<compile_context>
chip_gen: v6e
topology: v6e:2x2x1
jax: 0.10.0
libtpu: 0.0.40
codegen_flags: <defaults>
</compile_context>

<pallas_src>
import functools

import jax
import jax.numpy as jnp
import numpy as np
from jax import lax
from jax.experimental import pallas as pl
from jax.experimental.pallas import tpu as pltpu

# ----------------------------------------------------------------------------
# Shapes consistent with the module: x1, x2 are (B, N, H, W) with dim = H*W.
# ----------------------------------------------------------------------------
BATCH = 2
IN_CH = 16                     # CrossAttention in_channels  (N)
FEAT = 16                      # feature-map H = W
DIM = FEAT * FEAT              # CrossAttention dim = H*W = 256
NUM_HEADS = 8
HEAD_DIM = DIM // NUM_HEADS    # 32


# ----------------------------------------------------------------------------
# Fused Pallas kernel: conv_cat matmul + QKV + MHA + proj + residual
# ----------------------------------------------------------------------------
def _cross_attention_kernel(x1_ref, patches_ref, wc_ref, bc_ref, wq_ref,
                            wkv_ref, wp_ref, bp_ref, o_ref, *, num_heads):
    B, N, C = x1_ref.shape
    nh = num_heads
    hd = C // nh
    scale = hd ** -0.5

    # Weights are loaded once and stay VMEM/vreg-resident across the batch.
    wc = wc_ref[...]      # (N, 9*2N)   conv_cat weight (im2col layout)
    bc = bc_ref[...]      # (N, 1)      conv_cat bias
    wq = wq_ref[...]      # (C, C)      Wq^T
    wkv = wkv_ref[...]    # (C, 2C)     [Wk^T | Wv^T] stacked along N
    wp = wp_ref[...]      # (C, C)      Wproj^T
    bp = bp_ref[...]      # (1, C)      proj bias

    for b in range(B):    # static unroll; batch folded out of the grid
        x1 = x1_ref[b]                                                  # (N, C)

        # conv_cat: (N, 9*2N) @ (9*2N, C)  ->  lane-dense (N, C)
        xcat = jnp.dot(wc, patches_ref[b],
                       preferred_element_type=jnp.float32) + bc

        # projections (qkv_bias=False in the module)
        q = jnp.dot(x1, wq, preferred_element_type=jnp.float32)         # (N, C)
        kv = jnp.dot(xcat, wkv, preferred_element_type=jnp.float32)     # (N, 2C)
        k = kv[:, :C]
        v = kv[:, C:]

        # heads as a batch dim -> two batched dot_generals (no per-head loop)
        qh = jnp.transpose(q.reshape(N, nh, hd), (1, 0, 2))             # (nh,N,hd)
        kh = jnp.transpose(k.reshape(N, nh, hd), (1, 0, 2))
        vh = jnp.transpose(v.reshape(N, nh, hd), (1, 0, 2))

        s = jnp.einsum('hnd,hmd->hnm', qh, kh,
                       preferred_element_type=jnp.float32) * scale      # (nh,N,N)
        s = s - jnp.max(s, axis=-1, keepdims=True)
        e = jnp.exp(s)
        p = e / jnp.sum(e, axis=-1, keepdims=True)
        # attn_drop / proj_drop have p=0.0 -> identity (omitted)

        o = jnp.einsum('hnm,hmd->hnd', p, vh,
                       preferred_element_type=jnp.float32)              # (nh,N,hd)
        attn = jnp.transpose(o, (1, 0, 2)).reshape(N, C)                # (N, C)

        y = jnp.dot(attn, wp, preferred_element_type=jnp.float32) + bp
        o_ref[b] = y + x1                                               # residual


# ----------------------------------------------------------------------------
# Wrapper (layout glue outside the kernel; compute inside)
# ----------------------------------------------------------------------------
def _im2col_3x3(x):
    """(B, Cin, H, W) -> (B, 9*Cin, H*W) patches for a pad=1, 3x3 conv."""
    B, Cin, H, W = x.shape
    xp = jnp.pad(x, ((0, 0), (0, 0), (1, 1), (1, 1)))
    cols = [xp[:, :, kh:kh + H, kw:kw + W]
            for kh in range(3) for kw in range(3)]
    return jnp.stack(cols, axis=1).reshape(B, 9 * Cin, H * W)


def cross_attention_forward(x1, x2, params):
    """CrossAttention.forward — x1, x2: (B, N, H, W), dim = H*W."""
    B, N, H, W = x1.shape
    C = H * W

    # im2col of cat([x1, x2], dim=1): pure layout plumbing (XLA glue);
    # presents patches channels-first so the in-kernel conv matmul result is
    # already (N, C) with C on the lane axis.
    patches = _im2col_3x3(jnp.concatenate([x1, x2], axis=1))     # (B, 18N, C)
    x1f = x1.reshape(B, N, C)

    # weight re-layouts (done once per call, outside the kernel)
    wc = params['conv_w'].transpose(0, 2, 3, 1).reshape(N, 9 * 2 * N)
    bc = params['conv_b'].reshape(N, 1)
    wq_t = params['wq'].T
    wkv_t = jnp.concatenate([params['wk'].T, params['wv'].T], axis=1)   # (C, 2C)
    wp_t = params['wp'].T
    bp = params['bp'].reshape(1, C)

    vmem = functools.partial(pl.BlockSpec, memory_space=pltpu.MemorySpace.VMEM)
    out = pl.pallas_call(
        functools.partial(_cross_attention_kernel, num_heads=NUM_HEADS),
        out_shape=jax.ShapeDtypeStruct((B, N, C), jnp.float32),
        in_specs=[vmem() for _ in range(8)],     # whole arrays, VMEM-resident
        out_specs=vmem(),                        # lane-dense (last dim = C)
    )(x1f, patches, wc, bc, wq_t, wkv_t, wp_t, bp)
    return out.reshape(B, N, H, W)


# ----------------------------------------------------------------------------
# Pure-JAX reference (for correctness check)
# ----------------------------------------------------------------------------
def cross_attention_ref(x1, x2, params):
    B, N, H, W = x1.shape
    C = H * W
    hp = lax.Precision.HIGHEST
    xcat = lax.conv_general_dilated(
        jnp.concatenate([x1, x2], axis=1), params['conv_w'],
        window_strides=(1, 1), padding='SAME',
        dimension_numbers=('NCHW', 'OIHW', 'NCHW'), precision=hp)
    xcat = (xcat + params['conv_b'][None, :, None, None]).reshape(B, N, C)
    x1f = x1.reshape(B, N, C)
    q = jnp.dot(x1f, params['wq'].T, precision=hp)
    k = jnp.dot(xcat, params['wk'].T, precision=hp)
    v = jnp.dot(xcat, params['wv'].T, precision=hp)

    def split(t):
        return jnp.transpose(t.reshape(B, N, NUM_HEADS, HEAD_DIM), (0, 2, 1, 3))

    qh, kh, vh = split(q), split(k), split(v)
    s = jnp.einsum('bhnd,bhmd->bhnm', qh, kh, precision=hp) * (HEAD_DIM ** -0.5)
    p = jax.nn.softmax(s, axis=-1)
    o = jnp.einsum('bhnm,bhmd->bhnd', p, vh, precision=hp)
    o = jnp.transpose(o, (0, 2, 1, 3)).reshape(B, N, C)
    o = jnp.dot(o, params['wp'].T, precision=hp) + params['bp']
    return (o + x1f).reshape(B, N, H, W)


# ----------------------------------------------------------------------------
# Deterministic parameters (PyTorch layouts: Conv2d OIHW, Linear (out, in))
# ----------------------------------------------------------------------------
def init_params(key):
    ks = jax.random.split(key, 7)

    def nrm(k, shape, s=0.02):
        return s * jax.random.normal(k, shape, jnp.float32)

    return {
        'conv_w': nrm(ks[0], (IN_CH, 2 * IN_CH, 3, 3)),   # conv_cat weight
        'conv_b': nrm(ks[1], (IN_CH,)),                   # conv_cat bias
        'wq': nrm(ks[2], (DIM, DIM)),                     # wq (no bias)
        'wk': nrm(ks[3], (DIM, DIM)),                     # wk (no bias)
        'wv': nrm(ks[4], (DIM, DIM)),                     # wv (no bias)
        'wp': nrm(ks[5], (DIM, DIM)),                     # proj weight
        'bp': nrm(ks[6], (DIM,)),                         # proj bias
    }
    # NOTE: self.conv_chanl (Conv2d(96,16,1)) is defined in __init__ but never
    # used in CrossAttention.forward, so it is intentionally omitted.


# ----------------------------------------------------------------------------
# Main
# ----------------------------------------------------------------------------
if __name__ == "__main__":
    key = jax.random.PRNGKey(0)
    k1, k2, kp = jax.random.split(key, 3)
    x1 = jax.random.normal(k1, (BATCH, IN_CH, FEAT, FEAT), jnp.float32)
    x2 = jax.random.normal(k2, (BATCH, IN_CH, FEAT, FEAT), jnp.float32)
    params = init_params(kp)

    fwd = jax.jit(cross_attention_forward)
    out = fwd(x1, x2, params)
    jax.block_until_ready(out)

    assert out.shape == (BATCH, IN_CH, FEAT, FEAT)
    assert bool(jnp.all(jnp.isfinite(out)))

    ref = jax.jit(cross_attention_ref)(x1, x2, params)
    jax.block_until_ready(ref)
    max_err = float(jnp.max(jnp.abs(out - ref)))
    assert np.isfinite(max_err) and max_err < 2e-2, f"max |err| = {max_err}"

    print("KERNEL_OK")
</pallas_src>

<mosaic_0001>
module attributes {stable_mosaic.version = 11 : i64} {
  func.func @_cross_attention_kernel(%arg0: memref<2x16x256xf32, #tpu.memory_space<vmem>>, %arg1: memref<2x288x256xf32, #tpu.memory_space<vmem>>, %arg2: memref<16x288xf32, #tpu.memory_space<vmem>>, %arg3: memref<16x1xf32, #tpu.memory_space<vmem>>, %arg4: memref<256x256xf32, #tpu.memory_space<vmem>>, %arg5: memref<256x512xf32, #tpu.memory_space<vmem>>, %arg6: memref<256x256xf32, #tpu.memory_space<vmem>>, %arg7: memref<1x256xf32, #tpu.memory_space<vmem>>, %arg8: memref<2x16x256xf32, #tpu.memory_space<vmem>>) attributes {dimension_semantics = [], scalar_prefetch = 0 : i64, scratch_operands = 0 : i64, tpu.core_type = #tpu.core_type<tc>} {
    %c0 = arith.constant 0 : index
    %c0_0 = arith.constant 0 : index
    %0 = vector.load %arg2[%c0, %c0_0] : memref<16x288xf32, #tpu.memory_space<vmem>>, vector<16x288xf32>
    %c0_1 = arith.constant 0 : index
    %c0_2 = arith.constant 0 : index
    %1 = vector.load %arg3[%c0_1, %c0_2] : memref<16x1xf32, #tpu.memory_space<vmem>>, vector<16x1xf32>
    %c0_3 = arith.constant 0 : index
    %c0_4 = arith.constant 0 : index
    %2 = vector.load %arg4[%c0_3, %c0_4] : memref<256x256xf32, #tpu.memory_space<vmem>>, vector<256x256xf32>
    %c0_5 = arith.constant 0 : index
    %c0_6 = arith.constant 0 : index
    %3 = vector.load %arg5[%c0_5, %c0_6] : memref<256x512xf32, #tpu.memory_space<vmem>>, vector<256x512xf32>
    %c0_7 = arith.constant 0 : index
    %c0_8 = arith.constant 0 : index
    %4 = vector.load %arg6[%c0_7, %c0_8] : memref<256x256xf32, #tpu.memory_space<vmem>>, vector<256x256xf32>
    %c0_9 = arith.constant 0 : index
    %c0_10 = arith.constant 0 : index
    %5 = vector.load %arg7[%c0_9, %c0_10] : memref<1x256xf32, #tpu.memory_space<vmem>>, vector<1x256xf32>
    %c0_11 = arith.constant 0 : index
    %c0_12 = arith.constant 0 : index
    %c0_13 = arith.constant 0 : index
    %6 = vector.load %arg0[%c0_11, %c0_12, %c0_13] : memref<2x16x256xf32, #tpu.memory_space<vmem>>, vector<1x16x256xf32>
    %7 = vector.shape_cast %6 : vector<1x16x256xf32> to vector<16x256xf32>
    %c0_14 = arith.constant 0 : index
    %c0_15 = arith.constant 0 : index
    %c0_16 = arith.constant 0 : index
    %8 = vector.load %arg1[%c0_14, %c0_15, %c0_16] : memref<2x288x256xf32, #tpu.memory_space<vmem>>, vector<1x288x256xf32>
    %9 = vector.shape_cast %8 : vector<1x288x256xf32> to vector<288x256xf32>
    %cst = arith.constant dense<0.000000e+00> : vector<16x256xf32>
    %10 = tpu.matmul %0, %9, %cst {dimension_numbers = #tpu.dot_dimension_numbers<[1], [0], [0], [1], [0, 0, 1, 1], [], []>} : vector<16x288xf32>, vector<288x256xf32>, vector<16x256xf32> -> vector<16x256xf32>
    %11 = vector.broadcast %1 : vector<16x1xf32> to vector<16x256xf32>
    %12 = arith.addf %10, %11 : vector<16x256xf32>
    %cst_17 = arith.constant dense<0.000000e+00> : vector<16x256xf32>
    %13 = tpu.matmul %7, %2, %cst_17 {dimension_numbers = #tpu.dot_dimension_numbers<[1], [0], [0], [1], [0, 0, 1, 1], [], []>} : vector<16x256xf32>, vector<256x256xf32>, vector<16x256xf32> -> vector<16x256xf32>
    %cst_18 = arith.constant dense<0.000000e+00> : vector<16x512xf32>
    %14 = tpu.matmul %12, %3, %cst_18 {dimension_numbers = #tpu.dot_dimension_numbers<[1], [0], [0], [1], [0, 0, 1, 1], [], []>} : vector<16x256xf32>, vector<256x512xf32>, vector<16x512xf32> -> vector<16x512xf32>
    %15 = vector.extract_strided_slice %14 {offsets = [0, 0], sizes = [16, 256], strides = [1, 1]} : vector<16x512xf32> to vector<16x256xf32>
    %16 = vector.extract_strided_slice %14 {offsets = [0, 256], sizes = [16, 256], strides = [1, 1]} : vector<16x512xf32> to vector<16x256xf32>
    %17 = vector.shape_cast %13 : vector<16x256xf32> to vector<16x8x32xf32>
    %18 = tpu.transpose %17, [1, 0, 2] : vector<16x8x32xf32> -> vector<8x16x32xf32>
    %19 = vector.shape_cast %15 : vector<16x256xf32> to vector<16x8x32xf32>
    %20 = tpu.transpose %19, [1, 0, 2] : vector<16x8x32xf32> -> vector<8x16x32xf32>
    %21 = vector.shape_cast %16 : vector<16x256xf32> to vector<16x8x32xf32>
    %22 = tpu.transpose %21, [1, 0, 2] : vector<16x8x32xf32> -> vector<8x16x32xf32>
    "tpu.trace_start"() <{level = 10 : i32, message = "hnd,hmd->hnm"}> : () -> ()
    %cst_19 = arith.constant dense<0.000000e+00> : vector<8x16x16xf32>
    %23 = tpu.matmul %18, %20, %cst_19 {dimension_numbers = #tpu.dot_dimension_numbers<[2], [2], [1], [1], [0, 0, 0, 1, 1, 1], [0], [0]>} : vector<8x16x32xf32>, vector<8x16x32xf32>, vector<8x16x16xf32> -> vector<8x16x16xf32>
    "tpu.trace_stop"() : () -> ()
    %cst_20 = arith.constant 0.176776692 : f32
    %24 = vector.broadcast %cst_20 : f32 to vector<8x16x16xf32>
    %25 = arith.mulf %23, %24 : vector<8x16x16xf32>
    %cst_21 = arith.constant dense<0xFF800000> : vector<8x16xf32>
    %26 = vector.multi_reduction <maximumf>, %25, %cst_21 [2] : vector<8x16x16xf32> to vector<8x16xf32>
    %27 = vector.shape_cast %26 : vector<8x16xf32> to vector<8x16x1xf32>
    %28 = vector.broadcast %27 : vector<8x16x1xf32> to vector<8x16x16xf32>
    %29 = arith.subf %25, %28 : vector<8x16x16xf32>
    %30 = math.exp %29 : vector<8x16x16xf32>
    %cst_22 = arith.constant dense<0.000000e+00> : vector<8x16xf32>
    %31 = vector.multi_reduction <add>, %30, %cst_22 [2] : vector<8x16x16xf32> to vector<8x16xf32>
    %32 = vector.shape_cast %31 : vector<8x16xf32> to vector<8x16x1xf32>
    %33 = vector.broadcast %32 : vector<8x16x1xf32> to vector<8x16x16xf32>
    %34 = arith.divf %30, %33 : vector<8x16x16xf32>
    "tpu.trace_start"() <{level = 10 : i32, message = "hnm,hmd->hnd"}> : () -> ()
    %cst_23 = arith.constant dense<0.000000e+00> : vector<8x16x32xf32>
    %35 = tpu.matmul %34, %22, %cst_23 {dimension_numbers = #tpu.dot_dimension_numbers<[2], [1], [1], [2], [0, 0, 0, 1, 1, 2], [0], [0]>} : vector<8x16x16xf32>, vector<8x16x32xf32>, vector<8x16x32xf32> -> vector<8x16x32xf32>
    "tpu.trace_stop"() : () -> ()
    %36 = tpu.transpose %35, [1, 0, 2] : vector<8x16x32xf32> -> vector<16x8x32xf32>
    %37 = vector.shape_cast %36 : vector<16x8x32xf32> to vector<16x256xf32>
    %cst_24 = arith.constant dense<0.000000e+00> : vector<16x256xf32>
    %38 = tpu.matmul %37, %4, %cst_24 {dimension_numbers = #tpu.dot_dimension_numbers<[1], [0], [0], [1], [0, 0, 1, 1], [], []>} : vector<16x256xf32>, vector<256x256xf32>, vector<16x256xf32> -> vector<16x256xf32>
    %39 = vector.broadcast %5 : vector<1x256xf32> to vector<16x256xf32>
    %40 = arith.addf %38, %39 : vector<16x256xf32>
    %41 = arith.addf %40, %7 : vector<16x256xf32>
    %c0_25 = arith.constant 0 : index
    %c0_26 = arith.constant 0 : index
    %c0_27 = arith.constant 0 : index
    %42 = vector.load %arg8[%c0_25, %c0_26, %c0_27] : memref<2x16x256xf32, #tpu.memory_space<vmem>>, vector<1x16x256xf32>
    %43 = vector.shape_cast %42 : vector<1x16x256xf32> to vector<16x256xf32>
    %44 = vector.shape_cast %41 : vector<16x256xf32> to vector<1x16x256xf32>
    tpu.vector_store %arg8[%c0_25, %c0_26, %c0_27], %44 {strides = array<i32>} : memref<2x16x256xf32, #tpu.memory_space<vmem>>, vector<1x16x256xf32>,
    %c1 = arith.constant 1 : index
    %c0_28 = arith.constant 0 : index
    %c0_29 = arith.constant 0 : index
    %45 = vector.load %arg0[%c1, %c0_28, %c0_29] : memref<2x16x256xf32, #tpu.memory_space<vmem>>, vector<1x16x256xf32>
    %46 = vector.shape_cast %45 : vector<1x16x256xf32> to vector<16x256xf32>
    %c1_30 = arith.constant 1 : index
    %c0_31 = arith.constant 0 : index
    %c0_32 = arith.constant 0 : index
    %47 = vector.load %arg1[%c1_30, %c0_31, %c0_32] : memref<2x288x256xf32, #tpu.memory_space<vmem>>, vector<1x288x256xf32>
    %48 = vector.shape_cast %47 : vector<1x288x256xf32> to vector<288x256xf32>
    %cst_33 = arith.constant dense<0.000000e+00> : vector<16x256xf32>
    %49 = tpu.matmul %0, %48, %cst_33 {dimension_numbers = #tpu.dot_dimension_numbers<[1], [0], [0], [1], [0, 0, 1, 1], [], []>} : vector<16x288xf32>, vector<288x256xf32>, vector<16x256xf32> -> vector<16x256xf32>
    %50 = vector.broadcast %1 : vector<16x1xf32> to vector<16x256xf32>
    %51 = arith.addf %49, %50 : vector<16x256xf32>
    %cst_34 = arith.constant dense<0.000000e+00> : vector<16x256xf32>
    %52 = tpu.matmul %46, %2, %cst_34 {dimension_numbers = #tpu.dot_dimension_numbers<[1], [0], [0], [1], [0, 0, 1, 1], [], []>} : vector<16x256xf32>, vector<256x256xf32>, vector<16x256xf32> -> vector<16x256xf32>
    %cst_35 = arith.constant dense<0.000000e+00> : vector<16x512xf32>
    %53 = tpu.matmul %51, %3, %cst_35 {dimension_numbers = #tpu.dot_dimension_numbers<[1], [0], [0], [1], [0, 0, 1, 1], [], []>} : vector<16x256xf32>, vector<256x512xf32>, vector<16x512xf32> -> vector<16x512xf32>
    %54 = vector.extract_strided_slice %53 {offsets = [0, 0], sizes = [16, 256], strides = [1, 1]} : vector<16x512xf32> to vector<16x256xf32>
    %55 = vector.extract_strided_slice %53 {offsets = [0, 256], sizes = [16, 256], strides = [1, 1]} : vector<16x512xf32> to vector<16x256xf32>
    %56 = vector.shape_cast %52 : vector<16x256xf32> to vector<16x8x32xf32>
    %57 = tpu.transpose %56, [1, 0, 2] : vector<16x8x32xf32> -> vector<8x16x32xf32>
    %58 = vector.shape_cast %54 : vector<16x256xf32> to vector<16x8x32xf32>
    %59 = tpu.transpose %58, [1, 0, 2] : vector<16x8x32xf32> -> vector<8x16x32xf32>
    %60 = vector.shape_cast %55 : vector<16x256xf32> to vector<16x8x32xf32>
    %61 = tpu.transpose %60, [1, 0, 2] : vector<16x8x32xf32> -> vector<8x16x32xf32>
    "tpu.trace_start"() <{level = 10 : i32, message = "hnd,hmd->hnm"}> : () -> ()
    %cst_36 = arith.constant dense<0.000000e+00> : vector<8x16x16xf32>
    %62 = tpu.matmul %57, %59, %cst_36 {dimension_numbers = #tpu.dot_dimension_numbers<[2], [2], [1], [1], [0, 0, 0, 1, 1, 1], [0], [0]>} : vector<8x16x32xf32>, vector<8x16x32xf32>, vector<8x16x16xf32> -> vector<8x16x16xf32>
    "tpu.trace_stop"() : () -> ()
    %cst_37 = arith.constant 0.176776692 : f32
    %63 = vector.broadcast %cst_37 : f32 to vector<8x16x16xf32>
    %64 = arith.mulf %62, %63 : vector<8x16x16xf32>
    %cst_38 = arith.constant dense<0xFF800000> : vector<8x16xf32>
    %65 = vector.multi_reduction <maximumf>, %64, %cst_38 [2] : vector<8x16x16xf32> to vector<8x16xf32>
    %66 = vector.shape_cast %65 : vector<8x16xf32> to vector<8x16x1xf32>
    %67 = vector.broadcast %66 : vector<8x16x1xf32> to vector<8x16x16xf32>
    %68 = arith.subf %64, %67 : vector<8x16x16xf32>
    %69 = math.exp %68 : vector<8x16x16xf32>
    %cst_39 = arith.constant dense<0.000000e+00> : vector<8x16xf32>
    %70 = vector.multi_reduction <add>, %69, %cst_39 [2] : vector<8x16x16xf32> to vector<8x16xf32>
    %71 = vector.shape_cast %70 : vector<8x16xf32> to vector<8x16x1xf32>
    %72 = vector.broadcast %71 : vector<8x16x1xf32> to vector<8x16x16xf32>
    %73 = arith.divf %69, %72 : vector<8x16x16xf32>
    "tpu.trace_start"() <{level = 10 : i32, message = "hnm,hmd->hnd"}> : () -> ()
    %cst_40 = arith.constant dense<0.000000e+00> : vector<8x16x32xf32>
    %74 = tpu.matmul %73, %61, %cst_40 {dimension_numbers = #tpu.dot_dimension_numbers<[2], [1], [1], [2], [0, 0, 0, 1, 1, 2], [0], [0]>} : vector<8x16x16xf32>, vector<8x16x32xf32>, vector<8x16x32xf32> -> vector<8x16x32xf32>
    "tpu.trace_stop"() : () -> ()
    %75 = tpu.transpose %74, [1, 0, 2] : vector<8x16x32xf32> -> vector<16x8x32xf32>
    %76 = vector.shape_cast %75 : vector<16x8x32xf32> to vector<16x256xf32>
    %cst_41 = arith.constant dense<0.000000e+00> : vector<16x256xf32>
    %77 = tpu.matmul %76, %4, %cst_41 {dimension_numbers = #tpu.dot_dimension_numbers<[1], [0], [0], [1], [0, 0, 1, 1], [], []>} : vector<16x256xf32>, vector<256x256xf32>, vector<16x256xf32> -> vector<16x256xf32>
    %78 = vector.broadcast %5 : vector<1x256xf32> to vector<16x256xf32>
    %79 = arith.addf %77, %78 : vector<16x256xf32>
    %80 = arith.addf %79, %46 : vector<16x256xf32>
    %c1_42 = arith.constant 1 : index
    %c0_43 = arith.constant 0 : index
    %c0_44 = arith.constant 0 : index
    %81 = vector.load %arg8[%c1_42, %c0_43, %c0_44] : memref<2x16x256xf32, #tpu.memory_space<vmem>>, vector<1x16x256xf32>
    %82 = vector.shape_cast %81 : vector<1x16x256xf32> to vector<16x256xf32>
    %83 = vector.shape_cast %80 : vector<16x256xf32> to vector<1x16x256xf32>
    tpu.vector_store %arg8[%c1_42, %c0_43, %c0_44], %83 {strides = array<i32>} : memref<2x16x256xf32, #tpu.memory_space<vmem>>, vector<1x16x256xf32>,
    return
  }
}

</mosaic_0001>

<llo_original>
// kernel: cross_attention_forward.1
$region0: #{cross_attention_forward.1}
  #allocation0 [shape = 'u32[]', space=smem, size = 0x4, offset = 0x4, fixed_abs, tag = 'smem constant byte address 0x4 - core index']
  #allocation1 [shape = 'u32[144,128]{1,0:T(1,128)}', space=vmem, size = 0x12000, scoped, tag = 'internal scratch']
  %s0 = inlined_call_operand.vmem [shape: f32[2,16,256], index: 0, kind: input, shape index: {}]
  %s1 = inlined_call_operand.vmem [shape: f32[2,288,256], index: 1, kind: input, shape index: {}]
  %s2 = inlined_call_operand.vmem [shape: f32[16,288], index: 2, kind: input, shape index: {}]
  %s3 = inlined_call_operand.vmem [shape: f32[16,1], index: 3, kind: input, shape index: {}]
  %s4 = inlined_call_operand.vmem [shape: f32[256,256], index: 4, kind: input, shape index: {}]
  %s5 = inlined_call_operand.vmem [shape: f32[256,512], index: 5, kind: input, shape index: {}]
  %s6 = inlined_call_operand.vmem [shape: f32[256,256], index: 6, kind: input, shape index: {}]
  %s7 = inlined_call_operand.vmem [shape: f32[1,256], index: 7, kind: input, shape index: {}]
  %s8 = inlined_call_operand.vmem [shape: f32[2,16,256], index: 8, kind: output, shape index: {}]
  %s9 = sld [smem:[#allocation0]]
  $region42: #{cross_attention_forward.1} parent=0
    _
  %s11 = ssub.s32 1, %s9
  %s12 = scalar_select 0, %s11, %s9
  // Predicated region
  $region2: #{cross_attention_forward.1} parent=0 // pred_check
    _
  $region3: #{cross_attention_forward.1} parent=0 // pred_check_branch
    %14 = sbr.rel (0) target = $region5
  $region4: #{cross_attention_forward.1} parent=0 // pred_region
    _
  $region5: #{cross_attention_forward.1} parent=0 // pred_fallthru
    _
  // Predicated region
  $region6: #{cross_attention_forward.1} parent=0 // pred_check
    _
  $region7: #{cross_attention_forward.1} parent=0 // pred_check_branch
    %16 = sbr.rel (0) target = $region9
  $region8: #{cross_attention_forward.1} parent=0 // pred_region
    _
  $region9: #{cross_attention_forward.1} parent=0 // pred_fallthru
    _
  // Predicated region
  $region10: #{cross_attention_forward.1} parent=0 // pred_check
    _
  $region11: #{cross_attention_forward.1} parent=0 // pred_check_branch
    %18 = sbr.rel (0) target = $region13
  $region12: #{cross_attention_forward.1} parent=0 // pred_region
    _
  $region13: #{cross_attention_forward.1} parent=0 // pred_fallthru
    _
  // Predicated region
  $region14: #{cross_attention_forward.1} parent=0 // pred_check
    _
  $region15: #{cross_attention_forward.1} parent=0 // pred_check_branch
    %20 = sbr.rel (0) target = $region17
  $region16: #{cross_attention_forward.1} parent=0 // pred_region
    _
  $region17: #{cross_attention_forward.1} parent=0 // pred_fallthru
    _
  // Predicated region
  $region18: #{cross_attention_forward.1} parent=0 // pred_check
    _
  $region19: #{cross_attention_forward.1} parent=0 // pred_check_branch
    %22 = sbr.rel (0) target = $region21
  $region20: #{cross_attention_forward.1} parent=0 // pred_region
    _
  $region21: #{cross_attention_forward.1} parent=0 // pred_fallthru
    _
  // Predicated region
  $region22: #{cross_attention_forward.1} parent=0 // pred_check
    _
  $region23: #{cross_attention_forward.1} parent=0 // pred_check_branch
    %24 = sbr.rel (0) target = $region25
  $region24: #{cross_attention_forward.1} parent=0 // pred_region
    _
  $region25: #{cross_attention_forward.1} parent=0 // pred_fallthru
    _
  // Predicated region
  $region26: #{cross_attention_forward.1} parent=0 // pred_check
    _
  $region27: #{cross_attention_forward.1} parent=0 // pred_check_branch
    %26 = sbr.rel (0) target = $region29
  $region28: #{cross_attention_forward.1} parent=0 // pred_region
    _
  $region29: #{cross_attention_forward.1} parent=0 // pred_fallthru
    _
  // Predicated region
  $region30: #{cross_attention_forward.1} parent=0 // pred_check
    _
  $region31: #{cross_attention_forward.1} parent=0 // pred_check_branch
    %28 = sbr.rel (0) target = $region33
  $region32: #{cross_attention_forward.1} parent=0 // pred_region
    _
  $region33: #{cross_attention_forward.1} parent=0 // pred_fallthru
    _
  %v29 = vld [vmem:[%s2] sm:$0xff]
  %v30 = vld [vmem:[%s2 + $0x8] sm:$0xff]
  %v31 = vld [vmem:[%s2 + $0x10] sm:$0xff]
  %v32 = vld [vmem:[%s2 + $0x18] sm:$0xff]
  %v33 = vld [vmem:[%s2 + $0x20] sm:$0xff]
  %v34 = vld [vmem:[%s2 + $0x28] sm:$0xff]
  %v35 = vld [vmem:[%s3] sm:$0xff]
  %v36 = vld [vmem:[%s3 + $0x8] sm:$0xff]
  %v37 = vld [vmem:[%s4] sm:$0xff]
  %v38 = vld [vmem:[%s4 + $0x8] sm:$0xff]
  %v39 = vld [vmem:[%s4 + $0x10] sm:$0xff]
  %v40 = vld [vmem:[%s4 + $0x18] sm:$0xff]
  %v41 = vld [vmem:[%s4 + $0x20] sm:$0xff]
  %v42 = vld [vmem:[%s4 + $0x28] sm:$0xff]
  %v43 = vld [vmem:[%s4 + $0x30] sm:$0xff]
  %v44 = vld [vmem:[%s4 + $0x38] sm:$0xff]
  %v45 = vld [vmem:[%s4 + $0x40] sm:$0xff]
  %v46 = vld [vmem:[%s4 + $0x48] sm:$0xff]
  %v47 = vld [vmem:[%s4 + $0x50] sm:$0xff]
  %v48 = vld [vmem:[%s4 + $0x58] sm:$0xff]
  %v49 = vld [vmem:[%s4 + $0x60] sm:$0xff]
  %v50 = vld [vmem:[%s4 + $0x68] sm:$0xff]
  %v51 = vld [vmem:[%s4 + $0x70] sm:$0xff]
  %v52 = vld [vmem:[%s4 + $0x78] sm:$0xff]
  %v53 = vld [vmem:[%s4 + $0x80] sm:$0xff]
  %v54 = vld [vmem:[%s4 + $0x88] sm:$0xff]
  %v55 = vld [vmem:[%s4 + $0x90] sm:$0xff]
  %v56 = vld [vmem:[%s4 + $0x98] sm:$0xff]
  %v57 = vld [vmem:[%s4 + $0xa0] sm:$0xff]
  %v58 = vld [vmem:[%s4 + $0xa8] sm:$0xff]
  %v59 = vld [vmem:[%s4 + $0xb0] sm:$0xff]
  %v60 = vld [vmem:[%s4 + $0xb8] sm:$0xff]
  %v61 = vld [vmem:[%s4 + $0xc0] sm:$0xff]
  %v62 = vld [vmem:[%s4 + $0xc8] sm:$0xff]
  %v63 = vld [vmem:[%s4 + $0xd0] sm:$0xff]
  %v64 = vld [vmem:[%s4 + $0xd8] sm:$0xff]
  %v65 = vld [vmem:[%s4 + $0xe0] sm:$0xff]
  %v66 = vld [vmem:[%s4 + $0xe8] sm:$0xff]
  %v67 = vld [vmem:[%s4 + $0xf0] sm:$0xff]
  %v68 = vld [vmem:[%s4 + $0xf8] sm:$0xff]
  %v69 = vld [vmem:[%s4 + $0x100] sm:$0xff]
  %v70 = vld [vmem:[%s4 + $0x108] sm:$0xff]
  %v71 = vld [vmem:[%s4 + $0x110] sm:$0xff]
  %v72 = vld [vmem:[%s4 + $0x118] sm:$0xff]
  %v73 = vld [vmem:[%s4 + $0x120] sm:$0xff]
  %v74 = vld [vmem:[%s4 + $0x128] sm:$0xff]
  %v75 = vld [vmem:[%s4 + $0x130] sm:$0xff]
  %v76 = vld [vmem:[%s4 + $0x138] sm:$0xff]
  %v77 = vld [vmem:[%s4 + $0x140] sm:$0xff]
  %v78 = vld [vmem:[%s4 + $0x148] sm:$0xff]
  %v79 = vld [vmem:[%s4 + $0x150] sm:$0xff]
  %v80 = vld [vmem:[%s4 + $0x158] sm:$0xff]
  %v81 = vld [vmem:[%s4 + $0x160] sm:$0xff]
  %v82 = vld [vmem:[%s4 + $0x168] sm:$0xff]
  %v83 = vld [vmem:[%s4 + $0x170] sm:$0xff]
  %v84 = vld [vmem:[%s4 + $0x178] sm:$0xff]
  %v85 = vld [vmem:[%s4 + $0x180] sm:$0xff]
  %v86 = vld [vmem:[%s4 + $0x188] sm:$0xff]
  %v87 = vld [vmem:[%s4 + $0x190] sm:$0xff]
  %v88 = vld [vmem:[%s4 + $0x198] sm:$0xff]
  %v89 = vld [vmem:[%s4 + $0x1a0] sm:$0xff]
  %v90 = vld [vmem:[%s4 + $0x1a8] sm:$0xff]
  %v91 = vld [vmem:[%s4 + $0x1b0] sm:$0xff]
  %v92 = vld [vmem:[%s4 + $0x1b8] sm:$0xff]
  %v93 = vld [vmem:[%s4 + $0x1c0] sm:$0xff]
  %v94 = vld [vmem:[%s4 + $0x1c8] sm:$0xff]
  %v95 = vld [vmem:[%s4 + $0x1d0] sm:$0xff]
  %v96 = vld [vmem:[%s4 + $0x1d8] sm:$0xff]
  %v97 = vld [vmem:[%s4 + $0x1e0] sm:$0xff]
  %v98 = vld [vmem:[%s4 + $0x1e8] sm:$0xff]
  %v99 = vld [vmem:[%s4 + $0x1f0] sm:$0xff]
  %v100 = vld [vmem:[%s4 + $0x1f8] sm:$0xff]
  %v101 = vld [vmem:[%s5] sm:$0xff]
  %v102 = vld [vmem:[%s5 + $0x8] sm:$0xff]
  %v103 = vld [vmem:[%s5 + $0x10] sm:$0xff]
  %v104 = vld [vmem:[%s5 + $0x18] sm:$0xff]
  %v105 = vld [vmem:[%s5 + $0x20] sm:$0xff]
  %v106 = vld [vmem:[%s5 + $0x28] sm:$0xff]
  %v107 = vld [vmem:[%s5 + $0x30] sm:$0xff]
  %v108 = vld [vmem:[%s5 + $0x38] sm:$0xff]
  %v109 = vld [vmem:[%s5 + $0x40] sm:$0xff]
  %v110 = vld [vmem:[%s5 + $0x48] sm:$0xff]
  %v111 = vld [vmem:[%s5 + $0x50] sm:$0xff]
  %v112 = vld [vmem:[%s5 + $0x58] sm:$0xff]
  %v113 = vld [vmem:[%s5 + $0x60] sm:$0xff]
  %v114 = vld [vmem:[%s5 + $0x68] sm:$0xff]
  %v115 = vld [vmem:[%s5 + $0x70] sm:$0xff]
  %v116 = vld [vmem:[%s5 + $0x78] sm:$0xff]
  %v117 = vld [vmem:[%s5 + $0x80] sm:$0xff]
  %v118 = vld [vmem:[%s5 + $0x88] sm:$0xff]
  %v119 = vld [vmem:[%s5 + $0x90] sm:$0xff]
  %v120 = vld [vmem:[%s5 + $0x98] sm:$0xff]
  %v121 = vld [vmem:[%s5 + $0xa0] sm:$0xff]
  %v122 = vld [vmem:[%s5 + $0xa8] sm:$0xff]
  %v123 = vld [vmem:[%s5 + $0xb0] sm:$0xff]
  %v124 = vld [vmem:[%s5 + $0xb8] sm:$0xff]
  %v125 = vld [vmem:[%s5 + $0xc0] sm:$0xff]
  %v126 = vld [vmem:[%s5 + $0xc8] sm:$0xff]
  %v127 = vld [vmem:[%s5 + $0xd0] sm:$0xff]
  %v128 = vld [vmem:[%s5 + $0xd8] sm:$0xff]
  %v129 = vld [vmem:[%s5 + $0xe0] sm:$0xff]
  %v130 = vld [vmem:[%s5 + $0xe8] sm:$0xff]
  %v131 = vld [vmem:[%s5 + $0xf0] sm:$0xff]
  %v132 = vld [vmem:[%s5 + $0xf8] sm:$0xff]
  %v133 = vld [vmem:[%s5 + $0x100] sm:$0xff]
  %v134 = vld [vmem:[%s5 + $0x108] sm:$0xff]
  %v135 = vld [vmem:[%s5 + $0x110] sm:$0xff]
  %v136 = vld [vmem:[%s5 + $0x118] sm:$0xff]
  %v137 = vld [vmem:[%s5 + $0x120] sm:$0xff]
  %v138 = vld [vmem:[%s5 + $0x128] sm:$0xff]
  %v139 = vld [vmem:[%s5 + $0x130] sm:$0xff]
  %v140 = vld [vmem:[%s5 + $0x138] sm:$0xff]
  %v141 = vld [vmem:[%s5 + $0x140] sm:$0xff]
  %v142 = vld [vmem:[%s5 + $0x148] sm:$0xff]
  %v143 = vld [vmem:[%s5 + $0x150] sm:$0xff]
  %v144 = vld [vmem:[%s5 + $0x158] sm:$0xff]
  %v145 = vld [vmem:[%s5 + $0x160] sm:$0xff]
  %v146 = vld [vmem:[%s5 + $0x168] sm:$0xff]
  %v147 = vld [vmem:[%s5 + $0x170] sm:$0xff]
  %v148 = vld [vmem:[%s5 + $0x178] sm:$0xff]
  %v149 = vld [vmem:[%s5 + $0x180] sm:$0xff]
  %v150 = vld [vmem:[%s5 + $0x188] sm:$0xff]
  %v151 = vld [vmem:[%s5 + $0x190] sm:$0xff]
  %v152 = vld [vmem:[%s5 + $0x198] sm:$0xff]
  %v153 = vld [vmem:[%s5 + $0x1a0] sm:$0xff]
  %v154 = vld [vmem:[%s5 + $0x1a8] sm:$0xff]
  %v155 = vld [vmem:[%s5 + $0x1b0] sm:$0xff]
  %v156 = vld [vmem:[%s5 + $0x1b8] sm:$0xff]
  %v157 = vld [vmem:[%s5 + $0x1c0] sm:$0xff]
  %v158 = vld [vmem:[%s5 + $0x1c8] sm:$0xff]
  %v159 = vld [vmem:[%s5 + $0x1d0] sm:$0xff]
  %v160 = vld [vmem:[%s5 + $0x1d8] sm:$0xff]
  %v161 = vld [vmem:[%s5 + $0x1e0] sm:$0xff]
  %v162 = vld [vmem:[%s5 + $0x1e8] sm:$0xff]
  %v163 = vld [vmem:[%s5 + $0x1f0] sm:$0xff]
  %v164 = vld [vmem:[%s5 + $0x1f8] sm:$0xff]
  %v165 = vld [vmem:[%s5 + $0x200] sm:$0xff]
  %v166 = vld [vmem:[%s5 + $0x208] sm:$0xff]
  %v167 = vld [vmem:[%s5 + $0x210] sm:$0xff]
  %v168 = vld [vmem:[%s5 + $0x218] sm:$0xff]
  %v169 = vld [vmem:[%s5 + $0x220] sm:$0xff]
  %v170 = vld [vmem:[%s5 + $0x228] sm:$0xff]
  %v171 = vld [vmem:[%s5 + $0x230] sm:$0xff]
  %v172 = vld [vmem:[%s5 + $0x238] sm:$0xff]
  %v173 = vld [vmem:[%s5 + $0x240] sm:$0xff]
  %v174 = vld [vmem:[%s5 + $0x248] sm:$0xff]
  %v175 = vld [vmem:[%s5 + $0x250] sm:$0xff]
  %v176 = vld [vmem:[%s5 + $0x258] sm:$0xff]
  %v177 = vld [vmem:[%s5 + $0x260] sm:$0xff]
  %v178 = vld [vmem:[%s5 + $0x268] sm:$0xff]
  %v179 = vld [vmem:[%s5 + $0x270] sm:$0xff]
  %v180 = vld [vmem:[%s5 + $0x278] sm:$0xff]
  %v181 = vld [vmem:[%s5 + $0x280] sm:$0xff]
  %v182 = vld [vmem:[%s5 + $0x288] sm:$0xff]
  %v183 = vld [vmem:[%s5 + $0x290] sm:$0xff]
  %v184 = vld [vmem:[%s5 + $0x298] sm:$0xff]
  %v185 = vld [vmem:[%s5 + $0x2a0] sm:$0xff]
  %v186 = vld [vmem:[%s5 + $0x2a8] sm:$0xff]
  %v187 = vld [vmem:[%s5 + $0x2b0] sm:$0xff]
  %v188 = vld [vmem:[%s5 + $0x2b8] sm:$0xff]
  %v189 = vld [vmem:[%s5 + $0x2c0] sm:$0xff]
  %v190 = vld [vmem:[%s5 + $0x2c8] sm:$0xff]
  %v191 = vld [vmem:[%s5 + $0x2d0] sm:$0xff]
  %v192 = vld [vmem:[%s5 + $0x2d8] sm:$0xff]
  %v193 = vld [vmem:[%s5 + $0x2e0] sm:$0xff]
  %v194 = vld [vmem:[%s5 + $0x2e8] sm:$0xff]
  %v195 = vld [vmem:[%s5 + $0x2f0] sm:$0xff]
  %v196 = vld [vmem:[%s5 + $0x2f8] sm:$0xff]
  %v197 = vld [vmem:[%s5 + $0x300] sm:$0xff]
  %v198 = vld [vmem:[%s5 + $0x308] sm:$0xff]
  %v199 = vld [vmem:[%s5 + $0x310] sm:$0xff]
  %v200 = vld [vmem:[%s5 + $0x318] sm:$0xff]
  %v201 = vld [vmem:[%s5 + $0x320] sm:$0xff]
  %v202 = vld [vmem:[%s5 + $0x328] sm:$0xff]
  %v203 = vld [vmem:[%s5 + $0x330] sm:$0xff]
  %v204 = vld [vmem:[%s5 + $0x338] sm:$0xff]
  %v205 = vld [vmem:[%s5 + $0x340] sm:$0xff]
  %v206 = vld [vmem:[%s5 + $0x348] sm:$0xff]
  %v207 = vld [vmem:[%s5 + $0x350] sm:$0xff]
  %v208 = vld [vmem:[%s5 + $0x358] sm:$0xff]
  %v209 = vld [vmem:[%s5 + $0x360] sm:$0xff]
  %v210 = vld [vmem:[%s5 + $0x368] sm:$0xff]
  %v211 = vld [vmem:[%s5 + $0x370] sm:$0xff]
  %v212 = vld [vmem:[%s5 + $0x378] sm:$0xff]
  %v213 = vld [vmem:[%s5 + $0x380] sm:$0xff]
  %v214 = vld [vmem:[%s5 + $0x388] sm:$0xff]
  %v215 = vld [vmem:[%s5 + $0x390] sm:$0xff]
  %v216 = vld [vmem:[%s5 + $0x398] sm:$0xff]
  %v217 = vld [vmem:[%s5 + $0x3a0] sm:$0xff]
  %v218 = vld [vmem:[%s5 + $0x3a8] sm:$0xff]
  %v219 = vld [vmem:[%s5 + $0x3b0] sm:$0xff]
  %v220 = vld [vmem:[%s5 + $0x3b8] sm:$0xff]
  %v221 = vld [vmem:[%s5 + $0x3c0] sm:$0xff]
  %v222 = vld [vmem:[%s5 + $0x3c8] sm:$0xff]
  %v223 = vld [vmem:[%s5 + $0x3d0] sm:$0xff]
  %v224 = vld [vmem:[%s5 + $0x3d8] sm:$0xff]
  %v225 = vld [vmem:[%s5 + $0x3e0] sm:$0xff]
  %v226 = vld [vmem:[%s5 + $0x3e8] sm:$0xff]
  %v227 = vld [vmem:[%s5 + $0x3f0] sm:$0xff]
  %v228 = vld [vmem:[%s5 + $0x3f8] sm:$0xff]
  %v229 = vld [vmem:[%s6] sm:$0xff]
  %v230 = vld [vmem:[%s6 + $0x8] sm:$0xff]
  %v231 = vld [vmem:[%s6 + $0x10] sm:$0xff]
  %v232 = vld [vmem:[%s6 + $0x18] sm:$0xff]
  %v233 = vld [vmem:[%s6 + $0x20] sm:$0xff]
  %v234 = vld [vmem:[%s6 + $0x28] sm:$0xff]
  %v235 = vld [vmem:[%s6 + $0x30] sm:$0xff]
  %v236 = vld [vmem:[%s6 + $0x38] sm:$0xff]
  %v237 = vld [vmem:[%s6 + $0x40] sm:$0xff]
  %v238 = vld [vmem:[%s6 + $0x48] sm:$0xff]
  %v239 = vld [vmem:[%s6 + $0x50] sm:$0xff]
  %v240 = vld [vmem:[%s6 + $0x58] sm:$0xff]
  %v241 = vld [vmem:[%s6 + $0x60] sm:$0xff]
  %v242 = vld [vmem:[%s6 + $0x68] sm:$0xff]
  %v243 = vld [vmem:[%s6 + $0x70] sm:$0xff]
  %v244 = vld [vmem:[%s6 + $0x78] sm:$0xff]
  %v245 = vld [vmem:[%s6 + $0x80] sm:$0xff]
  %v246 = vld [vmem:[%s6 + $0x88] sm:$0xff]
  %v247 = vld [vmem:[%s6 + $0x90] sm:$0xff]
  %v248 = vld [vmem:[%s6 + $0x98] sm:$0xff]
  %v249 = vld [vmem:[%s6 + $0xa0] sm:$0xff]
  %v250 = vld [vmem:[%s6 + $0xa8] sm:$0xff]
  %v251 = vld [vmem:[%s6 + $0xb0] sm:$0xff]
  %v252 = vld [vmem:[%s6 + $0xb8] sm:$0xff]
  %v253 = vld [vmem:[%s6 + $0xc0] sm:$0xff]
  %v254 = vld [vmem:[%s6 + $0xc8] sm:$0xff]
  %v255 = vld [vmem:[%s6 + $0xd0] sm:$0xff]
  %v256 = vld [vmem:[%s6 + $0xd8] sm:$0xff]
  %v257 = vld [vmem:[%s6 + $0xe0] sm:$0xff]
  %v258 = vld [vmem:[%s6 + $0xe8] sm:$0xff]
  %v259 = vld [vmem:[%s6 + $0xf0] sm:$0xff]
  %v260 = vld [vmem:[%s6 + $0xf8] sm:$0xff]
  %v261 = vld [vmem:[%s6 + $0x100] sm:$0xff]
  %v262 = vld [vmem:[%s6 + $0x108] sm:$0xff]
  %v263 = vld [vmem:[%s6 + $0x110] sm:$0xff]
  %v264 = vld [vmem:[%s6 + $0x118] sm:$0xff]
  %v265 = vld [vmem:[%s6 + $0x120] sm:$0xff]
  %v266 = vld [vmem:[%s6 + $0x128] sm:$0xff]
  %v267 = vld [vmem:[%s6 + $0x130] sm:$0xff]
  %v268 = vld [vmem:[%s6 + $0x138] sm:$0xff]
  %v269 = vld [vmem:[%s6 + $0x140] sm:$0xff]
  %v270 = vld [vmem:[%s6 + $0x148] sm:$0xff]
  %v271 = vld [vmem:[%s6 + $0x150] sm:$0xff]
  %v272 = vld [vmem:[%s6 + $0x158] sm:$0xff]
  %v273 = vld [vmem:[%s6 + $0x160] sm:$0xff]
  %v274 = vld [vmem:[%s6 + $0x168] sm:$0xff]
  %v275 = vld [vmem:[%s6 + $0x170] sm:$0xff]
  %v276 = vld [vmem:[%s6 + $0x178] sm:$0xff]
  %v277 = vld [vmem:[%s6 + $0x180] sm:$0xff]
  %v278 = vld [vmem:[%s6 + $0x188] sm:$0xff]
  %v279 = vld [vmem:[%s6 + $0x190] sm:$0xff]
  %v280 = vld [vmem:[%s6 + $0x198] sm:$0xff]
  %v281 = vld [vmem:[%s6 + $0x1a0] sm:$0xff]
  %v282 = vld [vmem:[%s6 + $0x1a8] sm:$0xff]
  %v283 = vld [vmem:[%s6 + $0x1b0] sm:$0xff]
  %v284 = vld [vmem:[%s6 + $0x1b8] sm:$0xff]
  %v285 = vld [vmem:[%s6 + $0x1c0] sm:$0xff]
  %v286 = vld [vmem:[%s6 + $0x1c8] sm:$0xff]
  %v287 = vld [vmem:[%s6 + $0x1d0] sm:$0xff]
  %v288 = vld [vmem:[%s6 + $0x1d8] sm:$0xff]
  %v289 = vld [vmem:[%s6 + $0x1e0] sm:$0xff]
  %v290 = vld [vmem:[%s6 + $0x1e8] sm:$0xff]
  %v291 = vld [vmem:[%s6 + $0x1f0] sm:$0xff]
  %v292 = vld [vmem:[%s6 + $0x1f8] sm:$0xff]
  %v293 = vld [vmem:[%s7] sm:$0x3]
  %v294 = vld [vmem:[%s0] sm:$0xff]
  %v295 = vld [vmem:[%s0 + $0x8] sm:$0xff]
  %v296 = vld [vmem:[%s0 + $0x10] sm:$0xff]
  %v297 = vld [vmem:[%s0 + $0x18] sm:$0xff]
  %v298 = vld [vmem:[%s1] sm:$0xff]
  %v299 = vld [vmem:[%s1 + $0x8] sm:$0xff]
  %v300 = vld [vmem:[%s1 + $0x10] sm:$0xff]
  %v301 = vld [vmem:[%s1 + $0x18] sm:$0xff]
  %v302 = vld [vmem:[%s1 + $0x20] sm:$0xff]
  %v303 = vld [vmem:[%s1 + $0x28] sm:$0xff]
  %v304 = vld [vmem:[%s1 + $0x30] sm:$0xff]
  %v305 = vld [vmem:[%s1 + $0x38] sm:$0xff]
  %v306 = vld [vmem:[%s1 + $0x40] sm:$0xff]
  %v307 = vld [vmem:[%s1 + $0x48] sm:$0xff]
  %v308 = vld [vmem:[%s1 + $0x50] sm:$0xff]
  %v309 = vld [vmem:[%s1 + $0x58] sm:$0xff]
  %v310 = vld [vmem:[%s1 + $0x60] sm:$0xff]
  %v311 = vld [vmem:[%s1 + $0x68] sm:$0xff]
  %v312 = vld [vmem:[%s1 + $0x70] sm:$0xff]
  %v313 = vld [vmem:[%s1 + $0x78] sm:$0xff]
  %v314 = vld [vmem:[%s1 + $0x80] sm:$0xff]
  %v315 = vld [vmem:[%s1 + $0x88] sm:$0xff]
  %v316 = vld [vmem:[%s1 + $0x90] sm:$0xff]
  %v317 = vld [vmem:[%s1 + $0x98] sm:$0xff]
  %v318 = vld [vmem:[%s1 + $0xa0] sm:$0xff]
  %v319 = vld [vmem:[%s1 + $0xa8] sm:$0xff]
  %v320 = vld [vmem:[%s1 + $0xb0] sm:$0xff]
  %v321 = vld [vmem:[%s1 + $0xb8] sm:$0xff]
  %v322 = vld [vmem:[%s1 + $0xc0] sm:$0xff]
  %v323 = vld [vmem:[%s1 + $0xc8] sm:$0xff]
  %v324 = vld [vmem:[%s1 + $0xd0] sm:$0xff]
  %v325 = vld [vmem:[%s1 + $0xd8] sm:$0xff]
  %v326 = vld [vmem:[%s1 + $0xe0] sm:$0xff]
  %v327 = vld [vmem:[%s1 + $0xe8] sm:$0xff]
  %v328 = vld [vmem:[%s1 + $0xf0] sm:$0xff]
  %v329 = vld [vmem:[%s1 + $0xf8] sm:$0xff]
  %v330 = vld [vmem:[%s1 + $0x100] sm:$0xff]
  %v331 = vld [vmem:[%s1 + $0x108] sm:$0xff]
  %v332 = vld [vmem:[%s1 + $0x110] sm:$0xff]
  %v333 = vld [vmem:[%s1 + $0x118] sm:$0xff]
  %v334 = vld [vmem:[%s1 + $0x120] sm:$0xff]
  %v335 = vld [vmem:[%s1 + $0x128] sm:$0xff]
  %v336 = vld [vmem:[%s1 + $0x130] sm:$0xff]
  %v337 = vld [vmem:[%s1 + $0x138] sm:$0xff]
  %v338 = vld [vmem:[%s1 + $0x140] sm:$0xff]
  %v339 = vld [vmem:[%s1 + $0x148] sm:$0xff]
  %v340 = vld [vmem:[%s1 + $0x150] sm:$0xff]
  %v341 = vld [vmem:[%s1 + $0x158] sm:$0xff]
  %v342 = vld [vmem:[%s1 + $0x160] sm:$0xff]
  %v343 = vld [vmem:[%s1 + $0x168] sm:$0xff]
  %v344 = vld [vmem:[%s1 + $0x170] sm:$0xff]
  %v345 = vld [vmem:[%s1 + $0x178] sm:$0xff]
  %v346 = vld [vmem:[%s1 + $0x180] sm:$0xff]
  %v347 = vld [vmem:[%s1 + $0x188] sm:$0xff]
  %v348 = vld [vmem:[%s1 + $0x190] sm:$0xff]
  %v349 = vld [vmem:[%s1 + $0x198] sm:$0xff]
  %v350 = vld [vmem:[%s1 + $0x1a0] sm:$0xff]
  %v351 = vld [vmem:[%s1 + $0x1a8] sm:$0xff]
  %v352 = vld [vmem:[%s1 + $0x1b0] sm:$0xff]
  %v353 = vld [vmem:[%s1 + $0x1b8] sm:$0xff]
  %v354 = vld [vmem:[%s1 + $0x1c0] sm:$0xff]
  %v355 = vld [vmem:[%s1 + $0x1c8] sm:$0xff]
  %v356 = vld [vmem:[%s1 + $0x1d0] sm:$0xff]
  %v357 = vld [vmem:[%s1 + $0x1d8] sm:$0xff]
  %v358 = vld [vmem:[%s1 + $0x1e0] sm:$0xff]
  %v359 = vld [vmem:[%s1 + $0x1e8] sm:$0xff]
  %v360 = vld [vmem:[%s1 + $0x1f0] sm:$0xff]
  %v361 = vld [vmem:[%s1 + $0x1f8] sm:$0xff]
  %v362 = vld [vmem:[%s1 + $0x200] sm:$0xff]
  %v363 = vld [vmem:[%s1 + $0x208] sm:$0xff]
  %v364 = vld [vmem:[%s1 + $0x210] sm:$0xff]
  %v365 = vld [vmem:[%s1 + $0x218] sm:$0xff]
  %v366 = vld [vmem:[%s1 + $0x220] sm:$0xff]
  %v367 = vld [vmem:[%s1 + $0x228] sm:$0xff]
  %v368 = vld [vmem:[%s1 + $0x230] sm:$0xff]
  %v369 = vld [vmem:[%s1 + $0x238] sm:$0xff]
  %371 = vset.pattern.permute.xlu0 0
  %372 = vperm.xlu0 %371, %v35
  %v373 = vpop.permute.xlu0 %372
  %376 = vset.pattern.permute.xlu0 0
  %377 = vperm.xlu0 %376, %v36
  %v378 = vpop.permute.xlu0 %377
  %vm380 = vcmask 261120
  %v382 = vsel %vm380, %v31, 0
  %v385 = vsel %vm380, %v34, 0
  %387 = vmatprep.subr.mxu0 %v329
  %388 = vmatpush1.msra.mxu0 %v328
  %389 = vmatprep.subr.mxu0 %v327
  %390 = vmatpush1.msra.mxu0 %v326
  %391 = vmatprep.subr.mxu0 %v325
  %392 = vmatpush1.msra.mxu0 %v324
  %393 = vmatprep.subr.mxu0 %v323
  %394 = vmatpush1.msra.mxu0 %v322
  %395 = vmatprep.subr.mxu0 %v321
  %396 = vmatpush1.msra.mxu0 %v320
  %397 = vmatprep.subr.mxu0 %v319
  %398 = vmatpush1.msra.mxu0 %v318
  %399 = vmatprep.subr.mxu0 %v317
  %400 = vmatpush1.msra.mxu0 %v316
  %401 = vmatprep.subr.mxu0 %v315
  %402 = vmatpush1.msra.mxu0 %v314
  %403 = vmatprep.subr.mxu0 %v313
  %404 = vmatpush1.msra.mxu0 %v312
  %405 = vmatprep.subr.mxu0 %v311
  %406 = vmatpush1.msra.mxu0 %v310
  %407 = vmatprep.subr.mxu0 %v309
  %408 = vmatpush1.msra.mxu0 %v308
  %409 = vmatprep.subr.mxu0 %v307
  %410 = vmatpush1.msra.mxu0 %v306
  %411 = vmatprep.subr.mxu0 %v305
  %412 = vmatpush1.msra.mxu0 %v304
  %413 = vmatprep.subr.mxu0 %v303
  %414 = vmatpush1.msra.mxu0 %v302
  %415 = vmatprep.subr.mxu0 %v301
  %416 = vmatpush1.msra.mxu0 %v300
  %417 = vmatprep.subr.mxu0 %v299
  %418 = vmatpush1.msra.mxu0 %v298
  %419 = vmatprep.subr.mxu0 %v361
  %420 = vmatpush2.msra.mxu0 %v360
  %421 = vmatprep.subr.mxu0 %v359
  %422 = vmatpush2.msra.mxu0 %v358
  %423 = vmatprep.subr.mxu0 %v357
  %424 = vmatpush2.msra.mxu0 %v356
  %425 = vmatprep.subr.mxu0 %v355
  %426 = vmatpush2.msra.mxu0 %v354
  %427 = vmatprep.subr.mxu0 %v353
  %428 = vmatpush2.msra.mxu0 %v352
  %429 = vmatprep.subr.mxu0 %v351
  %430 = vmatpush2.msra.mxu0 %v350
  %431 = vmatprep.subr.mxu0 %v349
  %432 = vmatpush2.msra.mxu0 %v348
  %433 = vmatprep.subr.mxu0 %v347
  %434 = vmatpush2.msra.mxu0 %v346
  %435 = vmatprep.subr.mxu0 %v345
  %436 = vmatpush2.msra.mxu0 %v344
  %437 = vmatprep.subr.mxu0 %v343
  %438 = vmatpush2.msra.mxu0 %v342
  %439 = vmatprep.subr.mxu0 %v341
  %440 = vmatpush2.msra.mxu0 %v340
  %441 = vmatprep.subr.mxu0 %v339
  %442 = vmatpush2.msra.mxu0 %v338
  %443 = vmatprep.subr.mxu0 %v337
  %444 = vmatpush2.msra.mxu0 %v336
  %445 = vmatprep.subr.mxu0 %v335
  %446 = vmatpush2.msra.mxu0 %v334
  %447 = vmatprep.subr.mxu0 %v333
  %448 = vmatpush2.msra.mxu0 %v332
  %449 = vmatprep.subr.mxu0 %v331
  %450 = vmatpush2.msra.mxu0 %v330
  %451 = vmatprep.mubr.f32.mxu0 %v30
  %452 = vmatmul.mubr.f32.gmra.mxu0 %v29
  %v453 = vpop.f32.mrf.mxu0
  %v454 = vadd.f32 %v373, %v453
  %v455 = vpop.f32.mrf.mxu0
  %v456 = vadd.f32 %v373, %v455
  %457 = vmatprep.mubr.f32.mxu0 %v33
  %458 = vmatmul.mubr.f32.gmra.mxu0 %v32
  %v459 = vpop.f32.mrf.mxu0
  %v460 = vadd.f32 %v378, %v459
  %v461 = vpop.f32.mrf.mxu0
  %v462 = vadd.f32 %v378, %v461
  %463 = vdwg.mxu0
  %464 = vmatprep.subr.mxu0 0.0
  %465 = vmatpush1.msra.mxu0 0.0
  %466 = vmatprep.subr.mxu0 0.0
  %467 = vmatpush1.msra.mxu0 0.0
  %468 = vmatprep.subr.mxu0 0.0
  %469 = vmatpush1.msra.mxu0 0.0
  %470 = vmatprep.subr.mxu0 0.0
  %471 = vmatpush1.msra.mxu0 0.0
  %472 = vmatprep.subr.mxu0 0.0
  %473 = vmatpush1.msra.mxu0 0.0
  %474 = vmatprep.subr.mxu0 0.0
  %475 = vmatpush1.msra.mxu0 0.0
  %476 = vmatprep.subr.mxu0 0.0
  %477 = vmatpush1.msra.mxu0 0.0
  %478 = vmatprep.subr.mxu0 0.0
  %479 = vmatpush1.msra.mxu0 0.0
  %480 = vmatprep.subr.mxu0 0.0
  %481 = vmatpush1.msra.mxu0 0.0
  %482 = vmatprep.subr.mxu0 0.0
  %483 = vmatpush1.msra.mxu0 0.0
  %484 = vmatprep.subr.mxu0 0.0
  %485 = vmatpush1.msra.mxu0 0.0
  %486 = vmatprep.subr.mxu0 0.0
  %487 = vmatpush1.msra.mxu0 0.0
  %488 = vmatprep.subr.mxu0 %v369
  %489 = vmatpush1.msra.mxu0 %v368
  %490 = vmatprep.subr.mxu0 %v367
  %491 = vmatpush1.msra.mxu0 %v366
  %492 = vmatprep.subr.mxu0 %v365
  %493 = vmatpush1.msra.mxu0 %v364
  %494 = vmatprep.subr.mxu0 %v363
  %495 = vmatpush1.msra.mxu0 %v362
  %496 = vmatprep.subr.mxu0 0.0
  %497 = vmatpush2.msra.mxu0 0.0
  %498 = vmatprep.subr.mxu0 0.0
  %499 = vmatpush2.msra.mxu0 0.0
  %500 = vmatprep.subr.mxu0 0.0
  %501 = vmatpush2.msra.mxu0 0.0
  %502 = vmatprep.subr.mxu0 0.0
  %503 = vmatpush2.msra.mxu0 0.0
  %504 = vmatprep.subr.mxu0 0.0
  %505 = vmatpush2.msra.mxu0 0.0
  %506 = vmatprep.subr.mxu0 0.0
  %507 = vmatpush2.msra.mxu0 0.0
  %508 = vmatprep.subr.mxu0 0.0
  %509 = vmatpush2.msra.mxu0 0.0
  %510 = vmatprep.subr.mxu0 0.0
  %511 = vmatpush2.msra.mxu0 0.0
  %512 = vmatprep.subr.mxu0 0.0
  %513 = vmatpush2.msra.mxu0 0.0
  %514 = vmatprep.subr.mxu0 0.0
  %515 = vmatpush2.msra.mxu0 0.0
  %516 = vmatprep.subr.mxu0 0.0
  %517 = vmatpush2.msra.mxu0 0.0
  %518 = vmatprep.subr.mxu0 0.0
  %519 = vmatpush2.msra.mxu0 0.0
  %520 = vmatprep.subr.mxu0 0.0
  %521 = vmatpush2.msra.mxu0 0.0
  %522 = vmatprep.subr.mxu0 0.0
  %523 = vmatpush2.msra.mxu0 0.0
  %524 = vmatprep.subr.mxu0 0.0
  %525 = vmatpush2.msra.mxu0 0.0
  %526 = vmatprep.subr.mxu0 0.0
  %527 = vmatpush2.msra.mxu0 0.0
  %528 = vmatprep.mubr.f32.mxu0 0.0
  %529 = vmatmul.mubr.f32.gmra.mxu0 %v382
  %v530 = vpop.f32.mrf.mxu0
  %v531 = vadd.f32 %v454, %v530
  %v532 = vpop.f32.mrf.mxu0
  %v533 = vadd.f32 %v456, %v532
  %534 = vmatprep.mubr.f32.mxu0 0.0
  %535 = vmatmul.mubr.f32.gmra.mxu0 %v385
  %v536 = vpop.f32.mrf.mxu0
  %v537 = vadd.f32 %v460, %v536
  %v538 = vpop.f32.mrf.mxu0
  %v539 = vadd.f32 %v462, %v538
  %540 = vdwg.mxu0
  %541 = vmatprep.subr.mxu0 %v68
  %542 = vmatpush1.msra.mxu0 %v67
  %543 = vmatprep.subr.mxu0 %v66
  %544 = vmatpush1.msra.mxu0 %v65
  %545 = vmatprep.subr.mxu0 %v64
  %546 = vmatpush1.msra.mxu0 %v63
  %547 = vmatprep.subr.mxu0 %v62
  %548 = vmatpush1.msra.mxu0 %v61
  %549 = vmatprep.subr.mxu0 %v60
  %550 = vmatpush1.msra.mxu0 %v59
  %551 = vmatprep.subr.mxu0 %v58
  %552 = vmatpush1.msra.mxu0 %v57
  %553 = vmatprep.subr.mxu0 %v56
  %554 = vmatpush1.msra.mxu0 %v55
  %555 = vmatprep.subr.mxu0 %v54
  %556 = vmatpush1.msra.mxu0 %v53
  %557 = vmatprep.subr.mxu0 %v52
  %558 = vmatpush1.msra.mxu0 %v51
  %559 = vmatprep.subr.mxu0 %v50
  %560 = vmatpush1.msra.mxu0 %v49
  %561 = vmatprep.subr.mxu0 %v48
  %562 = vmatpush1.msra.mxu0 %v47
  %563 = vmatprep.subr.mxu0 %v46
  %564 = vmatpush1.msra.mxu0 %v45
  %565 = vmatprep.subr.mxu0 %v44
  %566 = vmatpush1.msra.mxu0 %v43
  %567 = vmatprep.subr.mxu0 %v42
  %568 = vmatpush1.msra.mxu0 %v41
  %569 = vmatprep.subr.mxu0 %v40
  %570 = vmatpush1.msra.mxu0 %v39
  %571 = vmatprep.subr.mxu0 %v38
  %572 = vmatpush1.msra.mxu0 %v37
  %573 = vmatprep.subr.mxu0 %v100
  %574 = vmatpush2.msra.mxu0 %v99
  %575 = vmatprep.subr.mxu0 %v98
  %576 = vmatpush2.msra.mxu0 %v97
  %577 = vmatprep.subr.mxu0 %v96
  %578 = vmatpush2.msra.mxu0 %v95
  %579 = vmatprep.subr.mxu0 %v94
  %580 = vmatpush2.msra.mxu0 %v93
  %581 = vmatprep.subr.mxu0 %v92
  %582 = vmatpush2.msra.mxu0 %v91
  %583 = vmatprep.subr.mxu0 %v90
  %584 = vmatpush2.msra.mxu0 %v89
  %585 = vmatprep.subr.mxu0 %v88
  %586 = vmatpush2.msra.mxu0 %v87
  %587 = vmatprep.subr.mxu0 %v86
  %588 = vmatpush2.msra.mxu0 %v85
  %589 = vmatprep.subr.mxu0 %v84
  %590 = vmatpush2.msra.mxu0 %v83
  %591 = vmatprep.subr.mxu0 %v82
  %592 = vmatpush2.msra.mxu0 %v81
  %593 = vmatprep.subr.mxu0 %v80
  %594 = vmatpush2.msra.mxu0 %v79
  %595 = vmatprep.subr.mxu0 %v78
  %596 = vmatpush2.msra.mxu0 %v77
  %597 = vmatprep.subr.mxu0 %v76
  %598 = vmatpush2.msra.mxu0 %v75
  %599 = vmatprep.subr.mxu0 %v74
  %600 = vmatpush2.msra.mxu0 %v73
  %601 = vmatprep.subr.mxu0 %v72
  %602 = vmatpush2.msra.mxu0 %v71
  %603 = vmatprep.subr.mxu0 %v70
  %604 = vmatpush2.msra.mxu0 %v69
  %605 = vmatprep.mubr.f32.mxu0 %v295
  %606 = vmatmul.mubr.f32.gmra.mxu0 %v294
  %v607 = vpop.f32.mrf.mxu0
  %v608 = vadd.f32 0.0, %v607
  %v609 = vpop.f32.mrf.mxu0
  %v610 = vadd.f32 0.0, %v609
  %611 = vmatprep.mubr.f32.mxu0 %v297
  %612 = vmatmul.mubr.f32.gmra.mxu0 %v296
  %v613 = vpop.f32.mrf.mxu0
  %v614 = vadd.f32 0.0, %v613
  %v615 = vpop.f32.mrf.mxu0
  %v616 = vadd.f32 0.0, %v615
  %617 = vdwg.mxu0
  %618 = vmatprep.subr.mxu0 %v162
  %619 = vmatpush1.msra.mxu0 %v161
  %620 = vmatprep.subr.mxu0 %v158
  %621 = vmatpush1.msra.mxu0 %v157
  %622 = vmatprep.subr.mxu0 %v154
  %623 = vmatpush1.msra.mxu0 %v153
  %624 = vmatprep.subr.mxu0 %v150
  %625 = vmatpush1.msra.mxu0 %v149
  %626 = vmatprep.subr.mxu0 %v146
  %627 = vmatpush1.msra.mxu0 %v145
  %628 = vmatprep.subr.mxu0 %v142
  %629 = vmatpush1.msra.mxu0 %v141
  %630 = vmatprep.subr.mxu0 %v138
  %631 = vmatpush1.msra.mxu0 %v137
  %632 = vmatprep.subr.mxu0 %v134
  %633 = vmatpush1.msra.mxu0 %v133
  %634 = vmatprep.subr.mxu0 %v130
  %635 = vmatpush1.msra.mxu0 %v129
  %636 = vmatprep.subr.mxu0 %v126
  %637 = vmatpush1.msra.mxu0 %v125
  %638 = vmatprep.subr.mxu0 %v122
  %639 = vmatpush1.msra.mxu0 %v121
  %640 = vmatprep.subr.mxu0 %v118
  %641 = vmatpush1.msra.mxu0 %v117
  %642 = vmatprep.subr.mxu0 %v114
  %643 = vmatpush1.msra.mxu0 %v113
  %644 = vmatprep.subr.mxu0 %v110
  %645 = vmatpush1.msra.mxu0 %v109
  %646 = vmatprep.subr.mxu0 %v106
  %647 = vmatpush1.msra.mxu0 %v105
  %648 = vmatprep.subr.mxu0 %v102
  %649 = vmatpush1.msra.mxu0 %v101
  %650 = vmatprep.subr.mxu0 %v226
  %651 = vmatpush2.msra.mxu0 %v225
  %652 = vmatprep.subr.mxu0 %v222
  %653 = vmatpush2.msra.mxu0 %v221
  %654 = vmatprep.subr.mxu0 %v218
  %655 = vmatpush2.msra.mxu0 %v217
  %656 = vmatprep.subr.mxu0 %v214
  %657 = vmatpush2.msra.mxu0 %v213
  %658 = vmatprep.subr.mxu0 %v210
  %659 = vmatpush2.msra.mxu0 %v209
  %660 = vmatprep.subr.mxu0 %v206
  %661 = vmatpush2.msra.mxu0 %v205
  %662 = vmatprep.subr.mxu0 %v202
  %663 = vmatpush2.msra.mxu0 %v201
  %664 = vmatprep.subr.mxu0 %v198
  %665 = vmatpush2.msra.mxu0 %v197
  %666 = vmatprep.subr.mxu0 %v194
  %667 = vmatpush2.msra.mxu0 %v193
  %668 = vmatprep.subr.mxu0 %v190
  %669 = vmatpush2.msra.mxu0 %v189
  %670 = vmatprep.subr.mxu0 %v186
  %671 = vmatpush2.msra.mxu0 %v185
  %672 = vmatprep.subr.mxu0 %v182
  %673 = vmatpush2.msra.mxu0 %v181
  %674 = vmatprep.subr.mxu0 %v178
  %675 = vmatpush2.msra.mxu0 %v177
  %676 = vmatprep.subr.mxu0 %v174
  %677 = vmatpush2.msra.mxu0 %v173
  %678 = vmatprep.subr.mxu0 %v170
  %679 = vmatpush2.msra.mxu0 %v169
  %680 = vmatprep.subr.mxu0 %v166
  %681 = vmatpush2.msra.mxu0 %v165
  %682 = vmatprep.mubr.f32.mxu0 %v533
  %683 = vmatmul.mubr.f32.gmra.mxu0 %v531
  %v684 = vpop.f32.mrf.mxu0
  %v685 = vadd.f32 0.0, %v684
  %v686 = vpop.f32.mrf.mxu0
  %v687 = vadd.f32 0.0, %v686
  %688 = vmatprep.mubr.f32.mxu0 %v539
  %689 = vmatmul.mubr.f32.gmra.mxu0 %v537
  %v690 = vpop.f32.mrf.mxu0
  %v691 = vadd.f32 0.0, %v690
  %v692 = vpop.f32.mrf.mxu0
  %v693 = vadd.f32 0.0, %v692
  %694 = vdwg.mxu0
  %695 = vmatprep.subr.mxu0 %v164
  %696 = vmatpush1.msra.mxu0 %v163
  %697 = vmatprep.subr.mxu0 %v160
  %698 = vmatpush1.msra.mxu0 %v159
  %699 = vmatprep.subr.mxu0 %v156
  %700 = vmatpush1.msra.mxu0 %v155
  %701 = vmatprep.subr.mxu0 %v152
  %702 = vmatpush1.msra.mxu0 %v151
  %703 = vmatprep.subr.mxu0 %v148
  %704 = vmatpush1.msra.mxu0 %v147
  %705 = vmatprep.subr.mxu0 %v144
  %706 = vmatpush1.msra.mxu0 %v143
  %707 = vmatprep.subr.mxu0 %v140
  %708 = vmatpush1.msra.mxu0 %v139
  %709 = vmatprep.subr.mxu0 %v136
  %710 = vmatpush1.msra.mxu0 %v135
  %711 = vmatprep.subr.mxu0 %v132
  %712 = vmatpush1.msra.mxu0 %v131
  %713 = vmatprep.subr.mxu0 %v128
  %714 = vmatpush1.msra.mxu0 %v127
  %715 = vmatprep.subr.mxu0 %v124
  %716 = vmatpush1.msra.mxu0 %v123
  %717 = vmatprep.subr.mxu0 %v120
  %718 = vmatpush1.msra.mxu0 %v119
  %719 = vmatprep.subr.mxu0 %v116
  %720 = vmatpush1.msra.mxu0 %v115
  %721 = vmatprep.subr.mxu0 %v112
  %722 = vmatpush1.msra.mxu0 %v111
  %723 = vmatprep.subr.mxu0 %v108
  %724 = vmatpush1.msra.mxu0 %v107
  %725 = vmatprep.subr.mxu0 %v104
  %726 = vmatpush1.msra.mxu0 %v103
  %727 = vmatprep.subr.mxu0 %v228
  %728 = vmatpush2.msra.mxu0 %v227
  %729 = vmatprep.subr.mxu0 %v224
  %730 = vmatpush2.msra.mxu0 %v223
  %731 = vmatprep.subr.mxu0 %v220
  %732 = vmatpush2.msra.mxu0 %v219
  %733 = vmatprep.subr.mxu0 %v216
  %734 = vmatpush2.msra.mxu0 %v215
  %735 = vmatprep.subr.mxu0 %v212
  %736 = vmatpush2.msra.mxu0 %v211
  %737 = vmatprep.subr.mxu0 %v208
  %738 = vmatpush2.msra.mxu0 %v207
  %739 = vmatprep.subr.mxu0 %v204
  %740 = vmatpush2.msra.mxu0 %v203
  %741 = vmatprep.subr.mxu0 %v200
  %742 = vmatpush2.msra.mxu0 %v199
  %743 = vmatprep.subr.mxu0 %v196
  %744 = vmatpush2.msra.mxu0 %v195
  %745 = vmatprep.subr.mxu0 %v192
  %746 = vmatpush2.msra.mxu0 %v191
  %747 = vmatprep.subr.mxu0 %v188
  %748 = vmatpush2.msra.mxu0 %v187
  %749 = vmatprep.subr.mxu0 %v184
  %750 = vmatpush2.msra.mxu0 %v183
  %751 = vmatprep.subr.mxu0 %v180
  %752 = vmatpush2.msra.mxu0 %v179
  %753 = vmatprep.subr.mxu0 %v176
  %754 = vmatpush2.msra.mxu0 %v175
  %755 = vmatprep.subr.mxu0 %v172
  %756 = vmatpush2.msra.mxu0 %v171
  %757 = vmatprep.subr.mxu0 %v168
  %758 = vmatpush2.msra.mxu0 %v167
  %759 = vmatprep.mubr.f32.mxu0 %v533
  %760 = vmatmul.mubr.f32.gmra.mxu0 %v531
  %v761 = vpop.f32.mrf.mxu0
  %v762 = vadd.f32 0.0, %v761
  %v763 = vpop.f32.mrf.mxu0
  %v764 = vadd.f32 0.0, %v763
  %765 = vmatprep.mubr.f32.mxu0 %v539
  %766 = vmatmul.mubr.f32.gmra.mxu0 %v537
  %v767 = vpop.f32.mrf.mxu0
  %v768 = vadd.f32 0.0, %v767
  %v769 = vpop.f32.mrf.mxu0
  %v770 = vadd.f32 0.0, %v769
  %771 = vdwg.mxu0
  %774 = vrot.lane.b32.xlu0 %v608, 96
  %v775 = vpop.permute.xlu0 %774
  %776 = vrot.lane.b32.xlu0 %v614, 96
  %v777 = vpop.permute.xlu0 %776
  %780 = vrot.lane.b32.xlu0 %v608, 64
  %v781 = vpop.permute.xlu0 %780
  %782 = vrot.lane.b32.xlu0 %v614, 64
  %v783 = vpop.permute.xlu0 %782
  %786 = vrot.lane.b32.xlu0 %v608, 32
  %v787 = vpop.permute.xlu0 %786
  %788 = vrot.lane.b32.xlu0 %v614, 32
  %v789 = vpop.permute.xlu0 %788
  %794 = vrot.lane.b32.xlu0 %v610, 96
  %v795 = vpop.permute.xlu0 %794
  %796 = vrot.lane.b32.xlu0 %v616, 96
  %v797 = vpop.permute.xlu0 %796
  %800 = vrot.lane.b32.xlu0 %v610, 64
  %v801 = vpop.permute.xlu0 %800
  %802 = vrot.lane.b32.xlu0 %v616, 64
  %v803 = vpop.permute.xlu0 %802
  %806 = vrot.lane.b32.xlu0 %v610, 32
  %v807 = vpop.permute.xlu0 %806
  %808 = vrot.lane.b32.xlu0 %v616, 32
  %v809 = vpop.permute.xlu0 %808
  %v812 = vcombine.low %v608, %v781
  %v813 = vcombine.high %v608, %v781
  %v815 = vunpack.c.l.s4 1983009808
  %v816 = vunpack.c.0.s8 %v815
  %v817 = vlaneseq
  %v818 = vshrl.u32 %v817, 7
  %v819 = vsub.s32 %v816, %v818
  %v820 = vrot.slane %v812, %v819
  %v822 = vunpack.c.l.s4 1983009808
  %v823 = vunpack.c.0.s8 %v822
  %v824 = vlaneseq
  %v825 = vshrl.u32 %v824, 7
  %v826 = vsub.s32 %v823, %v825
  %v827 = vrot.slane %v813, %v826
  %v828 = vcombine.low %v775, %v787
  %v829 = vcombine.high %v775, %v787
  %v831 = vunpack.c.l.s4 1983009808
  %v832 = vunpack.c.0.s8 %v831
  %v833 = vlaneseq
  %v834 = vshrl.u32 %v833, 7
  %v835 = vsub.s32 %v832, %v834
  %v836 = vrot.slane %v828, %v835
  %v838 = vunpack.c.l.s4 1983009808
  %v839 = vunpack.c.0.s8 %v838
  %v840 = vlaneseq
  %v841 = vshrl.u32 %v840, 7
  %v842 = vsub.s32 %v839, %v841
  %v843 = vrot.slane %v829, %v842
  %v844 = vcombine.low %v610, %v801
  %v845 = vcombine.high %v610, %v801
  %v847 = vunpack.c.l.s4 1983009808
  %v848 = vunpack.c.0.s8 %v847
  %v849 = vlaneseq
  %v850 = vshrl.u32 %v849, 7
  %v851 = vsub.s32 %v848, %v850
  %v852 = vrot.slane %v844, %v851
  %v854 = vunpack.c.l.s4 1983009808
  %v855 = vunpack.c.0.s8 %v854
  %v856 = vlaneseq
  %v857 = vshrl.u32 %v856, 7
  %v858 = vsub.s32 %v855, %v857
  %v859 = vrot.slane %v845, %v858
  %v860 = vcombine.low %v795, %v807
  %v861 = vcombine.high %v795, %v807
  %v863 = vunpack.c.l.s4 1983009808
  %v864 = vunpack.c.0.s8 %v863
  %v865 = vlaneseq
  %v866 = vshrl.u32 %v865, 7
  %v867 = vsub.s32 %v864, %v866
  %v868 = vrot.slane %v860, %v867
  %v870 = vunpack.c.l.s4 1983009808
  %v871 = vunpack.c.0.s8 %v870
  %v872 = vlaneseq
  %v873 = vshrl.u32 %v872, 7
  %v874 = vsub.s32 %v871, %v873
  %v875 = vrot.slane %v861, %v874
  %v876 = vcombine.low %v820, %v836
  %v877 = vcombine.high %v820, %v836
  %v879 = vunpack.c.l.s4 1934713408
  %v880 = vunpack.c.0.s8 %v879
  %v881 = vlaneseq
  %v882 = vshrl.u32 %v881, 7
  %v883 = vsub.s32 %v880, %v882
  %v884 = vrot.slane %v876, %v883
  %v886 = vunpack.c.l.s4 1934713408
  %v887 = vunpack.c.0.s8 %v886
  %v888 = vlaneseq
  %v889 = vshrl.u32 %v888, 7
  %v890 = vsub.s32 %v887, %v889
  %v891 = vrot.slane %v877, %v890
  %v892 = vcombine.low %v827, %v843
  %v893 = vcombine.high %v827, %v843
  %v895 = vunpack.c.l.s4 1934713408
  %v896 = vunpack.c.0.s8 %v895
  %v897 = vlaneseq
  %v898 = vshrl.u32 %v897, 7
  %v899 = vsub.s32 %v896, %v898
  %v900 = vrot.slane %v892, %v899
  %v902 = vunpack.c.l.s4 1934713408
  %v903 = vunpack.c.0.s8 %v902
  %v904 = vlaneseq
  %v905 = vshrl.u32 %v904, 7
  %v906 = vsub.s32 %v903, %v905
  %v907 = vrot.slane %v893, %v906
  %v908 = vcombine.low %v852, %v868
  %v909 = vcombine.high %v852, %v868
  %v911 = vunpack.c.l.s4 1934713408
  %v912 = vunpack.c.0.s8 %v911
  %v913 = vlaneseq
  %v914 = vshrl.u32 %v913, 7
  %v915 = vsub.s32 %v912, %v914
  %v916 = vrot.slane %v908, %v915
  %v918 = vunpack.c.l.s4 1934713408
  %v919 = vunpack.c.0.s8 %v918
  %v920 = vlaneseq
  %v921 = vshrl.u32 %v920, 7
  %v922 = vsub.s32 %v919, %v921
  %v923 = vrot.slane %v909, %v922
  %v924 = vcombine.low %v859, %v875
  %v925 = vcombine.high %v859, %v875
  %v927 = vunpack.c.l.s4 1934713408
  %v928 = vunpack.c.0.s8 %v927
  %v929 = vlaneseq
  %v930 = vshrl.u32 %v929, 7
  %v931 = vsub.s32 %v928, %v930
  %v932 = vrot.slane %v924, %v931
  %v934 = vunpack.c.l.s4 1934713408
  %v935 = vunpack.c.0.s8 %v934
  %v936 = vlaneseq
  %v937 = vshrl.u32 %v936, 7
  %v938 = vsub.s32 %v935, %v937
  %v939 = vrot.slane %v925, %v938
  %v940 = vcombine.low %v884, %v916
  %v941 = vcombine.high %v884, %v916
  %v942 = vcombine.low %v891, %v923
  %v943 = vcombine.high %v891, %v923
  %v944 = vcombine.low %v900, %v932
  %v945 = vcombine.high %v900, %v932
  %v946 = vcombine.low %v907, %v939
  %v947 = vcombine.high %v907, %v939
  %v948 = vcombine.low %v614, %v783
  %v949 = vcombine.high %v614, %v783
  %v951 = vunpack.c.l.s4 1983009808
  %v952 = vunpack.c.0.s8 %v951
  %v953 = vlaneseq
  %v954 = vshrl.u32 %v953, 7
  %v955 = vsub.s32 %v952, %v954
  %v956 = vrot.slane %v948, %v955
  %v958 = vunpack.c.l.s4 1983009808
  %v959 = vunpack.c.0.s8 %v958
  %v960 = vlaneseq
  %v961 = vshrl.u32 %v960, 7
  %v962 = vsub.s32 %v959, %v961
  %v963 = vrot.slane %v949, %v962
  %v964 = vcombine.low %v777, %v789
  %v965 = vcombine.high %v777, %v789
  %v967 = vunpack.c.l.s4 1983009808
  %v968 = vunpack.c.0.s8 %v967
  %v969 = vlaneseq
  %v970 = vshrl.u32 %v969, 7
  %v971 = vsub.s32 %v968, %v970
  %v972 = vrot.slane %v964, %v971
  %v974 = vunpack.c.l.s4 1983009808
  %v975 = vunpack.c.0.s8 %v974
  %v976 = vlaneseq
  %v977 = vshrl.u32 %v976, 7
  %v978 = vsub.s32 %v975, %v977
  %v979 = vrot.slane %v965, %v978
  %v980 = vcombine.low %v616, %v803
  %v981 = vcombine.high %v616, %v803
  %v983 = vunpack.c.l.s4 1983009808
  %v984 = vunpack.c.0.s8 %v983
  %v985 = vlaneseq
  %v986 = vshrl.u32 %v985, 7
  %v987 = vsub.s32 %v984, %v986
  %v988 = vrot.slane %v980, %v987
  %v990 = vunpack.c.l.s4 1983009808
  %v991 = vunpack.c.0.s8 %v990
  %v992 = vlaneseq
  %v993 = vshrl.u32 %v992, 7
  %v994 = vsub.s32 %v991, %v993
  %v995 = vrot.slane %v981, %v994
  %v996 = vcombine.low %v797, %v809
  %v997 = vcombine.high %v797, %v809
  %v999 = vunpack.c.l.s4 1983009808
  %v1000 = vunpack.c.0.s8 %v999
  %v1001 = vlaneseq
  %v1002 = vshrl.u32 %v1001, 7
  %v1003 = vsub.s32 %v1000, %v1002
  %v1004 = vrot.slane %v996, %v1003
  %v1006 = vunpack.c.l.s4 1983009808
  %v1007 = vunpack.c.0.s8 %v1006
  %v1008 = vlaneseq
  %v1009 = vshrl.u32 %v1008, 7
  %v1010 = vsub.s32 %v1007, %v1009
  %v1011 = vrot.slane %v997, %v1010
  %v1012 = vcombine.low %v956, %v972
  %v1013 = vcombine.high %v956, %v972
  %v1015 = vunpack.c.l.s4 1934713408
  %v1016 = vunpack.c.0.s8 %v1015
  %v1017 = vlaneseq
  %v1018 = vshrl.u32 %v1017, 7
  %v1019 = vsub.s32 %v1016, %v1018
  %v1020 = vrot.slane %v1012, %v1019
  %v1022 = vunpack.c.l.s4 1934713408
  %v1023 = vunpack.c.0.s8 %v1022
  %v1024 = vlaneseq
  %v1025 = vshrl.u32 %v1024, 7
  %v1026 = vsub.s32 %v1023, %v1025
  %v1027 = vrot.slane %v1013, %v1026
  %v1028 = vcombine.low %v963, %v979
  %v1029 = vcombine.high %v963, %v979
  %v1031 = vunpack.c.l.s4 1934713408
  %v1032 = vunpack.c.0.s8 %v1031
  %v1033 = vlaneseq
  %v1034 = vshrl.u32 %v1033, 7
  %v1035 = vsub.s32 %v1032, %v1034
  %v1036 = vrot.slane %v1028, %v1035
  %v1038 = vunpack.c.l.s4 1934713408
  %v1039 = vunpack.c.0.s8 %v1038
  %v1040 = vlaneseq
  %v1041 = vshrl.u32 %v1040, 7
  %v1042 = vsub.s32 %v1039, %v1041
  %v1043 = vrot.slane %v1029, %v1042
  %v1044 = vcombine.low %v988, %v1004
  %v1045 = vcombine.high %v988, %v1004
  %v1047 = vunpack.c.l.s4 1934713408
  %v1048 = vunpack.c.0.s8 %v1047
  %v1049 = vlaneseq
  %v1050 = vshrl.u32 %v1049, 7
  %v1051 = vsub.s32 %v1048, %v1050
  %v1052 = vrot.slane %v1044, %v1051
  %v1054 = vunpack.c.l.s4 1934713408
  %v1055 = vunpack.c.0.s8 %v1054
  %v1056 = vlaneseq
  %v1057 = vshrl.u32 %v1056, 7
  %v1058 = vsub.s32 %v1055, %v1057
  %v1059 = vrot.slane %v1045, %v1058
  %v1060 = vcombine.low %v995, %v1011
  %v1061 = vcombine.high %v995, %v1011
  %v1063 = vunpack.c.l.s4 1934713408
  %v1064 = vunpack.c.0.s8 %v1063
  %v1065 = vlaneseq
  %v1066 = vshrl.u32 %v1065, 7
  %v1067 = vsub.s32 %v1064, %v1066
  %v1068 = vrot.slane %v1060, %v1067
  %v1070 = vunpack.c.l.s4 1934713408
  %v1071 = vunpack.c.0.s8 %v1070
  %v1072 = vlaneseq
  %v1073 = vshrl.u32 %v1072, 7
  %v1074 = vsub.s32 %v1071, %v1073
  %v1075 = vrot.slane %v1061, %v1074
  %v1076 = vcombine.low %v1020, %v1052
  %v1077 = vcombine.high %v1020, %v1052
  %v1078 = vcombine.low %v1027, %v1059
  %v1079 = vcombine.high %v1027, %v1059
  %v1080 = vcombine.low %v1036, %v1068
  %v1081 = vcombine.high %v1036, %v1068
  %v1082 = vcombine.low %v1043, %v1075
  %v1083 = vcombine.high %v1043, %v1075
  %v1084 = vcombine.low %v940, %v942
  %v1085 = vcombine.high %v940, %v942
  %v1087 = vunpack.c.l.s4 1983009808
  %v1088 = vunpack.c.0.s8 %v1087
  %v1089 = vlaneseq
  %v1090 = vshrl.u32 %v1089, 7
  %v1091 = vsub.s32 %v1088, %v1090
  %v1092 = vrot.slane %v1084, %v1091
  %v1094 = vunpack.c.l.s4 1983009808
  %v1095 = vunpack.c.0.s8 %v1094
  %v1096 = vlaneseq
  %v1097 = vshrl.u32 %v1096, 7
  %v1098 = vsub.s32 %v1095, %v1097
  %v1099 = vrot.slane %v1085, %v1098
  %v1100 = vcombine.low %v941, %v943
  %v1101 = vcombine.high %v941, %v943
  %v1103 = vunpack.c.l.s4 1983009808
  %v1104 = vunpack.c.0.s8 %v1103
  %v1105 = vlaneseq
  %v1106 = vshrl.u32 %v1105, 7
  %v1107 = vsub.s32 %v1104, %v1106
  %v1108 = vrot.slane %v1100, %v1107
  %v1110 = vunpack.c.l.s4 1983009808
  %v1111 = vunpack.c.0.s8 %v1110
  %v1112 = vlaneseq
  %v1113 = vshrl.u32 %v1112, 7
  %v1114 = vsub.s32 %v1111, %v1113
  %v1115 = vrot.slane %v1101, %v1114
  %v1116 = vcombine.low %v944, %v946
  %v1117 = vcombine.high %v944, %v946
  %v1119 = vunpack.c.l.s4 1983009808
  %v1120 = vunpack.c.0.s8 %v1119
  %v1121 = vlaneseq
  %v1122 = vshrl.u32 %v1121, 7
  %v1123 = vsub.s32 %v1120, %v1122
  %v1124 = vrot.slane %v1116, %v1123
  %v1126 = vunpack.c.l.s4 1983009808
  %v1127 = vunpack.c.0.s8 %v1126
  %v1128 = vlaneseq
  %v1129 = vshrl.u32 %v1128, 7
  %v1130 = vsub.s32 %v1127, %v1129
  %v1131 = vrot.slane %v1117, %v1130
  %v1132 = vcombine.low %v945, %v947
  %v1133 = vcombine.high %v945, %v947
  %v1135 = vunpack.c.l.s4 1983009808
  %v1136 = vunpack.c.0.s8 %v1135
  %v1137 = vlaneseq
  %v1138 = vshrl.u32 %v1137, 7
  %v1139 = vsub.s32 %v1136, %v1138
  %v1140 = vrot.slane %v1132, %v1139
  %v1142 = vunpack.c.l.s4 1983009808
  %v1143 = vunpack.c.0.s8 %v1142
  %v1144 = vlaneseq
  %v1145 = vshrl.u32 %v1144, 7
  %v1146 = vsub.s32 %v1143, %v1145
  %v1147 = vrot.slane %v1133, %v1146
  %v1148 = vcombine.low %v1092, %v1108
  %v1149 = vcombine.high %v1092, %v1108
  %v1151 = vunpack.c.l.s4 1934713408
  %v1152 = vunpack.c.0.s8 %v1151
  %v1153 = vlaneseq
  %v1154 = vshrl.u32 %v1153, 7
  %v1155 = vsub.s32 %v1152, %v1154
  %v1156 = vrot.slane %v1148, %v1155
  %v1158 = vunpack.c.l.s4 1934713408
  %v1159 = vunpack.c.0.s8 %v1158
  %v1160 = vlaneseq
  %v1161 = vshrl.u32 %v1160, 7
  %v1162 = vsub.s32 %v1159, %v1161
  %v1163 = vrot.slane %v1149, %v1162
  %v1164 = vcombine.low %v1099, %v1115
  %v1165 = vcombine.high %v1099, %v1115
  %v1167 = vunpack.c.l.s4 1934713408
  %v1168 = vunpack.c.0.s8 %v1167
  %v1169 = vlaneseq
  %v1170 = vshrl.u32 %v1169, 7
  %v1171 = vsub.s32 %v1168, %v1170
  %v1172 = vrot.slane %v1164, %v1171
  %v1174 = vunpack.c.l.s4 1934713408
  %v1175 = vunpack.c.0.s8 %v1174
  %v1176 = vlaneseq
  %v1177 = vshrl.u32 %v1176, 7
  %v1178 = vsub.s32 %v1175, %v1177
  %v1179 = vrot.slane %v1165, %v1178
  %v1180 = vcombine.low %v1124, %v1140
  %v1181 = vcombine.high %v1124, %v1140
  %v1183 = vunpack.c.l.s4 1934713408
  %v1184 = vunpack.c.0.s8 %v1183
  %v1185 = vlaneseq
  %v1186 = vshrl.u32 %v1185, 7
  %v1187 = vsub.s32 %v1184, %v1186
  %v1188 = vrot.slane %v1180, %v1187
  %v1190 = vunpack.c.l.s4 1934713408
  %v1191 = vunpack.c.0.s8 %v1190
  %v1192 = vlaneseq
  %v1193 = vshrl.u32 %v1192, 7
  %v1194 = vsub.s32 %v1191, %v1193
  %v1195 = vrot.slane %v1181, %v1194
  %v1196 = vcombine.low %v1131, %v1147
  %v1197 = vcombine.high %v1131, %v1147
  %v1199 = vunpack.c.l.s4 1934713408
  %v1200 = vunpack.c.0.s8 %v1199
  %v1201 = vlaneseq
  %v1202 = vshrl.u32 %v1201, 7
  %v1203 = vsub.s32 %v1200, %v1202
  %v1204 = vrot.slane %v1196, %v1203
  %v1206 = vunpack.c.l.s4 1934713408
  %v1207 = vunpack.c.0.s8 %v1206
  %v1208 = vlaneseq
  %v1209 = vshrl.u32 %v1208, 7
  %v1210 = vsub.s32 %v1207, %v1209
  %v1211 = vrot.slane %v1197, %v1210
  %v1212 = vcombine.low %v1156, %v1188
  %v1213 = vcombine.high %v1156, %v1188
  %v1214 = vcombine.low %v1163, %v1195
  %v1215 = vcombine.high %v1163, %v1195
  %v1216 = vcombine.low %v1172, %v1204
  %v1217 = vcombine.high %v1172, %v1204
  %v1218 = vcombine.low %v1179, %v1211
  %v1219 = vcombine.high %v1179, %v1211
  %v1220 = vcombine.low %v1076, %v1078
  %v1221 = vcombine.high %v1076, %v1078
  %v1223 = vunpack.c.l.s4 1983009808
  %v1224 = vunpack.c.0.s8 %v1223
  %v1225 = vlaneseq
  %v1226 = vshrl.u32 %v1225, 7
  %v1227 = vsub.s32 %v1224, %v1226
  %v1228 = vrot.slane %v1220, %v1227
  %v1230 = vunpack.c.l.s4 1983009808
  %v1231 = vunpack.c.0.s8 %v1230
  %v1232 = vlaneseq
  %v1233 = vshrl.u32 %v1232, 7
  %v1234 = vsub.s32 %v1231, %v1233
  %v1235 = vrot.slane %v1221, %v1234
  %v1236 = vcombine.low %v1077, %v1079
  %v1237 = vcombine.high %v1077, %v1079
  %v1239 = vunpack.c.l.s4 1983009808
  %v1240 = vunpack.c.0.s8 %v1239
  %v1241 = vlaneseq
  %v1242 = vshrl.u32 %v1241, 7
  %v1243 = vsub.s32 %v1240, %v1242
  %v1244 = vrot.slane %v1236, %v1243
  %v1246 = vunpack.c.l.s4 1983009808
  %v1247 = vunpack.c.0.s8 %v1246
  %v1248 = vlaneseq
  %v1249 = vshrl.u32 %v1248, 7
  %v1250 = vsub.s32 %v1247, %v1249
  %v1251 = vrot.slane %v1237, %v1250
  %v1252 = vcombine.low %v1080, %v1082
  %v1253 = vcombine.high %v1080, %v1082
  %v1255 = vunpack.c.l.s4 1983009808
  %v1256 = vunpack.c.0.s8 %v1255
  %v1257 = vlaneseq
  %v1258 = vshrl.u32 %v1257, 7
  %v1259 = vsub.s32 %v1256, %v1258
  %v1260 = vrot.slane %v1252, %v1259
  %v1262 = vunpack.c.l.s4 1983009808
  %v1263 = vunpack.c.0.s8 %v1262
  %v1264 = vlaneseq
  %v1265 = vshrl.u32 %v1264, 7
  %v1266 = vsub.s32 %v1263, %v1265
  %v1267 = vrot.slane %v1253, %v1266
  %v1268 = vcombine.low %v1081, %v1083
  %v1269 = vcombine.high %v1081, %v1083
  %v1271 = vunpack.c.l.s4 1983009808
  %v1272 = vunpack.c.0.s8 %v1271
  %v1273 = vlaneseq
  %v1274 = vshrl.u32 %v1273, 7
  %v1275 = vsub.s32 %v1272, %v1274
  %v1276 = vrot.slane %v1268, %v1275
  %v1278 = vunpack.c.l.s4 1983009808
  %v1279 = vunpack.c.0.s8 %v1278
  %v1280 = vlaneseq
  %v1281 = vshrl.u32 %v1280, 7
  %v1282 = vsub.s32 %v1279, %v1281
  %v1283 = vrot.slane %v1269, %v1282
  %v1284 = vcombine.low %v1228, %v1244
  %v1285 = vcombine.high %v1228, %v1244
  %v1287 = vunpack.c.l.s4 1934713408
  %v1288 = vunpack.c.0.s8 %v1287
  %v1289 = vlaneseq
  %v1290 = vshrl.u32 %v1289, 7
  %v1291 = vsub.s32 %v1288, %v1290
  %v1292 = vrot.slane %v1284, %v1291
  %v1294 = vunpack.c.l.s4 1934713408
  %v1295 = vunpack.c.0.s8 %v1294
  %v1296 = vlaneseq
  %v1297 = vshrl.u32 %v1296, 7
  %v1298 = vsub.s32 %v1295, %v1297
  %v1299 = vrot.slane %v1285, %v1298
  %v1300 = vcombine.low %v1235, %v1251
  %v1301 = vcombine.high %v1235, %v1251
  %v1303 = vunpack.c.l.s4 1934713408
  %v1304 = vunpack.c.0.s8 %v1303
  %v1305 = vlaneseq
  %v1306 = vshrl.u32 %v1305, 7
  %v1307 = vsub.s32 %v1304, %v1306
  %v1308 = vrot.slane %v1300, %v1307
  %v1310 = vunpack.c.l.s4 1934713408
  %v1311 = vunpack.c.0.s8 %v1310
  %v1312 = vlaneseq
  %v1313 = vshrl.u32 %v1312, 7
  %v1314 = vsub.s32 %v1311, %v1313
  %v1315 = vrot.slane %v1301, %v1314
  %v1316 = vcombine.low %v1260, %v1276
  %v1317 = vcombine.high %v1260, %v1276
  %v1319 = vunpack.c.l.s4 1934713408
  %v1320 = vunpack.c.0.s8 %v1319
  %v1321 = vlaneseq
  %v1322 = vshrl.u32 %v1321, 7
  %v1323 = vsub.s32 %v1320, %v1322
  %v1324 = vrot.slane %v1316, %v1323
  %v1326 = vunpack.c.l.s4 1934713408
  %v1327 = vunpack.c.0.s8 %v1326
  %v1328 = vlaneseq
  %v1329 = vshrl.u32 %v1328, 7
  %v1330 = vsub.s32 %v1327, %v1329
  %v1331 = vrot.slane %v1317, %v1330
  %v1332 = vcombine.low %v1267, %v1283
  %v1333 = vcombine.high %v1267, %v1283
  %v1335 = vunpack.c.l.s4 1934713408
  %v1336 = vunpack.c.0.s8 %v1335
  %v1337 = vlaneseq
  %v1338 = vshrl.u32 %v1337, 7
  %v1339 = vsub.s32 %v1336, %v1338
  %v1340 = vrot.slane %v1332, %v1339
  %v1342 = vunpack.c.l.s4 1934713408
  %v1343 = vunpack.c.0.s8 %v1342
  %v1344 = vlaneseq
  %v1345 = vshrl.u32 %v1344, 7
  %v1346 = vsub.s32 %v1343, %v1345
  %v1347 = vrot.slane %v1333, %v1346
  %v1348 = vcombine.low %v1292, %v1324
  %v1349 = vcombine.high %v1292, %v1324
  %v1350 = vcombine.low %v1299, %v1331
  %v1351 = vcombine.high %v1299, %v1331
  %v1352 = vcombine.low %v1308, %v1340
  %v1353 = vcombine.high %v1308, %v1340
  %v1354 = vcombine.low %v1315, %v1347
  %v1355 = vcombine.high %v1315, %v1347
  %1358 = vrot.lane.b32.xlu0 %v685, 96
  %v1359 = vpop.permute.xlu0 %1358
  %1360 = vrot.lane.b32.xlu0 %v691, 96
  %v1361 = vpop.permute.xlu0 %1360
  %1364 = vrot.lane.b32.xlu0 %v685, 64
  %v1365 = vpop.permute.xlu0 %1364
  %1366 = vrot.lane.b32.xlu0 %v691, 64
  %v1367 = vpop.permute.xlu0 %1366
  %1370 = vrot.lane.b32.xlu0 %v685, 32
  %v1371 = vpop.permute.xlu0 %1370
  %1372 = vrot.lane.b32.xlu0 %v691, 32
  %v1373 = vpop.permute.xlu0 %1372
  %1378 = vrot.lane.b32.xlu0 %v687, 96
  %v1379 = vpop.permute.xlu0 %1378
  %1380 = vrot.lane.b32.xlu0 %v693, 96
  %v1381 = vpop.permute.xlu0 %1380
  %1384 = vrot.lane.b32.xlu0 %v687, 64
  %v1385 = vpop.permute.xlu0 %1384
  %1386 = vrot.lane.b32.xlu0 %v693, 64
  %v1387 = vpop.permute.xlu0 %1386
  %1390 = vrot.lane.b32.xlu0 %v687, 32
  %v1391 = vpop.permute.xlu0 %1390
  %1392 = vrot.lane.b32.xlu0 %v693, 32
  %v1393 = vpop.permute.xlu0 %1392
  %v1396 = vcombine.low %v685, %v1365
  %v1397 = vcombine.high %v685, %v1365
  %v1399 = vunpack.c.l.s4 1983009808
  %v1400 = vunpack.c.0.s8 %v1399
  %v1401 = vlaneseq
  %v1402 = vshrl.u32 %v1401, 7
  %v1403 = vsub.s32 %v1400, %v1402
  %v1404 = vrot.slane %v1396, %v1403
  %v1406 = vunpack.c.l.s4 1983009808
  %v1407 = vunpack.c.0.s8 %v1406
  %v1408 = vlaneseq
  %v1409 = vshrl.u32 %v1408, 7
  %v1410 = vsub.s32 %v1407, %v1409
  %v1411 = vrot.slane %v1397, %v1410
  %v1412 = vcombine.low %v1359, %v1371
  %v1413 = vcombine.high %v1359, %v1371
  %v1415 = vunpack.c.l.s4 1983009808
  %v1416 = vunpack.c.0.s8 %v1415
  %v1417 = vlaneseq
  %v1418 = vshrl.u32 %v1417, 7
  %v1419 = vsub.s32 %v1416, %v1418
  %v1420 = vrot.slane %v1412, %v1419
  %v1422 = vunpack.c.l.s4 1983009808
  %v1423 = vunpack.c.0.s8 %v1422
  %v1424 = vlaneseq
  %v1425 = vshrl.u32 %v1424, 7
  %v1426 = vsub.s32 %v1423, %v1425
  %v1427 = vrot.slane %v1413, %v1426
  %v1428 = vcombine.low %v687, %v1385
  %v1429 = vcombine.high %v687, %v1385
  %v1431 = vunpack.c.l.s4 1983009808
  %v1432 = vunpack.c.0.s8 %v1431
  %v1433 = vlaneseq
  %v1434 = vshrl.u32 %v1433, 7
  %v1435 = vsub.s32 %v1432, %v1434
  %v1436 = vrot.slane %v1428, %v1435
  %v1438 = vunpack.c.l.s4 1983009808
  %v1439 = vunpack.c.0.s8 %v1438
  %v1440 = vlaneseq
  %v1441 = vshrl.u32 %v1440, 7
  %v1442 = vsub.s32 %v1439, %v1441
  %v1443 = vrot.slane %v1429, %v1442
  %v1444 = vcombine.low %v1379, %v1391
  %v1445 = vcombine.high %v1379, %v1391
  %v1447 = vunpack.c.l.s4 1983009808
  %v1448 = vunpack.c.0.s8 %v1447
  %v1449 = vlaneseq
  %v1450 = vshrl.u32 %v1449, 7
  %v1451 = vsub.s32 %v1448, %v1450
  %v1452 = vrot.slane %v1444, %v1451
  %v1454 = vunpack.c.l.s4 1983009808
  %v1455 = vunpack.c.0.s8 %v1454
  %v1456 = vlaneseq
  %v1457 = vshrl.u32 %v1456, 7
  %v1458 = vsub.s32 %v1455, %v1457
  %v1459 = vrot.slane %v1445, %v1458
  %v1460 = vcombine.low %v1404, %v1420
  %v1461 = vcombine.high %v1404, %v1420
  %v1463 = vunpack.c.l.s4 1934713408
  %v1464 = vunpack.c.0.s8 %v1463
  %v1465 = vlaneseq
  %v1466 = vshrl.u32 %v1465, 7
  %v1467 = vsub.s32 %v1464, %v1466
  %v1468 = vrot.slane %v1460, %v1467
  %v1470 = vunpack.c.l.s4 1934713408
  %v1471 = vunpack.c.0.s8 %v1470
  %v1472 = vlaneseq
  %v1473 = vshrl.u32 %v1472, 7
  %v1474 = vsub.s32 %v1471, %v1473
  %v1475 = vrot.slane %v1461, %v1474
  %v1476 = vcombine.low %v1411, %v1427
  %v1477 = vcombine.high %v1411, %v1427
  %v1479 = vunpack.c.l.s4 1934713408
  %v1480 = vunpack.c.0.s8 %v1479
  %v1481 = vlaneseq
  %v1482 = vshrl.u32 %v1481, 7
  %v1483 = vsub.s32 %v1480, %v1482
  %v1484 = vrot.slane %v1476, %v1483
  %v1486 = vunpack.c.l.s4 1934713408
  %v1487 = vunpack.c.0.s8 %v1486
  %v1488 = vlaneseq
  %v1489 = vshrl.u32 %v1488, 7
  %v1490 = vsub.s32 %v1487, %v1489
  %v1491 = vrot.slane %v1477, %v1490
  %v1492 = vcombine.low %v1436, %v1452
  %v1493 = vcombine.high %v1436, %v1452
  %v1495 = vunpack.c.l.s4 1934713408
  %v1496 = vunpack.c.0.s8 %v1495
  %v1497 = vlaneseq
  %v1498 = vshrl.u32 %v1497, 7
  %v1499 = vsub.s32 %v1496, %v1498
  %v1500 = vrot.slane %v1492, %v1499
  %v1502 = vunpack.c.l.s4 1934713408
  %v1503 = vunpack.c.0.s8 %v1502
  %v1504 = vlaneseq
  %v1505 = vshrl.u32 %v1504, 7
  %v1506 = vsub.s32 %v1503, %v1505
  %v1507 = vrot.slane %v1493, %v1506
  %v1508 = vcombine.low %v1443, %v1459
  %v1509 = vcombine.high %v1443, %v1459
  %v1511 = vunpack.c.l.s4 1934713408
  %v1512 = vunpack.c.0.s8 %v1511
  %v1513 = vlaneseq
  %v1514 = vshrl.u32 %v1513, 7
  %v1515 = vsub.s32 %v1512, %v1514
  %v1516 = vrot.slane %v1508, %v1515
  %v1518 = vunpack.c.l.s4 1934713408
  %v1519 = vunpack.c.0.s8 %v1518
  %v1520 = vlaneseq
  %v1521 = vshrl.u32 %v1520, 7
  %v1522 = vsub.s32 %v1519, %v1521
  %v1523 = vrot.slane %v1509, %v1522
  %v1524 = vcombine.low %v1468, %v1500
  %v1525 = vcombine.high %v1468, %v1500
  %v1526 = vcombine.low %v1475, %v1507
  %v1527 = vcombine.high %v1475, %v1507
  %v1528 = vcombine.low %v1484, %v1516
  %v1529 = vcombine.high %v1484, %v1516
  %v1530 = vcombine.low %v1491, %v1523
  %v1531 = vcombine.high %v1491, %v1523
  %v1532 = vcombine.low %v691, %v1367
  %v1533 = vcombine.high %v691, %v1367
  %v1535 = vunpack.c.l.s4 1983009808
  %v1536 = vunpack.c.0.s8 %v1535
  %v1537 = vlaneseq
  %v1538 = vshrl.u32 %v1537, 7
  %v1539 = vsub.s32 %v1536, %v1538
  %v1540 = vrot.slane %v1532, %v1539
  %v1542 = vunpack.c.l.s4 1983009808
  %v1543 = vunpack.c.0.s8 %v1542
  %v1544 = vlaneseq
  %v1545 = vshrl.u32 %v1544, 7
  %v1546 = vsub.s32 %v1543, %v1545
  %v1547 = vrot.slane %v1533, %v1546
  %v1548 = vcombine.low %v1361, %v1373
  %v1549 = vcombine.high %v1361, %v1373
  %v1551 = vunpack.c.l.s4 1983009808
  %v1552 = vunpack.c.0.s8 %v1551
  %v1553 = vlaneseq
  %v1554 = vshrl.u32 %v1553, 7
  %v1555 = vsub.s32 %v1552, %v1554
  %v1556 = vrot.slane %v1548, %v1555
  %v1558 = vunpack.c.l.s4 1983009808
  %v1559 = vunpack.c.0.s8 %v1558
  %v1560 = vlaneseq
  %v1561 = vshrl.u32 %v1560, 7
  %v1562 = vsub.s32 %v1559, %v1561
  %v1563 = vrot.slane %v1549, %v1562
  %v1564 = vcombine.low %v693, %v1387
  %v1565 = vcombine.high %v693, %v1387
  %v1567 = vunpack.c.l.s4 1983009808
  %v1568 = vunpack.c.0.s8 %v1567
  %v1569 = vlaneseq
  %v1570 = vshrl.u32 %v1569, 7
  %v1571 = vsub.s32 %v1568, %v1570
  %v1572 = vrot.slane %v1564, %v1571
  %v1574 = vunpack.c.l.s4 1983009808
  %v1575 = vunpack.c.0.s8 %v1574
  %v1576 = vlaneseq
  %v1577 = vshrl.u32 %v1576, 7
  %v1578 = vsub.s32 %v1575, %v1577
  %v1579 = vrot.slane %v1565, %v1578
  %v1580 = vcombine.low %v1381, %v1393
  %v1581 = vcombine.high %v1381, %v1393
  %v1583 = vunpack.c.l.s4 1983009808
  %v1584 = vunpack.c.0.s8 %v1583
  %v1585 = vlaneseq
  %v1586 = vshrl.u32 %v1585, 7
  %v1587 = vsub.s32 %v1584, %v1586
  %v1588 = vrot.slane %v1580, %v1587
  %v1590 = vunpack.c.l.s4 1983009808
  %v1591 = vunpack.c.0.s8 %v1590
  %v1592 = vlaneseq
  %v1593 = vshrl.u32 %v1592, 7
  %v1594 = vsub.s32 %v1591, %v1593
  %v1595 = vrot.slane %v1581, %v1594
  %v1596 = vcombine.low %v1540, %v1556
  %v1597 = vcombine.high %v1540, %v1556
  %v1599 = vunpack.c.l.s4 1934713408
  %v1600 = vunpack.c.0.s8 %v1599
  %v1601 = vlaneseq
  %v1602 = vshrl.u32 %v1601, 7
  %v1603 = vsub.s32 %v1600, %v1602
  %v1604 = vrot.slane %v1596, %v1603
  %v1606 = vunpack.c.l.s4 1934713408
  %v1607 = vunpack.c.0.s8 %v1606
  %v1608 = vlaneseq
  %v1609 = vshrl.u32 %v1608, 7
  %v1610 = vsub.s32 %v1607, %v1609
  %v1611 = vrot.slane %v1597, %v1610
  %v1612 = vcombine.low %v1547, %v1563
  %v1613 = vcombine.high %v1547, %v1563
  %v1615 = vunpack.c.l.s4 1934713408
  %v1616 = vunpack.c.0.s8 %v1615
  %v1617 = vlaneseq
  %v1618 = vshrl.u32 %v1617, 7
  %v1619 = vsub.s32 %v1616, %v1618
  %v1620 = vrot.slane %v1612, %v1619
  %v1622 = vunpack.c.l.s4 1934713408
  %v1623 = vunpack.c.0.s8 %v1622
  %v1624 = vlaneseq
  %v1625 = vshrl.u32 %v1624, 7
  %v1626 = vsub.s32 %v1623, %v1625
  %v1627 = vrot.slane %v1613, %v1626
  %v1628 = vcombine.low %v1572, %v1588
  %v1629 = vcombine.high %v1572, %v1588
  %v1631 = vunpack.c.l.s4 1934713408
  %v1632 = vunpack.c.0.s8 %v1631
  %v1633 = vlaneseq
  %v1634 = vshrl.u32 %v1633, 7
  %v1635 = vsub.s32 %v1632, %v1634
  %v1636 = vrot.slane %v1628, %v1635
  %v1638 = vunpack.c.l.s4 1934713408
  %v1639 = vunpack.c.0.s8 %v1638
  %v1640 = vlaneseq
  %v1641 = vshrl.u32 %v1640, 7
  %v1642 = vsub.s32 %v1639, %v1641
  %v1643 = vrot.slane %v1629, %v1642
  %v1644 = vcombine.low %v1579, %v1595
  %v1645 = vcombine.high %v1579, %v1595
  %v1647 = vunpack.c.l.s4 1934713408
  %v1648 = vunpack.c.0.s8 %v1647
  %v1649 = vlaneseq
  %v1650 = vshrl.u32 %v1649, 7
  %v1651 = vsub.s32 %v1648, %v1650
  %v1652 = vrot.slane %v1644, %v1651
  %v1654 = vunpack.c.l.s4 1934713408
  %v1655 = vunpack.c.0.s8 %v1654
  %v1656 = vlaneseq
  %v1657 = vshrl.u32 %v1656, 7
  %v1658 = vsub.s32 %v1655, %v1657
  %v1659 = vrot.slane %v1645, %v1658
  %v1660 = vcombine.low %v1604, %v1636
  %v1661 = vcombine.high %v1604, %v1636
  %v1662 = vcombine.low %v1611, %v1643
  %v1663 = vcombine.high %v1611, %v1643
  %v1664 = vcombine.low %v1620, %v1652
  %v1665 = vcombine.high %v1620, %v1652
  %v1666 = vcombine.low %v1627, %v1659
  %v1667 = vcombine.high %v1627, %v1659
  %v1668 = vcombine.low %v1524, %v1526
  %v1669 = vcombine.high %v1524, %v1526
  %v1671 = vunpack.c.l.s4 1983009808
  %v1672 = vunpack.c.0.s8 %v1671
  %v1673 = vlaneseq
  %v1674 = vshrl.u32 %v1673, 7
  %v1675 = vsub.s32 %v1672, %v1674
  %v1676 = vrot.slane %v1668, %v1675
  %v1678 = vunpack.c.l.s4 1983009808
  %v1679 = vunpack.c.0.s8 %v1678
  %v1680 = vlaneseq
  %v1681 = vshrl.u32 %v1680, 7
  %v1682 = vsub.s32 %v1679, %v1681
  %v1683 = vrot.slane %v1669, %v1682
  %v1684 = vcombine.low %v1525, %v1527
  %v1685 = vcombine.high %v1525, %v1527
  %v1687 = vunpack.c.l.s4 1983009808
  %v1688 = vunpack.c.0.s8 %v1687
  %v1689 = vlaneseq
  %v1690 = vshrl.u32 %v1689, 7
  %v1691 = vsub.s32 %v1688, %v1690
  %v1692 = vrot.slane %v1684, %v1691
  %v1694 = vunpack.c.l.s4 1983009808
  %v1695 = vunpack.c.0.s8 %v1694
  %v1696 = vlaneseq
  %v1697 = vshrl.u32 %v1696, 7
  %v1698 = vsub.s32 %v1695, %v1697
  %v1699 = vrot.slane %v1685, %v1698
  %v1700 = vcombine.low %v1528, %v1530
  %v1701 = vcombine.high %v1528, %v1530
  %v1703 = vunpack.c.l.s4 1983009808
  %v1704 = vunpack.c.0.s8 %v1703
  %v1705 = vlaneseq
  %v1706 = vshrl.u32 %v1705, 7
  %v1707 = vsub.s32 %v1704, %v1706
  %v1708 = vrot.slane %v1700, %v1707
  %v1710 = vunpack.c.l.s4 1983009808
  %v1711 = vunpack.c.0.s8 %v1710
  %v1712 = vlaneseq
  %v1713 = vshrl.u32 %v1712, 7
  %v1714 = vsub.s32 %v1711, %v1713
  %v1715 = vrot.slane %v1701, %v1714
  %v1716 = vcombine.low %v1529, %v1531
  %v1717 = vcombine.high %v1529, %v1531
  %v1719 = vunpack.c.l.s4 1983009808
  %v1720 = vunpack.c.0.s8 %v1719
  %v1721 = vlaneseq
  %v1722 = vshrl.u32 %v1721, 7
  %v1723 = vsub.s32 %v1720, %v1722
  %v1724 = vrot.slane %v1716, %v1723
  %v1726 = vunpack.c.l.s4 1983009808
  %v1727 = vunpack.c.0.s8 %v1726
  %v1728 = vlaneseq
  %v1729 = vshrl.u32 %v1728, 7
  %v1730 = vsub.s32 %v1727, %v1729
  %v1731 = vrot.slane %v1717, %v1730
  %v1732 = vcombine.low %v1676, %v1692
  %v1733 = vcombine.high %v1676, %v1692
  %v1735 = vunpack.c.l.s4 1934713408
  %v1736 = vunpack.c.0.s8 %v1735
  %v1737 = vlaneseq
  %v1738 = vshrl.u32 %v1737, 7
  %v1739 = vsub.s32 %v1736, %v1738
  %v1740 = vrot.slane %v1732, %v1739
  %v1742 = vunpack.c.l.s4 1934713408
  %v1743 = vunpack.c.0.s8 %v1742
  %v1744 = vlaneseq
  %v1745 = vshrl.u32 %v1744, 7
  %v1746 = vsub.s32 %v1743, %v1745
  %v1747 = vrot.slane %v1733, %v1746
  %v1748 = vcombine.low %v1683, %v1699
  %v1749 = vcombine.high %v1683, %v1699
  %v1751 = vunpack.c.l.s4 1934713408
  %v1752 = vunpack.c.0.s8 %v1751
  %v1753 = vlaneseq
  %v1754 = vshrl.u32 %v1753, 7
  %v1755 = vsub.s32 %v1752, %v1754
  %v1756 = vrot.slane %v1748, %v1755
  %v1758 = vunpack.c.l.s4 1934713408
  %v1759 = vunpack.c.0.s8 %v1758
  %v1760 = vlaneseq
  %v1761 = vshrl.u32 %v1760, 7
  %v1762 = vsub.s32 %v1759, %v1761
  %v1763 = vrot.slane %v1749, %v1762
  %v1764 = vcombine.low %v1708, %v1724
  %v1765 = vcombine.high %v1708, %v1724
  %v1767 = vunpack.c.l.s4 1934713408
  %v1768 = vunpack.c.0.s8 %v1767
  %v1769 = vlaneseq
  %v1770 = vshrl.u32 %v1769, 7
  %v1771 = vsub.s32 %v1768, %v1770
  %v1772 = vrot.slane %v1764, %v1771
  %v1774 = vunpack.c.l.s4 1934713408
  %v1775 = vunpack.c.0.s8 %v1774
  %v1776 = vlaneseq
  %v1777 = vshrl.u32 %v1776, 7
  %v1778 = vsub.s32 %v1775, %v1777
  %v1779 = vrot.slane %v1765, %v1778
  %v1780 = vcombine.low %v1715, %v1731
  %v1781 = vcombine.high %v1715, %v1731
  %v1783 = vunpack.c.l.s4 1934713408
  %v1784 = vunpack.c.0.s8 %v1783
  %v1785 = vlaneseq
  %v1786 = vshrl.u32 %v1785, 7
  %v1787 = vsub.s32 %v1784, %v1786
  %v1788 = vrot.slane %v1780, %v1787
  %v1790 = vunpack.c.l.s4 1934713408
  %v1791 = vunpack.c.0.s8 %v1790
  %v1792 = vlaneseq
  %v1793 = vshrl.u32 %v1792, 7
  %v1794 = vsub.s32 %v1791, %v1793
  %v1795 = vrot.slane %v1781, %v1794
  %v1796 = vcombine.low %v1740, %v1772
  %v1797 = vcombine.high %v1740, %v1772
  %v1798 = vcombine.low %v1747, %v1779
  %v1799 = vcombine.high %v1747, %v1779
  %v1800 = vcombine.low %v1756, %v1788
  %v1801 = vcombine.high %v1756, %v1788
  %v1802 = vcombine.low %v1763, %v1795
  %v1803 = vcombine.high %v1763, %v1795
  %v1804 = vcombine.low %v1660, %v1662
  %v1805 = vcombine.high %v1660, %v1662
  %v1807 = vunpack.c.l.s4 1983009808
  %v1808 = vunpack.c.0.s8 %v1807
  %v1809 = vlaneseq
  %v1810 = vshrl.u32 %v1809, 7
  %v1811 = vsub.s32 %v1808, %v1810
  %v1812 = vrot.slane %v1804, %v1811
  %v1814 = vunpack.c.l.s4 1983009808
  %v1815 = vunpack.c.0.s8 %v1814
  %v1816 = vlaneseq
  %v1817 = vshrl.u32 %v1816, 7
  %v1818 = vsub.s32 %v1815, %v1817
  %v1819 = vrot.slane %v1805, %v1818
  %v1820 = vcombine.low %v1661, %v1663
  %v1821 = vcombine.high %v1661, %v1663
  %v1823 = vunpack.c.l.s4 1983009808
  %v1824 = vunpack.c.0.s8 %v1823
  %v1825 = vlaneseq
  %v1826 = vshrl.u32 %v1825, 7
  %v1827 = vsub.s32 %v1824, %v1826
  %v1828 = vrot.slane %v1820, %v1827
  %v1830 = vunpack.c.l.s4 1983009808
  %v1831 = vunpack.c.0.s8 %v1830
  %v1832 = vlaneseq
  %v1833 = vshrl.u32 %v1832, 7
  %v1834 = vsub.s32 %v1831, %v1833
  %v1835 = vrot.slane %v1821, %v1834
  %v1836 = vcombine.low %v1664, %v1666
  %v1837 = vcombine.high %v1664, %v1666
  %v1839 = vunpack.c.l.s4 1983009808
  %v1840 = vunpack.c.0.s8 %v1839
  %v1841 = vlaneseq
  %v1842 = vshrl.u32 %v1841, 7
  %v1843 = vsub.s32 %v1840, %v1842
  %v1844 = vrot.slane %v1836, %v1843
  %v1846 = vunpack.c.l.s4 1983009808
  %v1847 = vunpack.c.0.s8 %v1846
  %v1848 = vlaneseq
  %v1849 = vshrl.u32 %v1848, 7
  %v1850 = vsub.s32 %v1847, %v1849
  %v1851 = vrot.slane %v1837, %v1850
  %v1852 = vcombine.low %v1665, %v1667
  %v1853 = vcombine.high %v1665, %v1667
  %v1855 = vunpack.c.l.s4 1983009808
  %v1856 = vunpack.c.0.s8 %v1855
  %v1857 = vlaneseq
  %v1858 = vshrl.u32 %v1857, 7
  %v1859 = vsub.s32 %v1856, %v1858
  %v1860 = vrot.slane %v1852, %v1859
  %v1862 = vunpack.c.l.s4 1983009808
  %v1863 = vunpack.c.0.s8 %v1862
  %v1864 = vlaneseq
  %v1865 = vshrl.u32 %v1864, 7
  %v1866 = vsub.s32 %v1863, %v1865
  %v1867 = vrot.slane %v1853, %v1866
  %v1868 = vcombine.low %v1812, %v1828
  %v1869 = vcombine.high %v1812, %v1828
  %v1871 = vunpack.c.l.s4 1934713408
  %v1872 = vunpack.c.0.s8 %v1871
  %v1873 = vlaneseq
  %v1874 = vshrl.u32 %v1873, 7
  %v1875 = vsub.s32 %v1872, %v1874
  %v1876 = vrot.slane %v1868, %v1875
  %v1878 = vunpack.c.l.s4 1934713408
  %v1879 = vunpack.c.0.s8 %v1878
  %v1880 = vlaneseq
  %v1881 = vshrl.u32 %v1880, 7
  %v1882 = vsub.s32 %v1879, %v1881
  %v1883 = vrot.slane %v1869, %v1882
  %v1884 = vcombine.low %v1819, %v1835
  %v1885 = vcombine.high %v1819, %v1835
  %v1887 = vunpack.c.l.s4 1934713408
  %v1888 = vunpack.c.0.s8 %v1887
  %v1889 = vlaneseq
  %v1890 = vshrl.u32 %v1889, 7
  %v1891 = vsub.s32 %v1888, %v1890
  %v1892 = vrot.slane %v1884, %v1891
  %v1894 = vunpack.c.l.s4 1934713408
  %v1895 = vunpack.c.0.s8 %v1894
  %v1896 = vlaneseq
  %v1897 = vshrl.u32 %v1896, 7
  %v1898 = vsub.s32 %v1895, %v1897
  %v1899 = vrot.slane %v1885, %v1898
  %v1900 = vcombine.low %v1844, %v1860
  %v1901 = vcombine.high %v1844, %v1860
  %v1903 = vunpack.c.l.s4 1934713408
  %v1904 = vunpack.c.0.s8 %v1903
  %v1905 = vlaneseq
  %v1906 = vshrl.u32 %v1905, 7
  %v1907 = vsub.s32 %v1904, %v1906
  %v1908 = vrot.slane %v1900, %v1907
  %v1910 = vunpack.c.l.s4 1934713408
  %v1911 = vunpack.c.0.s8 %v1910
  %v1912 = vlaneseq
  %v1913 = vshrl.u32 %v1912, 7
  %v1914 = vsub.s32 %v1911, %v1913
  %v1915 = vrot.slane %v1901, %v1914
  %v1916 = vcombine.low %v1851, %v1867
  %v1917 = vcombine.high %v1851, %v1867
  %v1919 = vunpack.c.l.s4 1934713408
  %v1920 = vunpack.c.0.s8 %v1919
  %v1921 = vlaneseq
  %v1922 = vshrl.u32 %v1921, 7
  %v1923 = vsub.s32 %v1920, %v1922
  %v1924 = vrot.slane %v1916, %v1923
  %v1926 = vunpack.c.l.s4 1934713408
  %v1927 = vunpack.c.0.s8 %v1926
  %v1928 = vlaneseq
  %v1929 = vshrl.u32 %v1928, 7
  %v1930 = vsub.s32 %v1927, %v1929
  %v1931 = vrot.slane %v1917, %v1930
  %v1932 = vcombine.low %v1876, %v1908
  %v1933 = vcombine.high %v1876, %v1908
  %v1934 = vcombine.low %v1883, %v1915
  %v1935 = vcombine.high %v1883, %v1915
  %v1936 = vcombine.low %v1892, %v1924
  %v1937 = vcombine.high %v1892, %v1924
  %v1938 = vcombine.low %v1899, %v1931
  %v1939 = vcombine.high %v1899, %v1931
  %1942 = vrot.lane.b32.xlu0 %v762, 96
  %v1943 = vpop.permute.xlu0 %1942
  %1944 = vrot.lane.b32.xlu0 %v768, 96
  %v1945 = vpop.permute.xlu0 %1944
  %1948 = vrot.lane.b32.xlu0 %v762, 64
  %v1949 = vpop.permute.xlu0 %1948
  %1950 = vrot.lane.b32.xlu0 %v768, 64
  %v1951 = vpop.permute.xlu0 %1950
  %1954 = vrot.lane.b32.xlu0 %v762, 32
  %v1955 = vpop.permute.xlu0 %1954
  %1956 = vrot.lane.b32.xlu0 %v768, 32
  %v1957 = vpop.permute.xlu0 %1956
  %1962 = vrot.lane.b32.xlu0 %v764, 96
  %v1963 = vpop.permute.xlu0 %1962
  %1964 = vrot.lane.b32.xlu0 %v770, 96
  %v1965 = vpop.permute.xlu0 %1964
  %1968 = vrot.lane.b32.xlu0 %v764, 64
  %v1969 = vpop.permute.xlu0 %1968
  %1970 = vrot.lane.b32.xlu0 %v770, 64
  %v1971 = vpop.permute.xlu0 %1970
  %1974 = vrot.lane.b32.xlu0 %v764, 32
  %v1975 = vpop.permute.xlu0 %1974
  %1976 = vrot.lane.b32.xlu0 %v770, 32
  %v1977 = vpop.permute.xlu0 %1976
  %v1980 = vcombine.low %v762, %v1949
  %v1981 = vcombine.high %v762, %v1949
  %v1983 = vunpack.c.l.s4 1983009808
  %v1984 = vunpack.c.0.s8 %v1983
  %v1985 = vlaneseq
  %v1986 = vshrl.u32 %v1985, 7
  %v1987 = vsub.s32 %v1984, %v1986
  %v1988 = vrot.slane %v1980, %v1987
  %v1990 = vunpack.c.l.s4 1983009808
  %v1991 = vunpack.c.0.s8 %v1990
  %v1992 = vlaneseq
  %v1993 = vshrl.u32 %v1992, 7
  %v1994 = vsub.s32 %v1991, %v1993
  %v1995 = vrot.slane %v1981, %v1994
  %v1996 = vcombine.low %v1943, %v1955
  %v1997 = vcombine.high %v1943, %v1955
  %v1999 = vunpack.c.l.s4 1983009808
  %v2000 = vunpack.c.0.s8 %v1999
  %v2001 = vlaneseq
  %v2002 = vshrl.u32 %v2001, 7
  %v2003 = vsub.s32 %v2000, %v2002
  %v2004 = vrot.slane %v1996, %v2003
  %v2006 = vunpack.c.l.s4 1983009808
  %v2007 = vunpack.c.0.s8 %v2006
  %v2008 = vlaneseq
  %v2009 = vshrl.u32 %v2008, 7
  %v2010 = vsub.s32 %v2007, %v2009
  %v2011 = vrot.slane %v1997, %v2010
  %v2012 = vcombine.low %v764, %v1969
  %v2013 = vcombine.high %v764, %v1969
  %v2015 = vunpack.c.l.s4 1983009808
  %v2016 = vunpack.c.0.s8 %v2015
  %v2017 = vlaneseq
  %v2018 = vshrl.u32 %v2017, 7
  %v2019 = vsub.s32 %v2016, %v2018
  %v2020 = vrot.slane %v2012, %v2019
  %v2022 = vunpack.c.l.s4 1983009808
  %v2023 = vunpack.c.0.s8 %v2022
  %v2024 = vlaneseq
  %v2025 = vshrl.u32 %v2024, 7
  %v2026 = vsub.s32 %v2023, %v2025
  %v2027 = vrot.slane %v2013, %v2026
  %v2028 = vcombine.low %v1963, %v1975
  %v2029 = vcombine.high %v1963, %v1975
  %v2031 = vunpack.c.l.s4 1983009808
  %v2032 = vunpack.c.0.s8 %v2031
  %v2033 = vlaneseq
  %v2034 = vshrl.u32 %v2033, 7
  %v2035 = vsub.s32 %v2032, %v2034
  %v2036 = vrot.slane %v2028, %v2035
  %v2038 = vunpack.c.l.s4 1983009808
  %v2039 = vunpack.c.0.s8 %v2038
  %v2040 = vlaneseq
  %v2041 = vshrl.u32 %v2040, 7
  %v2042 = vsub.s32 %v2039, %v2041
  %v2043 = vrot.slane %v2029, %v2042
  %v2044 = vcombine.low %v1988, %v2004
  %v2045 = vcombine.high %v1988, %v2004
  %v2047 = vunpack.c.l.s4 1934713408
  %v2048 = vunpack.c.0.s8 %v2047
  %v2049 = vlaneseq
  %v2050 = vshrl.u32 %v2049, 7
  %v2051 = vsub.s32 %v2048, %v2050
  %v2052 = vrot.slane %v2044, %v2051
  %v2054 = vunpack.c.l.s4 1934713408
  %v2055 = vunpack.c.0.s8 %v2054
  %v2056 = vlaneseq
  %v2057 = vshrl.u32 %v2056, 7
  %v2058 = vsub.s32 %v2055, %v2057
  %v2059 = vrot.slane %v2045, %v2058
  %v2060 = vcombine.low %v1995, %v2011
  %v2061 = vcombine.high %v1995, %v2011
  %v2063 = vunpack.c.l.s4 1934713408
  %v2064 = vunpack.c.0.s8 %v2063
  %v2065 = vlaneseq
  %v2066 = vshrl.u32 %v2065, 7
  %v2067 = vsub.s32 %v2064, %v2066
  %v2068 = vrot.slane %v2060, %v2067
  %v2070 = vunpack.c.l.s4 1934713408
  %v2071 = vunpack.c.0.s8 %v2070
  %v2072 = vlaneseq
  %v2073 = vshrl.u32 %v2072, 7
  %v2074 = vsub.s32 %v2071, %v2073
  %v2075 = vrot.slane %v2061, %v2074
  %v2076 = vcombine.low %v2020, %v2036
  %v2077 = vcombine.high %v2020, %v2036
  %v2079 = vunpack.c.l.s4 1934713408
  %v2080 = vunpack.c.0.s8 %v2079
  %v2081 = vlaneseq
  %v2082 = vshrl.u32 %v2081, 7
  %v2083 = vsub.s32 %v2080, %v2082
  %v2084 = vrot.slane %v2076, %v2083
  %v2086 = vunpack.c.l.s4 1934713408
  %v2087 = vunpack.c.0.s8 %v2086
  %v2088 = vlaneseq
  %v2089 = vshrl.u32 %v2088, 7
  %v2090 = vsub.s32 %v2087, %v2089
  %v2091 = vrot.slane %v2077, %v2090
  %v2092 = vcombine.low %v2027, %v2043
  %v2093 = vcombine.high %v2027, %v2043
  %v2095 = vunpack.c.l.s4 1934713408
  %v2096 = vunpack.c.0.s8 %v2095
  %v2097 = vlaneseq
  %v2098 = vshrl.u32 %v2097, 7
  %v2099 = vsub.s32 %v2096, %v2098
  %v2100 = vrot.slane %v2092, %v2099
  %v2102 = vunpack.c.l.s4 1934713408
  %v2103 = vunpack.c.0.s8 %v2102
  %v2104 = vlaneseq
  %v2105 = vshrl.u32 %v2104, 7
  %v2106 = vsub.s32 %v2103, %v2105
  %v2107 = vrot.slane %v2093, %v2106
  %v2108 = vcombine.low %v2052, %v2084
  %v2109 = vcombine.high %v2052, %v2084
  %v2110 = vcombine.low %v2059, %v2091
  %v2111 = vcombine.high %v2059, %v2091
  %v2112 = vcombine.low %v2068, %v2100
  %v2113 = vcombine.high %v2068, %v2100
  %v2114 = vcombine.low %v2075, %v2107
  %v2115 = vcombine.high %v2075, %v2107
  %v2116 = vcombine.low %v768, %v1951
  %v2117 = vcombine.high %v768, %v1951
  %v2119 = vunpack.c.l.s4 1983009808
  %v2120 = vunpack.c.0.s8 %v2119
  %v2121 = vlaneseq
  %v2122 = vshrl.u32 %v2121, 7
  %v2123 = vsub.s32 %v2120, %v2122
  %v2124 = vrot.slane %v2116, %v2123
  %v2126 = vunpack.c.l.s4 1983009808
  %v2127 = vunpack.c.0.s8 %v2126
  %v2128 = vlaneseq
  %v2129 = vshrl.u32 %v2128, 7
  %v2130 = vsub.s32 %v2127, %v2129
  %v2131 = vrot.slane %v2117, %v2130
  %v2132 = vcombine.low %v1945, %v1957
  %v2133 = vcombine.high %v1945, %v1957
  %v2135 = vunpack.c.l.s4 1983009808
  %v2136 = vunpack.c.0.s8 %v2135
  %v2137 = vlaneseq
  %v2138 = vshrl.u32 %v2137, 7
  %v2139 = vsub.s32 %v2136, %v2138
  %v2140 = vrot.slane %v2132, %v2139
  %v2142 = vunpack.c.l.s4 1983009808
  %v2143 = vunpack.c.0.s8 %v2142
  %v2144 = vlaneseq
  %v2145 = vshrl.u32 %v2144, 7
  %v2146 = vsub.s32 %v2143, %v2145
  %v2147 = vrot.slane %v2133, %v2146
  %v2148 = vcombine.low %v770, %v1971
  %v2149 = vcombine.high %v770, %v1971
  %v2151 = vunpack.c.l.s4 1983009808
  %v2152 = vunpack.c.0.s8 %v2151
  %v2153 = vlaneseq
  %v2154 = vshrl.u32 %v2153, 7
  %v2155 = vsub.s32 %v2152, %v2154
  %v2156 = vrot.slane %v2148, %v2155
  %v2158 = vunpack.c.l.s4 1983009808
  %v2159 = vunpack.c.0.s8 %v2158
  %v2160 = vlaneseq
  %v2161 = vshrl.u32 %v2160, 7
  %v2162 = vsub.s32 %v2159, %v2161
  %v2163 = vrot.slane %v2149, %v2162
  %v2164 = vcombine.low %v1965, %v1977
  %v2165 = vcombine.high %v1965, %v1977
  %v2167 = vunpack.c.l.s4 1983009808
  %v2168 = vunpack.c.0.s8 %v2167
  %v2169 = vlaneseq
  %v2170 = vshrl.u32 %v2169, 7
  %v2171 = vsub.s32 %v2168, %v2170
  %v2172 = vrot.slane %v2164, %v2171
  %v2174 = vunpack.c.l.s4 1983009808
  %v2175 = vunpack.c.0.s8 %v2174
  %v2176 = vlaneseq
  %v2177 = vshrl.u32 %v2176, 7
  %v2178 = vsub.s32 %v2175, %v2177
  %v2179 = vrot.slane %v2165, %v2178
  %v2180 = vcombine.low %v2124, %v2140
  %v2181 = vcombine.high %v2124, %v2140
  %v2183 = vunpack.c.l.s4 1934713408
  %v2184 = vunpack.c.0.s8 %v2183
  %v2185 = vlaneseq
  %v2186 = vshrl.u32 %v2185, 7
  %v2187 = vsub.s32 %v2184, %v2186
  %v2188 = vrot.slane %v2180, %v2187
  %v2190 = vunpack.c.l.s4 1934713408
  %v2191 = vunpack.c.0.s8 %v2190
  %v2192 = vlaneseq
  %v2193 = vshrl.u32 %v2192, 7
  %v2194 = vsub.s32 %v2191, %v2193
  %v2195 = vrot.slane %v2181, %v2194
  %v2196 = vcombine.low %v2131, %v2147
  %v2197 = vcombine.high %v2131, %v2147
  %v2199 = vunpack.c.l.s4 1934713408
  %v2200 = vunpack.c.0.s8 %v2199
  %v2201 = vlaneseq
  %v2202 = vshrl.u32 %v2201, 7
  %v2203 = vsub.s32 %v2200, %v2202
  %v2204 = vrot.slane %v2196, %v2203
  %v2206 = vunpack.c.l.s4 1934713408
  %v2207 = vunpack.c.0.s8 %v2206
  %v2208 = vlaneseq
  %v2209 = vshrl.u32 %v2208, 7
  %v2210 = vsub.s32 %v2207, %v2209
  %v2211 = vrot.slane %v2197, %v2210
  %v2212 = vcombine.low %v2156, %v2172
  %v2213 = vcombine.high %v2156, %v2172
  %v2215 = vunpack.c.l.s4 1934713408
  %v2216 = vunpack.c.0.s8 %v2215
  %v2217 = vlaneseq
  %v2218 = vshrl.u32 %v2217, 7
  %v2219 = vsub.s32 %v2216, %v2218
  %v2220 = vrot.slane %v2212, %v2219
  %v2222 = vunpack.c.l.s4 1934713408
  %v2223 = vunpack.c.0.s8 %v2222
  %v2224 = vlaneseq
  %v2225 = vshrl.u32 %v2224, 7
  %v2226 = vsub.s32 %v2223, %v2225
  %v2227 = vrot.slane %v2213, %v2226
  %v2228 = vcombine.low %v2163, %v2179
  %v2229 = vcombine.high %v2163, %v2179
  %v2231 = vunpack.c.l.s4 1934713408
  %v2232 = vunpack.c.0.s8 %v2231
  %v2233 = vlaneseq
  %v2234 = vshrl.u32 %v2233, 7
  %v2235 = vsub.s32 %v2232, %v2234
  %v2236 = vrot.slane %v2228, %v2235
  %v2238 = vunpack.c.l.s4 1934713408
  %v2239 = vunpack.c.0.s8 %v2238
  %v2240 = vlaneseq
  %v2241 = vshrl.u32 %v2240, 7
  %v2242 = vsub.s32 %v2239, %v2241
  %v2243 = vrot.slane %v2229, %v2242
  %v2244 = vcombine.low %v2188, %v2220
  %v2245 = vcombine.high %v2188, %v2220
  %v2246 = vcombine.low %v2195, %v2227
  %v2247 = vcombine.high %v2195, %v2227
  %v2248 = vcombine.low %v2204, %v2236
  %v2249 = vcombine.high %v2204, %v2236
  %v2250 = vcombine.low %v2211, %v2243
  %v2251 = vcombine.high %v2211, %v2243
  %v2252 = vcombine.low %v2108, %v2110
  %v2253 = vcombine.high %v2108, %v2110
  %v2255 = vunpack.c.l.s4 1983009808
  %v2256 = vunpack.c.0.s8 %v2255
  %v2257 = vlaneseq
  %v2258 = vshrl.u32 %v2257, 7
  %v2259 = vsub.s32 %v2256, %v2258
  %v2260 = vrot.slane %v2252, %v2259
  %v2262 = vunpack.c.l.s4 1983009808
  %v2263 = vunpack.c.0.s8 %v2262
  %v2264 = vlaneseq
  %v2265 = vshrl.u32 %v2264, 7
  %v2266 = vsub.s32 %v2263, %v2265
  %v2267 = vrot.slane %v2253, %v2266
  %v2268 = vcombine.low %v2109, %v2111
  %v2269 = vcombine.high %v2109, %v2111
  %v2271 = vunpack.c.l.s4 1983009808
  %v2272 = vunpack.c.0.s8 %v2271
  %v2273 = vlaneseq
  %v2274 = vshrl.u32 %v2273, 7
  %v2275 = vsub.s32 %v2272, %v2274
  %v2276 = vrot.slane %v2268, %v2275
  %v2278 = vunpack.c.l.s4 1983009808
  %v2279 = vunpack.c.0.s8 %v2278
  %v2280 = vlaneseq
  %v2281 = vshrl.u32 %v2280, 7
  %v2282 = vsub.s32 %v2279, %v2281
  %v2283 = vrot.slane %v2269, %v2282
  %v2284 = vcombine.low %v2112, %v2114
  %v2285 = vcombine.high %v2112, %v2114
  %v2287 = vunpack.c.l.s4 1983009808
  %v2288 = vunpack.c.0.s8 %v2287
  %v2289 = vlaneseq
  %v2290 = vshrl.u32 %v2289, 7
  %v2291 = vsub.s32 %v2288, %v2290
  %v2292 = vrot.slane %v2284, %v2291
  %v2294 = vunpack.c.l.s4 1983009808
  %v2295 = vunpack.c.0.s8 %v2294
  %v2296 = vlaneseq
  %v2297 = vshrl.u32 %v2296, 7
  %v2298 = vsub.s32 %v2295, %v2297
  %v2299 = vrot.slane %v2285, %v2298
  %v2300 = vcombine.low %v2113, %v2115
  %v2301 = vcombine.high %v2113, %v2115
  %v2303 = vunpack.c.l.s4 1983009808
  %v2304 = vunpack.c.0.s8 %v2303
  %v2305 = vlaneseq
  %v2306 = vshrl.u32 %v2305, 7
  %v2307 = vsub.s32 %v2304, %v2306
  %v2308 = vrot.slane %v2300, %v2307
  %v2310 = vunpack.c.l.s4 1983009808
  %v2311 = vunpack.c.0.s8 %v2310
  %v2312 = vlaneseq
  %v2313 = vshrl.u32 %v2312, 7
  %v2314 = vsub.s32 %v2311, %v2313
  %v2315 = vrot.slane %v2301, %v2314
  %v2316 = vcombine.low %v2260, %v2276
  %v2317 = vcombine.high %v2260, %v2276
  %v2319 = vunpack.c.l.s4 1934713408
  %v2320 = vunpack.c.0.s8 %v2319
  %v2321 = vlaneseq
  %v2322 = vshrl.u32 %v2321, 7
  %v2323 = vsub.s32 %v2320, %v2322
  %v2324 = vrot.slane %v2316, %v2323
  %v2326 = vunpack.c.l.s4 1934713408
  %v2327 = vunpack.c.0.s8 %v2326
  %v2328 = vlaneseq
  %v2329 = vshrl.u32 %v2328, 7
  %v2330 = vsub.s32 %v2327, %v2329
  %v2331 = vrot.slane %v2317, %v2330
  %v2332 = vcombine.low %v2267, %v2283
  %v2333 = vcombine.high %v2267, %v2283
  %v2335 = vunpack.c.l.s4 1934713408
  %v2336 = vunpack.c.0.s8 %v2335
  %v2337 = vlaneseq
  %v2338 = vshrl.u32 %v2337, 7
  %v2339 = vsub.s32 %v2336, %v2338
  %v2340 = vrot.slane %v2332, %v2339
  %v2342 = vunpack.c.l.s4 1934713408
  %v2343 = vunpack.c.0.s8 %v2342
  %v2344 = vlaneseq
  %v2345 = vshrl.u32 %v2344, 7
  %v2346 = vsub.s32 %v2343, %v2345
  %v2347 = vrot.slane %v2333, %v2346
  %v2348 = vcombine.low %v2292, %v2308
  %v2349 = vcombine.high %v2292, %v2308
  %v2351 = vunpack.c.l.s4 1934713408
  %v2352 = vunpack.c.0.s8 %v2351
  %v2353 = vlaneseq
  %v2354 = vshrl.u32 %v2353, 7
  %v2355 = vsub.s32 %v2352, %v2354
  %v2356 = vrot.slane %v2348, %v2355
  %v2358 = vunpack.c.l.s4 1934713408
  %v2359 = vunpack.c.0.s8 %v2358
  %v2360 = vlaneseq
  %v2361 = vshrl.u32 %v2360, 7
  %v2362 = vsub.s32 %v2359, %v2361
  %v2363 = vrot.slane %v2349, %v2362
  %v2364 = vcombine.low %v2299, %v2315
  %v2365 = vcombine.high %v2299, %v2315
  %v2367 = vunpack.c.l.s4 1934713408
  %v2368 = vunpack.c.0.s8 %v2367
  %v2369 = vlaneseq
  %v2370 = vshrl.u32 %v2369, 7
  %v2371 = vsub.s32 %v2368, %v2370
  %v2372 = vrot.slane %v2364, %v2371
  %v2374 = vunpack.c.l.s4 1934713408
  %v2375 = vunpack.c.0.s8 %v2374
  %v2376 = vlaneseq
  %v2377 = vshrl.u32 %v2376, 7
  %v2378 = vsub.s32 %v2375, %v2377
  %v2379 = vrot.slane %v2365, %v2378
  %v2380 = vcombine.low %v2324, %v2356
  %v2381 = vcombine.high %v2324, %v2356
  %v2382 = vcombine.low %v2331, %v2363
  %v2383 = vcombine.high %v2331, %v2363
  %v2384 = vcombine.low %v2340, %v2372
  %v2385 = vcombine.high %v2340, %v2372
  %v2386 = vcombine.low %v2347, %v2379
  %v2387 = vcombine.high %v2347, %v2379
  %v2388 = vcombine.low %v2244, %v2246
  %v2389 = vcombine.high %v2244, %v2246
  %v2391 = vunpack.c.l.s4 1983009808
  %v2392 = vunpack.c.0.s8 %v2391
  %v2393 = vlaneseq
  %v2394 = vshrl.u32 %v2393, 7
  %v2395 = vsub.s32 %v2392, %v2394
  %v2396 = vrot.slane %v2388, %v2395
  %v2398 = vunpack.c.l.s4 1983009808
  %v2399 = vunpack.c.0.s8 %v2398
  %v2400 = vlaneseq
  %v2401 = vshrl.u32 %v2400, 7
  %v2402 = vsub.s32 %v2399, %v2401
  %v2403 = vrot.slane %v2389, %v2402
  %v2404 = vcombine.low %v2245, %v2247
  %v2405 = vcombine.high %v2245, %v2247
  %v2407 = vunpack.c.l.s4 1983009808
  %v2408 = vunpack.c.0.s8 %v2407
  %v2409 = vlaneseq
  %v2410 = vshrl.u32 %v2409, 7
  %v2411 = vsub.s32 %v2408, %v2410
  %v2412 = vrot.slane %v2404, %v2411
  %v2414 = vunpack.c.l.s4 1983009808
  %v2415 = vunpack.c.0.s8 %v2414
  %v2416 = vlaneseq
  %v2417 = vshrl.u32 %v2416, 7
  %v2418 = vsub.s32 %v2415, %v2417
  %v2419 = vrot.slane %v2405, %v2418
  %v2420 = vcombine.low %v2248, %v2250
  %v2421 = vcombine.high %v2248, %v2250
  %v2423 = vunpack.c.l.s4 1983009808
  %v2424 = vunpack.c.0.s8 %v2423
  %v2425 = vlaneseq
  %v2426 = vshrl.u32 %v2425, 7
  %v2427 = vsub.s32 %v2424, %v2426
  %v2428 = vrot.slane %v2420, %v2427
  %v2430 = vunpack.c.l.s4 1983009808
  %v2431 = vunpack.c.0.s8 %v2430
  %v2432 = vlaneseq
  %v2433 = vshrl.u32 %v2432, 7
  %v2434 = vsub.s32 %v2431, %v2433
  %v2435 = vrot.slane %v2421, %v2434
  %v2436 = vcombine.low %v2249, %v2251
  %v2437 = vcombine.high %v2249, %v2251
  %v2439 = vunpack.c.l.s4 1983009808
  %v2440 = vunpack.c.0.s8 %v2439
  %v2441 = vlaneseq
  %v2442 = vshrl.u32 %v2441, 7
  %v2443 = vsub.s32 %v2440, %v2442
  %v2444 = vrot.slane %v2436, %v2443
  %v2446 = vunpack.c.l.s4 1983009808
  %v2447 = vunpack.c.0.s8 %v2446
  %v2448 = vlaneseq
  %v2449 = vshrl.u32 %v2448, 7
  %v2450 = vsub.s32 %v2447, %v2449
  %v2451 = vrot.slane %v2437, %v2450
  %v2452 = vcombine.low %v2396, %v2412
  %v2453 = vcombine.high %v2396, %v2412
  %v2455 = vunpack.c.l.s4 1934713408
  %v2456 = vunpack.c.0.s8 %v2455
  %v2457 = vlaneseq
  %v2458 = vshrl.u32 %v2457, 7
  %v2459 = vsub.s32 %v2456, %v2458
  %v2460 = vrot.slane %v2452, %v2459
  %v2462 = vunpack.c.l.s4 1934713408
  %v2463 = vunpack.c.0.s8 %v2462
  %v2464 = vlaneseq
  %v2465 = vshrl.u32 %v2464, 7
  %v2466 = vsub.s32 %v2463, %v2465
  %v2467 = vrot.slane %v2453, %v2466
  %v2468 = vcombine.low %v2403, %v2419
  %v2469 = vcombine.high %v2403, %v2419
  %v2471 = vunpack.c.l.s4 1934713408
  %v2472 = vunpack.c.0.s8 %v2471
  %v2473 = vlaneseq
  %v2474 = vshrl.u32 %v2473, 7
  %v2475 = vsub.s32 %v2472, %v2474
  %v2476 = vrot.slane %v2468, %v2475
  %v2478 = vunpack.c.l.s4 1934713408
  %v2479 = vunpack.c.0.s8 %v2478
  %v2480 = vlaneseq
  %v2481 = vshrl.u32 %v2480, 7
  %v2482 = vsub.s32 %v2479, %v2481
  %v2483 = vrot.slane %v2469, %v2482
  %v2484 = vcombine.low %v2428, %v2444
  %v2485 = vcombine.high %v2428, %v2444
  %v2487 = vunpack.c.l.s4 1934713408
  %v2488 = vunpack.c.0.s8 %v2487
  %v2489 = vlaneseq
  %v2490 = vshrl.u32 %v2489, 7
  %v2491 = vsub.s32 %v2488, %v2490
  %v2492 = vrot.slane %v2484, %v2491
  %v2494 = vunpack.c.l.s4 1934713408
  %v2495 = vunpack.c.0.s8 %v2494
  %v2496 = vlaneseq
  %v2497 = vshrl.u32 %v2496, 7
  %v2498 = vsub.s32 %v2495, %v2497
  %v2499 = vrot.slane %v2485, %v2498
  %v2500 = vcombine.low %v2435, %v2451
  %v2501 = vcombine.high %v2435, %v2451
  %v2503 = vunpack.c.l.s4 1934713408
  %v2504 = vunpack.c.0.s8 %v2503
  %v2505 = vlaneseq
  %v2506 = vshrl.u32 %v2505, 7
  %v2507 = vsub.s32 %v2504, %v2506
  %v2508 = vrot.slane %v2500, %v2507
  %v2510 = vunpack.c.l.s4 1934713408
  %v2511 = vunpack.c.0.s8 %v2510
  %v2512 = vlaneseq
  %v2513 = vshrl.u32 %v2512, 7
  %v2514 = vsub.s32 %v2511, %v2513
  %v2515 = vrot.slane %v2501, %v2514
  %v2516 = vcombine.low %v2460, %v2492
  %v2517 = vcombine.high %v2460, %v2492
  %v2518 = vcombine.low %v2467, %v2499
  %v2519 = vcombine.high %v2467, %v2499
  %v2520 = vcombine.low %v2476, %v2508
  %v2521 = vcombine.high %v2476, %v2508
  %v2522 = vcombine.low %v2483, %v2515
  %v2523 = vcombine.high %v2483, %v2515
  %v2525 = vsel %vm380, %v1212, 0
  %v2528 = vsel %vm380, %v1348, 0
  %v2531 = vsel %vm380, %v1796, 0
  %v2534 = vsel %vm380, %v1932, 0
  %2536 = vmatprep.subr.mxu0 0.0
  %2537 = vmatpush1.xpose.msra.mxu0 0.0
  %2538 = vmatprep.subr.mxu0 0.0
  %2539 = vmatpush1.xpose.msra.mxu0 0.0
  %2540 = vmatprep.subr.mxu0 0.0
  %2541 = vmatpush1.xpose.msra.mxu0 0.0
  %2542 = vmatprep.subr.mxu0 0.0
  %2543 = vmatpush1.xpose.msra.mxu0 0.0
  %2544 = vmatprep.subr.mxu0 0.0
  %2545 = vmatpush1.xpose.msra.mxu0 0.0
  %2546 = vmatprep.subr.mxu0 0.0
  %2547 = vmatpush1.xpose.msra.mxu0 0.0
  %2548 = vmatprep.subr.mxu0 0.0
  %2549 = vmatpush1.xpose.msra.mxu0 0.0
  %2550 = vmatprep.subr.mxu0 0.0
  %2551 = vmatpush1.xpose.msra.mxu0 0.0
  %2552 = vmatprep.subr.mxu0 0.0
  %2553 = vmatpush1.xpose.msra.mxu0 0.0
  %2554 = vmatprep.subr.mxu0 0.0
  %2555 = vmatpush1.xpose.msra.mxu0 0.0
  %2556 = vmatprep.subr.mxu0 0.0
  %2557 = vmatpush1.xpose.msra.mxu0 0.0
  %2558 = vmatprep.subr.mxu0 0.0
  %2559 = vmatpush1.xpose.msra.mxu0 0.0
  %2560 = vmatprep.subr.mxu0 0.0
  %2561 = vmatpush1.xpose.msra.mxu0 0.0
  %2562 = vmatprep.subr.mxu0 0.0
  %2563 = vmatpush1.xpose.msra.mxu0 0.0
  %2564 = vmatprep.subr.mxu0 0.0
  %2565 = vmatpush1.xpose.msra.mxu0 %v2534
  %2566 = vmatprep.subr.mxu0 0.0
  %2567 = vmatpush1.xpose.msra.mxu0 %v2531
  %2568 = vmatprep.subr.mxu0 0.0
  %2569 = vmatpush2.xpose.msra.mxu0 0.0
  %2570 = vmatprep.subr.mxu0 0.0
  %2571 = vmatpush2.xpose.msra.mxu0 0.0
  %2572 = vmatprep.subr.mxu0 0.0
  %2573 = vmatpush2.xpose.msra.mxu0 0.0
  %2574 = vmatprep.subr.mxu0 0.0
  %2575 = vmatpush2.xpose.msra.mxu0 0.0
  %2576 = vmatprep.subr.mxu0 0.0
  %2577 = vmatpush2.xpose.msra.mxu0 0.0
  %2578 = vmatprep.subr.mxu0 0.0
  %2579 = vmatpush2.xpose.msra.mxu0 0.0
  %2580 = vmatprep.subr.mxu0 0.0
  %2581 = vmatpush2.xpose.msra.mxu0 0.0
  %2582 = vmatprep.subr.mxu0 0.0
  %2583 = vmatpush2.xpose.msra.mxu0 0.0
  %2584 = vmatprep.subr.mxu0 0.0
  %2585 = vmatpush2.xpose.msra.mxu0 0.0
  %2586 = vmatprep.subr.mxu0 0.0
  %2587 = vmatpush2.xpose.msra.mxu0 0.0
  %2588 = vmatprep.subr.mxu0 0.0
  %2589 = vmatpush2.xpose.msra.mxu0 0.0
  %2590 = vmatprep.subr.mxu0 0.0
  %2591 = vmatpush2.xpose.msra.mxu0 0.0
  %2592 = vmatprep.subr.mxu0 0.0
  %2593 = vmatpush2.xpose.msra.mxu0 0.0
  %2594 = vmatprep.subr.mxu0 0.0
  %2595 = vmatpush2.xpose.msra.mxu0 0.0
  %2596 = vmatprep.subr.mxu0 0.0
  %2597 = vmatpush2.xpose.msra.mxu0 0.0
  %2598 = vmatprep.subr.mxu0 0.0
  %2599 = vmatpush2.xpose.msra.mxu0 0.0
  %2600 = vmatprep.mubr.f32.mxu0 0.0
  %2601 = vmatmul.mubr.f32.gmra.mxu0 %v2525
  %v2602 = vpop.f32.mrf.mxu0
  %v2603 = vadd.f32 0.0, %v2602
  %v2604 = vpop.f32.mrf.mxu0
  %2605 = vmatprep.mubr.f32.mxu0 0.0
  %2606 = vmatmul.mubr.f32.gmra.mxu0 %v2528
  %v2607 = vpop.f32.mrf.mxu0
  %v2608 = vadd.f32 0.0, %v2607
  %v2609 = vpop.f32.mrf.mxu0
  %2610 = vdwg.mxu0
  %v2612 = vsel %vm380, %v1213, 0
  %v2615 = vsel %vm380, %v1349, 0
  %v2618 = vsel %vm380, %v1797, 0
  %v2621 = vsel %vm380, %v1933, 0
  %2623 = vmatprep.subr.mxu0 0.0
  %2624 = vmatpush1.xpose.msra.mxu0 0.0
  %2625 = vmatprep.subr.mxu0 0.0
  %2626 = vmatpush1.xpose.msra.mxu0 0.0
  %2627 = vmatprep.subr.mxu0 0.0
  %2628 = vmatpush1.xpose.msra.mxu0 0.0
  %2629 = vmatprep.subr.mxu0 0.0
  %2630 = vmatpush1.xpose.msra.mxu0 0.0
  %2631 = vmatprep.subr.mxu0 0.0
  %2632 = vmatpush1.xpose.msra.mxu0 0.0
  %2633 = vmatprep.subr.mxu0 0.0
  %2634 = vmatpush1.xpose.msra.mxu0 0.0
  %2635 = vmatprep.subr.mxu0 0.0
  %2636 = vmatpush1.xpose.msra.mxu0 0.0
  %2637 = vmatprep.subr.mxu0 0.0
  %2638 = vmatpush1.xpose.msra.mxu0 0.0
  %2639 = vmatprep.subr.mxu0 0.0
  %2640 = vmatpush1.xpose.msra.mxu0 0.0
  %2641 = vmatprep.subr.mxu0 0.0
  %2642 = vmatpush1.xpose.msra.mxu0 0.0
  %2643 = vmatprep.subr.mxu0 0.0
  %2644 = vmatpush1.xpose.msra.mxu0 0.0
  %2645 = vmatprep.subr.mxu0 0.0
  %2646 = vmatpush1.xpose.msra.mxu0 0.0
  %2647 = vmatprep.subr.mxu0 0.0
  %2648 = vmatpush1.xpose.msra.mxu0 0.0
  %2649 = vmatprep.subr.mxu0 0.0
  %2650 = vmatpush1.xpose.msra.mxu0 0.0
  %2651 = vmatprep.subr.mxu0 0.0
  %2652 = vmatpush1.xpose.msra.mxu0 %v2621
  %2653 = vmatprep.subr.mxu0 0.0
  %2654 = vmatpush1.xpose.msra.mxu0 %v2618
  %2655 = vmatprep.subr.mxu0 0.0
  %2656 = vmatpush2.xpose.msra.mxu0 0.0
  %2657 = vmatprep.subr.mxu0 0.0
  %2658 = vmatpush2.xpose.msra.mxu0 0.0
  %2659 = vmatprep.subr.mxu0 0.0
  %2660 = vmatpush2.xpose.msra.mxu0 0.0
  %2661 = vmatprep.subr.mxu0 0.0
  %2662 = vmatpush2.xpose.msra.mxu0 0.0
  %2663 = vmatprep.subr.mxu0 0.0
  %2664 = vmatpush2.xpose.msra.mxu0 0.0
  %2665 = vmatprep.subr.mxu0 0.0
  %2666 = vmatpush2.xpose.msra.mxu0 0.0
  %2667 = vmatprep.subr.mxu0 0.0
  %2668 = vmatpush2.xpose.msra.mxu0 0.0
  %2669 = vmatprep.subr.mxu0 0.0
  %2670 = vmatpush2.xpose.msra.mxu0 0.0
  %2671 = vmatprep.subr.mxu0 0.0
  %2672 = vmatpush2.xpose.msra.mxu0 0.0
  %2673 = vmatprep.subr.mxu0 0.0
  %2674 = vmatpush2.xpose.msra.mxu0 0.0
  %2675 = vmatprep.subr.mxu0 0.0
  %2676 = vmatpush2.xpose.msra.mxu0 0.0
  %2677 = vmatprep.subr.mxu0 0.0
  %2678 = vmatpush2.xpose.msra.mxu0 0.0
  %2679 = vmatprep.subr.mxu0 0.0
  %2680 = vmatpush2.xpose.msra.mxu0 0.0
  %2681 = vmatprep.subr.mxu0 0.0
  %2682 = vmatpush2.xpose.msra.mxu0 0.0
  %2683 = vmatprep.subr.mxu0 0.0
  %2684 = vmatpush2.xpose.msra.mxu0 0.0
  %2685 = vmatprep.subr.mxu0 0.0
  %2686 = vmatpush2.xpose.msra.mxu0 0.0
  %2687 = vmatprep.mubr.f32.mxu0 0.0
  %2688 = vmatmul.mubr.f32.gmra.mxu0 %v2612
  %v2689 = vpop.f32.mrf.mxu0
  %v2690 = vadd.f32 0.0, %v2689
  %v2691 = vpop.f32.mrf.mxu0
  %2692 = vmatprep.mubr.f32.mxu0 0.0
  %2693 = vmatmul.mubr.f32.gmra.mxu0 %v2615
  %v2694 = vpop.f32.mrf.mxu0
  %v2695 = vadd.f32 0.0, %v2694
  %v2696 = vpop.f32.mrf.mxu0
  %2697 = vdwg.mxu0
  %v2699 = vsel %vm380, %v1214, 0
  %v2702 = vsel %vm380, %v1350, 0
  %v2705 = vsel %vm380, %v1798, 0
  %v2708 = vsel %vm380, %v1934, 0
  %2710 = vmatprep.subr.mxu0 0.0
  %2711 = vmatpush1.xpose.msra.mxu0 0.0
  %2712 = vmatprep.subr.mxu0 0.0
  %2713 = vmatpush1.xpose.msra.mxu0 0.0
  %2714 = vmatprep.subr.mxu0 0.0
  %2715 = vmatpush1.xpose.msra.mxu0 0.0
  %2716 = vmatprep.subr.mxu0 0.0
  %2717 = vmatpush1.xpose.msra.mxu0 0.0
  %2718 = vmatprep.subr.mxu0 0.0
  %2719 = vmatpush1.xpose.msra.mxu0 0.0
  %2720 = vmatprep.subr.mxu0 0.0
  %2721 = vmatpush1.xpose.msra.mxu0 0.0
  %2722 = vmatprep.subr.mxu0 0.0
  %2723 = vmatpush1.xpose.msra.mxu0 0.0
  %2724 = vmatprep.subr.mxu0 0.0
  %2725 = vmatpush1.xpose.msra.mxu0 0.0
  %2726 = vmatprep.subr.mxu0 0.0
  %2727 = vmatpush1.xpose.msra.mxu0 0.0
  %2728 = vmatprep.subr.mxu0 0.0
  %2729 = vmatpush1.xpose.msra.mxu0 0.0
  %2730 = vmatprep.subr.mxu0 0.0
  %2731 = vmatpush1.xpose.msra.mxu0 0.0
  %2732 = vmatprep.subr.mxu0 0.0
  %2733 = vmatpush1.xpose.msra.mxu0 0.0
  %2734 = vmatprep.subr.mxu0 0.0
  %2735 = vmatpush1.xpose.msra.mxu0 0.0
  %2736 = vmatprep.subr.mxu0 0.0
  %2737 = vmatpush1.xpose.msra.mxu0 0.0
  %2738 = vmatprep.subr.mxu0 0.0
  %2739 = vmatpush1.xpose.msra.mxu0 %v2708
  %2740 = vmatprep.subr.mxu0 0.0
  %2741 = vmatpush1.xpose.msra.mxu0 %v2705
  %2742 = vmatprep.subr.mxu0 0.0
  %2743 = vmatpush2.xpose.msra.mxu0 0.0
  %2744 = vmatprep.subr.mxu0 0.0
  %2745 = vmatpush2.xpose.msra.mxu0 0.0
  %2746 = vmatprep.subr.mxu0 0.0
  %2747 = vmatpush2.xpose.msra.mxu0 0.0
  %2748 = vmatprep.subr.mxu0 0.0
  %2749 = vmatpush2.xpose.msra.mxu0 0.0
  %2750 = vmatprep.subr.mxu0 0.0
  %2751 = vmatpush2.xpose.msra.mxu0 0.0
  %2752 = vmatprep.subr.mxu0 0.0
  %2753 = vmatpush2.xpose.msra.mxu0 0.0
  %2754 = vmatprep.subr.mxu0 0.0
  %2755 = vmatpush2.xpose.msra.mxu0 0.0
  %2756 = vmatprep.subr.mxu0 0.0
  %2757 = vmatpush2.xpose.msra.mxu0 0.0
  %2758 = vmatprep.subr.mxu0 0.0
  %2759 = vmatpush2.xpose.msra.mxu0 0.0
  %2760 = vmatprep.subr.mxu0 0.0
  %2761 = vmatpush2.xpose.msra.mxu0 0.0
  %2762 = vmatprep.subr.mxu0 0.0
  %2763 = vmatpush2.xpose.msra.mxu0 0.0
  %2764 = vmatprep.subr.mxu0 0.0
  %2765 = vmatpush2.xpose.msra.mxu0 0.0
  %2766 = vmatprep.subr.mxu0 0.0
  %2767 = vmatpush2.xpose.msra.mxu0 0.0
  %2768 = vmatprep.subr.mxu0 0.0
  %2769 = vmatpush2.xpose.msra.mxu0 0.0
  %2770 = vmatprep.subr.mxu0 0.0
  %2771 = vmatpush2.xpose.msra.mxu0 0.0
  %2772 = vmatprep.subr.mxu0 0.0
  %2773 = vmatpush2.xpose.msra.mxu0 0.0
  %2774 = vmatprep.mubr.f32.mxu0 0.0
  %2775 = vmatmul.mubr.f32.gmra.mxu0 %v2699
  %v2776 = vpop.f32.mrf.mxu0
  %v2777 = vadd.f32 0.0, %v2776
  %v2778 = vpop.f32.mrf.mxu0
  %2779 = vmatprep.mubr.f32.mxu0 0.0
  %2780 = vmatmul.mubr.f32.gmra.mxu0 %v2702
  %v2781 = vpop.f32.mrf.mxu0
  %v2782 = vadd.f32 0.0, %v2781
  %v2783 = vpop.f32.mrf.mxu0
  %2784 = vdwg.mxu0
  %v2786 = vsel %vm380, %v1215, 0
  %v2789 = vsel %vm380, %v1351, 0
  %v2792 = vsel %vm380, %v1799, 0
  %v2795 = vsel %vm380, %v1935, 0
  %2797 = vmatprep.subr.mxu0 0.0
  %2798 = vmatpush1.xpose.msra.mxu0 0.0
  %2799 = vmatprep.subr.mxu0 0.0
  %2800 = vmatpush1.xpose.msra.mxu0 0.0
  %2801 = vmatprep.subr.mxu0 0.0
  %2802 = vmatpush1.xpose.msra.mxu0 0.0
  %2803 = vmatprep.subr.mxu0 0.0
  %2804 = vmatpush1.xpose.msra.mxu0 0.0
  %2805 = vmatprep.subr.mxu0 0.0
  %2806 = vmatpush1.xpose.msra.mxu0 0.0
  %2807 = vmatprep.subr.mxu0 0.0
  %2808 = vmatpush1.xpose.msra.mxu0 0.0
  %2809 = vmatprep.subr.mxu0 0.0
  %2810 = vmatpush1.xpose.msra.mxu0 0.0
  %2811 = vmatprep.subr.mxu0 0.0
  %2812 = vmatpush1.xpose.msra.mxu0 0.0
  %2813 = vmatprep.subr.mxu0 0.0
  %2814 = vmatpush1.xpose.msra.mxu0 0.0
  %2815 = vmatprep.subr.mxu0 0.0
  %2816 = vmatpush1.xpose.msra.mxu0 0.0
  %2817 = vmatprep.subr.mxu0 0.0
  %2818 = vmatpush1.xpose.msra.mxu0 0.0
  %2819 = vmatprep.subr.mxu0 0.0
  %2820 = vmatpush1.xpose.msra.mxu0 0.0
  %2821 = vmatprep.subr.mxu0 0.0
  %2822 = vmatpush1.xpose.msra.mxu0 0.0
  %2823 = vmatprep.subr.mxu0 0.0
  %2824 = vmatpush1.xpose.msra.mxu0 0.0
  %2825 = vmatprep.subr.mxu0 0.0
  %2826 = vmatpush1.xpose.msra.mxu0 %v2795
  %2827 = vmatprep.subr.mxu0 0.0
  %2828 = vmatpush1.xpose.msra.mxu0 %v2792
  %2829 = vmatprep.subr.mxu0 0.0
  %2830 = vmatpush2.xpose.msra.mxu0 0.0
  %2831 = vmatprep.subr.mxu0 0.0
  %2832 = vmatpush2.xpose.msra.mxu0 0.0
  %2833 = vmatprep.subr.mxu0 0.0
  %2834 = vmatpush2.xpose.msra.mxu0 0.0
  %2835 = vmatprep.subr.mxu0 0.0
  %2836 = vmatpush2.xpose.msra.mxu0 0.0
  %2837 = vmatprep.subr.mxu0 0.0
  %2838 = vmatpush2.xpose.msra.mxu0 0.0
  %2839 = vmatprep.subr.mxu0 0.0
  %2840 = vmatpush2.xpose.msra.mxu0 0.0
  %2841 = vmatprep.subr.mxu0 0.0
  %2842 = vmatpush2.xpose.msra.mxu0 0.0
  %2843 = vmatprep.subr.mxu0 0.0
  %2844 = vmatpush2.xpose.msra.mxu0 0.0
  %2845 = vmatprep.subr.mxu0 0.0
  %2846 = vmatpush2.xpose.msra.mxu0 0.0
  %2847 = vmatprep.subr.mxu0 0.0
  %2848 = vmatpush2.xpose.msra.mxu0 0.0
  %2849 = vmatprep.subr.mxu0 0.0
  %2850 = vmatpush2.xpose.msra.mxu0 0.0
  %2851 = vmatprep.subr.mxu0 0.0
  %2852 = vmatpush2.xpose.msra.mxu0 0.0
  %2853 = vmatprep.subr.mxu0 0.0
  %2854 = vmatpush2.xpose.msra.mxu0 0.0
  %2855 = vmatprep.subr.mxu0 0.0
  %2856 = vmatpush2.xpose.msra.mxu0 0.0
  %2857 = vmatprep.subr.mxu0 0.0
  %2858 = vmatpush2.xpose.msra.mxu0 0.0
  %2859 = vmatprep.subr.mxu0 0.0
  %2860 = vmatpush2.xpose.msra.mxu0 0.0
  %2861 = vmatprep.mubr.f32.mxu0 0.0
  %2862 = vmatmul.mubr.f32.gmra.mxu0 %v2786
  %v2863 = vpop.f32.mrf.mxu0
  %v2864 = vadd.f32 0.0, %v2863
  %v2865 = vpop.f32.mrf.mxu0
  %2866 = vmatprep.mubr.f32.mxu0 0.0
  %2867 = vmatmul.mubr.f32.gmra.mxu0 %v2789
  %v2868 = vpop.f32.mrf.mxu0
  %v2869 = vadd.f32 0.0, %v2868
  %v2870 = vpop.f32.mrf.mxu0
  %2871 = vdwg.mxu0
  %v2873 = vsel %vm380, %v1216, 0
  %v2876 = vsel %vm380, %v1352, 0
  %v2879 = vsel %vm380, %v1800, 0
  %v2882 = vsel %vm380, %v1936, 0
  %2884 = vmatprep.subr.mxu0 0.0
  %2885 = vmatpush1.xpose.msra.mxu0 0.0
  %2886 = vmatprep.subr.mxu0 0.0
  %2887 = vmatpush1.xpose.msra.mxu0 0.0
  %2888 = vmatprep.subr.mxu0 0.0
  %2889 = vmatpush1.xpose.msra.mxu0 0.0
  %2890 = vmatprep.subr.mxu0 0.0
  %2891 = vmatpush1.xpose.msra.mxu0 0.0
  %2892 = vmatprep.subr.mxu0 0.0
  %2893 = vmatpush1.xpose.msra.mxu0 0.0
  %2894 = vmatprep.subr.mxu0 0.0
  %2895 = vmatpush1.xpose.msra.mxu0 0.0
  %2896 = vmatprep.subr.mxu0 0.0
  %2897 = vmatpush1.xpose.msra.mxu0 0.0
  %2898 = vmatprep.subr.mxu0 0.0
  %2899 = vmatpush1.xpose.msra.mxu0 0.0
  %2900 = vmatprep.subr.mxu0 0.0
  %2901 = vmatpush1.xpose.msra.mxu0 0.0
  %2902 = vmatprep.subr.mxu0 0.0
  %2903 = vmatpush1.xpose.msra.mxu0 0.0
  %2904 = vmatprep.subr.mxu0 0.0
  %2905 = vmatpush1.xpose.msra.mxu0 0.0
  %2906 = vmatprep.subr.mxu0 0.0
  %2907 = vmatpush1.xpose.msra.mxu0 0.0
  %2908 = vmatprep.subr.mxu0 0.0
  %2909 = vmatpush1.xpose.msra.mxu0 0.0
  %2910 = vmatprep.subr.mxu0 0.0
  %2911 = vmatpush1.xpose.msra.mxu0 0.0
  %2912 = vmatprep.subr.mxu0 0.0
  %2913 = vmatpush1.xpose.msra.mxu0 %v2882
  %2914 = vmatprep.subr.mxu0 0.0
  %2915 = vmatpush1.xpose.msra.mxu0 %v2879
  %2916 = vmatprep.subr.mxu0 0.0
  %2917 = vmatpush2.xpose.msra.mxu0 0.0
  %2918 = vmatprep.subr.mxu0 0.0
  %2919 = vmatpush2.xpose.msra.mxu0 0.0
  %2920 = vmatprep.subr.mxu0 0.0
  %2921 = vmatpush2.xpose.msra.mxu0 0.0
  %2922 = vmatprep.subr.mxu0 0.0
  %2923 = vmatpush2.xpose.msra.mxu0 0.0
  %2924 = vmatprep.subr.mxu0 0.0
  %2925 = vmatpush2.xpose.msra.mxu0 0.0
  %2926 = vmatprep.subr.mxu0 0.0
  %2927 = vmatpush2.xpose.msra.mxu0 0.0
  %2928 = vmatprep.subr.mxu0 0.0
  %2929 = vmatpush2.xpose.msra.mxu0 0.0
  %2930 = vmatprep.subr.mxu0 0.0
  %2931 = vmatpush2.xpose.msra.mxu0 0.0
  %2932 = vmatprep.subr.mxu0 0.0
  %2933 = vmatpush2.xpose.msra.mxu0 0.0
  %2934 = vmatprep.subr.mxu0 0.0
  %2935 = vmatpush2.xpose.msra.mxu0 0.0
  %2936 = vmatprep.subr.mxu0 0.0
  %2937 = vmatpush2.xpose.msra.mxu0 0.0
  %2938 = vmatprep.subr.mxu0 0.0
  %2939 = vmatpush2.xpose.msra.mxu0 0.0
  %2940 = vmatprep.subr.mxu0 0.0
  %2941 = vmatpush2.xpose.msra.mxu0 0.0
  %2942 = vmatprep.subr.mxu0 0.0
  %2943 = vmatpush2.xpose.msra.mxu0 0.0
  %2944 = vmatprep.subr.mxu0 0.0
  %2945 = vmatpush2.xpose.msra.mxu0 0.0
  %2946 = vmatprep.subr.mxu0 0.0
  %2947 = vmatpush2.xpose.msra.mxu0 0.0
  %2948 = vmatprep.mubr.f32.mxu0 0.0
  %2949 = vmatmul.mubr.f32.gmra.mxu0 %v2873
  %v2950 = vpop.f32.mrf.mxu0
  %v2951 = vadd.f32 0.0, %v2950
  %v2952 = vpop.f32.mrf.mxu0
  %2953 = vmatprep.mubr.f32.mxu0 0.0
  %2954 = vmatmul.mubr.f32.gmra.mxu0 %v2876
  %v2955 = vpop.f32.mrf.mxu0
  %v2956 = vadd.f32 0.0, %v2955
  %v2957 = vpop.f32.mrf.mxu0
  %2958 = vdwg.mxu0
  %v2960 = vsel %vm380, %v1217, 0
  %v2963 = vsel %vm380, %v1353, 0
  %v2966 = vsel %vm380, %v1801, 0
  %v2969 = vsel %vm380, %v1937, 0
  %2971 = vmatprep.subr.mxu0 0.0
  %2972 = vmatpush1.xpose.msra.mxu0 0.0
  %2973 = vmatprep.subr.mxu0 0.0
  %2974 = vmatpush1.xpose.msra.mxu0 0.0
  %2975 = vmatprep.subr.mxu0 0.0
  %2976 = vmatpush1.xpose.msra.mxu0 0.0
  %2977 = vmatprep.subr.mxu0 0.0
  %2978 = vmatpush1.xpose.msra.mxu0 0.0
  %2979 = vmatprep.subr.mxu0 0.0
  %2980 = vmatpush1.xpose.msra.mxu0 0.0
  %2981 = vmatprep.subr.mxu0 0.0
  %2982 = vmatpush1.xpose.msra.mxu0 0.0
  %2983 = vmatprep.subr.mxu0 0.0
  %2984 = vmatpush1.xpose.msra.mxu0 0.0
  %2985 = vmatprep.subr.mxu0 0.0
  %2986 = vmatpush1.xpose.msra.mxu0 0.0
  %2987 = vmatprep.subr.mxu0 0.0
  %2988 = vmatpush1.xpose.msra.mxu0 0.0
  %2989 = vmatprep.subr.mxu0 0.0
  %2990 = vmatpush1.xpose.msra.mxu0 0.0
  %2991 = vmatprep.subr.mxu0 0.0
  %2992 = vmatpush1.xpose.msra.mxu0 0.0
  %2993 = vmatprep.subr.mxu0 0.0
  %2994 = vmatpush1.xpose.msra.mxu0 0.0
  %2995 = vmatprep.subr.mxu0 0.0
  %2996 = vmatpush1.xpose.msra.mxu0 0.0
  %2997 = vmatprep.subr.mxu0 0.0
  %2998 = vmatpush1.xpose.msra.mxu0 0.0
  %2999 = vmatprep.subr.mxu0 0.0
  %3000 = vmatpush1.xpose.msra.mxu0 %v2969
  %3001 = vmatprep.subr.mxu0 0.0
  %3002 = vmatpush1.xpose.msra.mxu0 %v2966
  %3003 = vmatprep.subr.mxu0 0.0
  %3004 = vmatpush2.xpose.msra.mxu0 0.0
  %3005 = vmatprep.subr.mxu0 0.0
  %3006 = vmatpush2.xpose.msra.mxu0 0.0
  %3007 = vmatprep.subr.mxu0 0.0
  %3008 = vmatpush2.xpose.msra.mxu0 0.0
  %3009 = vmatprep.subr.mxu0 0.0
  %3010 = vmatpush2.xpose.msra.mxu0 0.0
  %3011 = vmatprep.subr.mxu0 0.0
  %3012 = vmatpush2.xpose.msra.mxu0 0.0
  %3013 = vmatprep.subr.mxu0 0.0
  %3014 = vmatpush2.xpose.msra.mxu0 0.0
  %3015 = vmatprep.subr.mxu0 0.0
  %3016 = vmatpush2.xpose.msra.mxu0 0.0
  %3017 = vmatprep.subr.mxu0 0.0
  %3018 = vmatpush2.xpose.msra.mxu0 0.0
  %3019 = vmatprep.subr.mxu0 0.0
  %3020 = vmatpush2.xpose.msra.mxu0 0.0
  %3021 = vmatprep.subr.mxu0 0.0
  %3022 = vmatpush2.xpose.msra.mxu0 0.0
  %3023 = vmatprep.subr.mxu0 0.0
  %3024 = vmatpush2.xpose.msra.mxu0 0.0
  %3025 = vmatprep.subr.mxu0 0.0
  %3026 = vmatpush2.xpose.msra.mxu0 0.0
  %3027 = vmatprep.subr.mxu0 0.0
  %3028 = vmatpush2.xpose.msra.mxu0 0.0
  %3029 = vmatprep.subr.mxu0 0.0
  %3030 = vmatpush2.xpose.msra.mxu0 0.0
  %3031 = vmatprep.subr.mxu0 0.0
  %3032 = vmatpush2.xpose.msra.mxu0 0.0
  %3033 = vmatprep.subr.mxu0 0.0
  %3034 = vmatpush2.xpose.msra.mxu0 0.0
  %3035 = vmatprep.mubr.f32.mxu0 0.0
  %3036 = vmatmul.mubr.f32.gmra.mxu0 %v2960
  %v3037 = vpop.f32.mrf.mxu0
  %v3038 = vadd.f32 0.0, %v3037
  %v3039 = vpop.f32.mrf.mxu0
  %3040 = vmatprep.mubr.f32.mxu0 0.0
  %3041 = vmatmul.mubr.f32.gmra.mxu0 %v2963
  %v3042 = vpop.f32.mrf.mxu0
  %v3043 = vadd.f32 0.0, %v3042
  %v3044 = vpop.f32.mrf.mxu0
  %3045 = vdwg.mxu0
  %v3047 = vsel %vm380, %v1218, 0
  %v3050 = vsel %vm380, %v1354, 0
  %v3053 = vsel %vm380, %v1802, 0
  %v3056 = vsel %vm380, %v1938, 0
  %3058 = vmatprep.subr.mxu0 0.0
  %3059 = vmatpush1.xpose.msra.mxu0 0.0
  %3060 = vmatprep.subr.mxu0 0.0
  %3061 = vmatpush1.xpose.msra.mxu0 0.0
  %3062 = vmatprep.subr.mxu0 0.0
  %3063 = vmatpush1.xpose.msra.mxu0 0.0
  %3064 = vmatprep.subr.mxu0 0.0
  %3065 = vmatpush1.xpose.msra.mxu0 0.0
  %3066 = vmatprep.subr.mxu0 0.0
  %3067 = vmatpush1.xpose.msra.mxu0 0.0
  %3068 = vmatprep.subr.mxu0 0.0
  %3069 = vmatpush1.xpose.msra.mxu0 0.0
  %3070 = vmatprep.subr.mxu0 0.0
  %3071 = vmatpush1.xpose.msra.mxu0 0.0
  %3072 = vmatprep.subr.mxu0 0.0
  %3073 = vmatpush1.xpose.msra.mxu0 0.0
  %3074 = vmatprep.subr.mxu0 0.0
  %3075 = vmatpush1.xpose.msra.mxu0 0.0
  %3076 = vmatprep.subr.mxu0 0.0
  %3077 = vmatpush1.xpose.msra.mxu0 0.0
  %3078 = vmatprep.subr.mxu0 0.0
  %3079 = vmatpush1.xpose.msra.mxu0 0.0
  %3080 = vmatprep.subr.mxu0 0.0
  %3081 = vmatpush1.xpose.msra.mxu0 0.0
  %3082 = vmatprep.subr.mxu0 0.0
  %3083 = vmatpush1.xpose.msra.mxu0 0.0
  %3084 = vmatprep.subr.mxu0 0.0
  %3085 = vmatpush1.xpose.msra.mxu0 0.0
  %3086 = vmatprep.subr.mxu0 0.0
  %3087 = vmatpush1.xpose.msra.mxu0 %v3056
  %3088 = vmatprep.subr.mxu0 0.0
  %3089 = vmatpush1.xpose.msra.mxu0 %v3053
  %3090 = vmatprep.subr.mxu0 0.0
  %3091 = vmatpush2.xpose.msra.mxu0 0.0
  %3092 = vmatprep.subr.mxu0 0.0
  %3093 = vmatpush2.xpose.msra.mxu0 0.0
  %3094 = vmatprep.subr.mxu0 0.0
  %3095 = vmatpush2.xpose.msra.mxu0 0.0
  %3096 = vmatprep.subr.mxu0 0.0
  %3097 = vmatpush2.xpose.msra.mxu0 0.0
  %3098 = vmatprep.subr.mxu0 0.0
  %3099 = vmatpush2.xpose.msra.mxu0 0.0
  %3100 = vmatprep.subr.mxu0 0.0
  %3101 = vmatpush2.xpose.msra.mxu0 0.0
  %3102 = vmatprep.subr.mxu0 0.0
  %3103 = vmatpush2.xpose.msra.mxu0 0.0
  %3104 = vmatprep.subr.mxu0 0.0
  %3105 = vmatpush2.xpose.msra.mxu0 0.0
  %3106 = vmatprep.subr.mxu0 0.0
  %3107 = vmatpush2.xpose.msra.mxu0 0.0
  %3108 = vmatprep.subr.mxu0 0.0
  %3109 = vmatpush2.xpose.msra.mxu0 0.0
  %3110 = vmatprep.subr.mxu0 0.0
  %3111 = vmatpush2.xpose.msra.mxu0 0.0
  %3112 = vmatprep.subr.mxu0 0.0
  %3113 = vmatpush2.xpose.msra.mxu0 0.0
  %3114 = vmatprep.subr.mxu0 0.0
  %3115 = vmatpush2.xpose.msra.mxu0 0.0
  %3116 = vmatprep.subr.mxu0 0.0
  %3117 = vmatpush2.xpose.msra.mxu0 0.0
  %3118 = vmatprep.subr.mxu0 0.0
  %3119 = vmatpush2.xpose.msra.mxu0 0.0
  %3120 = vmatprep.subr.mxu0 0.0
  %3121 = vmatpush2.xpose.msra.mxu0 0.0
  %3122 = vmatprep.mubr.f32.mxu0 0.0
  %3123 = vmatmul.mubr.f32.gmra.mxu0 %v3047
  %v3124 = vpop.f32.mrf.mxu0
  %v3125 = vadd.f32 0.0, %v3124
  %v3126 = vpop.f32.mrf.mxu0
  %3127 = vmatprep.mubr.f32.mxu0 0.0
  %3128 = vmatmul.mubr.f32.gmra.mxu0 %v3050
  %v3129 = vpop.f32.mrf.mxu0
  %v3130 = vadd.f32 0.0, %v3129
  %v3131 = vpop.f32.mrf.mxu0
  %3132 = vdwg.mxu0
  %v3134 = vsel %vm380, %v1219, 0
  %v3137 = vsel %vm380, %v1355, 0
  %v3140 = vsel %vm380, %v1803, 0
  %v3143 = vsel %vm380, %v1939, 0
  %3145 = vmatprep.subr.mxu0 0.0
  %3146 = vmatpush1.xpose.msra.mxu0 0.0
  %3147 = vmatprep.subr.mxu0 0.0
  %3148 = vmatpush1.xpose.msra.mxu0 0.0
  %3149 = vmatprep.subr.mxu0 0.0
  %3150 = vmatpush1.xpose.msra.mxu0 0.0
  %3151 = vmatprep.subr.mxu0 0.0
  %3152 = vmatpush1.xpose.msra.mxu0 0.0
  %3153 = vmatprep.subr.mxu0 0.0
  %3154 = vmatpush1.xpose.msra.mxu0 0.0
  %3155 = vmatprep.subr.mxu0 0.0
  %3156 = vmatpush1.xpose.msra.mxu0 0.0
  %3157 = vmatprep.subr.mxu0 0.0
  %3158 = vmatpush1.xpose.msra.mxu0 0.0
  %3159 = vmatprep.subr.mxu0 0.0
  %3160 = vmatpush1.xpose.msra.mxu0 0.0
  %3161 = vmatprep.subr.mxu0 0.0
  %3162 = vmatpush1.xpose.msra.mxu0 0.0
  %3163 = vmatprep.subr.mxu0 0.0
  %3164 = vmatpush1.xpose.msra.mxu0 0.0
  %3165 = vmatprep.subr.mxu0 0.0
  %3166 = vmatpush1.xpose.msra.mxu0 0.0
  %3167 = vmatprep.subr.mxu0 0.0
  %3168 = vmatpush1.xpose.msra.mxu0 0.0
  %3169 = vmatprep.subr.mxu0 0.0
  %3170 = vmatpush1.xpose.msra.mxu0 0.0
  %3171 = vmatprep.subr.mxu0 0.0
  %3172 = vmatpush1.xpose.msra.mxu0 0.0
  %3173 = vmatprep.subr.mxu0 0.0
  %3174 = vmatpush1.xpose.msra.mxu0 %v3143
  %3175 = vmatprep.subr.mxu0 0.0
  %3176 = vmatpush1.xpose.msra.mxu0 %v3140
  %3177 = vmatprep.subr.mxu0 0.0
  %3178 = vmatpush2.xpose.msra.mxu0 0.0
  %3179 = vmatprep.subr.mxu0 0.0
  %3180 = vmatpush2.xpose.msra.mxu0 0.0
  %3181 = vmatprep.subr.mxu0 0.0
  %3182 = vmatpush2.xpose.msra.mxu0 0.0
  %3183 = vmatprep.subr.mxu0 0.0
  %3184 = vmatpush2.xpose.msra.mxu0 0.0
  %3185 = vmatprep.subr.mxu0 0.0
  %3186 = vmatpush2.xpose.msra.mxu0 0.0
  %3187 = vmatprep.subr.mxu0 0.0
  %3188 = vmatpush2.xpose.msra.mxu0 0.0
  %3189 = vmatprep.subr.mxu0 0.0
  %3190 = vmatpush2.xpose.msra.mxu0 0.0
  %3191 = vmatprep.subr.mxu0 0.0
  %3192 = vmatpush2.xpose.msra.mxu0 0.0
  %3193 = vmatprep.subr.mxu0 0.0
  %3194 = vmatpush2.xpose.msra.mxu0 0.0
  %3195 = vmatprep.subr.mxu0 0.0
  %3196 = vmatpush2.xpose.msra.mxu0 0.0
  %3197 = vmatprep.subr.mxu0 0.0
  %3198 = vmatpush2.xpose.msra.mxu0 0.0
  %3199 = vmatprep.subr.mxu0 0.0
  %3200 = vmatpush2.xpose.msra.mxu0 0.0
  %3201 = vmatprep.subr.mxu0 0.0
  %3202 = vmatpush2.xpose.msra.mxu0 0.0
  %3203 = vmatprep.subr.mxu0 0.0
  %3204 = vmatpush2.xpose.msra.mxu0 0.0
  %3205 = vmatprep.subr.mxu0 0.0
  %3206 = vmatpush2.xpose.msra.mxu0 0.0
  %3207 = vmatprep.subr.mxu0 0.0
  %3208 = vmatpush2.xpose.msra.mxu0 0.0
  %3209 = vmatprep.mubr.f32.mxu0 0.0
  %3210 = vmatmul.mubr.f32.gmra.mxu0 %v3134
  %v3211 = vpop.f32.mrf.mxu0
  %v3212 = vadd.f32 0.0, %v3211
  %v3213 = vpop.f32.mrf.mxu0
  %3214 = vmatprep.mubr.f32.mxu0 0.0
  %3215 = vmatmul.mubr.f32.gmra.mxu0 %v3137
  %v3216 = vpop.f32.mrf.mxu0
  %v3217 = vadd.f32 0.0, %v3216
  %v3218 = vpop.f32.mrf.mxu0
  %3219 = vdwg.mxu0
  %v3220 = vmul.f32 %v2603, 0.17677669
  %v3221 = vmul.f32 %v2608, 0.17677669
  %v3222 = vmul.f32 %v2690, 0.17677669
  %v3223 = vmul.f32 %v2695, 0.17677669
  %v3224 = vmul.f32 %v2777, 0.17677669
  %v3225 = vmul.f32 %v2782, 0.17677669
  %v3226 = vmul.f32 %v2864, 0.17677669
  %v3227 = vmul.f32 %v2869, 0.17677669
  %v3228 = vmul.f32 %v2951, 0.17677669
  %v3229 = vmul.f32 %v2956, 0.17677669
  %v3230 = vmul.f32 %v3038, 0.17677669
  %v3231 = vmul.f32 %v3043, 0.17677669
  %v3232 = vmul.f32 %v3125, 0.17677669
  %v3233 = vmul.f32 %v3130, 0.17677669
  %v3234 = vmul.f32 %v3212, 0.17677669
  %v3235 = vmul.f32 %v3217, 0.17677669
  %vm3236 = vcmask 130048
  %v3237 = vsel %vm3236, %v3220, -inf
  %3238 = vmax.xlane.f32.xlu0 %v3237
  %v3239 = vpop.xlane.xlu0 %3238
  %v3240 = vsel %vm3236, %v3221, -inf
  %3241 = vmax.xlane.f32.xlu0 %v3240
  %v3242 = vpop.xlane.xlu0 %3241
  %v3243 = vsel %vm3236, %v3222, -inf
  %3244 = vmax.xlane.f32.xlu0 %v3243
  %v3245 = vpop.xlane.xlu0 %3244
  %v3246 = vsel %vm3236, %v3223, -inf
  %3247 = vmax.xlane.f32.xlu0 %v3246
  %v3248 = vpop.xlane.xlu0 %3247
  %v3249 = vsel %vm3236, %v3224, -inf
  %3250 = vmax.xlane.f32.xlu0 %v3249
  %v3251 = vpop.xlane.xlu0 %3250
  %v3252 = vsel %vm3236, %v3225, -inf
  %3253 = vmax.xlane.f32.xlu0 %v3252
  %v3254 = vpop.xlane.xlu0 %3253
  %v3255 = vsel %vm3236, %v3226, -inf
  %3256 = vmax.xlane.f32.xlu0 %v3255
  %v3257 = vpop.xlane.xlu0 %3256
  %v3258 = vsel %vm3236, %v3227, -inf
  %3259 = vmax.xlane.f32.xlu0 %v3258
  %v3260 = vpop.xlane.xlu0 %3259
  %v3261 = vsel %vm3236, %v3228, -inf
  %3262 = vmax.xlane.f32.xlu0 %v3261
  %v3263 = vpop.xlane.xlu0 %3262
  %v3264 = vsel %vm3236, %v3229, -inf
  %3265 = vmax.xlane.f32.xlu0 %v3264
  %v3266 = vpop.xlane.xlu0 %3265
  %v3267 = vsel %vm3236, %v3230, -inf
  %3268 = vmax.xlane.f32.xlu0 %v3267
  %v3269 = vpop.xlane.xlu0 %3268
  %v3270 = vsel %vm3236, %v3231, -inf
  %3271 = vmax.xlane.f32.xlu0 %v3270
  %v3272 = vpop.xlane.xlu0 %3271
  %v3273 = vsel %vm3236, %v3232, -inf
  %3274 = vmax.xlane.f32.xlu0 %v3273
  %v3275 = vpop.xlane.xlu0 %3274
  %v3276 = vsel %vm3236, %v3233, -inf
  %3277 = vmax.xlane.f32.xlu0 %v3276
  %v3278 = vpop.xlane.xlu0 %3277
  %v3279 = vsel %vm3236, %v3234, -inf
  %3280 = vmax.xlane.f32.xlu0 %v3279
  %v3281 = vpop.xlane.xlu0 %3280
  %v3282 = vsel %vm3236, %v3235, -inf
  %3283 = vmax.xlane.f32.xlu0 %v3282
  %v3284 = vpop.xlane.xlu0 %3283
  %v3285 = vsub.f32 %v3220, %v3239
  %v3286 = vsub.f32 %v3221, %v3242
  %v3287 = vsub.f32 %v3222, %v3245
  %v3288 = vsub.f32 %v3223, %v3248
  %v3289 = vsub.f32 %v3224, %v3251
  %v3290 = vsub.f32 %v3225, %v3254
  %v3291 = vsub.f32 %v3226, %v3257
  %v3292 = vsub.f32 %v3227, %v3260
  %v3293 = vsub.f32 %v3228, %v3263
  %v3294 = vsub.f32 %v3229, %v3266
  %v3295 = vsub.f32 %v3230, %v3269
  %v3296 = vsub.f32 %v3231, %v3272
  %v3297 = vsub.f32 %v3232, %v3275
  %v3298 = vsub.f32 %v3233, %v3278
  %v3299 = vsub.f32 %v3234, %v3281
  %v3300 = vsub.f32 %v3235, %v3284
  %v3301 = vmul.f32 %v3285, 1.442695
  %v3302 = vpow.pop %v3301
  %v3303 = vmul.f32 %v3286, 1.442695
  %v3304 = vpow.pop %v3303
  %v3305 = vmul.f32 %v3287, 1.442695
  %v3306 = vpow.pop %v3305
  %v3307 = vmul.f32 %v3288, 1.442695
  %v3308 = vpow.pop %v3307
  %v3309 = vmul.f32 %v3289, 1.442695
  %v3310 = vpow.pop %v3309
  %v3311 = vmul.f32 %v3290, 1.442695
  %v3312 = vpow.pop %v3311
  %v3313 = vmul.f32 %v3291, 1.442695
  %v3314 = vpow.pop %v3313
  %v3315 = vmul.f32 %v3292, 1.442695
  %v3316 = vpow.pop %v3315
  %v3317 = vmul.f32 %v3293, 1.442695
  %v3318 = vpow.pop %v3317
  %v3319 = vmul.f32 %v3294, 1.442695
  %v3320 = vpow.pop %v3319
  %v3321 = vmul.f32 %v3295, 1.442695
  %v3322 = vpow.pop %v3321
  %v3323 = vmul.f32 %v3296, 1.442695
  %v3324 = vpow.pop %v3323
  %v3325 = vmul.f32 %v3297, 1.442695
  %v3326 = vpow.pop %v3325
  %v3327 = vmul.f32 %v3298, 1.442695
  %v3328 = vpow.pop %v3327
  %v3329 = vmul.f32 %v3299, 1.442695
  %v3330 = vpow.pop %v3329
  %v3331 = vmul.f32 %v3300, 1.442695
  %v3332 = vpow.pop %v3331
  %v3333 = vsel %vm3236, %v3302, 0.0
  %3334 = vadd.xlane.f32.xlu0 %v3333
  %v3335 = vpop.xlane.xlu0 %3334
  %v3336 = vsel %vm3236, %v3304, 0.0
  %3337 = vadd.xlane.f32.xlu0 %v3336
  %v3338 = vpop.xlane.xlu0 %3337
  %v3339 = vsel %vm3236, %v3306, 0.0
  %3340 = vadd.xlane.f32.xlu0 %v3339
  %v3341 = vpop.xlane.xlu0 %3340
  %v3342 = vsel %vm3236, %v3308, 0.0
  %3343 = vadd.xlane.f32.xlu0 %v3342
  %v3344 = vpop.xlane.xlu0 %3343
  %v3345 = vsel %vm3236, %v3310, 0.0
  %3346 = vadd.xlane.f32.xlu0 %v3345
  %v3347 = vpop.xlane.xlu0 %3346
  %v3348 = vsel %vm3236, %v3312, 0.0
  %3349 = vadd.xlane.f32.xlu0 %v3348
  %v3350 = vpop.xlane.xlu0 %3349
  %v3351 = vsel %vm3236, %v3314, 0.0
  %3352 = vadd.xlane.f32.xlu0 %v3351
  %v3353 = vpop.xlane.xlu0 %3352
  %v3354 = vsel %vm3236, %v3316, 0.0
  %3355 = vadd.xlane.f32.xlu0 %v3354
  %v3356 = vpop.xlane.xlu0 %3355
  %v3357 = vsel %vm3236, %v3318, 0.0
  %3358 = vadd.xlane.f32.xlu0 %v3357
  %v3359 = vpop.xlane.xlu0 %3358
  %v3360 = vsel %vm3236, %v3320, 0.0
  %3361 = vadd.xlane.f32.xlu0 %v3360
  %v3362 = vpop.xlane.xlu0 %3361
  %v3363 = vsel %vm3236, %v3322, 0.0
  %3364 = vadd.xlane.f32.xlu0 %v3363
  %v3365 = vpop.xlane.xlu0 %3364
  %v3366 = vsel %vm3236, %v3324, 0.0
  %3367 = vadd.xlane.f32.xlu0 %v3366
  %v3368 = vpop.xlane.xlu0 %3367
  %v3369 = vsel %vm3236, %v3326, 0.0
  %3370 = vadd.xlane.f32.xlu0 %v3369
  %v3371 = vpop.xlane.xlu0 %3370
  %v3372 = vsel %vm3236, %v3328, 0.0
  %3373 = vadd.xlane.f32.xlu0 %v3372
  %v3374 = vpop.xlane.xlu0 %3373
  %v3375 = vsel %vm3236, %v3330, 0.0
  %3376 = vadd.xlane.f32.xlu0 %v3375
  %v3377 = vpop.xlane.xlu0 %3376
  %v3378 = vsel %vm3236, %v3332, 0.0
  %3379 = vadd.xlane.f32.xlu0 %v3378
  %v3380 = vpop.xlane.xlu0 %3379
  %v3381 = vrcp.pop %v3335
  %v3382 = vmul.f32 %v3302, %v3381
  %v3383 = vrcp.pop %v3338
  %v3384 = vmul.f32 %v3304, %v3383
  %v3385 = vrcp.pop %v3341
  %v3386 = vmul.f32 %v3306, %v3385
  %v3387 = vrcp.pop %v3344
  %v3388 = vmul.f32 %v3308, %v3387
  %v3389 = vrcp.pop %v3347
  %v3390 = vmul.f32 %v3310, %v3389
  %v3391 = vrcp.pop %v3350
  %v3392 = vmul.f32 %v3312, %v3391
  %v3393 = vrcp.pop %v3353
  %v3394 = vmul.f32 %v3314, %v3393
  %v3395 = vrcp.pop %v3356
  %v3396 = vmul.f32 %v3316, %v3395
  %v3397 = vrcp.pop %v3359
  %v3398 = vmul.f32 %v3318, %v3397
  %v3399 = vrcp.pop %v3362
  %v3400 = vmul.f32 %v3320, %v3399
  %v3401 = vrcp.pop %v3365
  %v3402 = vmul.f32 %v3322, %v3401
  %v3403 = vrcp.pop %v3368
  %v3404 = vmul.f32 %v3324, %v3403
  %v3405 = vrcp.pop %v3371
  %v3406 = vmul.f32 %v3326, %v3405
  %v3407 = vrcp.pop %v3374
  %v3408 = vmul.f32 %v3328, %v3407
  %v3409 = vrcp.pop %v3377
  %v3410 = vmul.f32 %v3330, %v3409
  %v3411 = vrcp.pop %v3380
  %v3412 = vmul.f32 %v3332, %v3411
  %v3414 = vsel %vm3236, %v3382, 0
  %v3417 = vsel %vm3236, %v3384, 0
  %3419 = vmatprep.subr.mxu0 0.0
  %3420 = vmatpush1.msra.mxu0 0.0
  %3421 = vmatprep.subr.mxu0 0.0
  %3422 = vmatpush1.msra.mxu0 0.0
  %3423 = vmatprep.subr.mxu0 0.0
  %3424 = vmatpush1.msra.mxu0 0.0
  %3425 = vmatprep.subr.mxu0 0.0
  %3426 = vmatpush1.msra.mxu0 0.0
  %3427 = vmatprep.subr.mxu0 0.0
  %3428 = vmatpush1.msra.mxu0 0.0
  %3429 = vmatprep.subr.mxu0 0.0
  %3430 = vmatpush1.msra.mxu0 0.0
  %3431 = vmatprep.subr.mxu0 0.0
  %3432 = vmatpush1.msra.mxu0 0.0
  %3433 = vmatprep.subr.mxu0 0.0
  %3434 = vmatpush1.msra.mxu0 0.0
  %3435 = vmatprep.subr.mxu0 0.0
  %3436 = vmatpush1.msra.mxu0 0.0
  %3437 = vmatprep.subr.mxu0 0.0
  %3438 = vmatpush1.msra.mxu0 0.0
  %3439 = vmatprep.subr.mxu0 0.0
  %3440 = vmatpush1.msra.mxu0 0.0
  %3441 = vmatprep.subr.mxu0 0.0
  %3442 = vmatpush1.msra.mxu0 0.0
  %3443 = vmatprep.subr.mxu0 0.0
  %3444 = vmatpush1.msra.mxu0 0.0
  %3445 = vmatprep.subr.mxu0 0.0
  %3446 = vmatpush1.msra.mxu0 0.0
  %3447 = vmatprep.subr.mxu0 0.0
  %3448 = vmatpush1.msra.mxu0 %v2516
  %3449 = vmatprep.subr.mxu0 0.0
  %3450 = vmatpush1.msra.mxu0 %v2380
  %3451 = vmatprep.subr.mxu0 0.0
  %3452 = vmatpush2.msra.mxu0 0.0
  %3453 = vmatprep.subr.mxu0 0.0
  %3454 = vmatpush2.msra.mxu0 0.0
  %3455 = vmatprep.subr.mxu0 0.0
  %3456 = vmatpush2.msra.mxu0 0.0
  %3457 = vmatprep.subr.mxu0 0.0
  %3458 = vmatpush2.msra.mxu0 0.0
  %3459 = vmatprep.subr.mxu0 0.0
  %3460 = vmatpush2.msra.mxu0 0.0
  %3461 = vmatprep.subr.mxu0 0.0
  %3462 = vmatpush2.msra.mxu0 0.0
  %3463 = vmatprep.subr.mxu0 0.0
  %3464 = vmatpush2.msra.mxu0 0.0
  %3465 = vmatprep.subr.mxu0 0.0
  %3466 = vmatpush2.msra.mxu0 0.0
  %3467 = vmatprep.subr.mxu0 0.0
  %3468 = vmatpush2.msra.mxu0 0.0
  %3469 = vmatprep.subr.mxu0 0.0
  %3470 = vmatpush2.msra.mxu0 0.0
  %3471 = vmatprep.subr.mxu0 0.0
  %3472 = vmatpush2.msra.mxu0 0.0
  %3473 = vmatprep.subr.mxu0 0.0
  %3474 = vmatpush2.msra.mxu0 0.0
  %3475 = vmatprep.subr.mxu0 0.0
  %3476 = vmatpush2.msra.mxu0 0.0
  %3477 = vmatprep.subr.mxu0 0.0
  %3478 = vmatpush2.msra.mxu0 0.0
  %3479 = vmatprep.subr.mxu0 0.0
  %3480 = vmatpush2.msra.mxu0 0.0
  %3481 = vmatprep.subr.mxu0 0.0
  %3482 = vmatpush2.msra.mxu0 0.0
  %3483 = vmatprep.mubr.f32.mxu0 0.0
  %3484 = vmatmul.mubr.f32.gmra.mxu0 %v3414
  %v3485 = vpop.f32.mrf.mxu0
  %v3486 = vadd.f32 0.0, %v3485
  %v3487 = vpop.f32.mrf.mxu0
  %3488 = vmatprep.mubr.f32.mxu0 0.0
  %3489 = vmatmul.mubr.f32.gmra.mxu0 %v3417
  %v3490 = vpop.f32.mrf.mxu0
  %v3491 = vadd.f32 0.0, %v3490
  %v3492 = vpop.f32.mrf.mxu0
  %3493 = vdwg.mxu0
  %v3495 = vsel %vm3236, %v3386, 0
  %v3498 = vsel %vm3236, %v3388, 0
  %3500 = vmatprep.subr.mxu0 0.0
  %3501 = vmatpush1.msra.mxu0 0.0
  %3502 = vmatprep.subr.mxu0 0.0
  %3503 = vmatpush1.msra.mxu0 0.0
  %3504 = vmatprep.subr.mxu0 0.0
  %3505 = vmatpush1.msra.mxu0 0.0
  %3506 = vmatprep.subr.mxu0 0.0
  %3507 = vmatpush1.msra.mxu0 0.0
  %3508 = vmatprep.subr.mxu0 0.0
  %3509 = vmatpush1.msra.mxu0 0.0
  %3510 = vmatprep.subr.mxu0 0.0
  %3511 = vmatpush1.msra.mxu0 0.0
  %3512 = vmatprep.subr.mxu0 0.0
  %3513 = vmatpush1.msra.mxu0 0.0
  %3514 = vmatprep.subr.mxu0 0.0
  %3515 = vmatpush1.msra.mxu0 0.0
  %3516 = vmatprep.subr.mxu0 0.0
  %3517 = vmatpush1.msra.mxu0 0.0
  %3518 = vmatprep.subr.mxu0 0.0
  %3519 = vmatpush1.msra.mxu0 0.0
  %3520 = vmatprep.subr.mxu0 0.0
  %3521 = vmatpush1.msra.mxu0 0.0
  %3522 = vmatprep.subr.mxu0 0.0
  %3523 = vmatpush1.msra.mxu0 0.0
  %3524 = vmatprep.subr.mxu0 0.0
  %3525 = vmatpush1.msra.mxu0 0.0
  %3526 = vmatprep.subr.mxu0 0.0
  %3527 = vmatpush1.msra.mxu0 0.0
  %3528 = vmatprep.subr.mxu0 0.0
  %3529 = vmatpush1.msra.mxu0 %v2517
  %3530 = vmatprep.subr.mxu0 0.0
  %3531 = vmatpush1.msra.mxu0 %v2381
  %3532 = vmatprep.subr.mxu0 0.0
  %3533 = vmatpush2.msra.mxu0 0.0
  %3534 = vmatprep.subr.mxu0 0.0
  %3535 = vmatpush2.msra.mxu0 0.0
  %3536 = vmatprep.subr.mxu0 0.0
  %3537 = vmatpush2.msra.mxu0 0.0
  %3538 = vmatprep.subr.mxu0 0.0
  %3539 = vmatpush2.msra.mxu0 0.0
  %3540 = vmatprep.subr.mxu0 0.0
  %3541 = vmatpush2.msra.mxu0 0.0
  %3542 = vmatprep.subr.mxu0 0.0
  %3543 = vmatpush2.msra.mxu0 0.0
  %3544 = vmatprep.subr.mxu0 0.0
  %3545 = vmatpush2.msra.mxu0 0.0
  %3546 = vmatprep.subr.mxu0 0.0
  %3547 = vmatpush2.msra.mxu0 0.0
  %3548 = vmatprep.subr.mxu0 0.0
  %3549 = vmatpush2.msra.mxu0 0.0
  %3550 = vmatprep.subr.mxu0 0.0
  %3551 = vmatpush2.msra.mxu0 0.0
  %3552 = vmatprep.subr.mxu0 0.0
  %3553 = vmatpush2.msra.mxu0 0.0
  %3554 = vmatprep.subr.mxu0 0.0
  %3555 = vmatpush2.msra.mxu0 0.0
  %3556 = vmatprep.subr.mxu0 0.0
  %3557 = vmatpush2.msra.mxu0 0.0
  %3558 = vmatprep.subr.mxu0 0.0
  %3559 = vmatpush2.msra.mxu0 0.0
  %3560 = vmatprep.subr.mxu0 0.0
  %3561 = vmatpush2.msra.mxu0 0.0
  %3562 = vmatprep.subr.mxu0 0.0
  %3563 = vmatpush2.msra.mxu0 0.0
  %3564 = vmatprep.mubr.f32.mxu0 0.0
  %3565 = vmatmul.mubr.f32.gmra.mxu0 %v3495
  %v3566 = vpop.f32.mrf.mxu0
  %v3567 = vadd.f32 0.0, %v3566
  %v3568 = vpop.f32.mrf.mxu0
  %3569 = vmatprep.mubr.f32.mxu0 0.0
  %3570 = vmatmul.mubr.f32.gmra.mxu0 %v3498
  %v3571 = vpop.f32.mrf.mxu0
  %v3572 = vadd.f32 0.0, %v3571
  %v3573 = vpop.f32.mrf.mxu0
  %3574 = vdwg.mxu0
  %v3576 = vsel %vm3236, %v3390, 0
  %v3579 = vsel %vm3236, %v3392, 0
  %3581 = vmatprep.subr.mxu0 0.0
  %3582 = vmatpush1.msra.mxu0 0.0
  %3583 = vmatprep.subr.mxu0 0.0
  %3584 = vmatpush1.msra.mxu0 0.0
  %3585 = vmatprep.subr.mxu0 0.0
  %3586 = vmatpush1.msra.mxu0 0.0
  %3587 = vmatprep.subr.mxu0 0.0
  %3588 = vmatpush1.msra.mxu0 0.0
  %3589 = vmatprep.subr.mxu0 0.0
  %3590 = vmatpush1.msra.mxu0 0.0
  %3591 = vmatprep.subr.mxu0 0.0
  %3592 = vmatpush1.msra.mxu0 0.0
  %3593 = vmatprep.subr.mxu0 0.0
  %3594 = vmatpush1.msra.mxu0 0.0
  %3595 = vmatprep.subr.mxu0 0.0
  %3596 = vmatpush1.msra.mxu0 0.0
  %3597 = vmatprep.subr.mxu0 0.0
  %3598 = vmatpush1.msra.mxu0 0.0
  %3599 = vmatprep.subr.mxu0 0.0
  %3600 = vmatpush1.msra.mxu0 0.0
  %3601 = vmatprep.subr.mxu0 0.0
  %3602 = vmatpush1.msra.mxu0 0.0
  %3603 = vmatprep.subr.mxu0 0.0
  %3604 = vmatpush1.msra.mxu0 0.0
  %3605 = vmatprep.subr.mxu0 0.0
  %3606 = vmatpush1.msra.mxu0 0.0
  %3607 = vmatprep.subr.mxu0 0.0
  %3608 = vmatpush1.msra.mxu0 0.0
  %3609 = vmatprep.subr.mxu0 0.0
  %3610 = vmatpush1.msra.mxu0 %v2518
  %3611 = vmatprep.subr.mxu0 0.0
  %3612 = vmatpush1.msra.mxu0 %v2382
  %3613 = vmatprep.subr.mxu0 0.0
  %3614 = vmatpush2.msra.mxu0 0.0
  %3615 = vmatprep.subr.mxu0 0.0
  %3616 = vmatpush2.msra.mxu0 0.0
  %3617 = vmatprep.subr.mxu0 0.0
  %3618 = vmatpush2.msra.mxu0 0.0
  %3619 = vmatprep.subr.mxu0 0.0
  %3620 = vmatpush2.msra.mxu0 0.0
  %3621 = vmatprep.subr.mxu0 0.0
  %3622 = vmatpush2.msra.mxu0 0.0
  %3623 = vmatprep.subr.mxu0 0.0
  %3624 = vmatpush2.msra.mxu0 0.0
  %3625 = vmatprep.subr.mxu0 0.0
  %3626 = vmatpush2.msra.mxu0 0.0
  %3627 = vmatprep.subr.mxu0 0.0
  %3628 = vmatpush2.msra.mxu0 0.0
  %3629 = vmatprep.subr.mxu0 0.0
  %3630 = vmatpush2.msra.mxu0 0.0
  %3631 = vmatprep.subr.mxu0 0.0
  %3632 = vmatpush2.msra.mxu0 0.0
  %3633 = vmatprep.subr.mxu0 0.0
  %3634 = vmatpush2.msra.mxu0 0.0
  %3635 = vmatprep.subr.mxu0 0.0
  %3636 = vmatpush2.msra.mxu0 0.0
  %3637 = vmatprep.subr.mxu0 0.0
  %3638 = vmatpush2.msra.mxu0 0.0
  %3639 = vmatprep.subr.mxu0 0.0
  %3640 = vmatpush2.msra.mxu0 0.0
  %3641 = vmatprep.subr.mxu0 0.0
  %3642 = vmatpush2.msra.mxu0 0.0
  %3643 = vmatprep.subr.mxu0 0.0
  %3644 = vmatpush2.msra.mxu0 0.0
  %3645 = vmatprep.mubr.f32.mxu0 0.0
  %3646 = vmatmul.mubr.f32.gmra.mxu0 %v3576
  %v3647 = vpop.f32.mrf.mxu0
  %v3648 = vadd.f32 0.0, %v3647
  %v3649 = vpop.f32.mrf.mxu0
  %3650 = vmatprep.mubr.f32.mxu0 0.0
  %3651 = vmatmul.mubr.f32.gmra.mxu0 %v3579
  %v3652 = vpop.f32.mrf.mxu0
  %v3653 = vadd.f32 0.0, %v3652
  %v3654 = vpop.f32.mrf.mxu0
  %3655 = vdwg.mxu0
  %v3657 = vsel %vm3236, %v3394, 0
  %v3660 = vsel %vm3236, %v3396, 0
  %3662 = vmatprep.subr.mxu0 0.0
  %3663 = vmatpush1.msra.mxu0 0.0
  %3664 = vmatprep.subr.mxu0 0.0
  %3665 = vmatpush1.msra.mxu0 0.0
  %3666 = vmatprep.subr.mxu0 0.0
  %3667 = vmatpush1.msra.mxu0 0.0
  %3668 = vmatprep.subr.mxu0 0.0
  %3669 = vmatpush1.msra.mxu0 0.0
  %3670 = vmatprep.subr.mxu0 0.0
  %3671 = vmatpush1.msra.mxu0 0.0
  %3672 = vmatprep.subr.mxu0 0.0
  %3673 = vmatpush1.msra.mxu0 0.0
  %3674 = vmatprep.subr.mxu0 0.0
  %3675 = vmatpush1.msra.mxu0 0.0
  %3676 = vmatprep.subr.mxu0 0.0
  %3677 = vmatpush1.msra.mxu0 0.0
  %3678 = vmatprep.subr.mxu0 0.0
  %3679 = vmatpush1.msra.mxu0 0.0
  %3680 = vmatprep.subr.mxu0 0.0
  %3681 = vmatpush1.msra.mxu0 0.0
  %3682 = vmatprep.subr.mxu0 0.0
  %3683 = vmatpush1.msra.mxu0 0.0
  %3684 = vmatprep.subr.mxu0 0.0
  %3685 = vmatpush1.msra.mxu0 0.0
  %3686 = vmatprep.subr.mxu0 0.0
  %3687 = vmatpush1.msra.mxu0 0.0
  %3688 = vmatprep.subr.mxu0 0.0
  %3689 = vmatpush1.msra.mxu0 0.0
  %3690 = vmatprep.subr.mxu0 0.0
  %3691 = vmatpush1.msra.mxu0 %v2519
  %3692 = vmatprep.subr.mxu0 0.0
  %3693 = vmatpush1.msra.mxu0 %v2383
  %3694 = vmatprep.subr.mxu0 0.0
  %3695 = vmatpush2.msra.mxu0 0.0
  %3696 = vmatprep.subr.mxu0 0.0
  %3697 = vmatpush2.msra.mxu0 0.0
  %3698 = vmatprep.subr.mxu0 0.0
  %3699 = vmatpush2.msra.mxu0 0.0
  %3700 = vmatprep.subr.mxu0 0.0
  %3701 = vmatpush2.msra.mxu0 0.0
  %3702 = vmatprep.subr.mxu0 0.0
  %3703 = vmatpush2.msra.mxu0 0.0
  %3704 = vmatprep.subr.mxu0 0.0
  %3705 = vmatpush2.msra.mxu0 0.0
  %3706 = vmatprep.subr.mxu0 0.0
  %3707 = vmatpush2.msra.mxu0 0.0
  %3708 = vmatprep.subr.mxu0 0.0
  %3709 = vmatpush2.msra.mxu0 0.0
  %3710 = vmatprep.subr.mxu0 0.0
  %3711 = vmatpush2.msra.mxu0 0.0
  %3712 = vmatprep.subr.mxu0 0.0
  %3713 = vmatpush2.msra.mxu0 0.0
  %3714 = vmatprep.subr.mxu0 0.0
  %3715 = vmatpush2.msra.mxu0 0.0
  %3716 = vmatprep.subr.mxu0 0.0
  %3717 = vmatpush2.msra.mxu0 0.0
  %3718 = vmatprep.subr.mxu0 0.0
  %3719 = vmatpush2.msra.mxu0 0.0
  %3720 = vmatprep.subr.mxu0 0.0
  %3721 = vmatpush2.msra.mxu0 0.0
  %3722 = vmatprep.subr.mxu0 0.0
  %3723 = vmatpush2.msra.mxu0 0.0
  %3724 = vmatprep.subr.mxu0 0.0
  %3725 = vmatpush2.msra.mxu0 0.0
  %3726 = vmatprep.mubr.f32.mxu0 0.0
  %3727 = vmatmul.mubr.f32.gmra.mxu0 %v3657
  %v3728 = vpop.f32.mrf.mxu0
  %v3729 = vadd.f32 0.0, %v3728
  %v3730 = vpop.f32.mrf.mxu0
  %3731 = vmatprep.mubr.f32.mxu0 0.0
  %3732 = vmatmul.mubr.f32.gmra.mxu0 %v3660
  %v3733 = vpop.f32.mrf.mxu0
  %v3734 = vadd.f32 0.0, %v3733
  %v3735 = vpop.f32.mrf.mxu0
  %3736 = vdwg.mxu0
  %v3738 = vsel %vm3236, %v3398, 0
  %v3741 = vsel %vm3236, %v3400, 0
  %3743 = vmatprep.subr.mxu0 0.0
  %3744 = vmatpush1.msra.mxu0 0.0
  %3745 = vmatprep.subr.mxu0 0.0
  %3746 = vmatpush1.msra.mxu0 0.0
  %3747 = vmatprep.subr.mxu0 0.0
  %3748 = vmatpush1.msra.mxu0 0.0
  %3749 = vmatprep.subr.mxu0 0.0
  %3750 = vmatpush1.msra.mxu0 0.0
  %3751 = vmatprep.subr.mxu0 0.0
  %3752 = vmatpush1.msra.mxu0 0.0
  %3753 = vmatprep.subr.mxu0 0.0
  %3754 = vmatpush1.msra.mxu0 0.0
  %3755 = vmatprep.subr.mxu0 0.0
  %3756 = vmatpush1.msra.mxu0 0.0
  %3757 = vmatprep.subr.mxu0 0.0
  %3758 = vmatpush1.msra.mxu0 0.0
  %3759 = vmatprep.subr.mxu0 0.0
  %3760 = vmatpush1.msra.mxu0 0.0
  %3761 = vmatprep.subr.mxu0 0.0
  %3762 = vmatpush1.msra.mxu0 0.0
  %3763 = vmatprep.subr.mxu0 0.0
  %3764 = vmatpush1.msra.mxu0 0.0
  %3765 = vmatprep.subr.mxu0 0.0
  %3766 = vmatpush1.msra.mxu0 0.0
  %3767 = vmatprep.subr.mxu0 0.0
  %3768 = vmatpush1.msra.mxu0 0.0
  %3769 = vmatprep.subr.mxu0 0.0
  %3770 = vmatpush1.msra.mxu0 0.0
  %3771 = vmatprep.subr.mxu0 0.0
  %3772 = vmatpush1.msra.mxu0 %v2520
  %3773 = vmatprep.subr.mxu0 0.0
  %3774 = vmatpush1.msra.mxu0 %v2384
  %3775 = vmatprep.subr.mxu0 0.0
  %3776 = vmatpush2.msra.mxu0 0.0
  %3777 = vmatprep.subr.mxu0 0.0
  %3778 = vmatpush2.msra.mxu0 0.0
  %3779 = vmatprep.subr.mxu0 0.0
  %3780 = vmatpush2.msra.mxu0 0.0
  %3781 = vmatprep.subr.mxu0 0.0
  %3782 = vmatpush2.msra.mxu0 0.0
  %3783 = vmatprep.subr.mxu0 0.0
  %3784 = vmatpush2.msra.mxu0 0.0
  %3785 = vmatprep.subr.mxu0 0.0
  %3786 = vmatpush2.msra.mxu0 0.0
  %3787 = vmatprep.subr.mxu0 0.0
  %3788 = vmatpush2.msra.mxu0 0.0
  %3789 = vmatprep.subr.mxu0 0.0
  %3790 = vmatpush2.msra.mxu0 0.0
  %3791 = vmatprep.subr.mxu0 0.0
  %3792 = vmatpush2.msra.mxu0 0.0
  %3793 = vmatprep.subr.mxu0 0.0
  %3794 = vmatpush2.msra.mxu0 0.0
  %3795 = vmatprep.subr.mxu0 0.0
  %3796 = vmatpush2.msra.mxu0 0.0
  %3797 = vmatprep.subr.mxu0 0.0
  %3798 = vmatpush2.msra.mxu0 0.0
  %3799 = vmatprep.subr.mxu0 0.0
  %3800 = vmatpush2.msra.mxu0 0.0
  %3801 = vmatprep.subr.mxu0 0.0
  %3802 = vmatpush2.msra.mxu0 0.0
  %3803 = vmatprep.subr.mxu0 0.0
  %3804 = vmatpush2.msra.mxu0 0.0
  %3805 = vmatprep.subr.mxu0 0.0
  %3806 = vmatpush2.msra.mxu0 0.0
  %3807 = vmatprep.mubr.f32.mxu0 0.0
  %3808 = vmatmul.mubr.f32.gmra.mxu0 %v3738
  %v3809 = vpop.f32.mrf.mxu0
  %v3810 = vadd.f32 0.0, %v3809
  %v3811 = vpop.f32.mrf.mxu0
  %3812 = vmatprep.mubr.f32.mxu0 0.0
  %3813 = vmatmul.mubr.f32.gmra.mxu0 %v3741
  %v3814 = vpop.f32.mrf.mxu0
  %v3815 = vadd.f32 0.0, %v3814
  %v3816 = vpop.f32.mrf.mxu0
  %3817 = vdwg.mxu0
  %v3819 = vsel %vm3236, %v3402, 0
  %v3822 = vsel %vm3236, %v3404, 0
  %3824 = vmatprep.subr.mxu0 0.0
  %3825 = vmatpush1.msra.mxu0 0.0
  %3826 = vmatprep.subr.mxu0 0.0
  %3827 = vmatpush1.msra.mxu0 0.0
  %3828 = vmatprep.subr.mxu0 0.0
  %3829 = vmatpush1.msra.mxu0 0.0
  %3830 = vmatprep.subr.mxu0 0.0
  %3831 = vmatpush1.msra.mxu0 0.0
  %3832 = vmatprep.subr.mxu0 0.0
  %3833 = vmatpush1.msra.mxu0 0.0
  %3834 = vmatprep.subr.mxu0 0.0
  %3835 = vmatpush1.msra.mxu0 0.0
  %3836 = vmatprep.subr.mxu0 0.0
  %3837 = vmatpush1.msra.mxu0 0.0
  %3838 = vmatprep.subr.mxu0 0.0
  %3839 = vmatpush1.msra.mxu0 0.0
  %3840 = vmatprep.subr.mxu0 0.0
  %3841 = vmatpush1.msra.mxu0 0.0
  %3842 = vmatprep.subr.mxu0 0.0
  %3843 = vmatpush1.msra.mxu0 0.0
  %3844 = vmatprep.subr.mxu0 0.0
  %3845 = vmatpush1.msra.mxu0 0.0
  %3846 = vmatprep.subr.mxu0 0.0
  %3847 = vmatpush1.msra.mxu0 0.0
  %3848 = vmatprep.subr.mxu0 0.0
  %3849 = vmatpush1.msra.mxu0 0.0
  %3850 = vmatprep.subr.mxu0 0.0
  %3851 = vmatpush1.msra.mxu0 0.0
  %3852 = vmatprep.subr.mxu0 0.0
  %3853 = vmatpush1.msra.mxu0 %v2521
  %3854 = vmatprep.subr.mxu0 0.0
  %3855 = vmatpush1.msra.mxu0 %v2385
  %3856 = vmatprep.subr.mxu0 0.0
  %3857 = vmatpush2.msra.mxu0 0.0
  %3858 = vmatprep.subr.mxu0 0.0
  %3859 = vmatpush2.msra.mxu0 0.0
  %3860 = vmatprep.subr.mxu0 0.0
  %3861 = vmatpush2.msra.mxu0 0.0
  %3862 = vmatprep.subr.mxu0 0.0
  %3863 = vmatpush2.msra.mxu0 0.0
  %3864 = vmatprep.subr.mxu0 0.0
  %3865 = vmatpush2.msra.mxu0 0.0
  %3866 = vmatprep.subr.mxu0 0.0
  %3867 = vmatpush2.msra.mxu0 0.0
  %3868 = vmatprep.subr.mxu0 0.0
  %3869 = vmatpush2.msra.mxu0 0.0
  %3870 = vmatprep.subr.mxu0 0.0
  %3871 = vmatpush2.msra.mxu0 0.0
  %3872 = vmatprep.subr.mxu0 0.0
  %3873 = vmatpush2.msra.mxu0 0.0
  %3874 = vmatprep.subr.mxu0 0.0
  %3875 = vmatpush2.msra.mxu0 0.0
  %3876 = vmatprep.subr.mxu0 0.0
  %3877 = vmatpush2.msra.mxu0 0.0
  %3878 = vmatprep.subr.mxu0 0.0
  %3879 = vmatpush2.msra.mxu0 0.0
  %3880 = vmatprep.subr.mxu0 0.0
  %3881 = vmatpush2.msra.mxu0 0.0
  %3882 = vmatprep.subr.mxu0 0.0
  %3883 = vmatpush2.msra.mxu0 0.0
  %3884 = vmatprep.subr.mxu0 0.0
  %3885 = vmatpush2.msra.mxu0 0.0
  %3886 = vmatprep.subr.mxu0 0.0
  %3887 = vmatpush2.msra.mxu0 0.0
  %3888 = vmatprep.mubr.f32.mxu0 0.0
  %3889 = vmatmul.mubr.f32.gmra.mxu0 %v3819
  %v3890 = vpop.f32.mrf.mxu0
  %v3891 = vadd.f32 0.0, %v3890
  %v3892 = vpop.f32.mrf.mxu0
  %3893 = vmatprep.mubr.f32.mxu0 0.0
  %3894 = vmatmul.mubr.f32.gmra.mxu0 %v3822
  %v3895 = vpop.f32.mrf.mxu0
  %v3896 = vadd.f32 0.0, %v3895
  %v3897 = vpop.f32.mrf.mxu0
  %3898 = vdwg.mxu0
  %v3900 = vsel %vm3236, %v3406, 0
  %v3903 = vsel %vm3236, %v3408, 0
  %3905 = vmatprep.subr.mxu0 0.0
  %3906 = vmatpush1.msra.mxu0 0.0
  %3907 = vmatprep.subr.mxu0 0.0
  %3908 = vmatpush1.msra.mxu0 0.0
  %3909 = vmatprep.subr.mxu0 0.0
  %3910 = vmatpush1.msra.mxu0 0.0
  %3911 = vmatprep.subr.mxu0 0.0
  %3912 = vmatpush1.msra.mxu0 0.0
  %3913 = vmatprep.subr.mxu0 0.0
  %3914 = vmatpush1.msra.mxu0 0.0
  %3915 = vmatprep.subr.mxu0 0.0
  %3916 = vmatpush1.msra.mxu0 0.0
  %3917 = vmatprep.subr.mxu0 0.0
  %3918 = vmatpush1.msra.mxu0 0.0
  %3919 = vmatprep.subr.mxu0 0.0
  %3920 = vmatpush1.msra.mxu0 0.0
  %3921 = vmatprep.subr.mxu0 0.0
  %3922 = vmatpush1.msra.mxu0 0.0
  %3923 = vmatprep.subr.mxu0 0.0
  %3924 = vmatpush1.msra.mxu0 0.0
  %3925 = vmatprep.subr.mxu0 0.0
  %3926 = vmatpush1.msra.mxu0 0.0
  %3927 = vmatprep.subr.mxu0 0.0
  %3928 = vmatpush1.msra.mxu0 0.0
  %3929 = vmatprep.subr.mxu0 0.0
  %3930 = vmatpush1.msra.mxu0 0.0
  %3931 = vmatprep.subr.mxu0 0.0
  %3932 = vmatpush1.msra.mxu0 0.0
  %3933 = vmatprep.subr.mxu0 0.0
  %3934 = vmatpush1.msra.mxu0 %v2522
  %3935 = vmatprep.subr.mxu0 0.0
  %3936 = vmatpush1.msra.mxu0 %v2386
  %3937 = vmatprep.subr.mxu0 0.0
  %3938 = vmatpush2.msra.mxu0 0.0
  %3939 = vmatprep.subr.mxu0 0.0
  %3940 = vmatpush2.msra.mxu0 0.0
  %3941 = vmatprep.subr.mxu0 0.0
  %3942 = vmatpush2.msra.mxu0 0.0
  %3943 = vmatprep.subr.mxu0 0.0
  %3944 = vmatpush2.msra.mxu0 0.0
  %3945 = vmatprep.subr.mxu0 0.0
  %3946 = vmatpush2.msra.mxu0 0.0
  %3947 = vmatprep.subr.mxu0 0.0
  %3948 = vmatpush2.msra.mxu0 0.0
  %3949 = vmatprep.subr.mxu0 0.0
  %3950 = vmatpush2.msra.mxu0 0.0
  %3951 = vmatprep.subr.mxu0 0.0
  %3952 = vmatpush2.msra.mxu0 0.0
  %3953 = vmatprep.subr.mxu0 0.0
  %3954 = vmatpush2.msra.mxu0 0.0
  %3955 = vmatprep.subr.mxu0 0.0
  %3956 = vmatpush2.msra.mxu0 0.0
  %3957 = vmatprep.subr.mxu0 0.0
  %3958 = vmatpush2.msra.mxu0 0.0
  %3959 = vmatprep.subr.mxu0 0.0
  %3960 = vmatpush2.msra.mxu0 0.0
  %3961 = vmatprep.subr.mxu0 0.0
  %3962 = vmatpush2.msra.mxu0 0.0
  %3963 = vmatprep.subr.mxu0 0.0
  %3964 = vmatpush2.msra.mxu0 0.0
  %3965 = vmatprep.subr.mxu0 0.0
  %3966 = vmatpush2.msra.mxu0 0.0
  %3967 = vmatprep.subr.mxu0 0.0
  %3968 = vmatpush2.msra.mxu0 0.0
  %3969 = vmatprep.mubr.f32.mxu0 0.0
  %3970 = vmatmul.mubr.f32.gmra.mxu0 %v3900
  %v3971 = vpop.f32.mrf.mxu0
  %v3972 = vadd.f32 0.0, %v3971
  %v3973 = vpop.f32.mrf.mxu0
  %3974 = vmatprep.mubr.f32.mxu0 0.0
  %3975 = vmatmul.mubr.f32.gmra.mxu0 %v3903
  %v3976 = vpop.f32.mrf.mxu0
  %v3977 = vadd.f32 0.0, %v3976
  %v3978 = vpop.f32.mrf.mxu0
  %3979 = vdwg.mxu0
  %v3981 = vsel %vm3236, %v3410, 0
  %v3984 = vsel %vm3236, %v3412, 0
  %3986 = vmatprep.subr.mxu0 0.0
  %3987 = vmatpush1.msra.mxu0 0.0
  %3988 = vmatprep.subr.mxu0 0.0
  %3989 = vmatpush1.msra.mxu0 0.0
  %3990 = vmatprep.subr.mxu0 0.0
  %3991 = vmatpush1.msra.mxu0 0.0
  %3992 = vmatprep.subr.mxu0 0.0
  %3993 = vmatpush1.msra.mxu0 0.0
  %3994 = vmatprep.subr.mxu0 0.0
  %3995 = vmatpush1.msra.mxu0 0.0
  %3996 = vmatprep.subr.mxu0 0.0
  %3997 = vmatpush1.msra.mxu0 0.0
  %3998 = vmatprep.subr.mxu0 0.0
  %3999 = vmatpush1.msra.mxu0 0.0
  %4000 = vmatprep.subr.mxu0 0.0
  %4001 = vmatpush1.msra.mxu0 0.0
  %4002 = vmatprep.subr.mxu0 0.0
  %4003 = vmatpush1.msra.mxu0 0.0
  %4004 = vmatprep.subr.mxu0 0.0
  %4005 = vmatpush1.msra.mxu0 0.0
  %4006 = vmatprep.subr.mxu0 0.0
  %4007 = vmatpush1.msra.mxu0 0.0
  %4008 = vmatprep.subr.mxu0 0.0
  %4009 = vmatpush1.msra.mxu0 0.0
  %4010 = vmatprep.subr.mxu0 0.0
  %4011 = vmatpush1.msra.mxu0 0.0
  %4012 = vmatprep.subr.mxu0 0.0
  %4013 = vmatpush1.msra.mxu0 0.0
  %4014 = vmatprep.subr.mxu0 0.0
  %4015 = vmatpush1.msra.mxu0 %v2523
  %4016 = vmatprep.subr.mxu0 0.0
  %4017 = vmatpush1.msra.mxu0 %v2387
  %4018 = vmatprep.subr.mxu0 0.0
  %4019 = vmatpush2.msra.mxu0 0.0
  %4020 = vmatprep.subr.mxu0 0.0
  %4021 = vmatpush2.msra.mxu0 0.0
  %4022 = vmatprep.subr.mxu0 0.0
  %4023 = vmatpush2.msra.mxu0 0.0
  %4024 = vmatprep.subr.mxu0 0.0
  %4025 = vmatpush2.msra.mxu0 0.0
  %4026 = vmatprep.subr.mxu0 0.0
  %4027 = vmatpush2.msra.mxu0 0.0
  %4028 = vmatprep.subr.mxu0 0.0
  %4029 = vmatpush2.msra.mxu0 0.0
  %4030 = vmatprep.subr.mxu0 0.0
  %4031 = vmatpush2.msra.mxu0 0.0
  %4032 = vmatprep.subr.mxu0 0.0
  %4033 = vmatpush2.msra.mxu0 0.0
  %4034 = vmatprep.subr.mxu0 0.0
  %4035 = vmatpush2.msra.mxu0 0.0
  %4036 = vmatprep.subr.mxu0 0.0
  %4037 = vmatpush2.msra.mxu0 0.0
  %4038 = vmatprep.subr.mxu0 0.0
  %4039 = vmatpush2.msra.mxu0 0.0
  %4040 = vmatprep.subr.mxu0 0.0
  %4041 = vmatpush2.msra.mxu0 0.0
  %4042 = vmatprep.subr.mxu0 0.0
  %4043 = vmatpush2.msra.mxu0 0.0
  %4044 = vmatprep.subr.mxu0 0.0
  %4045 = vmatpush2.msra.mxu0 0.0
  %4046 = vmatprep.subr.mxu0 0.0
  %4047 = vmatpush2.msra.mxu0 0.0
  %4048 = vmatprep.subr.mxu0 0.0
  %4049 = vmatpush2.msra.mxu0 0.0
  %4050 = vmatprep.mubr.f32.mxu0 0.0
  %4051 = vmatmul.mubr.f32.gmra.mxu0 %v3981
  %v4052 = vpop.f32.mrf.mxu0
  %v4053 = vadd.f32 0.0, %v4052
  %v4054 = vpop.f32.mrf.mxu0
  %4055 = vmatprep.mubr.f32.mxu0 0.0
  %4056 = vmatmul.mubr.f32.gmra.mxu0 %v3984
  %v4057 = vpop.f32.mrf.mxu0
  %v4058 = vadd.f32 0.0, %v4057
  %v4059 = vpop.f32.mrf.mxu0
  %4060 = vdwg.mxu0
  %v4061 = vcombine.low %v3486, %v3648
  %v4062 = vcombine.high %v3486, %v3648
  %v4064 = vunpack.c.l.s4 1983009808
  %v4065 = vunpack.c.0.s8 %v4064
  %v4066 = vlaneseq
  %v4067 = vshrl.u32 %v4066, 7
  %v4068 = vsub.s32 %v4065, %v4067
  %v4069 = vrot.slane %v4061, %v4068
  %v4071 = vunpack.c.l.s4 1983009808
  %v4072 = vunpack.c.0.s8 %v4071
  %v4073 = vlaneseq
  %v4074 = vshrl.u32 %v4073, 7
  %v4075 = vsub.s32 %v4072, %v4074
  %v4076 = vrot.slane %v4062, %v4075
  %v4077 = vcombine.low %v3567, %v3729
  %v4078 = vcombine.high %v3567, %v3729
  %v4080 = vunpack.c.l.s4 1983009808
  %v4081 = vunpack.c.0.s8 %v4080
  %v4082 = vlaneseq
  %v4083 = vshrl.u32 %v4082, 7
  %v4084 = vsub.s32 %v4081, %v4083
  %v4085 = vrot.slane %v4077, %v4084
  %v4087 = vunpack.c.l.s4 1983009808
  %v4088 = vunpack.c.0.s8 %v4087
  %v4089 = vlaneseq
  %v4090 = vshrl.u32 %v4089, 7
  %v4091 = vsub.s32 %v4088, %v4090
  %v4092 = vrot.slane %v4078, %v4091
  %v4093 = vcombine.low %v3810, %v3972
  %v4094 = vcombine.high %v3810, %v3972
  %v4096 = vunpack.c.l.s4 1983009808
  %v4097 = vunpack.c.0.s8 %v4096
  %v4098 = vlaneseq
  %v4099 = vshrl.u32 %v4098, 7
  %v4100 = vsub.s32 %v4097, %v4099
  %v4101 = vrot.slane %v4093, %v4100
  %v4103 = vunpack.c.l.s4 1983009808
  %v4104 = vunpack.c.0.s8 %v4103
  %v4105 = vlaneseq
  %v4106 = vshrl.u32 %v4105, 7
  %v4107 = vsub.s32 %v4104, %v4106
  %v4108 = vrot.slane %v4094, %v4107
  %v4109 = vcombine.low %v3891, %v4053
  %v4110 = vcombine.high %v3891, %v4053
  %v4112 = vunpack.c.l.s4 1983009808
  %v4113 = vunpack.c.0.s8 %v4112
  %v4114 = vlaneseq
  %v4115 = vshrl.u32 %v4114, 7
  %v4116 = vsub.s32 %v4113, %v4115
  %v4117 = vrot.slane %v4109, %v4116
  %v4119 = vunpack.c.l.s4 1983009808
  %v4120 = vunpack.c.0.s8 %v4119
  %v4121 = vlaneseq
  %v4122 = vshrl.u32 %v4121, 7
  %v4123 = vsub.s32 %v4120, %v4122
  %v4124 = vrot.slane %v4110, %v4123
  %v4125 = vcombine.low %v4069, %v4085
  %v4126 = vcombine.high %v4069, %v4085
  %v4128 = vunpack.c.l.s4 1934713408
  %v4129 = vunpack.c.0.s8 %v4128
  %v4130 = vlaneseq
  %v4131 = vshrl.u32 %v4130, 7
  %v4132 = vsub.s32 %v4129, %v4131
  %v4133 = vrot.slane %v4125, %v4132
  %v4135 = vunpack.c.l.s4 1934713408
  %v4136 = vunpack.c.0.s8 %v4135
  %v4137 = vlaneseq
  %v4138 = vshrl.u32 %v4137, 7
  %v4139 = vsub.s32 %v4136, %v4138
  %v4140 = vrot.slane %v4126, %v4139
  %v4141 = vcombine.low %v4076, %v4092
  %v4142 = vcombine.high %v4076, %v4092
  %v4144 = vunpack.c.l.s4 1934713408
  %v4145 = vunpack.c.0.s8 %v4144
  %v4146 = vlaneseq
  %v4147 = vshrl.u32 %v4146, 7
  %v4148 = vsub.s32 %v4145, %v4147
  %v4149 = vrot.slane %v4141, %v4148
  %v4151 = vunpack.c.l.s4 1934713408
  %v4152 = vunpack.c.0.s8 %v4151
  %v4153 = vlaneseq
  %v4154 = vshrl.u32 %v4153, 7
  %v4155 = vsub.s32 %v4152, %v4154
  %v4156 = vrot.slane %v4142, %v4155
  %v4157 = vcombine.low %v4101, %v4117
  %v4158 = vcombine.high %v4101, %v4117
  %v4160 = vunpack.c.l.s4 1934713408
  %v4161 = vunpack.c.0.s8 %v4160
  %v4162 = vlaneseq
  %v4163 = vshrl.u32 %v4162, 7
  %v4164 = vsub.s32 %v4161, %v4163
  %v4165 = vrot.slane %v4157, %v4164
  %v4167 = vunpack.c.l.s4 1934713408
  %v4168 = vunpack.c.0.s8 %v4167
  %v4169 = vlaneseq
  %v4170 = vshrl.u32 %v4169, 7
  %v4171 = vsub.s32 %v4168, %v4170
  %v4172 = vrot.slane %v4158, %v4171
  %v4173 = vcombine.low %v4108, %v4124
  %v4174 = vcombine.high %v4108, %v4124
  %v4176 = vunpack.c.l.s4 1934713408
  %v4177 = vunpack.c.0.s8 %v4176
  %v4178 = vlaneseq
  %v4179 = vshrl.u32 %v4178, 7
  %v4180 = vsub.s32 %v4177, %v4179
  %v4181 = vrot.slane %v4173, %v4180
  %v4183 = vunpack.c.l.s4 1934713408
  %v4184 = vunpack.c.0.s8 %v4183
  %v4185 = vlaneseq
  %v4186 = vshrl.u32 %v4185, 7
  %v4187 = vsub.s32 %v4184, %v4186
  %v4188 = vrot.slane %v4174, %v4187
  %v4189 = vcombine.low %v4133, %v4165
  %v4190 = vcombine.high %v4133, %v4165
  %v4191 = vcombine.low %v4140, %v4172
  %v4192 = vcombine.high %v4140, %v4172
  %v4193 = vcombine.low %v4149, %v4181
  %v4194 = vcombine.high %v4149, %v4181
  %v4195 = vcombine.low %v4156, %v4188
  %v4196 = vcombine.high %v4156, %v4188
  %v4197 = vcombine.low %v3491, %v3653
  %v4198 = vcombine.high %v3491, %v3653
  %v4200 = vunpack.c.l.s4 1983009808
  %v4201 = vunpack.c.0.s8 %v4200
  %v4202 = vlaneseq
  %v4203 = vshrl.u32 %v4202, 7
  %v4204 = vsub.s32 %v4201, %v4203
  %v4205 = vrot.slane %v4197, %v4204
  %v4207 = vunpack.c.l.s4 1983009808
  %v4208 = vunpack.c.0.s8 %v4207
  %v4209 = vlaneseq
  %v4210 = vshrl.u32 %v4209, 7
  %v4211 = vsub.s32 %v4208, %v4210
  %v4212 = vrot.slane %v4198, %v4211
  %v4213 = vcombine.low %v3572, %v3734
  %v4214 = vcombine.high %v3572, %v3734
  %v4216 = vunpack.c.l.s4 1983009808
  %v4217 = vunpack.c.0.s8 %v4216
  %v4218 = vlaneseq
  %v4219 = vshrl.u32 %v4218, 7
  %v4220 = vsub.s32 %v4217, %v4219
  %v4221 = vrot.slane %v4213, %v4220
  %v4223 = vunpack.c.l.s4 1983009808
  %v4224 = vunpack.c.0.s8 %v4223
  %v4225 = vlaneseq
  %v4226 = vshrl.u32 %v4225, 7
  %v4227 = vsub.s32 %v4224, %v4226
  %v4228 = vrot.slane %v4214, %v4227
  %v4229 = vcombine.low %v3815, %v3977
  %v4230 = vcombine.high %v3815, %v3977
  %v4232 = vunpack.c.l.s4 1983009808
  %v4233 = vunpack.c.0.s8 %v4232
  %v4234 = vlaneseq
  %v4235 = vshrl.u32 %v4234, 7
  %v4236 = vsub.s32 %v4233, %v4235
  %v4237 = vrot.slane %v4229, %v4236
  %v4239 = vunpack.c.l.s4 1983009808
  %v4240 = vunpack.c.0.s8 %v4239
  %v4241 = vlaneseq
  %v4242 = vshrl.u32 %v4241, 7
  %v4243 = vsub.s32 %v4240, %v4242
  %v4244 = vrot.slane %v4230, %v4243
  %v4245 = vcombine.low %v3896, %v4058
  %v4246 = vcombine.high %v3896, %v4058
  %v4248 = vunpack.c.l.s4 1983009808
  %v4249 = vunpack.c.0.s8 %v4248
  %v4250 = vlaneseq
  %v4251 = vshrl.u32 %v4250, 7
  %v4252 = vsub.s32 %v4249, %v4251
  %v4253 = vrot.slane %v4245, %v4252
  %v4255 = vunpack.c.l.s4 1983009808
  %v4256 = vunpack.c.0.s8 %v4255
  %v4257 = vlaneseq
  %v4258 = vshrl.u32 %v4257, 7
  %v4259 = vsub.s32 %v4256, %v4258
  %v4260 = vrot.slane %v4246, %v4259
  %v4261 = vcombine.low %v4205, %v4221
  %v4262 = vcombine.high %v4205, %v4221
  %v4264 = vunpack.c.l.s4 1934713408
  %v4265 = vunpack.c.0.s8 %v4264
  %v4266 = vlaneseq
  %v4267 = vshrl.u32 %v4266, 7
  %v4268 = vsub.s32 %v4265, %v4267
  %v4269 = vrot.slane %v4261, %v4268
  %v4271 = vunpack.c.l.s4 1934713408
  %v4272 = vunpack.c.0.s8 %v4271
  %v4273 = vlaneseq
  %v4274 = vshrl.u32 %v4273, 7
  %v4275 = vsub.s32 %v4272, %v4274
  %v4276 = vrot.slane %v4262, %v4275
  %v4277 = vcombine.low %v4212, %v4228
  %v4278 = vcombine.high %v4212, %v4228
  %v4280 = vunpack.c.l.s4 1934713408
  %v4281 = vunpack.c.0.s8 %v4280
  %v4282 = vlaneseq
  %v4283 = vshrl.u32 %v4282, 7
  %v4284 = vsub.s32 %v4281, %v4283
  %v4285 = vrot.slane %v4277, %v4284
  %v4287 = vunpack.c.l.s4 1934713408
  %v4288 = vunpack.c.0.s8 %v4287
  %v4289 = vlaneseq
  %v4290 = vshrl.u32 %v4289, 7
  %v4291 = vsub.s32 %v4288, %v4290
  %v4292 = vrot.slane %v4278, %v4291
  %v4293 = vcombine.low %v4237, %v4253
  %v4294 = vcombine.high %v4237, %v4253
  %v4296 = vunpack.c.l.s4 1934713408
  %v4297 = vunpack.c.0.s8 %v4296
  %v4298 = vlaneseq
  %v4299 = vshrl.u32 %v4298, 7
  %v4300 = vsub.s32 %v4297, %v4299
  %v4301 = vrot.slane %v4293, %v4300
  %v4303 = vunpack.c.l.s4 1934713408
  %v4304 = vunpack.c.0.s8 %v4303
  %v4305 = vlaneseq
  %v4306 = vshrl.u32 %v4305, 7
  %v4307 = vsub.s32 %v4304, %v4306
  %v4308 = vrot.slane %v4294, %v4307
  %v4309 = vcombine.low %v4244, %v4260
  %v4310 = vcombine.high %v4244, %v4260
  %v4312 = vunpack.c.l.s4 1934713408
  %v4313 = vunpack.c.0.s8 %v4312
  %v4314 = vlaneseq
  %v4315 = vshrl.u32 %v4314, 7
  %v4316 = vsub.s32 %v4313, %v4315
  %v4317 = vrot.slane %v4309, %v4316
  %v4319 = vunpack.c.l.s4 1934713408
  %v4320 = vunpack.c.0.s8 %v4319
  %v4321 = vlaneseq
  %v4322 = vshrl.u32 %v4321, 7
  %v4323 = vsub.s32 %v4320, %v4322
  %v4324 = vrot.slane %v4310, %v4323
  %v4325 = vcombine.low %v4269, %v4301
  %v4326 = vcombine.high %v4269, %v4301
  %v4327 = vcombine.low %v4276, %v4308
  %v4328 = vcombine.high %v4276, %v4308
  %v4329 = vcombine.low %v4285, %v4317
  %v4330 = vcombine.high %v4285, %v4317
  %v4331 = vcombine.low %v4292, %v4324
  %v4332 = vcombine.high %v4292, %v4324
  %v4333 = vcombine.low %v4189, %v4191
  %v4334 = vcombine.high %v4189, %v4191
  %v4336 = vunpack.c.l.s4 1983009808
  %v4337 = vunpack.c.0.s8 %v4336
  %v4338 = vlaneseq
  %v4339 = vshrl.u32 %v4338, 7
  %v4340 = vsub.s32 %v4337, %v4339
  %v4341 = vrot.slane %v4333, %v4340
  %v4343 = vunpack.c.l.s4 1983009808
  %v4344 = vunpack.c.0.s8 %v4343
  %v4345 = vlaneseq
  %v4346 = vshrl.u32 %v4345, 7
  %v4347 = vsub.s32 %v4344, %v4346
  %v4348 = vrot.slane %v4334, %v4347
  %v4349 = vcombine.low %v4190, %v4192
  %v4350 = vcombine.high %v4190, %v4192
  %v4352 = vunpack.c.l.s4 1983009808
  %v4353 = vunpack.c.0.s8 %v4352
  %v4354 = vlaneseq
  %v4355 = vshrl.u32 %v4354, 7
  %v4356 = vsub.s32 %v4353, %v4355
  %v4357 = vrot.slane %v4349, %v4356
  %v4359 = vunpack.c.l.s4 1983009808
  %v4360 = vunpack.c.0.s8 %v4359
  %v4361 = vlaneseq
  %v4362 = vshrl.u32 %v4361, 7
  %v4363 = vsub.s32 %v4360, %v4362
  %v4364 = vrot.slane %v4350, %v4363
  %v4365 = vcombine.low %v4193, %v4195
  %v4366 = vcombine.high %v4193, %v4195
  %v4368 = vunpack.c.l.s4 1983009808
  %v4369 = vunpack.c.0.s8 %v4368
  %v4370 = vlaneseq
  %v4371 = vshrl.u32 %v4370, 7
  %v4372 = vsub.s32 %v4369, %v4371
  %v4373 = vrot.slane %v4365, %v4372
  %v4375 = vunpack.c.l.s4 1983009808
  %v4376 = vunpack.c.0.s8 %v4375
  %v4377 = vlaneseq
  %v4378 = vshrl.u32 %v4377, 7
  %v4379 = vsub.s32 %v4376, %v4378
  %v4380 = vrot.slane %v4366, %v4379
  %v4381 = vcombine.low %v4194, %v4196
  %v4382 = vcombine.high %v4194, %v4196
  %v4384 = vunpack.c.l.s4 1983009808
  %v4385 = vunpack.c.0.s8 %v4384
  %v4386 = vlaneseq
  %v4387 = vshrl.u32 %v4386, 7
  %v4388 = vsub.s32 %v4385, %v4387
  %v4389 = vrot.slane %v4381, %v4388
  %v4391 = vunpack.c.l.s4 1983009808
  %v4392 = vunpack.c.0.s8 %v4391
  %v4393 = vlaneseq
  %v4394 = vshrl.u32 %v4393, 7
  %v4395 = vsub.s32 %v4392, %v4394
  %v4396 = vrot.slane %v4382, %v4395
  %v4397 = vcombine.low %v4341, %v4357
  %v4398 = vcombine.high %v4341, %v4357
  %v4400 = vunpack.c.l.s4 1934713408
  %v4401 = vunpack.c.0.s8 %v4400
  %v4402 = vlaneseq
  %v4403 = vshrl.u32 %v4402, 7
  %v4404 = vsub.s32 %v4401, %v4403
  %v4405 = vrot.slane %v4397, %v4404
  %v4407 = vunpack.c.l.s4 1934713408
  %v4408 = vunpack.c.0.s8 %v4407
  %v4409 = vlaneseq
  %v4410 = vshrl.u32 %v4409, 7
  %v4411 = vsub.s32 %v4408, %v4410
  %v4412 = vrot.slane %v4398, %v4411
  %v4413 = vcombine.low %v4348, %v4364
  %v4414 = vcombine.high %v4348, %v4364
  %v4416 = vunpack.c.l.s4 1934713408
  %v4417 = vunpack.c.0.s8 %v4416
  %v4418 = vlaneseq
  %v4419 = vshrl.u32 %v4418, 7
  %v4420 = vsub.s32 %v4417, %v4419
  %v4421 = vrot.slane %v4413, %v4420
  %v4423 = vunpack.c.l.s4 1934713408
  %v4424 = vunpack.c.0.s8 %v4423
  %v4425 = vlaneseq
  %v4426 = vshrl.u32 %v4425, 7
  %v4427 = vsub.s32 %v4424, %v4426
  %v4428 = vrot.slane %v4414, %v4427
  %v4429 = vcombine.low %v4373, %v4389
  %v4430 = vcombine.high %v4373, %v4389
  %v4432 = vunpack.c.l.s4 1934713408
  %v4433 = vunpack.c.0.s8 %v4432
  %v4434 = vlaneseq
  %v4435 = vshrl.u32 %v4434, 7
  %v4436 = vsub.s32 %v4433, %v4435
  %v4437 = vrot.slane %v4429, %v4436
  %v4439 = vunpack.c.l.s4 1934713408
  %v4440 = vunpack.c.0.s8 %v4439
  %v4441 = vlaneseq
  %v4442 = vshrl.u32 %v4441, 7
  %v4443 = vsub.s32 %v4440, %v4442
  %v4444 = vrot.slane %v4430, %v4443
  %v4445 = vcombine.low %v4380, %v4396
  %v4446 = vcombine.high %v4380, %v4396
  %v4448 = vunpack.c.l.s4 1934713408
  %v4449 = vunpack.c.0.s8 %v4448
  %v4450 = vlaneseq
  %v4451 = vshrl.u32 %v4450, 7
  %v4452 = vsub.s32 %v4449, %v4451
  %v4453 = vrot.slane %v4445, %v4452
  %v4455 = vunpack.c.l.s4 1934713408
  %v4456 = vunpack.c.0.s8 %v4455
  %v4457 = vlaneseq
  %v4458 = vshrl.u32 %v4457, 7
  %v4459 = vsub.s32 %v4456, %v4458
  %v4460 = vrot.slane %v4446, %v4459
  %v4461 = vcombine.low %v4405, %v4437
  %v4462 = vcombine.high %v4405, %v4437
  %v4463 = vcombine.low %v4412, %v4444
  %v4464 = vcombine.high %v4412, %v4444
  %v4465 = vcombine.low %v4421, %v4453
  %v4466 = vcombine.high %v4421, %v4453
  %v4467 = vcombine.low %v4428, %v4460
  %v4468 = vcombine.high %v4428, %v4460
  %v4469 = vcombine.low %v4325, %v4327
  %v4470 = vcombine.high %v4325, %v4327
  %v4472 = vunpack.c.l.s4 1983009808
  %v4473 = vunpack.c.0.s8 %v4472
  %v4474 = vlaneseq
  %v4475 = vshrl.u32 %v4474, 7
  %v4476 = vsub.s32 %v4473, %v4475
  %v4477 = vrot.slane %v4469, %v4476
  %v4479 = vunpack.c.l.s4 1983009808
  %v4480 = vunpack.c.0.s8 %v4479
  %v4481 = vlaneseq
  %v4482 = vshrl.u32 %v4481, 7
  %v4483 = vsub.s32 %v4480, %v4482
  %v4484 = vrot.slane %v4470, %v4483
  %v4485 = vcombine.low %v4326, %v4328
  %v4486 = vcombine.high %v4326, %v4328
  %v4488 = vunpack.c.l.s4 1983009808
  %v4489 = vunpack.c.0.s8 %v4488
  %v4490 = vlaneseq
  %v4491 = vshrl.u32 %v4490, 7
  %v4492 = vsub.s32 %v4489, %v4491
  %v4493 = vrot.slane %v4485, %v4492
  %v4495 = vunpack.c.l.s4 1983009808
  %v4496 = vunpack.c.0.s8 %v4495
  %v4497 = vlaneseq
  %v4498 = vshrl.u32 %v4497, 7
  %v4499 = vsub.s32 %v4496, %v4498
  %v4500 = vrot.slane %v4486, %v4499
  %v4501 = vcombine.low %v4329, %v4331
  %v4502 = vcombine.high %v4329, %v4331
  %v4504 = vunpack.c.l.s4 1983009808
  %v4505 = vunpack.c.0.s8 %v4504
  %v4506 = vlaneseq
  %v4507 = vshrl.u32 %v4506, 7
  %v4508 = vsub.s32 %v4505, %v4507
  %v4509 = vrot.slane %v4501, %v4508
  %v4511 = vunpack.c.l.s4 1983009808
  %v4512 = vunpack.c.0.s8 %v4511
  %v4513 = vlaneseq
  %v4514 = vshrl.u32 %v4513, 7
  %v4515 = vsub.s32 %v4512, %v4514
  %v4516 = vrot.slane %v4502, %v4515
  %v4517 = vcombine.low %v4330, %v4332
  %v4518 = vcombine.high %v4330, %v4332
  %v4520 = vunpack.c.l.s4 1983009808
  %v4521 = vunpack.c.0.s8 %v4520
  %v4522 = vlaneseq
  %v4523 = vshrl.u32 %v4522, 7
  %v4524 = vsub.s32 %v4521, %v4523
  %v4525 = vrot.slane %v4517, %v4524
  %v4527 = vunpack.c.l.s4 1983009808
  %v4528 = vunpack.c.0.s8 %v4527
  %v4529 = vlaneseq
  %v4530 = vshrl.u32 %v4529, 7
  %v4531 = vsub.s32 %v4528, %v4530
  %v4532 = vrot.slane %v4518, %v4531
  %v4533 = vcombine.low %v4477, %v4493
  %v4534 = vcombine.high %v4477, %v4493
  %v4536 = vunpack.c.l.s4 1934713408
  %v4537 = vunpack.c.0.s8 %v4536
  %v4538 = vlaneseq
  %v4539 = vshrl.u32 %v4538, 7
  %v4540 = vsub.s32 %v4537, %v4539
  %v4541 = vrot.slane %v4533, %v4540
  %v4543 = vunpack.c.l.s4 1934713408
  %v4544 = vunpack.c.0.s8 %v4543
  %v4545 = vlaneseq
  %v4546 = vshrl.u32 %v4545, 7
  %v4547 = vsub.s32 %v4544, %v4546
  %v4548 = vrot.slane %v4534, %v4547
  %v4549 = vcombine.low %v4484, %v4500
  %v4550 = vcombine.high %v4484, %v4500
  %v4552 = vunpack.c.l.s4 1934713408
  %v4553 = vunpack.c.0.s8 %v4552
  %v4554 = vlaneseq
  %v4555 = vshrl.u32 %v4554, 7
  %v4556 = vsub.s32 %v4553, %v4555
  %v4557 = vrot.slane %v4549, %v4556
  %v4559 = vunpack.c.l.s4 1934713408
  %v4560 = vunpack.c.0.s8 %v4559
  %v4561 = vlaneseq
  %v4562 = vshrl.u32 %v4561, 7
  %v4563 = vsub.s32 %v4560, %v4562
  %v4564 = vrot.slane %v4550, %v4563
  %v4565 = vcombine.low %v4509, %v4525
  %v4566 = vcombine.high %v4509, %v4525
  %v4568 = vunpack.c.l.s4 1934713408
  %v4569 = vunpack.c.0.s8 %v4568
  %v4570 = vlaneseq
  %v4571 = vshrl.u32 %v4570, 7
  %v4572 = vsub.s32 %v4569, %v4571
  %v4573 = vrot.slane %v4565, %v4572
  %v4575 = vunpack.c.l.s4 1934713408
  %v4576 = vunpack.c.0.s8 %v4575
  %v4577 = vlaneseq
  %v4578 = vshrl.u32 %v4577, 7
  %v4579 = vsub.s32 %v4576, %v4578
  %v4580 = vrot.slane %v4566, %v4579
  %v4581 = vcombine.low %v4516, %v4532
  %v4582 = vcombine.high %v4516, %v4532
  %v4584 = vunpack.c.l.s4 1934713408
  %v4585 = vunpack.c.0.s8 %v4584
  %v4586 = vlaneseq
  %v4587 = vshrl.u32 %v4586, 7
  %v4588 = vsub.s32 %v4585, %v4587
  %v4589 = vrot.slane %v4581, %v4588
  %v4591 = vunpack.c.l.s4 1934713408
  %v4592 = vunpack.c.0.s8 %v4591
  %v4593 = vlaneseq
  %v4594 = vshrl.u32 %v4593, 7
  %v4595 = vsub.s32 %v4592, %v4594
  %v4596 = vrot.slane %v4582, %v4595
  %v4597 = vcombine.low %v4541, %v4573
  %v4598 = vcombine.high %v4541, %v4573
  %v4599 = vcombine.low %v4548, %v4580
  %v4600 = vcombine.high %v4548, %v4580
  %v4601 = vcombine.low %v4557, %v4589
  %v4602 = vcombine.high %v4557, %v4589
  %v4603 = vcombine.low %v4564, %v4596
  %v4604 = vcombine.high %v4564, %v4596
  %4607 = vrot.lane.b32.xlu0 %v4462, 32
  %v4608 = vpop.permute.xlu0 %4607
  %4609 = vrot.lane.b32.xlu0 %v4598, 32
  %v4610 = vpop.permute.xlu0 %4609
  %4615 = vrot.lane.b32.xlu0 %v4463, 64
  %v4616 = vpop.permute.xlu0 %4615
  %4617 = vrot.lane.b32.xlu0 %v4599, 64
  %v4618 = vpop.permute.xlu0 %4617
  %4623 = vrot.lane.b32.xlu0 %v4464, 96
  %v4624 = vpop.permute.xlu0 %4623
  %4625 = vrot.lane.b32.xlu0 %v4600, 96
  %v4626 = vpop.permute.xlu0 %4625
  %4631 = vrot.lane.b32.xlu0 %v4466, 32
  %v4632 = vpop.permute.xlu0 %4631
  %4633 = vrot.lane.b32.xlu0 %v4602, 32
  %v4634 = vpop.permute.xlu0 %4633
  %4639 = vrot.lane.b32.xlu0 %v4467, 64
  %v4640 = vpop.permute.xlu0 %4639
  %4641 = vrot.lane.b32.xlu0 %v4603, 64
  %v4642 = vpop.permute.xlu0 %4641
  %4647 = vrot.lane.b32.xlu0 %v4468, 96
  %v4648 = vpop.permute.xlu0 %4647
  %4649 = vrot.lane.b32.xlu0 %v4604, 96
  %v4650 = vpop.permute.xlu0 %4649
  %v4653 = vsel %vm380, %v4461, %v4608
  %v4654 = vsel %vm380, %v4597, %v4610
  %vm4655 = vcmask 523264
  %v4656 = vsel %vm4655, %v4653, %v4616
  %v4657 = vsel %vm4655, %v4654, %v4618
  %vm4658 = vcmask 785408
  %v4659 = vsel %vm4658, %v4656, %v4624
  %v4660 = vsel %vm4658, %v4657, %v4626
  %v4661 = vsel %vm380, %v4465, %v4632
  %v4662 = vsel %vm380, %v4601, %v4634
  %v4663 = vsel %vm4655, %v4661, %v4640
  %v4664 = vsel %vm4655, %v4662, %v4642
  %v4665 = vsel %vm4658, %v4663, %v4648
  %v4666 = vsel %vm4658, %v4664, %v4650
  %v4668 = vlaneseq
  %v4669 = vshrl.u32 %v4668, 7
  %v4670 = vsub.s32 0, %v4669
  %v4671 = vrot.slane %v293, %v4670
  %v4672 = vlaneseq
  %v4673 = vshrl.u32 %v4672, 7
  %v4674 = vsub.s32 1, %v4673
  %v4675 = vrot.slane %v293, %v4674
  %4678 = vmatprep.subr.mxu0 %v260
  %4679 = vmatpush1.msra.mxu0 %v259
  %4680 = vmatprep.subr.mxu0 %v258
  %4681 = vmatpush1.msra.mxu0 %v257
  %4682 = vmatprep.subr.mxu0 %v256
  %4683 = vmatpush1.msra.mxu0 %v255
  %4684 = vmatprep.subr.mxu0 %v254
  %4685 = vmatpush1.msra.mxu0 %v253
  %4686 = vmatprep.subr.mxu0 %v252
  %4687 = vmatpush1.msra.mxu0 %v251
  %4688 = vmatprep.subr.mxu0 %v250
  %4689 = vmatpush1.msra.mxu0 %v249
  %4690 = vmatprep.subr.mxu0 %v248
  %4691 = vmatpush1.msra.mxu0 %v247
  %4692 = vmatprep.subr.mxu0 %v246
  %4693 = vmatpush1.msra.mxu0 %v245
  %4694 = vmatprep.subr.mxu0 %v244
  %4695 = vmatpush1.msra.mxu0 %v243
  %4696 = vmatprep.subr.mxu0 %v242
  %4697 = vmatpush1.msra.mxu0 %v241
  %4698 = vmatprep.subr.mxu0 %v240
  %4699 = vmatpush1.msra.mxu0 %v239
  %4700 = vmatprep.subr.mxu0 %v238
  %4701 = vmatpush1.msra.mxu0 %v237
  %4702 = vmatprep.subr.mxu0 %v236
  %4703 = vmatpush1.msra.mxu0 %v235
  %4704 = vmatprep.subr.mxu0 %v234
  %4705 = vmatpush1.msra.mxu0 %v233
  %4706 = vmatprep.subr.mxu0 %v232
  %4707 = vmatpush1.msra.mxu0 %v231
  %4708 = vmatprep.subr.mxu0 %v230
  %4709 = vmatpush1.msra.mxu0 %v229
  %4710 = vmatprep.subr.mxu0 %v292
  %4711 = vmatpush2.msra.mxu0 %v291
  %4712 = vmatprep.subr.mxu0 %v290
  %4713 = vmatpush2.msra.mxu0 %v289
  %4714 = vmatprep.subr.mxu0 %v288
  %4715 = vmatpush2.msra.mxu0 %v287
  %4716 = vmatprep.subr.mxu0 %v286
  %4717 = vmatpush2.msra.mxu0 %v285
  %4718 = vmatprep.subr.mxu0 %v284
  %4719 = vmatpush2.msra.mxu0 %v283
  %4720 = vmatprep.subr.mxu0 %v282
  %4721 = vmatpush2.msra.mxu0 %v281
  %4722 = vmatprep.subr.mxu0 %v280
  %4723 = vmatpush2.msra.mxu0 %v279
  %4724 = vmatprep.subr.mxu0 %v278
  %4725 = vmatpush2.msra.mxu0 %v277
  %4726 = vmatprep.subr.mxu0 %v276
  %4727 = vmatpush2.msra.mxu0 %v275
  %4728 = vmatprep.subr.mxu0 %v274
  %4729 = vmatpush2.msra.mxu0 %v273
  %4730 = vmatprep.subr.mxu0 %v272
  %4731 = vmatpush2.msra.mxu0 %v271
  %4732 = vmatprep.subr.mxu0 %v270
  %4733 = vmatpush2.msra.mxu0 %v269
  %4734 = vmatprep.subr.mxu0 %v268
  %4735 = vmatpush2.msra.mxu0 %v267
  %4736 = vmatprep.subr.mxu0 %v266
  %4737 = vmatpush2.msra.mxu0 %v265
  %4738 = vmatprep.subr.mxu0 %v264
  %4739 = vmatpush2.msra.mxu0 %v263
  %4740 = vmatprep.subr.mxu0 %v262
  %4741 = vmatpush2.msra.mxu0 %v261
  %4742 = vmatprep.mubr.f32.mxu0 %v4665
  %4743 = vmatmul.mubr.f32.gmra.mxu0 %v4659
  %v4744 = vpop.f32.mrf.mxu0
  %v4745 = vadd.f32 %v4671, %v4744
  %v4746 = vpop.f32.mrf.mxu0
  %v4747 = vadd.f32 %v4675, %v4746
  %4748 = vmatprep.mubr.f32.mxu0 %v4666
  %4749 = vmatmul.mubr.f32.gmra.mxu0 %v4660
  %v4750 = vpop.f32.mrf.mxu0
  %v4751 = vadd.f32 %v4671, %v4750
  %v4752 = vpop.f32.mrf.mxu0
  %v4753 = vadd.f32 %v4675, %v4752
  %4754 = vdwg.mxu0
  %v4755 = vadd.f32 %v4745, %v294
  %v4756 = vadd.f32 %v4747, %v295
  %v4757 = vadd.f32 %v4751, %v296
  %v4758 = vadd.f32 %v4753, %v297
  %4759 = vst [vmem:[%s8] sm:$0xff] %v4755
  %4760 = vst [vmem:[%s8 + $0x8] sm:$0xff] %v4756
  %4761 = vst [vmem:[%s8 + $0x10] sm:$0xff] %v4757
  %4762 = vst [vmem:[%s8 + $0x18] sm:$0xff] %v4758
  %s4763 = scalar_lea.vmem %s0, 32
  %v4764 = vld [vmem:[%s4763] sm:$0xff]
  %v4765 = vld [vmem:[%s4763 + $0x8] sm:$0xff]
  %v4766 = vld [vmem:[%s4763 + $0x10] sm:$0xff]
  %v4767 = vld [vmem:[%s4763 + $0x18] sm:$0xff]
  %s4768 = scalar_lea.vmem %s1, 576
  %v4769 = vld [vmem:[%s4768] sm:$0xff]
  %v4770 = vld [vmem:[%s4768 + $0x8] sm:$0xff]
  %v4771 = vld [vmem:[%s4768 + $0x10] sm:$0xff]
  %v4772 = vld [vmem:[%s4768 + $0x18] sm:$0xff]
  %v4773 = vld [vmem:[%s4768 + $0x20] sm:$0xff]
  %v4774 = vld [vmem:[%s4768 + $0x28] sm:$0xff]
  %v4775 = vld [vmem:[%s4768 + $0x30] sm:$0xff]
  %v4776 = vld [vmem:[%s4768 + $0x38] sm:$0xff]
  %v4777 = vld [vmem:[%s4768 + $0x40] sm:$0xff]
  %v4778 = vld [vmem:[%s4768 + $0x48] sm:$0xff]
  %v4779 = vld [vmem:[%s4768 + $0x50] sm:$0xff]
  %v4780 = vld [vmem:[%s4768 + $0x58] sm:$0xff]
  %v4781 = vld [vmem:[%s4768 + $0x60] sm:$0xff]
  %v4782 = vld [vmem:[%s4768 + $0x68] sm:$0xff]
  %v4783 = vld [vmem:[%s4768 + $0x70] sm:$0xff]
  %v4784 = vld [vmem:[%s4768 + $0x78] sm:$0xff]
  %v4785 = vld [vmem:[%s4768 + $0x80] sm:$0xff]
  %v4786 = vld [vmem:[%s4768 + $0x88] sm:$0xff]
  %v4787 = vld [vmem:[%s4768 + $0x90] sm:$0xff]
  %v4788 = vld [vmem:[%s4768 + $0x98] sm:$0xff]
  %v4789 = vld [vmem:[%s4768 + $0xa0] sm:$0xff]
  %v4790 = vld [vmem:[%s4768 + $0xa8] sm:$0xff]
  %v4791 = vld [vmem:[%s4768 + $0xb0] sm:$0xff]
  %v4792 = vld [vmem:[%s4768 + $0xb8] sm:$0xff]
  %v4793 = vld [vmem:[%s4768 + $0xc0] sm:$0xff]
  %v4794 = vld [vmem:[%s4768 + $0xc8] sm:$0xff]
  %v4795 = vld [vmem:[%s4768 + $0xd0] sm:$0xff]
  %v4796 = vld [vmem:[%s4768 + $0xd8] sm:$0xff]
  %v4797 = vld [vmem:[%s4768 + $0xe0] sm:$0xff]
  %v4798 = vld [vmem:[%s4768 + $0xe8] sm:$0xff]
  %v4799 = vld [vmem:[%s4768 + $0xf0] sm:$0xff]
  %v4800 = vld [vmem:[%s4768 + $0xf8] sm:$0xff]
  %v4801 = vld [vmem:[%s4768 + $0x100] sm:$0xff]
  %v4802 = vld [vmem:[%s4768 + $0x108] sm:$0xff]
  %v4803 = vld [vmem:[%s4768 + $0x110] sm:$0xff]
  %v4804 = vld [vmem:[%s4768 + $0x118] sm:$0xff]
  %v4805 = vld [vmem:[%s4768 + $0x120] sm:$0xff]
  %v4806 = vld [vmem:[%s4768 + $0x128] sm:$0xff]
  %v4807 = vld [vmem:[%s4768 + $0x130] sm:$0xff]
  %v4808 = vld [vmem:[%s4768 + $0x138] sm:$0xff]
  %v4809 = vld [vmem:[%s4768 + $0x140] sm:$0xff]
  %v4810 = vld [vmem:[%s4768 + $0x148] sm:$0xff]
  %v4811 = vld [vmem:[%s4768 + $0x150] sm:$0xff]
  %v4812 = vld [vmem:[%s4768 + $0x158] sm:$0xff]
  %v4813 = vld [vmem:[%s4768 + $0x160] sm:$0xff]
  %v4814 = vld [vmem:[%s4768 + $0x168] sm:$0xff]
  %v4815 = vld [vmem:[%s4768 + $0x170] sm:$0xff]
  %v4816 = vld [vmem:[%s4768 + $0x178] sm:$0xff]
  %v4817 = vld [vmem:[%s4768 + $0x180] sm:$0xff]
  %v4818 = vld [vmem:[%s4768 + $0x188] sm:$0xff]
  %v4819 = vld [vmem:[%s4768 + $0x190] sm:$0xff]
  %v4820 = vld [vmem:[%s4768 + $0x198] sm:$0xff]
  %v4821 = vld [vmem:[%s4768 + $0x1a0] sm:$0xff]
  %v4822 = vld [vmem:[%s4768 + $0x1a8] sm:$0xff]
  %v4823 = vld [vmem:[%s4768 + $0x1b0] sm:$0xff]
  %v4824 = vld [vmem:[%s4768 + $0x1b8] sm:$0xff]
  %v4825 = vld [vmem:[%s4768 + $0x1c0] sm:$0xff]
  %v4826 = vld [vmem:[%s4768 + $0x1c8] sm:$0xff]
  %v4827 = vld [vmem:[%s4768 + $0x1d0] sm:$0xff]
  %v4828 = vld [vmem:[%s4768 + $0x1d8] sm:$0xff]
  %v4829 = vld [vmem:[%s4768 + $0x1e0] sm:$0xff]
  %v4830 = vld [vmem:[%s4768 + $0x1e8] sm:$0xff]
  %v4831 = vld [vmem:[%s4768 + $0x1f0] sm:$0xff]
  %v4832 = vld [vmem:[%s4768 + $0x1f8] sm:$0xff]
  %v4833 = vld [vmem:[%s4768 + $0x200] sm:$0xff]
  %v4834 = vld [vmem:[%s4768 + $0x208] sm:$0xff]
  %v4835 = vld [vmem:[%s4768 + $0x210] sm:$0xff]
  %v4836 = vld [vmem:[%s4768 + $0x218] sm:$0xff]
  %v4837 = vld [vmem:[%s4768 + $0x220] sm:$0xff]
  %v4838 = vld [vmem:[%s4768 + $0x228] sm:$0xff]
  %v4839 = vld [vmem:[%s4768 + $0x230] sm:$0xff]
  %v4840 = vld [vmem:[%s4768 + $0x238] sm:$0xff]
  %4841 = vmatprep.subr.mxu0 %v4800
  %4842 = vmatpush1.msra.mxu0 %v4799
  %4843 = vmatprep.subr.mxu0 %v4798
  %4844 = vmatpush1.msra.mxu0 %v4797
  %4845 = vmatprep.subr.mxu0 %v4796
  %4846 = vmatpush1.msra.mxu0 %v4795
  %4847 = vmatprep.subr.mxu0 %v4794
  %4848 = vmatpush1.msra.mxu0 %v4793
  %4849 = vmatprep.subr.mxu0 %v4792
  %4850 = vmatpush1.msra.mxu0 %v4791
  %4851 = vmatprep.subr.mxu0 %v4790
  %4852 = vmatpush1.msra.mxu0 %v4789
  %4853 = vmatprep.subr.mxu0 %v4788
  %4854 = vmatpush1.msra.mxu0 %v4787
  %4855 = vmatprep.subr.mxu0 %v4786
  %4856 = vmatpush1.msra.mxu0 %v4785
  %4857 = vmatprep.subr.mxu0 %v4784
  %4858 = vmatpush1.msra.mxu0 %v4783
  %4859 = vmatprep.subr.mxu0 %v4782
  %4860 = vmatpush1.msra.mxu0 %v4781
  %4861 = vmatprep.subr.mxu0 %v4780
  %4862 = vmatpush1.msra.mxu0 %v4779
  %4863 = vmatprep.subr.mxu0 %v4778
  %4864 = vmatpush1.msra.mxu0 %v4777
  %4865 = vmatprep.subr.mxu0 %v4776
  %4866 = vmatpush1.msra.mxu0 %v4775
  %4867 = vmatprep.subr.mxu0 %v4774
  %4868 = vmatpush1.msra.mxu0 %v4773
  %4869 = vmatprep.subr.mxu0 %v4772
  %4870 = vmatpush1.msra.mxu0 %v4771
  %4871 = vmatprep.subr.mxu0 %v4770
  %4872 = vmatpush1.msra.mxu0 %v4769
  %4873 = vmatprep.subr.mxu0 %v4832
  %4874 = vmatpush2.msra.mxu0 %v4831
  %4875 = vmatprep.subr.mxu0 %v4830
  %4876 = vmatpush2.msra.mxu0 %v4829
  %4877 = vmatprep.subr.mxu0 %v4828
  %4878 = vmatpush2.msra.mxu0 %v4827
  %4879 = vmatprep.subr.mxu0 %v4826
  %4880 = vmatpush2.msra.mxu0 %v4825
  %4881 = vmatprep.subr.mxu0 %v4824
  %4882 = vmatpush2.msra.mxu0 %v4823
  %4883 = vmatprep.subr.mxu0 %v4822
  %4884 = vmatpush2.msra.mxu0 %v4821
  %4885 = vmatprep.subr.mxu0 %v4820
  %4886 = vmatpush2.msra.mxu0 %v4819
  %4887 = vmatprep.subr.mxu0 %v4818
  %4888 = vmatpush2.msra.mxu0 %v4817
  %4889 = vmatprep.subr.mxu0 %v4816
  %4890 = vmatpush2.msra.mxu0 %v4815
  %4891 = vmatprep.subr.mxu0 %v4814
  %4892 = vmatpush2.msra.mxu0 %v4813
  %4893 = vmatprep.subr.mxu0 %v4812
  %4894 = vmatpush2.msra.mxu0 %v4811
  %4895 = vmatprep.subr.mxu0 %v4810
  %4896 = vmatpush2.msra.mxu0 %v4809
  %4897 = vmatprep.subr.mxu0 %v4808
  %4898 = vmatpush2.msra.mxu0 %v4807
  %4899 = vmatprep.subr.mxu0 %v4806
  %4900 = vmatpush2.msra.mxu0 %v4805
  %4901 = vmatprep.subr.mxu0 %v4804
  %4902 = vmatpush2.msra.mxu0 %v4803
  %4903 = vmatprep.subr.mxu0 %v4802
  %4904 = vmatpush2.msra.mxu0 %v4801
  %4905 = vmatprep.mubr.f32.mxu0 %v30
  %4906 = vmatmul.mubr.f32.gmra.mxu0 %v29
  %v4907 = vpop.f32.mrf.mxu0
  %v4908 = vadd.f32 %v373, %v4907
  %v4909 = vpop.f32.mrf.mxu0
  %v4910 = vadd.f32 %v373, %v4909
  %4911 = vmatprep.mubr.f32.mxu0 %v33
  %4912 = vmatmul.mubr.f32.gmra.mxu0 %v32
  %v4913 = vpop.f32.mrf.mxu0
  %v4914 = vadd.f32 %v378, %v4913
  %v4915 = vpop.f32.mrf.mxu0
  %v4916 = vadd.f32 %v378, %v4915
  %4917 = vdwg.mxu0
  %4918 = vmatprep.subr.mxu0 0.0
  %4919 = vmatpush1.msra.mxu0 0.0
  %4920 = vmatprep.subr.mxu0 0.0
  %4921 = vmatpush1.msra.mxu0 0.0
  %4922 = vmatprep.subr.mxu0 0.0
  %4923 = vmatpush1.msra.mxu0 0.0
  %4924 = vmatprep.subr.mxu0 0.0
  %4925 = vmatpush1.msra.mxu0 0.0
  %4926 = vmatprep.subr.mxu0 0.0
  %4927 = vmatpush1.msra.mxu0 0.0
  %4928 = vmatprep.subr.mxu0 0.0
  %4929 = vmatpush1.msra.mxu0 0.0
  %4930 = vmatprep.subr.mxu0 0.0
  %4931 = vmatpush1.msra.mxu0 0.0
  %4932 = vmatprep.subr.mxu0 0.0
  %4933 = vmatpush1.msra.mxu0 0.0
  %4934 = vmatprep.subr.mxu0 0.0
  %4935 = vmatpush1.msra.mxu0 0.0
  %4936 = vmatprep.subr.mxu0 0.0
  %4937 = vmatpush1.msra.mxu0 0.0
  %4938 = vmatprep.subr.mxu0 0.0
  %4939 = vmatpush1.msra.mxu0 0.0
  %4940 = vmatprep.subr.mxu0 0.0
  %4941 = vmatpush1.msra.mxu0 0.0
  %4942 = vmatprep.subr.mxu0 %v4840
  %4943 = vmatpush1.msra.mxu0 %v4839
  %4944 = vmatprep.subr.mxu0 %v4838
  %4945 = vmatpush1.msra.mxu0 %v4837
  %4946 = vmatprep.subr.mxu0 %v4836
  %4947 = vmatpush1.msra.mxu0 %v4835
  %4948 = vmatprep.subr.mxu0 %v4834
  %4949 = vmatpush1.msra.mxu0 %v4833
  %4950 = vmatprep.subr.mxu0 0.0
  %4951 = vmatpush2.msra.mxu0 0.0
  %4952 = vmatprep.subr.mxu0 0.0
  %4953 = vmatpush2.msra.mxu0 0.0
  %4954 = vmatprep.subr.mxu0 0.0
  %4955 = vmatpush2.msra.mxu0 0.0
  %4956 = vmatprep.subr.mxu0 0.0
  %4957 = vmatpush2.msra.mxu0 0.0
  %4958 = vmatprep.subr.mxu0 0.0
  %4959 = vmatpush2.msra.mxu0 0.0
  %4960 = vmatprep.subr.mxu0 0.0
  %4961 = vmatpush2.msra.mxu0 0.0
  %4962 = vmatprep.subr.mxu0 0.0
  %4963 = vmatpush2.msra.mxu0 0.0
  %4964 = vmatprep.subr.mxu0 0.0
  %4965 = vmatpush2.msra.mxu0 0.0
  %4966 = vmatprep.subr.mxu0 0.0
  %4967 = vmatpush2.msra.mxu0 0.0
  %4968 = vmatprep.subr.mxu0 0.0
  %4969 = vmatpush2.msra.mxu0 0.0
  %4970 = vmatprep.subr.mxu0 0.0
  %4971 = vmatpush2.msra.mxu0 0.0
  %4972 = vmatprep.subr.mxu0 0.0
  %4973 = vmatpush2.msra.mxu0 0.0
  %4974 = vmatprep.subr.mxu0 0.0
  %4975 = vmatpush2.msra.mxu0 0.0
  %4976 = vmatprep.subr.mxu0 0.0
  %4977 = vmatpush2.msra.mxu0 0.0
  %4978 = vmatprep.subr.mxu0 0.0
  %4979 = vmatpush2.msra.mxu0 0.0
  %4980 = vmatprep.subr.mxu0 0.0
  %4981 = vmatpush2.msra.mxu0 0.0
  %4982 = vmatprep.mubr.f32.mxu0 0.0
  %4983 = vmatmul.mubr.f32.gmra.mxu0 %v382
  %v4984 = vpop.f32.mrf.mxu0
  %v4985 = vadd.f32 %v4908, %v4984
  %v4986 = vpop.f32.mrf.mxu0
  %v4987 = vadd.f32 %v4910, %v4986
  %4988 = vmatprep.mubr.f32.mxu0 0.0
  %4989 = vmatmul.mubr.f32.gmra.mxu0 %v385
  %v4990 = vpop.f32.mrf.mxu0
  %v4991 = vadd.f32 %v4914, %v4990
  %v4992 = vpop.f32.mrf.mxu0
  %v4993 = vadd.f32 %v4916, %v4992
  %4994 = vdwg.mxu0
  %4995 = vmatprep.subr.mxu0 %v68
  %4996 = vmatpush1.msra.mxu0 %v67
  %4997 = vmatprep.subr.mxu0 %v66
  %4998 = vmatpush1.msra.mxu0 %v65
  %4999 = vmatprep.subr.mxu0 %v64
  %5000 = vmatpush1.msra.mxu0 %v63
  %5001 = vmatprep.subr.mxu0 %v62
  %5002 = vmatpush1.msra.mxu0 %v61
  %5003 = vmatprep.subr.mxu0 %v60
  %5004 = vmatpush1.msra.mxu0 %v59
  %5005 = vmatprep.subr.mxu0 %v58
  %5006 = vmatpush1.msra.mxu0 %v57
  %5007 = vmatprep.subr.mxu0 %v56
  %5008 = vmatpush1.msra.mxu0 %v55
  %5009 = vmatprep.subr.mxu0 %v54
  %5010 = vmatpush1.msra.mxu0 %v53
  %5011 = vmatprep.subr.mxu0 %v52
  %5012 = vmatpush1.msra.mxu0 %v51
  %5013 = vmatprep.subr.mxu0 %v50
  %5014 = vmatpush1.msra.mxu0 %v49
  %5015 = vmatprep.subr.mxu0 %v48
  %5016 = vmatpush1.msra.mxu0 %v47
  %5017 = vmatprep.subr.mxu0 %v46
  %5018 = vmatpush1.msra.mxu0 %v45
  %5019 = vmatprep.subr.mxu0 %v44
  %5020 = vmatpush1.msra.mxu0 %v43
  %5021 = vmatprep.subr.mxu0 %v42
  %5022 = vmatpush1.msra.mxu0 %v41
  %5023 = vmatprep.subr.mxu0 %v40
  %5024 = vmatpush1.msra.mxu0 %v39
  %5025 = vmatprep.subr.mxu0 %v38
  %5026 = vmatpush1.msra.mxu0 %v37
  %5027 = vmatprep.subr.mxu0 %v100
  %5028 = vmatpush2.msra.mxu0 %v99
  %5029 = vmatprep.subr.mxu0 %v98
  %5030 = vmatpush2.msra.mxu0 %v97
  %5031 = vmatprep.subr.mxu0 %v96
  %5032 = vmatpush2.msra.mxu0 %v95
  %5033 = vmatprep.subr.mxu0 %v94
  %5034 = vmatpush2.msra.mxu0 %v93
  %5035 = vmatprep.subr.mxu0 %v92
  %5036 = vmatpush2.msra.mxu0 %v91
  %5037 = vmatprep.subr.mxu0 %v90
  %5038 = vmatpush2.msra.mxu0 %v89
  %5039 = vmatprep.subr.mxu0 %v88
  %5040 = vmatpush2.msra.mxu0 %v87
  %5041 = vmatprep.subr.mxu0 %v86
  %5042 = vmatpush2.msra.mxu0 %v85
  %5043 = vmatprep.subr.mxu0 %v84
  %5044 = vmatpush2.msra.mxu0 %v83
  %5045 = vmatprep.subr.mxu0 %v82
  %5046 = vmatpush2.msra.mxu0 %v81
  %5047 = vmatprep.subr.mxu0 %v80
  %5048 = vmatpush2.msra.mxu0 %v79
  %5049 = vmatprep.subr.mxu0 %v78
  %5050 = vmatpush2.msra.mxu0 %v77
  %5051 = vmatprep.subr.mxu0 %v76
  %5052 = vmatpush2.msra.mxu0 %v75
  %5053 = vmatprep.subr.mxu0 %v74
  %5054 = vmatpush2.msra.mxu0 %v73
  %5055 = vmatprep.subr.mxu0 %v72
  %5056 = vmatpush2.msra.mxu0 %v71
  %5057 = vmatprep.subr.mxu0 %v70
  %5058 = vmatpush2.msra.mxu0 %v69
  %5059 = vmatprep.mubr.f32.mxu0 %v4765
  %5060 = vmatmul.mubr.f32.gmra.mxu0 %v4764
  %v5061 = vpop.f32.mrf.mxu0
  %v5062 = vadd.f32 0.0, %v5061
  %v5063 = vpop.f32.mrf.mxu0
  %v5064 = vadd.f32 0.0, %v5063
  %5065 = vmatprep.mubr.f32.mxu0 %v4767
  %5066 = vmatmul.mubr.f32.gmra.mxu0 %v4766
  %v5067 = vpop.f32.mrf.mxu0
  %v5068 = vadd.f32 0.0, %v5067
  %v5069 = vpop.f32.mrf.mxu0
  %v5070 = vadd.f32 0.0, %v5069
  %5071 = vdwg.mxu0
  %5072 = vmatprep.subr.mxu0 %v162
  %5073 = vmatpush1.msra.mxu0 %v161
  %5074 = vmatprep.subr.mxu0 %v158
  %5075 = vmatpush1.msra.mxu0 %v157
  %5076 = vmatprep.subr.mxu0 %v154
  %5077 = vmatpush1.msra.mxu0 %v153
  %5078 = vmatprep.subr.mxu0 %v150
  %5079 = vmatpush1.msra.mxu0 %v149
  %5080 = vmatprep.subr.mxu0 %v146
  %5081 = vmatpush1.msra.mxu0 %v145
  %5082 = vmatprep.subr.mxu0 %v142
  %5083 = vmatpush1.msra.mxu0 %v141
  %5084 = vmatprep.subr.mxu0 %v138
  %5085 = vmatpush1.msra.mxu0 %v137
  %5086 = vmatprep.subr.mxu0 %v134
  %5087 = vmatpush1.msra.mxu0 %v133
  %5088 = vmatprep.subr.mxu0 %v130
  %5089 = vmatpush1.msra.mxu0 %v129
  %5090 = vmatprep.subr.mxu0 %v126
  %5091 = vmatpush1.msra.mxu0 %v125
  %5092 = vmatprep.subr.mxu0 %v122
  %5093 = vmatpush1.msra.mxu0 %v121
  %5094 = vmatprep.subr.mxu0 %v118
  %5095 = vmatpush1.msra.mxu0 %v117
  %5096 = vmatprep.subr.mxu0 %v114
  %5097 = vmatpush1.msra.mxu0 %v113
  %5098 = vmatprep.subr.mxu0 %v110
  %5099 = vmatpush1.msra.mxu0 %v109
  %5100 = vmatprep.subr.mxu0 %v106
  %5101 = vmatpush1.msra.mxu0 %v105
  %5102 = vmatprep.subr.mxu0 %v102
  %5103 = vmatpush1.msra.mxu0 %v101
  %5104 = vmatprep.subr.mxu0 %v226
  %5105 = vmatpush2.msra.mxu0 %v225
  %5106 = vmatprep.subr.mxu0 %v222
  %5107 = vmatpush2.msra.mxu0 %v221
  %5108 = vmatprep.subr.mxu0 %v218
  %5109 = vmatpush2.msra.mxu0 %v217
  %5110 = vmatprep.subr.mxu0 %v214
  %5111 = vmatpush2.msra.mxu0 %v213
  %5112 = vmatprep.subr.mxu0 %v210
  %5113 = vmatpush2.msra.mxu0 %v209
  %5114 = vmatprep.subr.mxu0 %v206
  %5115 = vmatpush2.msra.mxu0 %v205
  %5116 = vmatprep.subr.mxu0 %v202
  %5117 = vmatpush2.msra.mxu0 %v201
  %5118 = vmatprep.subr.mxu0 %v198
  %5119 = vmatpush2.msra.mxu0 %v197
  %5120 = vmatprep.subr.mxu0 %v194
  %5121 = vmatpush2.msra.mxu0 %v193
  %5122 = vmatprep.subr.mxu0 %v190
  %5123 = vmatpush2.msra.mxu0 %v189
  %5124 = vmatprep.subr.mxu0 %v186
  %5125 = vmatpush2.msra.mxu0 %v185
  %5126 = vmatprep.subr.mxu0 %v182
  %5127 = vmatpush2.msra.mxu0 %v181
  %5128 = vmatprep.subr.mxu0 %v178
  %5129 = vmatpush2.msra.mxu0 %v177
  %5130 = vmatprep.subr.mxu0 %v174
  %5131 = vmatpush2.msra.mxu0 %v173
  %5132 = vmatprep.subr.mxu0 %v170
  %5133 = vmatpush2.msra.mxu0 %v169
  %5134 = vmatprep.subr.mxu0 %v166
  %5135 = vmatpush2.msra.mxu0 %v165
  %5136 = vmatprep.mubr.f32.mxu0 %v4987
  %5137 = vmatmul.mubr.f32.gmra.mxu0 %v4985
  %v5138 = vpop.f32.mrf.mxu0
  %v5139 = vadd.f32 0.0, %v5138
  %v5140 = vpop.f32.mrf.mxu0
  %v5141 = vadd.f32 0.0, %v5140
  %5142 = vmatprep.mubr.f32.mxu0 %v4993
  %5143 = vmatmul.mubr.f32.gmra.mxu0 %v4991
  %v5144 = vpop.f32.mrf.mxu0
  %v5145 = vadd.f32 0.0, %v5144
  %v5146 = vpop.f32.mrf.mxu0
  %v5147 = vadd.f32 0.0, %v5146
  %5148 = vdwg.mxu0
  %5149 = vmatprep.subr.mxu0 %v164
  %5150 = vmatpush1.msra.mxu0 %v163
  %5151 = vmatprep.subr.mxu0 %v160
  %5152 = vmatpush1.msra.mxu0 %v159
  %5153 = vmatprep.subr.mxu0 %v156
  %5154 = vmatpush1.msra.mxu0 %v155
  %5155 = vmatprep.subr.mxu0 %v152
  %5156 = vmatpush1.msra.mxu0 %v151
  %5157 = vmatprep.subr.mxu0 %v148
  %5158 = vmatpush1.msra.mxu0 %v147
  %5159 = vmatprep.subr.mxu0 %v144
  %5160 = vmatpush1.msra.mxu0 %v143
  %5161 = vmatprep.subr.mxu0 %v140
  %5162 = vmatpush1.msra.mxu0 %v139
  %5163 = vmatprep.subr.mxu0 %v136
  %5164 = vmatpush1.msra.mxu0 %v135
  %5165 = vmatprep.subr.mxu0 %v132
  %5166 = vmatpush1.msra.mxu0 %v131
  %5167 = vmatprep.subr.mxu0 %v128
  %5168 = vmatpush1.msra.mxu0 %v127
  %5169 = vmatprep.subr.mxu0 %v124
  %5170 = vmatpush1.msra.mxu0 %v123
  %5171 = vmatprep.subr.mxu0 %v120
  %5172 = vmatpush1.msra.mxu0 %v119
  %5173 = vmatprep.subr.mxu0 %v116
  %5174 = vmatpush1.msra.mxu0 %v115
  %5175 = vmatprep.subr.mxu0 %v112
  %5176 = vmatpush1.msra.mxu0 %v111
  %5177 = vmatprep.subr.mxu0 %v108
  %5178 = vmatpush1.msra.mxu0 %v107
  %5179 = vmatprep.subr.mxu0 %v104
  %5180 = vmatpush1.msra.mxu0 %v103
  %5181 = vmatprep.subr.mxu0 %v228
  %5182 = vmatpush2.msra.mxu0 %v227
  %5183 = vmatprep.subr.mxu0 %v224
  %5184 = vmatpush2.msra.mxu0 %v223
  %5185 = vmatprep.subr.mxu0 %v220
  %5186 = vmatpush2.msra.mxu0 %v219
  %5187 = vmatprep.subr.mxu0 %v216
  %5188 = vmatpush2.msra.mxu0 %v215
  %5189 = vmatprep.subr.mxu0 %v212
  %5190 = vmatpush2.msra.mxu0 %v211
  %5191 = vmatprep.subr.mxu0 %v208
  %5192 = vmatpush2.msra.mxu0 %v207
  %5193 = vmatprep.subr.mxu0 %v204
  %5194 = vmatpush2.msra.mxu0 %v203
  %5195 = vmatprep.subr.mxu0 %v200
  %5196 = vmatpush2.msra.mxu0 %v199
  %5197 = vmatprep.subr.mxu0 %v196
  %5198 = vmatpush2.msra.mxu0 %v195
  %5199 = vmatprep.subr.mxu0 %v192
  %5200 = vmatpush2.msra.mxu0 %v191
  %5201 = vmatprep.subr.mxu0 %v188
  %5202 = vmatpush2.msra.mxu0 %v187
  %5203 = vmatprep.subr.mxu0 %v184
  %5204 = vmatpush2.msra.mxu0 %v183
  %5205 = vmatprep.subr.mxu0 %v180
  %5206 = vmatpush2.msra.mxu0 %v179
  %5207 = vmatprep.subr.mxu0 %v176
  %5208 = vmatpush2.msra.mxu0 %v175
  %5209 = vmatprep.subr.mxu0 %v172
  %5210 = vmatpush2.msra.mxu0 %v171
  %5211 = vmatprep.subr.mxu0 %v168
  %5212 = vmatpush2.msra.mxu0 %v167
  %5213 = vmatprep.mubr.f32.mxu0 %v4987
  %5214 = vmatmul.mubr.f32.gmra.mxu0 %v4985
  %v5215 = vpop.f32.mrf.mxu0
  %v5216 = vadd.f32 0.0, %v5215
  %v5217 = vpop.f32.mrf.mxu0
  %v5218 = vadd.f32 0.0, %v5217
  %5219 = vmatprep.mubr.f32.mxu0 %v4993
  %5220 = vmatmul.mubr.f32.gmra.mxu0 %v4991
  %v5221 = vpop.f32.mrf.mxu0
  %v5222 = vadd.f32 0.0, %v5221
  %v5223 = vpop.f32.mrf.mxu0
  %v5224 = vadd.f32 0.0, %v5223
  %5225 = vdwg.mxu0
  %5228 = vrot.lane.b32.xlu0 %v5062, 96
  %v5229 = vpop.permute.xlu0 %5228
  %5230 = vrot.lane.b32.xlu0 %v5068, 96
  %v5231 = vpop.permute.xlu0 %5230
  %5234 = vrot.lane.b32.xlu0 %v5062, 64
  %v5235 = vpop.permute.xlu0 %5234
  %5236 = vrot.lane.b32.xlu0 %v5068, 64
  %v5237 = vpop.permute.xlu0 %5236
  %5240 = vrot.lane.b32.xlu0 %v5062, 32
  %v5241 = vpop.permute.xlu0 %5240
  %5242 = vrot.lane.b32.xlu0 %v5068, 32
  %v5243 = vpop.permute.xlu0 %5242
  %5248 = vrot.lane.b32.xlu0 %v5064, 96
  %v5249 = vpop.permute.xlu0 %5248
  %5250 = vrot.lane.b32.xlu0 %v5070, 96
  %v5251 = vpop.permute.xlu0 %5250
  %5254 = vrot.lane.b32.xlu0 %v5064, 64
  %v5255 = vpop.permute.xlu0 %5254
  %5256 = vrot.lane.b32.xlu0 %v5070, 64
  %v5257 = vpop.permute.xlu0 %5256
  %5260 = vrot.lane.b32.xlu0 %v5064, 32
  %v5261 = vpop.permute.xlu0 %5260
  %5262 = vrot.lane.b32.xlu0 %v5070, 32
  %v5263 = vpop.permute.xlu0 %5262
  %v5266 = vcombine.low %v5062, %v5235
  %v5267 = vcombine.high %v5062, %v5235
  %v5269 = vunpack.c.l.s4 1983009808
  %v5270 = vunpack.c.0.s8 %v5269
  %v5271 = vlaneseq
  %v5272 = vshrl.u32 %v5271, 7
  %v5273 = vsub.s32 %v5270, %v5272
  %v5274 = vrot.slane %v5266, %v5273
  %v5276 = vunpack.c.l.s4 1983009808
  %v5277 = vunpack.c.0.s8 %v5276
  %v5278 = vlaneseq
  %v5279 = vshrl.u32 %v5278, 7
  %v5280 = vsub.s32 %v5277, %v5279
  %v5281 = vrot.slane %v5267, %v5280
  %v5282 = vcombine.low %v5229, %v5241
  %v5283 = vcombine.high %v5229, %v5241
  %v5285 = vunpack.c.l.s4 1983009808
  %v5286 = vunpack.c.0.s8 %v5285
  %v5287 = vlaneseq
  %v5288 = vshrl.u32 %v5287, 7
  %v5289 = vsub.s32 %v5286, %v5288
  %v5290 = vrot.slane %v5282, %v5289
  %v5292 = vunpack.c.l.s4 1983009808
  %v5293 = vunpack.c.0.s8 %v5292
  %v5294 = vlaneseq
  %v5295 = vshrl.u32 %v5294, 7
  %v5296 = vsub.s32 %v5293, %v5295
  %v5297 = vrot.slane %v5283, %v5296
  %v5298 = vcombine.low %v5064, %v5255
  %v5299 = vcombine.high %v5064, %v5255
  %v5301 = vunpack.c.l.s4 1983009808
  %v5302 = vunpack.c.0.s8 %v5301
  %v5303 = vlaneseq
  %v5304 = vshrl.u32 %v5303, 7
  %v5305 = vsub.s32 %v5302, %v5304
  %v5306 = vrot.slane %v5298, %v5305
  %v5308 = vunpack.c.l.s4 1983009808
  %v5309 = vunpack.c.0.s8 %v5308
  %v5310 = vlaneseq
  %v5311 = vshrl.u32 %v5310, 7
  %v5312 = vsub.s32 %v5309, %v5311
  %v5313 = vrot.slane %v5299, %v5312
  %v5314 = vcombine.low %v5249, %v5261
  %v5315 = vcombine.high %v5249, %v5261
  %v5317 = vunpack.c.l.s4 1983009808
  %v5318 = vunpack.c.0.s8 %v5317
  %v5319 = vlaneseq
  %v5320 = vshrl.u32 %v5319, 7
  %v5321 = vsub.s32 %v5318, %v5320
  %v5322 = vrot.slane %v5314, %v5321
  %v5324 = vunpack.c.l.s4 1983009808
  %v5325 = vunpack.c.0.s8 %v5324
  %v5326 = vlaneseq
  %v5327 = vshrl.u32 %v5326, 7
  %v5328 = vsub.s32 %v5325, %v5327
  %v5329 = vrot.slane %v5315, %v5328
  %v5330 = vcombine.low %v5274, %v5290
  %v5331 = vcombine.high %v5274, %v5290
  %v5333 = vunpack.c.l.s4 1934713408
  %v5334 = vunpack.c.0.s8 %v5333
  %v5335 = vlaneseq
  %v5336 = vshrl.u32 %v5335, 7
  %v5337 = vsub.s32 %v5334, %v5336
  %v5338 = vrot.slane %v5330, %v5337
  %v5340 = vunpack.c.l.s4 1934713408
  %v5341 = vunpack.c.0.s8 %v5340
  %v5342 = vlaneseq
  %v5343 = vshrl.u32 %v5342, 7
  %v5344 = vsub.s32 %v5341, %v5343
  %v5345 = vrot.slane %v5331, %v5344
  %v5346 = vcombine.low %v5281, %v5297
  %v5347 = vcombine.high %v5281, %v5297
  %v5349 = vunpack.c.l.s4 1934713408
  %v5350 = vunpack.c.0.s8 %v5349
  %v5351 = vlaneseq
  %v5352 = vshrl.u32 %v5351, 7
  %v5353 = vsub.s32 %v5350, %v5352
  %v5354 = vrot.slane %v5346, %v5353
  %v5356 = vunpack.c.l.s4 1934713408
  %v5357 = vunpack.c.0.s8 %v5356
  %v5358 = vlaneseq
  %v5359 = vshrl.u32 %v5358, 7
  %v5360 = vsub.s32 %v5357, %v5359
  %v5361 = vrot.slane %v5347, %v5360
  %v5362 = vcombine.low %v5306, %v5322
  %v5363 = vcombine.high %v5306, %v5322
  %v5365 = vunpack.c.l.s4 1934713408
  %v5366 = vunpack.c.0.s8 %v5365
  %v5367 = vlaneseq
  %v5368 = vshrl.u32 %v5367, 7
  %v5369 = vsub.s32 %v5366, %v5368
  %v5370 = vrot.slane %v5362, %v5369
  %v5372 = vunpack.c.l.s4 1934713408
  %v5373 = vunpack.c.0.s8 %v5372
  %v5374 = vlaneseq
  %v5375 = vshrl.u32 %v5374, 7
  %v5376 = vsub.s32 %v5373, %v5375
  %v5377 = vrot.slane %v5363, %v5376
  %v5378 = vcombine.low %v5313, %v5329
  %v5379 = vcombine.high %v5313, %v5329
  %v5381 = vunpack.c.l.s4 1934713408
  %v5382 = vunpack.c.0.s8 %v5381
  %v5383 = vlaneseq
  %v5384 = vshrl.u32 %v5383, 7
  %v5385 = vsub.s32 %v5382, %v5384
  %v5386 = vrot.slane %v5378, %v5385
  %v5388 = vunpack.c.l.s4 1934713408
  %v5389 = vunpack.c.0.s8 %v5388
  %v5390 = vlaneseq
  %v5391 = vshrl.u32 %v5390, 7
  %v5392 = vsub.s32 %v5389, %v5391
  %v5393 = vrot.slane %v5379, %v5392
  %v5394 = vcombine.low %v5338, %v5370
  %v5395 = vcombine.high %v5338, %v5370
  %v5396 = vcombine.low %v5345, %v5377
  %v5397 = vcombine.high %v5345, %v5377
  %v5398 = vcombine.low %v5354, %v5386
  %v5399 = vcombine.high %v5354, %v5386
  %v5400 = vcombine.low %v5361, %v5393
  %v5401 = vcombine.high %v5361, %v5393
  %v5402 = vcombine.low %v5068, %v5237
  %v5403 = vcombine.high %v5068, %v5237
  %v5405 = vunpack.c.l.s4 1983009808
  %v5406 = vunpack.c.0.s8 %v5405
  %v5407 = vlaneseq
  %v5408 = vshrl.u32 %v5407, 7
  %v5409 = vsub.s32 %v5406, %v5408
  %v5410 = vrot.slane %v5402, %v5409
  %v5412 = vunpack.c.l.s4 1983009808
  %v5413 = vunpack.c.0.s8 %v5412
  %v5414 = vlaneseq
  %v5415 = vshrl.u32 %v5414, 7
  %v5416 = vsub.s32 %v5413, %v5415
  %v5417 = vrot.slane %v5403, %v5416
  %v5418 = vcombine.low %v5231, %v5243
  %v5419 = vcombine.high %v5231, %v5243
  %v5421 = vunpack.c.l.s4 1983009808
  %v5422 = vunpack.c.0.s8 %v5421
  %v5423 = vlaneseq
  %v5424 = vshrl.u32 %v5423, 7
  %v5425 = vsub.s32 %v5422, %v5424
  %v5426 = vrot.slane %v5418, %v5425
  %v5428 = vunpack.c.l.s4 1983009808
  %v5429 = vunpack.c.0.s8 %v5428
  %v5430 = vlaneseq
  %v5431 = vshrl.u32 %v5430, 7
  %v5432 = vsub.s32 %v5429, %v5431
  %v5433 = vrot.slane %v5419, %v5432
  %v5434 = vcombine.low %v5070, %v5257
  %v5435 = vcombine.high %v5070, %v5257
  %v5437 = vunpack.c.l.s4 1983009808
  %v5438 = vunpack.c.0.s8 %v5437
  %v5439 = vlaneseq
  %v5440 = vshrl.u32 %v5439, 7
  %v5441 = vsub.s32 %v5438, %v5440
  %v5442 = vrot.slane %v5434, %v5441
  %v5444 = vunpack.c.l.s4 1983009808
  %v5445 = vunpack.c.0.s8 %v5444
  %v5446 = vlaneseq
  %v5447 = vshrl.u32 %v5446, 7
  %v5448 = vsub.s32 %v5445, %v5447
  %v5449 = vrot.slane %v5435, %v5448
  %v5450 = vcombine.low %v5251, %v5263
  %v5451 = vcombine.high %v5251, %v5263
  %v5453 = vunpack.c.l.s4 1983009808
  %v5454 = vunpack.c.0.s8 %v5453
  %v5455 = vlaneseq
  %v5456 = vshrl.u32 %v5455, 7
  %v5457 = vsub.s32 %v5454, %v5456
  %v5458 = vrot.slane %v5450, %v5457
  %v5460 = vunpack.c.l.s4 1983009808
  %v5461 = vunpack.c.0.s8 %v5460
  %v5462 = vlaneseq
  %v5463 = vshrl.u32 %v5462, 7
  %v5464 = vsub.s32 %v5461, %v5463
  %v5465 = vrot.slane %v5451, %v5464
  %v5466 = vcombine.low %v5410, %v5426
  %v5467 = vcombine.high %v5410, %v5426
  %v5469 = vunpack.c.l.s4 1934713408
  %v5470 = vunpack.c.0.s8 %v5469
  %v5471 = vlaneseq
  %v5472 = vshrl.u32 %v5471, 7
  %v5473 = vsub.s32 %v5470, %v5472
  %v5474 = vrot.slane %v5466, %v5473
  %v5476 = vunpack.c.l.s4 1934713408
  %v5477 = vunpack.c.0.s8 %v5476
  %v5478 = vlaneseq
  %v5479 = vshrl.u32 %v5478, 7
  %v5480 = vsub.s32 %v5477, %v5479
  %v5481 = vrot.slane %v5467, %v5480
  %v5482 = vcombine.low %v5417, %v5433
  %v5483 = vcombine.high %v5417, %v5433
  %v5485 = vunpack.c.l.s4 1934713408
  %v5486 = vunpack.c.0.s8 %v5485
  %v5487 = vlaneseq
  %v5488 = vshrl.u32 %v5487, 7
  %v5489 = vsub.s32 %v5486, %v5488
  %v5490 = vrot.slane %v5482, %v5489
  %v5492 = vunpack.c.l.s4 1934713408
  %v5493 = vunpack.c.0.s8 %v5492
  %v5494 = vlaneseq
  %v5495 = vshrl.u32 %v5494, 7
  %v5496 = vsub.s32 %v5493, %v5495
  %v5497 = vrot.slane %v5483, %v5496
  %v5498 = vcombine.low %v5442, %v5458
  %v5499 = vcombine.high %v5442, %v5458
  %v5501 = vunpack.c.l.s4 1934713408
  %v5502 = vunpack.c.0.s8 %v5501
  %v5503 = vlaneseq
  %v5504 = vshrl.u32 %v5503, 7
  %v5505 = vsub.s32 %v5502, %v5504
  %v5506 = vrot.slane %v5498, %v5505
  %v5508 = vunpack.c.l.s4 1934713408
  %v5509 = vunpack.c.0.s8 %v5508
  %v5510 = vlaneseq
  %v5511 = vshrl.u32 %v5510, 7
  %v5512 = vsub.s32 %v5509, %v5511
  %v5513 = vrot.slane %v5499, %v5512
  %v5514 = vcombine.low %v5449, %v5465
  %v5515 = vcombine.high %v5449, %v5465
  %v5517 = vunpack.c.l.s4 1934713408
  %v5518 = vunpack.c.0.s8 %v5517
  %v5519 = vlaneseq
  %v5520 = vshrl.u32 %v5519, 7
  %v5521 = vsub.s32 %v5518, %v5520
  %v5522 = vrot.slane %v5514, %v5521
  %v5524 = vunpack.c.l.s4 1934713408
  %v5525 = vunpack.c.0.s8 %v5524
  %v5526 = vlaneseq
  %v5527 = vshrl.u32 %v5526, 7
  %v5528 = vsub.s32 %v5525, %v5527
  %v5529 = vrot.slane %v5515, %v5528
  %v5530 = vcombine.low %v5474, %v5506
  %v5531 = vcombine.high %v5474, %v5506
  %v5532 = vcombine.low %v5481, %v5513
  %v5533 = vcombine.high %v5481, %v5513
  %v5534 = vcombine.low %v5490, %v5522
  %v5535 = vcombine.high %v5490, %v5522
  %v5536 = vcombine.low %v5497, %v5529
  %v5537 = vcombine.high %v5497, %v5529
  %v5538 = vcombine.low %v5394, %v5396
  %v5539 = vcombine.high %v5394, %v5396
  %v5541 = vunpack.c.l.s4 1983009808
  %v5542 = vunpack.c.0.s8 %v5541
  %v5543 = vlaneseq
  %v5544 = vshrl.u32 %v5543, 7
  %v5545 = vsub.s32 %v5542, %v5544
  %v5546 = vrot.slane %v5538, %v5545
  %v5548 = vunpack.c.l.s4 1983009808
  %v5549 = vunpack.c.0.s8 %v5548
  %v5550 = vlaneseq
  %v5551 = vshrl.u32 %v5550, 7
  %v5552 = vsub.s32 %v5549, %v5551
  %v5553 = vrot.slane %v5539, %v5552
  %v5554 = vcombine.low %v5395, %v5397
  %v5555 = vcombine.high %v5395, %v5397
  %v5557 = vunpack.c.l.s4 1983009808
  %v5558 = vunpack.c.0.s8 %v5557
  %v5559 = vlaneseq
  %v5560 = vshrl.u32 %v5559, 7
  %v5561 = vsub.s32 %v5558, %v5560
  %v5562 = vrot.slane %v5554, %v5561
  %v5564 = vunpack.c.l.s4 1983009808
  %v5565 = vunpack.c.0.s8 %v5564
  %v5566 = vlaneseq
  %v5567 = vshrl.u32 %v5566, 7
  %v5568 = vsub.s32 %v5565, %v5567
  %v5569 = vrot.slane %v5555, %v5568
  %v5570 = vcombine.low %v5398, %v5400
  %v5571 = vcombine.high %v5398, %v5400
  %v5573 = vunpack.c.l.s4 1983009808
  %v5574 = vunpack.c.0.s8 %v5573
  %v5575 = vlaneseq
  %v5576 = vshrl.u32 %v5575, 7
  %v5577 = vsub.s32 %v5574, %v5576
  %v5578 = vrot.slane %v5570, %v5577
  %v5580 = vunpack.c.l.s4 1983009808
  %v5581 = vunpack.c.0.s8 %v5580
  %v5582 = vlaneseq
  %v5583 = vshrl.u32 %v5582, 7
  %v5584 = vsub.s32 %v5581, %v5583
  %v5585 = vrot.slane %v5571, %v5584
  %v5586 = vcombine.low %v5399, %v5401
  %v5587 = vcombine.high %v5399, %v5401
  %v5589 = vunpack.c.l.s4 1983009808
  %v5590 = vunpack.c.0.s8 %v5589
  %v5591 = vlaneseq
  %v5592 = vshrl.u32 %v5591, 7
  %v5593 = vsub.s32 %v5590, %v5592
  %v5594 = vrot.slane %v5586, %v5593
  %v5596 = vunpack.c.l.s4 1983009808
  %v5597 = vunpack.c.0.s8 %v5596
  %v5598 = vlaneseq
  %v5599 = vshrl.u32 %v5598, 7
  %v5600 = vsub.s32 %v5597, %v5599
  %v5601 = vrot.slane %v5587, %v5600
  %v5602 = vcombine.low %v5546, %v5562
  %v5603 = vcombine.high %v5546, %v5562
  %v5605 = vunpack.c.l.s4 1934713408
  %v5606 = vunpack.c.0.s8 %v5605
  %v5607 = vlaneseq
  %v5608 = vshrl.u32 %v5607, 7
  %v5609 = vsub.s32 %v5606, %v5608
  %v5610 = vrot.slane %v5602, %v5609
  %v5612 = vunpack.c.l.s4 1934713408
  %v5613 = vunpack.c.0.s8 %v5612
  %v5614 = vlaneseq
  %v5615 = vshrl.u32 %v5614, 7
  %v5616 = vsub.s32 %v5613, %v5615
  %v5617 = vrot.slane %v5603, %v5616
  %v5618 = vcombine.low %v5553, %v5569
  %v5619 = vcombine.high %v5553, %v5569
  %v5621 = vunpack.c.l.s4 1934713408
  %v5622 = vunpack.c.0.s8 %v5621
  %v5623 = vlaneseq
  %v5624 = vshrl.u32 %v5623, 7
  %v5625 = vsub.s32 %v5622, %v5624
  %v5626 = vrot.slane %v5618, %v5625
  %v5628 = vunpack.c.l.s4 1934713408
  %v5629 = vunpack.c.0.s8 %v5628
  %v5630 = vlaneseq
  %v5631 = vshrl.u32 %v5630, 7
  %v5632 = vsub.s32 %v5629, %v5631
  %v5633 = vrot.slane %v5619, %v5632
  %v5634 = vcombine.low %v5578, %v5594
  %v5635 = vcombine.high %v5578, %v5594
  %v5637 = vunpack.c.l.s4 1934713408
  %v5638 = vunpack.c.0.s8 %v5637
  %v5639 = vlaneseq
  %v5640 = vshrl.u32 %v5639, 7
  %v5641 = vsub.s32 %v5638, %v5640
  %v5642 = vrot.slane %v5634, %v5641
  %v5644 = vunpack.c.l.s4 1934713408
  %v5645 = vunpack.c.0.s8 %v5644
  %v5646 = vlaneseq
  %v5647 = vshrl.u32 %v5646, 7
  %v5648 = vsub.s32 %v5645, %v5647
  %v5649 = vrot.slane %v5635, %v5648
  %v5650 = vcombine.low %v5585, %v5601
  %v5651 = vcombine.high %v5585, %v5601
  %v5653 = vunpack.c.l.s4 1934713408
  %v5654 = vunpack.c.0.s8 %v5653
  %v5655 = vlaneseq
  %v5656 = vshrl.u32 %v5655, 7
  %v5657 = vsub.s32 %v5654, %v5656
  %v5658 = vrot.slane %v5650, %v5657
  %v5660 = vunpack.c.l.s4 1934713408
  %v5661 = vunpack.c.0.s8 %v5660
  %v5662 = vlaneseq
  %v5663 = vshrl.u32 %v5662, 7
  %v5664 = vsub.s32 %v5661, %v5663
  %v5665 = vrot.slane %v5651, %v5664
  %v5666 = vcombine.low %v5610, %v5642
  %v5667 = vcombine.high %v5610, %v5642
  %v5668 = vcombine.low %v5617, %v5649
  %v5669 = vcombine.high %v5617, %v5649
  %v5670 = vcombine.low %v5626, %v5658
  %v5671 = vcombine.high %v5626, %v5658
  %v5672 = vcombine.low %v5633, %v5665
  %v5673 = vcombine.high %v5633, %v5665
  %v5674 = vcombine.low %v5530, %v5532
  %v5675 = vcombine.high %v5530, %v5532
  %v5677 = vunpack.c.l.s4 1983009808
  %v5678 = vunpack.c.0.s8 %v5677
  %v5679 = vlaneseq
  %v5680 = vshrl.u32 %v5679, 7
  %v5681 = vsub.s32 %v5678, %v5680
  %v5682 = vrot.slane %v5674, %v5681
  %v5684 = vunpack.c.l.s4 1983009808
  %v5685 = vunpack.c.0.s8 %v5684
  %v5686 = vlaneseq
  %v5687 = vshrl.u32 %v5686, 7
  %v5688 = vsub.s32 %v5685, %v5687
  %v5689 = vrot.slane %v5675, %v5688
  %v5690 = vcombine.low %v5531, %v5533
  %v5691 = vcombine.high %v5531, %v5533
  %v5693 = vunpack.c.l.s4 1983009808
  %v5694 = vunpack.c.0.s8 %v5693
  %v5695 = vlaneseq
  %v5696 = vshrl.u32 %v5695, 7
  %v5697 = vsub.s32 %v5694, %v5696
  %v5698 = vrot.slane %v5690, %v5697
  %v5700 = vunpack.c.l.s4 1983009808
  %v5701 = vunpack.c.0.s8 %v5700
  %v5702 = vlaneseq
  %v5703 = vshrl.u32 %v5702, 7
  %v5704 = vsub.s32 %v5701, %v5703
  %v5705 = vrot.slane %v5691, %v5704
  %v5706 = vcombine.low %v5534, %v5536
  %v5707 = vcombine.high %v5534, %v5536
  %v5709 = vunpack.c.l.s4 1983009808
  %v5710 = vunpack.c.0.s8 %v5709
  %v5711 = vlaneseq
  %v5712 = vshrl.u32 %v5711, 7
  %v5713 = vsub.s32 %v5710, %v5712
  %v5714 = vrot.slane %v5706, %v5713
  %v5716 = vunpack.c.l.s4 1983009808
  %v5717 = vunpack.c.0.s8 %v5716
  %v5718 = vlaneseq
  %v5719 = vshrl.u32 %v5718, 7
  %v5720 = vsub.s32 %v5717, %v5719
  %v5721 = vrot.slane %v5707, %v5720
  %v5722 = vcombine.low %v5535, %v5537
  %v5723 = vcombine.high %v5535, %v5537
  %v5725 = vunpack.c.l.s4 1983009808
  %v5726 = vunpack.c.0.s8 %v5725
  %v5727 = vlaneseq
  %v5728 = vshrl.u32 %v5727, 7
  %v5729 = vsub.s32 %v5726, %v5728
  %v5730 = vrot.slane %v5722, %v5729
  %v5732 = vunpack.c.l.s4 1983009808
  %v5733 = vunpack.c.0.s8 %v5732
  %v5734 = vlaneseq
  %v5735 = vshrl.u32 %v5734, 7
  %v5736 = vsub.s32 %v5733, %v5735
  %v5737 = vrot.slane %v5723, %v5736
  %v5738 = vcombine.low %v5682, %v5698
  %v5739 = vcombine.high %v5682, %v5698
  %v5741 = vunpack.c.l.s4 1934713408
  %v5742 = vunpack.c.0.s8 %v5741
  %v5743 = vlaneseq
  %v5744 = vshrl.u32 %v5743, 7
  %v5745 = vsub.s32 %v5742, %v5744
  %v5746 = vrot.slane %v5738, %v5745
  %v5748 = vunpack.c.l.s4 1934713408
  %v5749 = vunpack.c.0.s8 %v5748
  %v5750 = vlaneseq
  %v5751 = vshrl.u32 %v5750, 7
  %v5752 = vsub.s32 %v5749, %v5751
  %v5753 = vrot.slane %v5739, %v5752
  %v5754 = vcombine.low %v5689, %v5705
  %v5755 = vcombine.high %v5689, %v5705
  %v5757 = vunpack.c.l.s4 1934713408
  %v5758 = vunpack.c.0.s8 %v5757
  %v5759 = vlaneseq
  %v5760 = vshrl.u32 %v5759, 7
  %v5761 = vsub.s32 %v5758, %v5760
  %v5762 = vrot.slane %v5754, %v5761
  %v5764 = vunpack.c.l.s4 1934713408
  %v5765 = vunpack.c.0.s8 %v5764
  %v5766 = vlaneseq
  %v5767 = vshrl.u32 %v5766, 7
  %v5768 = vsub.s32 %v5765, %v5767
  %v5769 = vrot.slane %v5755, %v5768
  %v5770 = vcombine.low %v5714, %v5730
  %v5771 = vcombine.high %v5714, %v5730
  %v5773 = vunpack.c.l.s4 1934713408
  %v5774 = vunpack.c.0.s8 %v5773
  %v5775 = vlaneseq
  %v5776 = vshrl.u32 %v5775, 7
  %v5777 = vsub.s32 %v5774, %v5776
  %v5778 = vrot.slane %v5770, %v5777
  %v5780 = vunpack.c.l.s4 1934713408
  %v5781 = vunpack.c.0.s8 %v5780
  %v5782 = vlaneseq
  %v5783 = vshrl.u32 %v5782, 7
  %v5784 = vsub.s32 %v5781, %v5783
  %v5785 = vrot.slane %v5771, %v5784
  %v5786 = vcombine.low %v5721, %v5737
  %v5787 = vcombine.high %v5721, %v5737
  %v5789 = vunpack.c.l.s4 1934713408
  %v5790 = vunpack.c.0.s8 %v5789
  %v5791 = vlaneseq
  %v5792 = vshrl.u32 %v5791, 7
  %v5793 = vsub.s32 %v5790, %v5792
  %v5794 = vrot.slane %v5786, %v5793
  %v5796 = vunpack.c.l.s4 1934713408
  %v5797 = vunpack.c.0.s8 %v5796
  %v5798 = vlaneseq
  %v5799 = vshrl.u32 %v5798, 7
  %v5800 = vsub.s32 %v5797, %v5799
  %v5801 = vrot.slane %v5787, %v5800
  %v5802 = vcombine.low %v5746, %v5778
  %v5803 = vcombine.high %v5746, %v5778
  %v5804 = vcombine.low %v5753, %v5785
  %v5805 = vcombine.high %v5753, %v5785
  %v5806 = vcombine.low %v5762, %v5794
  %v5807 = vcombine.high %v5762, %v5794
  %v5808 = vcombine.low %v5769, %v5801
  %v5809 = vcombine.high %v5769, %v5801
  %5812 = vrot.lane.b32.xlu0 %v5139, 96
  %v5813 = vpop.permute.xlu0 %5812
  %5814 = vrot.lane.b32.xlu0 %v5145, 96
  %v5815 = vpop.permute.xlu0 %5814
  %5818 = vrot.lane.b32.xlu0 %v5139, 64
  %v5819 = vpop.permute.xlu0 %5818
  %5820 = vrot.lane.b32.xlu0 %v5145, 64
  %v5821 = vpop.permute.xlu0 %5820
  %5824 = vrot.lane.b32.xlu0 %v5139, 32
  %v5825 = vpop.permute.xlu0 %5824
  %5826 = vrot.lane.b32.xlu0 %v5145, 32
  %v5827 = vpop.permute.xlu0 %5826
  %5832 = vrot.lane.b32.xlu0 %v5141, 96
  %v5833 = vpop.permute.xlu0 %5832
  %5834 = vrot.lane.b32.xlu0 %v5147, 96
  %v5835 = vpop.permute.xlu0 %5834
  %5838 = vrot.lane.b32.xlu0 %v5141, 64
  %v5839 = vpop.permute.xlu0 %5838
  %5840 = vrot.lane.b32.xlu0 %v5147, 64
  %v5841 = vpop.permute.xlu0 %5840
  %5844 = vrot.lane.b32.xlu0 %v5141, 32
  %v5845 = vpop.permute.xlu0 %5844
  %5846 = vrot.lane.b32.xlu0 %v5147, 32
  %v5847 = vpop.permute.xlu0 %5846
  %v5850 = vcombine.low %v5139, %v5819
  %v5851 = vcombine.high %v5139, %v5819
  %v5853 = vunpack.c.l.s4 1983009808
  %v5854 = vunpack.c.0.s8 %v5853
  %v5855 = vlaneseq
  %v5856 = vshrl.u32 %v5855, 7
  %v5857 = vsub.s32 %v5854, %v5856
  %v5858 = vrot.slane %v5850, %v5857
  %v5860 = vunpack.c.l.s4 1983009808
  %v5861 = vunpack.c.0.s8 %v5860
  %v5862 = vlaneseq
  %v5863 = vshrl.u32 %v5862, 7
  %v5864 = vsub.s32 %v5861, %v5863
  %v5865 = vrot.slane %v5851, %v5864
  %v5866 = vcombine.low %v5813, %v5825
  %v5867 = vcombine.high %v5813, %v5825
  %v5869 = vunpack.c.l.s4 1983009808
  %v5870 = vunpack.c.0.s8 %v5869
  %v5871 = vlaneseq
  %v5872 = vshrl.u32 %v5871, 7
  %v5873 = vsub.s32 %v5870, %v5872
  %v5874 = vrot.slane %v5866, %v5873
  %v5876 = vunpack.c.l.s4 1983009808
  %v5877 = vunpack.c.0.s8 %v5876
  %v5878 = vlaneseq
  %v5879 = vshrl.u32 %v5878, 7
  %v5880 = vsub.s32 %v5877, %v5879
  %v5881 = vrot.slane %v5867, %v5880
  %v5882 = vcombine.low %v5141, %v5839
  %v5883 = vcombine.high %v5141, %v5839
  %v5885 = vunpack.c.l.s4 1983009808
  %v5886 = vunpack.c.0.s8 %v5885
  %v5887 = vlaneseq
  %v5888 = vshrl.u32 %v5887, 7
  %v5889 = vsub.s32 %v5886, %v5888
  %v5890 = vrot.slane %v5882, %v5889
  %v5892 = vunpack.c.l.s4 1983009808
  %v5893 = vunpack.c.0.s8 %v5892
  %v5894 = vlaneseq
  %v5895 = vshrl.u32 %v5894, 7
  %v5896 = vsub.s32 %v5893, %v5895
  %v5897 = vrot.slane %v5883, %v5896
  %v5898 = vcombine.low %v5833, %v5845
  %v5899 = vcombine.high %v5833, %v5845
  %v5901 = vunpack.c.l.s4 1983009808
  %v5902 = vunpack.c.0.s8 %v5901
  %v5903 = vlaneseq
  %v5904 = vshrl.u32 %v5903, 7
  %v5905 = vsub.s32 %v5902, %v5904
  %v5906 = vrot.slane %v5898, %v5905
  %v5908 = vunpack.c.l.s4 1983009808
  %v5909 = vunpack.c.0.s8 %v5908
  %v5910 = vlaneseq
  %v5911 = vshrl.u32 %v5910, 7
  %v5912 = vsub.s32 %v5909, %v5911
  %v5913 = vrot.slane %v5899, %v5912
  %v5914 = vcombine.low %v5858, %v5874
  %v5915 = vcombine.high %v5858, %v5874
  %v5917 = vunpack.c.l.s4 1934713408
  %v5918 = vunpack.c.0.s8 %v5917
  %v5919 = vlaneseq
  %v5920 = vshrl.u32 %v5919, 7
  %v5921 = vsub.s32 %v5918, %v5920
  %v5922 = vrot.slane %v5914, %v5921
  %v5924 = vunpack.c.l.s4 1934713408
  %v5925 = vunpack.c.0.s8 %v5924
  %v5926 = vlaneseq
  %v5927 = vshrl.u32 %v5926, 7
  %v5928 = vsub.s32 %v5925, %v5927
  %v5929 = vrot.slane %v5915, %v5928
  %v5930 = vcombine.low %v5865, %v5881
  %v5931 = vcombine.high %v5865, %v5881
  %v5933 = vunpack.c.l.s4 1934713408
  %v5934 = vunpack.c.0.s8 %v5933
  %v5935 = vlaneseq
  %v5936 = vshrl.u32 %v5935, 7
  %v5937 = vsub.s32 %v5934, %v5936
  %v5938 = vrot.slane %v5930, %v5937
  %v5940 = vunpack.c.l.s4 1934713408
  %v5941 = vunpack.c.0.s8 %v5940
  %v5942 = vlaneseq
  %v5943 = vshrl.u32 %v5942, 7
  %v5944 = vsub.s32 %v5941, %v5943
  %v5945 = vrot.slane %v5931, %v5944
  %v5946 = vcombine.low %v5890, %v5906
  %v5947 = vcombine.high %v5890, %v5906
  %v5949 = vunpack.c.l.s4 1934713408
  %v5950 = vunpack.c.0.s8 %v5949
  %v5951 = vlaneseq
  %v5952 = vshrl.u32 %v5951, 7
  %v5953 = vsub.s32 %v5950, %v5952
  %v5954 = vrot.slane %v5946, %v5953
  %v5956 = vunpack.c.l.s4 1934713408
  %v5957 = vunpack.c.0.s8 %v5956
  %v5958 = vlaneseq
  %v5959 = vshrl.u32 %v5958, 7
  %v5960 = vsub.s32 %v5957, %v5959
  %v5961 = vrot.slane %v5947, %v5960
  %v5962 = vcombine.low %v5897, %v5913
  %v5963 = vcombine.high %v5897, %v5913
  %v5965 = vunpack.c.l.s4 1934713408
  %v5966 = vunpack.c.0.s8 %v5965
  %v5967 = vlaneseq
  %v5968 = vshrl.u32 %v5967, 7
  %v5969 = vsub.s32 %v5966, %v5968
  %v5970 = vrot.slane %v5962, %v5969
  %v5972 = vunpack.c.l.s4 1934713408
  %v5973 = vunpack.c.0.s8 %v5972
  %v5974 = vlaneseq
  %v5975 = vshrl.u32 %v5974, 7
  %v5976 = vsub.s32 %v5973, %v5975
  %v5977 = vrot.slane %v5963, %v5976
  %v5978 = vcombine.low %v5922, %v5954
  %v5979 = vcombine.high %v5922, %v5954
  %v5980 = vcombine.low %v5929, %v5961
  %v5981 = vcombine.high %v5929, %v5961
  %v5982 = vcombine.low %v5938, %v5970
  %v5983 = vcombine.high %v5938, %v5970
  %v5984 = vcombine.low %v5945, %v5977
  %v5985 = vcombine.high %v5945, %v5977
  %v5986 = vcombine.low %v5145, %v5821
  %v5987 = vcombine.high %v5145, %v5821
  %v5989 = vunpack.c.l.s4 1983009808
  %v5990 = vunpack.c.0.s8 %v5989
  %v5991 = vlaneseq
  %v5992 = vshrl.u32 %v5991, 7
  %v5993 = vsub.s32 %v5990, %v5992
  %v5994 = vrot.slane %v5986, %v5993
  %v5996 = vunpack.c.l.s4 1983009808
  %v5997 = vunpack.c.0.s8 %v5996
  %v5998 = vlaneseq
  %v5999 = vshrl.u32 %v5998, 7
  %v6000 = vsub.s32 %v5997, %v5999
  %v6001 = vrot.slane %v5987, %v6000
  %v6002 = vcombine.low %v5815, %v5827
  %v6003 = vcombine.high %v5815, %v5827
  %v6005 = vunpack.c.l.s4 1983009808
  %v6006 = vunpack.c.0.s8 %v6005
  %v6007 = vlaneseq
  %v6008 = vshrl.u32 %v6007, 7
  %v6009 = vsub.s32 %v6006, %v6008
  %v6010 = vrot.slane %v6002, %v6009
  %v6012 = vunpack.c.l.s4 1983009808
  %v6013 = vunpack.c.0.s8 %v6012
  %v6014 = vlaneseq
  %v6015 = vshrl.u32 %v6014, 7
  %v6016 = vsub.s32 %v6013, %v6015
  %v6017 = vrot.slane %v6003, %v6016
  %v6018 = vcombine.low %v5147, %v5841
  %v6019 = vcombine.high %v5147, %v5841
  %v6021 = vunpack.c.l.s4 1983009808
  %v6022 = vunpack.c.0.s8 %v6021
  %v6023 = vlaneseq
  %v6024 = vshrl.u32 %v6023, 7
  %v6025 = vsub.s32 %v6022, %v6024
  %v6026 = vrot.slane %v6018, %v6025
  %v6028 = vunpack.c.l.s4 1983009808
  %v6029 = vunpack.c.0.s8 %v6028
  %v6030 = vlaneseq
  %v6031 = vshrl.u32 %v6030, 7
  %v6032 = vsub.s32 %v6029, %v6031
  %v6033 = vrot.slane %v6019, %v6032
  %v6034 = vcombine.low %v5835, %v5847
  %v6035 = vcombine.high %v5835, %v5847
  %v6037 = vunpack.c.l.s4 1983009808
  %v6038 = vunpack.c.0.s8 %v6037
  %v6039 = vlaneseq
  %v6040 = vshrl.u32 %v6039, 7
  %v6041 = vsub.s32 %v6038, %v6040
  %v6042 = vrot.slane %v6034, %v6041
  %v6044 = vunpack.c.l.s4 1983009808
  %v6045 = vunpack.c.0.s8 %v6044
  %v6046 = vlaneseq
  %v6047 = vshrl.u32 %v6046, 7
  %v6048 = vsub.s32 %v6045, %v6047
  %v6049 = vrot.slane %v6035, %v6048
  %v6050 = vcombine.low %v5994, %v6010
  %v6051 = vcombine.high %v5994, %v6010
  %v6053 = vunpack.c.l.s4 1934713408
  %v6054 = vunpack.c.0.s8 %v6053
  %v6055 = vlaneseq
  %v6056 = vshrl.u32 %v6055, 7
  %v6057 = vsub.s32 %v6054, %v6056
  %v6058 = vrot.slane %v6050, %v6057
  %v6060 = vunpack.c.l.s4 1934713408
  %v6061 = vunpack.c.0.s8 %v6060
  %v6062 = vlaneseq
  %v6063 = vshrl.u32 %v6062, 7
  %v6064 = vsub.s32 %v6061, %v6063
  %v6065 = vrot.slane %v6051, %v6064
  %v6066 = vcombine.low %v6001, %v6017
  %v6067 = vcombine.high %v6001, %v6017
  %v6069 = vunpack.c.l.s4 1934713408
  %v6070 = vunpack.c.0.s8 %v6069
  %v6071 = vlaneseq
  %v6072 = vshrl.u32 %v6071, 7
  %v6073 = vsub.s32 %v6070, %v6072
  %v6074 = vrot.slane %v6066, %v6073
  %v6076 = vunpack.c.l.s4 1934713408
  %v6077 = vunpack.c.0.s8 %v6076
  %v6078 = vlaneseq
  %v6079 = vshrl.u32 %v6078, 7
  %v6080 = vsub.s32 %v6077, %v6079
  %v6081 = vrot.slane %v6067, %v6080
  %v6082 = vcombine.low %v6026, %v6042
  %v6083 = vcombine.high %v6026, %v6042
  %v6085 = vunpack.c.l.s4 1934713408
  %v6086 = vunpack.c.0.s8 %v6085
  %v6087 = vlaneseq
  %v6088 = vshrl.u32 %v6087, 7
  %v6089 = vsub.s32 %v6086, %v6088
  %v6090 = vrot.slane %v6082, %v6089
  %v6092 = vunpack.c.l.s4 1934713408
  %v6093 = vunpack.c.0.s8 %v6092
  %v6094 = vlaneseq
  %v6095 = vshrl.u32 %v6094, 7
  %v6096 = vsub.s32 %v6093, %v6095
  %v6097 = vrot.slane %v6083, %v6096
  %v6098 = vcombine.low %v6033, %v6049
  %v6099 = vcombine.high %v6033, %v6049
  %v6101 = vunpack.c.l.s4 1934713408
  %v6102 = vunpack.c.0.s8 %v6101
  %v6103 = vlaneseq
  %v6104 = vshrl.u32 %v6103, 7
  %v6105 = vsub.s32 %v6102, %v6104
  %v6106 = vrot.slane %v6098, %v6105
  %v6108 = vunpack.c.l.s4 1934713408
  %v6109 = vunpack.c.0.s8 %v6108
  %v6110 = vlaneseq
  %v6111 = vshrl.u32 %v6110, 7
  %v6112 = vsub.s32 %v6109, %v6111
  %v6113 = vrot.slane %v6099, %v6112
  %v6114 = vcombine.low %v6058, %v6090
  %v6115 = vcombine.high %v6058, %v6090
  %v6116 = vcombine.low %v6065, %v6097
  %v6117 = vcombine.high %v6065, %v6097
  %v6118 = vcombine.low %v6074, %v6106
  %v6119 = vcombine.high %v6074, %v6106
  %v6120 = vcombine.low %v6081, %v6113
  %v6121 = vcombine.high %v6081, %v6113
  %v6122 = vcombine.low %v5978, %v5980
  %v6123 = vcombine.high %v5978, %v5980
  %v6125 = vunpack.c.l.s4 1983009808
  %v6126 = vunpack.c.0.s8 %v6125
  %v6127 = vlaneseq
  %v6128 = vshrl.u32 %v6127, 7
  %v6129 = vsub.s32 %v6126, %v6128
  %v6130 = vrot.slane %v6122, %v6129
  %v6132 = vunpack.c.l.s4 1983009808
  %v6133 = vunpack.c.0.s8 %v6132
  %v6134 = vlaneseq
  %v6135 = vshrl.u32 %v6134, 7
  %v6136 = vsub.s32 %v6133, %v6135
  %v6137 = vrot.slane %v6123, %v6136
  %v6138 = vcombine.low %v5979, %v5981
  %v6139 = vcombine.high %v5979, %v5981
  %v6141 = vunpack.c.l.s4 1983009808
  %v6142 = vunpack.c.0.s8 %v6141
  %v6143 = vlaneseq
  %v6144 = vshrl.u32 %v6143, 7
  %v6145 = vsub.s32 %v6142, %v6144
  %v6146 = vrot.slane %v6138, %v6145
  %v6148 = vunpack.c.l.s4 1983009808
  %v6149 = vunpack.c.0.s8 %v6148
  %v6150 = vlaneseq
  %v6151 = vshrl.u32 %v6150, 7
  %v6152 = vsub.s32 %v6149, %v6151
  %v6153 = vrot.slane %v6139, %v6152
  %v6154 = vcombine.low %v5982, %v5984
  %v6155 = vcombine.high %v5982, %v5984
  %v6157 = vunpack.c.l.s4 1983009808
  %v6158 = vunpack.c.0.s8 %v6157
  %v6159 = vlaneseq
  %v6160 = vshrl.u32 %v6159, 7
  %v6161 = vsub.s32 %v6158, %v6160
  %v6162 = vrot.slane %v6154, %v6161
  %v6164 = vunpack.c.l.s4 1983009808
  %v6165 = vunpack.c.0.s8 %v6164
  %v6166 = vlaneseq
  %v6167 = vshrl.u32 %v6166, 7
  %v6168 = vsub.s32 %v6165, %v6167
  %v6169 = vrot.slane %v6155, %v6168
  %v6170 = vcombine.low %v5983, %v5985
  %v6171 = vcombine.high %v5983, %v5985
  %v6173 = vunpack.c.l.s4 1983009808
  %v6174 = vunpack.c.0.s8 %v6173
  %v6175 = vlaneseq
  %v6176 = vshrl.u32 %v6175, 7
  %v6177 = vsub.s32 %v6174, %v6176
  %v6178 = vrot.slane %v6170, %v6177
  %v6180 = vunpack.c.l.s4 1983009808
  %v6181 = vunpack.c.0.s8 %v6180
  %v6182 = vlaneseq
  %v6183 = vshrl.u32 %v6182, 7
  %v6184 = vsub.s32 %v6181, %v6183
  %v6185 = vrot.slane %v6171, %v6184
  %v6186 = vcombine.low %v6130, %v6146
  %v6187 = vcombine.high %v6130, %v6146
  %v6189 = vunpack.c.l.s4 1934713408
  %v6190 = vunpack.c.0.s8 %v6189
  %v6191 = vlaneseq
  %v6192 = vshrl.u32 %v6191, 7
  %v6193 = vsub.s32 %v6190, %v6192
  %v6194 = vrot.slane %v6186, %v6193
  %v6196 = vunpack.c.l.s4 1934713408
  %v6197 = vunpack.c.0.s8 %v6196
  %v6198 = vlaneseq
  %v6199 = vshrl.u32 %v6198, 7
  %v6200 = vsub.s32 %v6197, %v6199
  %v6201 = vrot.slane %v6187, %v6200
  %v6202 = vcombine.low %v6137, %v6153
  %v6203 = vcombine.high %v6137, %v6153
  %v6205 = vunpack.c.l.s4 1934713408
  %v6206 = vunpack.c.0.s8 %v6205
  %v6207 = vlaneseq
  %v6208 = vshrl.u32 %v6207, 7
  %v6209 = vsub.s32 %v6206, %v6208
  %v6210 = vrot.slane %v6202, %v6209
  %v6212 = vunpack.c.l.s4 1934713408
  %v6213 = vunpack.c.0.s8 %v6212
  %v6214 = vlaneseq
  %v6215 = vshrl.u32 %v6214, 7
  %v6216 = vsub.s32 %v6213, %v6215
  %v6217 = vrot.slane %v6203, %v6216
  %v6218 = vcombine.low %v6162, %v6178
  %v6219 = vcombine.high %v6162, %v6178
  %v6221 = vunpack.c.l.s4 1934713408
  %v6222 = vunpack.c.0.s8 %v6221
  %v6223 = vlaneseq
  %v6224 = vshrl.u32 %v6223, 7
  %v6225 = vsub.s32 %v6222, %v6224
  %v6226 = vrot.slane %v6218, %v6225
  %v6228 = vunpack.c.l.s4 1934713408
  %v6229 = vunpack.c.0.s8 %v6228
  %v6230 = vlaneseq
  %v6231 = vshrl.u32 %v6230, 7
  %v6232 = vsub.s32 %v6229, %v6231
  %v6233 = vrot.slane %v6219, %v6232
  %v6234 = vcombine.low %v6169, %v6185
  %v6235 = vcombine.high %v6169, %v6185
  %v6237 = vunpack.c.l.s4 1934713408
  %v6238 = vunpack.c.0.s8 %v6237
  %v6239 = vlaneseq
  %v6240 = vshrl.u32 %v6239, 7
  %v6241 = vsub.s32 %v6238, %v6240
  %v6242 = vrot.slane %v6234, %v6241
  %v6244 = vunpack.c.l.s4 1934713408
  %v6245 = vunpack.c.0.s8 %v6244
  %v6246 = vlaneseq
  %v6247 = vshrl.u32 %v6246, 7
  %v6248 = vsub.s32 %v6245, %v6247
  %v6249 = vrot.slane %v6235, %v6248
  %v6250 = vcombine.low %v6194, %v6226
  %v6251 = vcombine.high %v6194, %v6226
  %v6252 = vcombine.low %v6201, %v6233
  %v6253 = vcombine.high %v6201, %v6233
  %v6254 = vcombine.low %v6210, %v6242
  %v6255 = vcombine.high %v6210, %v6242
  %v6256 = vcombine.low %v6217, %v6249
  %v6257 = vcombine.high %v6217, %v6249
  %v6258 = vcombine.low %v6114, %v6116
  %v6259 = vcombine.high %v6114, %v6116
  %v6261 = vunpack.c.l.s4 1983009808
  %v6262 = vunpack.c.0.s8 %v6261
  %v6263 = vlaneseq
  %v6264 = vshrl.u32 %v6263, 7
  %v6265 = vsub.s32 %v6262, %v6264
  %v6266 = vrot.slane %v6258, %v6265
  %v6268 = vunpack.c.l.s4 1983009808
  %v6269 = vunpack.c.0.s8 %v6268
  %v6270 = vlaneseq
  %v6271 = vshrl.u32 %v6270, 7
  %v6272 = vsub.s32 %v6269, %v6271
  %v6273 = vrot.slane %v6259, %v6272
  %v6274 = vcombine.low %v6115, %v6117
  %v6275 = vcombine.high %v6115, %v6117
  %v6277 = vunpack.c.l.s4 1983009808
  %v6278 = vunpack.c.0.s8 %v6277
  %v6279 = vlaneseq
  %v6280 = vshrl.u32 %v6279, 7
  %v6281 = vsub.s32 %v6278, %v6280
  %v6282 = vrot.slane %v6274, %v6281
  %v6284 = vunpack.c.l.s4 1983009808
  %v6285 = vunpack.c.0.s8 %v6284
  %v6286 = vlaneseq
  %v6287 = vshrl.u32 %v6286, 7
  %v6288 = vsub.s32 %v6285, %v6287
  %v6289 = vrot.slane %v6275, %v6288
  %v6290 = vcombine.low %v6118, %v6120
  %v6291 = vcombine.high %v6118, %v6120
  %v6293 = vunpack.c.l.s4 1983009808
  %v6294 = vunpack.c.0.s8 %v6293
  %v6295 = vlaneseq
  %v6296 = vshrl.u32 %v6295, 7
  %v6297 = vsub.s32 %v6294, %v6296
  %v6298 = vrot.slane %v6290, %v6297
  %v6300 = vunpack.c.l.s4 1983009808
  %v6301 = vunpack.c.0.s8 %v6300
  %v6302 = vlaneseq
  %v6303 = vshrl.u32 %v6302, 7
  %v6304 = vsub.s32 %v6301, %v6303
  %v6305 = vrot.slane %v6291, %v6304
  %v6306 = vcombine.low %v6119, %v6121
  %v6307 = vcombine.high %v6119, %v6121
  %v6309 = vunpack.c.l.s4 1983009808
  %v6310 = vunpack.c.0.s8 %v6309
  %v6311 = vlaneseq
  %v6312 = vshrl.u32 %v6311, 7
  %v6313 = vsub.s32 %v6310, %v6312
  %v6314 = vrot.slane %v6306, %v6313
  %v6316 = vunpack.c.l.s4 1983009808
  %v6317 = vunpack.c.0.s8 %v6316
  %v6318 = vlaneseq
  %v6319 = vshrl.u32 %v6318, 7
  %v6320 = vsub.s32 %v6317, %v6319
  %v6321 = vrot.slane %v6307, %v6320
  %v6322 = vcombine.low %v6266, %v6282
  %v6323 = vcombine.high %v6266, %v6282
  %v6325 = vunpack.c.l.s4 1934713408
  %v6326 = vunpack.c.0.s8 %v6325
  %v6327 = vlaneseq
  %v6328 = vshrl.u32 %v6327, 7
  %v6329 = vsub.s32 %v6326, %v6328
  %v6330 = vrot.slane %v6322, %v6329
  %v6332 = vunpack.c.l.s4 1934713408
  %v6333 = vunpack.c.0.s8 %v6332
  %v6334 = vlaneseq
  %v6335 = vshrl.u32 %v6334, 7
  %v6336 = vsub.s32 %v6333, %v6335
  %v6337 = vrot.slane %v6323, %v6336
  %v6338 = vcombine.low %v6273, %v6289
  %v6339 = vcombine.high %v6273, %v6289
  %v6341 = vunpack.c.l.s4 1934713408
  %v6342 = vunpack.c.0.s8 %v6341
  %v6343 = vlaneseq
  %v6344 = vshrl.u32 %v6343, 7
  %v6345 = vsub.s32 %v6342, %v6344
  %v6346 = vrot.slane %v6338, %v6345
  %v6348 = vunpack.c.l.s4 1934713408
  %v6349 = vunpack.c.0.s8 %v6348
  %v6350 = vlaneseq
  %v6351 = vshrl.u32 %v6350, 7
  %v6352 = vsub.s32 %v6349, %v6351
  %v6353 = vrot.slane %v6339, %v6352
  %v6354 = vcombine.low %v6298, %v6314
  %v6355 = vcombine.high %v6298, %v6314
  %v6357 = vunpack.c.l.s4 1934713408
  %v6358 = vunpack.c.0.s8 %v6357
  %v6359 = vlaneseq
  %v6360 = vshrl.u32 %v6359, 7
  %v6361 = vsub.s32 %v6358, %v6360
  %v6362 = vrot.slane %v6354, %v6361
  %v6364 = vunpack.c.l.s4 1934713408
  %v6365 = vunpack.c.0.s8 %v6364
  %v6366 = vlaneseq
  %v6367 = vshrl.u32 %v6366, 7
  %v6368 = vsub.s32 %v6365, %v6367
  %v6369 = vrot.slane %v6355, %v6368
  %v6370 = vcombine.low %v6305, %v6321
  %v6371 = vcombine.high %v6305, %v6321
  %v6373 = vunpack.c.l.s4 1934713408
  %v6374 = vunpack.c.0.s8 %v6373
  %v6375 = vlaneseq
  %v6376 = vshrl.u32 %v6375, 7
  %v6377 = vsub.s32 %v6374, %v6376
  %v6378 = vrot.slane %v6370, %v6377
  %v6380 = vunpack.c.l.s4 1934713408
  %v6381 = vunpack.c.0.s8 %v6380
  %v6382 = vlaneseq
  %v6383 = vshrl.u32 %v6382, 7
  %v6384 = vsub.s32 %v6381, %v6383
  %v6385 = vrot.slane %v6371, %v6384
  %v6386 = vcombine.low %v6330, %v6362
  %v6387 = vcombine.high %v6330, %v6362
  %v6388 = vcombine.low %v6337, %v6369
  %v6389 = vcombine.high %v6337, %v6369
  %v6390 = vcombine.low %v6346, %v6378
  %v6391 = vcombine.high %v6346, %v6378
  %v6392 = vcombine.low %v6353, %v6385
  %v6393 = vcombine.high %v6353, %v6385
  %6396 = vrot.lane.b32.xlu0 %v5216, 96
  %v6397 = vpop.permute.xlu0 %6396
  %6398 = vrot.lane.b32.xlu0 %v5222, 96
  %v6399 = vpop.permute.xlu0 %6398
  %6402 = vrot.lane.b32.xlu0 %v5216, 64
  %v6403 = vpop.permute.xlu0 %6402
  %6404 = vrot.lane.b32.xlu0 %v5222, 64
  %v6405 = vpop.permute.xlu0 %6404
  %6408 = vrot.lane.b32.xlu0 %v5216, 32
  %v6409 = vpop.permute.xlu0 %6408
  %6410 = vrot.lane.b32.xlu0 %v5222, 32
  %v6411 = vpop.permute.xlu0 %6410
  %6416 = vrot.lane.b32.xlu0 %v5218, 96
  %v6417 = vpop.permute.xlu0 %6416
  %6418 = vrot.lane.b32.xlu0 %v5224, 96
  %v6419 = vpop.permute.xlu0 %6418
  %6422 = vrot.lane.b32.xlu0 %v5218, 64
  %v6423 = vpop.permute.xlu0 %6422
  %6424 = vrot.lane.b32.xlu0 %v5224, 64
  %v6425 = vpop.permute.xlu0 %6424
  %6428 = vrot.lane.b32.xlu0 %v5218, 32
  %v6429 = vpop.permute.xlu0 %6428
  %6430 = vrot.lane.b32.xlu0 %v5224, 32
  %v6431 = vpop.permute.xlu0 %6430
  %v6434 = vcombine.low %v5216, %v6403
  %v6435 = vcombine.high %v5216, %v6403
  %v6437 = vunpack.c.l.s4 1983009808
  %v6438 = vunpack.c.0.s8 %v6437
  %v6439 = vlaneseq
  %v6440 = vshrl.u32 %v6439, 7
  %v6441 = vsub.s32 %v6438, %v6440
  %v6442 = vrot.slane %v6434, %v6441
  %v6444 = vunpack.c.l.s4 1983009808
  %v6445 = vunpack.c.0.s8 %v6444
  %v6446 = vlaneseq
  %v6447 = vshrl.u32 %v6446, 7
  %v6448 = vsub.s32 %v6445, %v6447
  %v6449 = vrot.slane %v6435, %v6448
  %v6450 = vcombine.low %v6397, %v6409
  %v6451 = vcombine.high %v6397, %v6409
  %v6453 = vunpack.c.l.s4 1983009808
  %v6454 = vunpack.c.0.s8 %v6453
  %v6455 = vlaneseq
  %v6456 = vshrl.u32 %v6455, 7
  %v6457 = vsub.s32 %v6454, %v6456
  %v6458 = vrot.slane %v6450, %v6457
  %v6460 = vunpack.c.l.s4 1983009808
  %v6461 = vunpack.c.0.s8 %v6460
  %v6462 = vlaneseq
  %v6463 = vshrl.u32 %v6462, 7
  %v6464 = vsub.s32 %v6461, %v6463
  %v6465 = vrot.slane %v6451, %v6464
  %v6466 = vcombine.low %v5218, %v6423
  %v6467 = vcombine.high %v5218, %v6423
  %v6469 = vunpack.c.l.s4 1983009808
  %v6470 = vunpack.c.0.s8 %v6469
  %v6471 = vlaneseq
  %v6472 = vshrl.u32 %v6471, 7
  %v6473 = vsub.s32 %v6470, %v6472
  %v6474 = vrot.slane %v6466, %v6473
  %v6476 = vunpack.c.l.s4 1983009808
  %v6477 = vunpack.c.0.s8 %v6476
  %v6478 = vlaneseq
  %v6479 = vshrl.u32 %v6478, 7
  %v6480 = vsub.s32 %v6477, %v6479
  %v6481 = vrot.slane %v6467, %v6480
  %v6482 = vcombine.low %v6417, %v6429
  %v6483 = vcombine.high %v6417, %v6429
  %v6485 = vunpack.c.l.s4 1983009808
  %v6486 = vunpack.c.0.s8 %v6485
  %v6487 = vlaneseq
  %v6488 = vshrl.u32 %v6487, 7
  %v6489 = vsub.s32 %v6486, %v6488
  %v6490 = vrot.slane %v6482, %v6489
  %v6492 = vunpack.c.l.s4 1983009808
  %v6493 = vunpack.c.0.s8 %v6492
  %v6494 = vlaneseq
  %v6495 = vshrl.u32 %v6494, 7
  %v6496 = vsub.s32 %v6493, %v6495
  %v6497 = vrot.slane %v6483, %v6496
  %v6498 = vcombine.low %v6442, %v6458
  %v6499 = vcombine.high %v6442, %v6458
  %v6501 = vunpack.c.l.s4 1934713408
  %v6502 = vunpack.c.0.s8 %v6501
  %v6503 = vlaneseq
  %v6504 = vshrl.u32 %v6503, 7
  %v6505 = vsub.s32 %v6502, %v6504
  %v6506 = vrot.slane %v6498, %v6505
  %v6508 = vunpack.c.l.s4 1934713408
  %v6509 = vunpack.c.0.s8 %v6508
  %v6510 = vlaneseq
  %v6511 = vshrl.u32 %v6510, 7
  %v6512 = vsub.s32 %v6509, %v6511
  %v6513 = vrot.slane %v6499, %v6512
  %v6514 = vcombine.low %v6449, %v6465
  %v6515 = vcombine.high %v6449, %v6465
  %v6517 = vunpack.c.l.s4 1934713408
  %v6518 = vunpack.c.0.s8 %v6517
  %v6519 = vlaneseq
  %v6520 = vshrl.u32 %v6519, 7
  %v6521 = vsub.s32 %v6518, %v6520
  %v6522 = vrot.slane %v6514, %v6521
  %v6524 = vunpack.c.l.s4 1934713408
  %v6525 = vunpack.c.0.s8 %v6524
  %v6526 = vlaneseq
  %v6527 = vshrl.u32 %v6526, 7
  %v6528 = vsub.s32 %v6525, %v6527
  %v6529 = vrot.slane %v6515, %v6528
  %v6530 = vcombine.low %v6474, %v6490
  %v6531 = vcombine.high %v6474, %v6490
  %v6533 = vunpack.c.l.s4 1934713408
  %v6534 = vunpack.c.0.s8 %v6533
  %v6535 = vlaneseq
  %v6536 = vshrl.u32 %v6535, 7
  %v6537 = vsub.s32 %v6534, %v6536
  %v6538 = vrot.slane %v6530, %v6537
  %v6540 = vunpack.c.l.s4 1934713408
  %v6541 = vunpack.c.0.s8 %v6540
  %v6542 = vlaneseq
  %v6543 = vshrl.u32 %v6542, 7
  %v6544 = vsub.s32 %v6541, %v6543
  %v6545 = vrot.slane %v6531, %v6544
  %v6546 = vcombine.low %v6481, %v6497
  %v6547 = vcombine.high %v6481, %v6497
  %v6549 = vunpack.c.l.s4 1934713408
  %v6550 = vunpack.c.0.s8 %v6549
  %v6551 = vlaneseq
  %v6552 = vshrl.u32 %v6551, 7
  %v6553 = vsub.s32 %v6550, %v6552
  %v6554 = vrot.slane %v6546, %v6553
  %v6556 = vunpack.c.l.s4 1934713408
  %v6557 = vunpack.c.0.s8 %v6556
  %v6558 = vlaneseq
  %v6559 = vshrl.u32 %v6558, 7
  %v6560 = vsub.s32 %v6557, %v6559
  %v6561 = vrot.slane %v6547, %v6560
  %v6562 = vcombine.low %v6506, %v6538
  %v6563 = vcombine.high %v6506, %v6538
  %v6564 = vcombine.low %v6513, %v6545
  %v6565 = vcombine.high %v6513, %v6545
  %v6566 = vcombine.low %v6522, %v6554
  %v6567 = vcombine.high %v6522, %v6554
  %v6568 = vcombine.low %v6529, %v6561
  %v6569 = vcombine.high %v6529, %v6561
  %v6570 = vcombine.low %v5222, %v6405
  %v6571 = vcombine.high %v5222, %v6405
  %v6573 = vunpack.c.l.s4 1983009808
  %v6574 = vunpack.c.0.s8 %v6573
  %v6575 = vlaneseq
  %v6576 = vshrl.u32 %v6575, 7
  %v6577 = vsub.s32 %v6574, %v6576
  %v6578 = vrot.slane %v6570, %v6577
  %v6580 = vunpack.c.l.s4 1983009808
  %v6581 = vunpack.c.0.s8 %v6580
  %v6582 = vlaneseq
  %v6583 = vshrl.u32 %v6582, 7
  %v6584 = vsub.s32 %v6581, %v6583
  %v6585 = vrot.slane %v6571, %v6584
  %v6586 = vcombine.low %v6399, %v6411
  %v6587 = vcombine.high %v6399, %v6411
  %v6589 = vunpack.c.l.s4 1983009808
  %v6590 = vunpack.c.0.s8 %v6589
  %v6591 = vlaneseq
  %v6592 = vshrl.u32 %v6591, 7
  %v6593 = vsub.s32 %v6590, %v6592
  %v6594 = vrot.slane %v6586, %v6593
  %v6596 = vunpack.c.l.s4 1983009808
  %v6597 = vunpack.c.0.s8 %v6596
  %v6598 = vlaneseq
  %v6599 = vshrl.u32 %v6598, 7
  %v6600 = vsub.s32 %v6597, %v6599
  %v6601 = vrot.slane %v6587, %v6600
  %v6602 = vcombine.low %v5224, %v6425
  %v6603 = vcombine.high %v5224, %v6425
  %v6605 = vunpack.c.l.s4 1983009808
  %v6606 = vunpack.c.0.s8 %v6605
  %v6607 = vlaneseq
  %v6608 = vshrl.u32 %v6607, 7
  %v6609 = vsub.s32 %v6606, %v6608
  %v6610 = vrot.slane %v6602, %v6609
  %v6612 = vunpack.c.l.s4 1983009808
  %v6613 = vunpack.c.0.s8 %v6612
  %v6614 = vlaneseq
  %v6615 = vshrl.u32 %v6614, 7
  %v6616 = vsub.s32 %v6613, %v6615
  %v6617 = vrot.slane %v6603, %v6616
  %v6618 = vcombine.low %v6419, %v6431
  %v6619 = vcombine.high %v6419, %v6431
  %v6621 = vunpack.c.l.s4 1983009808
  %v6622 = vunpack.c.0.s8 %v6621
  %v6623 = vlaneseq
  %v6624 = vshrl.u32 %v6623, 7
  %v6625 = vsub.s32 %v6622, %v6624
  %v6626 = vrot.slane %v6618, %v6625
  %v6628 = vunpack.c.l.s4 1983009808
  %v6629 = vunpack.c.0.s8 %v6628
  %v6630 = vlaneseq
  %v6631 = vshrl.u32 %v6630, 7
  %v6632 = vsub.s32 %v6629, %v6631
  %v6633 = vrot.slane %v6619, %v6632
  %v6634 = vcombine.low %v6578, %v6594
  %v6635 = vcombine.high %v6578, %v6594
  %v6637 = vunpack.c.l.s4 1934713408
  %v6638 = vunpack.c.0.s8 %v6637
  %v6639 = vlaneseq
  %v6640 = vshrl.u32 %v6639, 7
  %v6641 = vsub.s32 %v6638, %v6640
  %v6642 = vrot.slane %v6634, %v6641
  %v6644 = vunpack.c.l.s4 1934713408
  %v6645 = vunpack.c.0.s8 %v6644
  %v6646 = vlaneseq
  %v6647 = vshrl.u32 %v6646, 7
  %v6648 = vsub.s32 %v6645, %v6647
  %v6649 = vrot.slane %v6635, %v6648
  %v6650 = vcombine.low %v6585, %v6601
  %v6651 = vcombine.high %v6585, %v6601
  %v6653 = vunpack.c.l.s4 1934713408
  %v6654 = vunpack.c.0.s8 %v6653
  %v6655 = vlaneseq
  %v6656 = vshrl.u32 %v6655, 7
  %v6657 = vsub.s32 %v6654, %v6656
  %v6658 = vrot.slane %v6650, %v6657
  %v6660 = vunpack.c.l.s4 1934713408
  %v6661 = vunpack.c.0.s8 %v6660
  %v6662 = vlaneseq
  %v6663 = vshrl.u32 %v6662, 7
  %v6664 = vsub.s32 %v6661, %v6663
  %v6665 = vrot.slane %v6651, %v6664
  %v6666 = vcombine.low %v6610, %v6626
  %v6667 = vcombine.high %v6610, %v6626
  %v6669 = vunpack.c.l.s4 1934713408
  %v6670 = vunpack.c.0.s8 %v6669
  %v6671 = vlaneseq
  %v6672 = vshrl.u32 %v6671, 7
  %v6673 = vsub.s32 %v6670, %v6672
  %v6674 = vrot.slane %v6666, %v6673
  %v6676 = vunpack.c.l.s4 1934713408
  %v6677 = vunpack.c.0.s8 %v6676
  %v6678 = vlaneseq
  %v6679 = vshrl.u32 %v6678, 7
  %v6680 = vsub.s32 %v6677, %v6679
  %v6681 = vrot.slane %v6667, %v6680
  %v6682 = vcombine.low %v6617, %v6633
  %v6683 = vcombine.high %v6617, %v6633
  %v6685 = vunpack.c.l.s4 1934713408
  %v6686 = vunpack.c.0.s8 %v6685
  %v6687 = vlaneseq
  %v6688 = vshrl.u32 %v6687, 7
  %v6689 = vsub.s32 %v6686, %v6688
  %v6690 = vrot.slane %v6682, %v6689
  %v6692 = vunpack.c.l.s4 1934713408
  %v6693 = vunpack.c.0.s8 %v6692
  %v6694 = vlaneseq
  %v6695 = vshrl.u32 %v6694, 7
  %v6696 = vsub.s32 %v6693, %v6695
  %v6697 = vrot.slane %v6683, %v6696
  %v6698 = vcombine.low %v6642, %v6674
  %v6699 = vcombine.high %v6642, %v6674
  %v6700 = vcombine.low %v6649, %v6681
  %v6701 = vcombine.high %v6649, %v6681
  %v6702 = vcombine.low %v6658, %v6690
  %v6703 = vcombine.high %v6658, %v6690
  %v6704 = vcombine.low %v6665, %v6697
  %v6705 = vcombine.high %v6665, %v6697
  %v6706 = vcombine.low %v6562, %v6564
  %v6707 = vcombine.high %v6562, %v6564
  %v6709 = vunpack.c.l.s4 1983009808
  %v6710 = vunpack.c.0.s8 %v6709
  %v6711 = vlaneseq
  %v6712 = vshrl.u32 %v6711, 7
  %v6713 = vsub.s32 %v6710, %v6712
  %v6714 = vrot.slane %v6706, %v6713
  %v6716 = vunpack.c.l.s4 1983009808
  %v6717 = vunpack.c.0.s8 %v6716
  %v6718 = vlaneseq
  %v6719 = vshrl.u32 %v6718, 7
  %v6720 = vsub.s32 %v6717, %v6719
  %v6721 = vrot.slane %v6707, %v6720
  %v6722 = vcombine.low %v6563, %v6565
  %v6723 = vcombine.high %v6563, %v6565
  %v6725 = vunpack.c.l.s4 1983009808
  %v6726 = vunpack.c.0.s8 %v6725
  %v6727 = vlaneseq
  %v6728 = vshrl.u32 %v6727, 7
  %v6729 = vsub.s32 %v6726, %v6728
  %v6730 = vrot.slane %v6722, %v6729
  %v6732 = vunpack.c.l.s4 1983009808
  %v6733 = vunpack.c.0.s8 %v6732
  %v6734 = vlaneseq
  %v6735 = vshrl.u32 %v6734, 7
  %v6736 = vsub.s32 %v6733, %v6735
  %v6737 = vrot.slane %v6723, %v6736
  %v6738 = vcombine.low %v6566, %v6568
  %v6739 = vcombine.high %v6566, %v6568
  %v6741 = vunpack.c.l.s4 1983009808
  %v6742 = vunpack.c.0.s8 %v6741
  %v6743 = vlaneseq
  %v6744 = vshrl.u32 %v6743, 7
  %v6745 = vsub.s32 %v6742, %v6744
  %v6746 = vrot.slane %v6738, %v6745
  %v6748 = vunpack.c.l.s4 1983009808
  %v6749 = vunpack.c.0.s8 %v6748
  %v6750 = vlaneseq
  %v6751 = vshrl.u32 %v6750, 7
  %v6752 = vsub.s32 %v6749, %v6751
  %v6753 = vrot.slane %v6739, %v6752
  %v6754 = vcombine.low %v6567, %v6569
  %v6755 = vcombine.high %v6567, %v6569
  %v6757 = vunpack.c.l.s4 1983009808
  %v6758 = vunpack.c.0.s8 %v6757
  %v6759 = vlaneseq
  %v6760 = vshrl.u32 %v6759, 7
  %v6761 = vsub.s32 %v6758, %v6760
  %v6762 = vrot.slane %v6754, %v6761
  %v6764 = vunpack.c.l.s4 1983009808
  %v6765 = vunpack.c.0.s8 %v6764
  %v6766 = vlaneseq
  %v6767 = vshrl.u32 %v6766, 7
  %v6768 = vsub.s32 %v6765, %v6767
  %v6769 = vrot.slane %v6755, %v6768
  %v6770 = vcombine.low %v6714, %v6730
  %v6771 = vcombine.high %v6714, %v6730
  %v6773 = vunpack.c.l.s4 1934713408
  %v6774 = vunpack.c.0.s8 %v6773
  %v6775 = vlaneseq
  %v6776 = vshrl.u32 %v6775, 7
  %v6777 = vsub.s32 %v6774, %v6776
  %v6778 = vrot.slane %v6770, %v6777
  %v6780 = vunpack.c.l.s4 1934713408
  %v6781 = vunpack.c.0.s8 %v6780
  %v6782 = vlaneseq
  %v6783 = vshrl.u32 %v6782, 7
  %v6784 = vsub.s32 %v6781, %v6783
  %v6785 = vrot.slane %v6771, %v6784
  %v6786 = vcombine.low %v6721, %v6737
  %v6787 = vcombine.high %v6721, %v6737
  %v6789 = vunpack.c.l.s4 1934713408
  %v6790 = vunpack.c.0.s8 %v6789
  %v6791 = vlaneseq
  %v6792 = vshrl.u32 %v6791, 7
  %v6793 = vsub.s32 %v6790, %v6792
  %v6794 = vrot.slane %v6786, %v6793
  %v6796 = vunpack.c.l.s4 1934713408
  %v6797 = vunpack.c.0.s8 %v6796
  %v6798 = vlaneseq
  %v6799 = vshrl.u32 %v6798, 7
  %v6800 = vsub.s32 %v6797, %v6799
  %v6801 = vrot.slane %v6787, %v6800
  %v6802 = vcombine.low %v6746, %v6762
  %v6803 = vcombine.high %v6746, %v6762
  %v6805 = vunpack.c.l.s4 1934713408
  %v6806 = vunpack.c.0.s8 %v6805
  %v6807 = vlaneseq
  %v6808 = vshrl.u32 %v6807, 7
  %v6809 = vsub.s32 %v6806, %v6808
  %v6810 = vrot.slane %v6802, %v6809
  %v6812 = vunpack.c.l.s4 1934713408
  %v6813 = vunpack.c.0.s8 %v6812
  %v6814 = vlaneseq
  %v6815 = vshrl.u32 %v6814, 7
  %v6816 = vsub.s32 %v6813, %v6815
  %v6817 = vrot.slane %v6803, %v6816
  %v6818 = vcombine.low %v6753, %v6769
  %v6819 = vcombine.high %v6753, %v6769
  %v6821 = vunpack.c.l.s4 1934713408
  %v6822 = vunpack.c.0.s8 %v6821
  %v6823 = vlaneseq
  %v6824 = vshrl.u32 %v6823, 7
  %v6825 = vsub.s32 %v6822, %v6824
  %v6826 = vrot.slane %v6818, %v6825
  %v6828 = vunpack.c.l.s4 1934713408
  %v6829 = vunpack.c.0.s8 %v6828
  %v6830 = vlaneseq
  %v6831 = vshrl.u32 %v6830, 7
  %v6832 = vsub.s32 %v6829, %v6831
  %v6833 = vrot.slane %v6819, %v6832
  %v6834 = vcombine.low %v6778, %v6810
  %v6835 = vcombine.high %v6778, %v6810
  %v6836 = vcombine.low %v6785, %v6817
  %v6837 = vcombine.high %v6785, %v6817
  %v6838 = vcombine.low %v6794, %v6826
  %v6839 = vcombine.high %v6794, %v6826
  %v6840 = vcombine.low %v6801, %v6833
  %v6841 = vcombine.high %v6801, %v6833
  %v6842 = vcombine.low %v6698, %v6700
  %v6843 = vcombine.high %v6698, %v6700
  %v6845 = vunpack.c.l.s4 1983009808
  %v6846 = vunpack.c.0.s8 %v6845
  %v6847 = vlaneseq
  %v6848 = vshrl.u32 %v6847, 7
  %v6849 = vsub.s32 %v6846, %v6848
  %v6850 = vrot.slane %v6842, %v6849
  %v6852 = vunpack.c.l.s4 1983009808
  %v6853 = vunpack.c.0.s8 %v6852
  %v6854 = vlaneseq
  %v6855 = vshrl.u32 %v6854, 7
  %v6856 = vsub.s32 %v6853, %v6855
  %v6857 = vrot.slane %v6843, %v6856
  %v6858 = vcombine.low %v6699, %v6701
  %v6859 = vcombine.high %v6699, %v6701
  %v6861 = vunpack.c.l.s4 1983009808
  %v6862 = vunpack.c.0.s8 %v6861
  %v6863 = vlaneseq
  %v6864 = vshrl.u32 %v6863, 7
  %v6865 = vsub.s32 %v6862, %v6864
  %v6866 = vrot.slane %v6858, %v6865
  %v6868 = vunpack.c.l.s4 1983009808
  %v6869 = vunpack.c.0.s8 %v6868
  %v6870 = vlaneseq
  %v6871 = vshrl.u32 %v6870, 7
  %v6872 = vsub.s32 %v6869, %v6871
  %v6873 = vrot.slane %v6859, %v6872
  %v6874 = vcombine.low %v6702, %v6704
  %v6875 = vcombine.high %v6702, %v6704
  %v6877 = vunpack.c.l.s4 1983009808
  %v6878 = vunpack.c.0.s8 %v6877
  %v6879 = vlaneseq
  %v6880 = vshrl.u32 %v6879, 7
  %v6881 = vsub.s32 %v6878, %v6880
  %v6882 = vrot.slane %v6874, %v6881
  %v6884 = vunpack.c.l.s4 1983009808
  %v6885 = vunpack.c.0.s8 %v6884
  %v6886 = vlaneseq
  %v6887 = vshrl.u32 %v6886, 7
  %v6888 = vsub.s32 %v6885, %v6887
  %v6889 = vrot.slane %v6875, %v6888
  %v6890 = vcombine.low %v6703, %v6705
  %v6891 = vcombine.high %v6703, %v6705
  %v6893 = vunpack.c.l.s4 1983009808
  %v6894 = vunpack.c.0.s8 %v6893
  %v6895 = vlaneseq
  %v6896 = vshrl.u32 %v6895, 7
  %v6897 = vsub.s32 %v6894, %v6896
  %v6898 = vrot.slane %v6890, %v6897
  %v6900 = vunpack.c.l.s4 1983009808
  %v6901 = vunpack.c.0.s8 %v6900
  %v6902 = vlaneseq
  %v6903 = vshrl.u32 %v6902, 7
  %v6904 = vsub.s32 %v6901, %v6903
  %v6905 = vrot.slane %v6891, %v6904
  %v6906 = vcombine.low %v6850, %v6866
  %v6907 = vcombine.high %v6850, %v6866
  %v6909 = vunpack.c.l.s4 1934713408
  %v6910 = vunpack.c.0.s8 %v6909
  %v6911 = vlaneseq
  %v6912 = vshrl.u32 %v6911, 7
  %v6913 = vsub.s32 %v6910, %v6912
  %v6914 = vrot.slane %v6906, %v6913
  %v6916 = vunpack.c.l.s4 1934713408
  %v6917 = vunpack.c.0.s8 %v6916
  %v6918 = vlaneseq
  %v6919 = vshrl.u32 %v6918, 7
  %v6920 = vsub.s32 %v6917, %v6919
  %v6921 = vrot.slane %v6907, %v6920
  %v6922 = vcombine.low %v6857, %v6873
  %v6923 = vcombine.high %v6857, %v6873
  %v6925 = vunpack.c.l.s4 1934713408
  %v6926 = vunpack.c.0.s8 %v6925
  %v6927 = vlaneseq
  %v6928 = vshrl.u32 %v6927, 7
  %v6929 = vsub.s32 %v6926, %v6928
  %v6930 = vrot.slane %v6922, %v6929
  %v6932 = vunpack.c.l.s4 1934713408
  %v6933 = vunpack.c.0.s8 %v6932
  %v6934 = vlaneseq
  %v6935 = vshrl.u32 %v6934, 7
  %v6936 = vsub.s32 %v6933, %v6935
  %v6937 = vrot.slane %v6923, %v6936
  %v6938 = vcombine.low %v6882, %v6898
  %v6939 = vcombine.high %v6882, %v6898
  %v6941 = vunpack.c.l.s4 1934713408
  %v6942 = vunpack.c.0.s8 %v6941
  %v6943 = vlaneseq
  %v6944 = vshrl.u32 %v6943, 7
  %v6945 = vsub.s32 %v6942, %v6944
  %v6946 = vrot.slane %v6938, %v6945
  %v6948 = vunpack.c.l.s4 1934713408
  %v6949 = vunpack.c.0.s8 %v6948
  %v6950 = vlaneseq
  %v6951 = vshrl.u32 %v6950, 7
  %v6952 = vsub.s32 %v6949, %v6951
  %v6953 = vrot.slane %v6939, %v6952
  %v6954 = vcombine.low %v6889, %v6905
  %v6955 = vcombine.high %v6889, %v6905
  %v6957 = vunpack.c.l.s4 1934713408
  %v6958 = vunpack.c.0.s8 %v6957
  %v6959 = vlaneseq
  %v6960 = vshrl.u32 %v6959, 7
  %v6961 = vsub.s32 %v6958, %v6960
  %v6962 = vrot.slane %v6954, %v6961
  %v6964 = vunpack.c.l.s4 1934713408
  %v6965 = vunpack.c.0.s8 %v6964
  %v6966 = vlaneseq
  %v6967 = vshrl.u32 %v6966, 7
  %v6968 = vsub.s32 %v6965, %v6967
  %v6969 = vrot.slane %v6955, %v6968
  %v6970 = vcombine.low %v6914, %v6946
  %v6971 = vcombine.high %v6914, %v6946
  %v6972 = vcombine.low %v6921, %v6953
  %v6973 = vcombine.high %v6921, %v6953
  %v6974 = vcombine.low %v6930, %v6962
  %v6975 = vcombine.high %v6930, %v6962
  %v6976 = vcombine.low %v6937, %v6969
  %v6977 = vcombine.high %v6937, %v6969
  %v6979 = vsel %vm380, %v5666, 0
  %v6982 = vsel %vm380, %v5802, 0
  %v6985 = vsel %vm380, %v6250, 0
  %v6988 = vsel %vm380, %v6386, 0
  %6990 = vmatprep.subr.mxu0 0.0
  %6991 = vmatpush1.xpose.msra.mxu0 0.0
  %6992 = vmatprep.subr.mxu0 0.0
  %6993 = vmatpush1.xpose.msra.mxu0 0.0
  %6994 = vmatprep.subr.mxu0 0.0
  %6995 = vmatpush1.xpose.msra.mxu0 0.0
  %6996 = vmatprep.subr.mxu0 0.0
  %6997 = vmatpush1.xpose.msra.mxu0 0.0
  %6998 = vmatprep.subr.mxu0 0.0
  %6999 = vmatpush1.xpose.msra.mxu0 0.0
  %7000 = vmatprep.subr.mxu0 0.0
  %7001 = vmatpush1.xpose.msra.mxu0 0.0
  %7002 = vmatprep.subr.mxu0 0.0
  %7003 = vmatpush1.xpose.msra.mxu0 0.0
  %7004 = vmatprep.subr.mxu0 0.0
  %7005 = vmatpush1.xpose.msra.mxu0 0.0
  %7006 = vmatprep.subr.mxu0 0.0
  %7007 = vmatpush1.xpose.msra.mxu0 0.0
  %7008 = vmatprep.subr.mxu0 0.0
  %7009 = vmatpush1.xpose.msra.mxu0 0.0
  %7010 = vmatprep.subr.mxu0 0.0
  %7011 = vmatpush1.xpose.msra.mxu0 0.0
  %7012 = vmatprep.subr.mxu0 0.0
  %7013 = vmatpush1.xpose.msra.mxu0 0.0
  %7014 = vmatprep.subr.mxu0 0.0
  %7015 = vmatpush1.xpose.msra.mxu0 0.0
  %7016 = vmatprep.subr.mxu0 0.0
  %7017 = vmatpush1.xpose.msra.mxu0 0.0
  %7018 = vmatprep.subr.mxu0 0.0
  %7019 = vmatpush1.xpose.msra.mxu0 %v6988
  %7020 = vmatprep.subr.mxu0 0.0
  %7021 = vmatpush1.xpose.msra.mxu0 %v6985
  %7022 = vmatprep.subr.mxu0 0.0
  %7023 = vmatpush2.xpose.msra.mxu0 0.0
  %7024 = vmatprep.subr.mxu0 0.0
  %7025 = vmatpush2.xpose.msra.mxu0 0.0
  %7026 = vmatprep.subr.mxu0 0.0
  %7027 = vmatpush2.xpose.msra.mxu0 0.0
  %7028 = vmatprep.subr.mxu0 0.0
  %7029 = vmatpush2.xpose.msra.mxu0 0.0
  %7030 = vmatprep.subr.mxu0 0.0
  %7031 = vmatpush2.xpose.msra.mxu0 0.0
  %7032 = vmatprep.subr.mxu0 0.0
  %7033 = vmatpush2.xpose.msra.mxu0 0.0
  %7034 = vmatprep.subr.mxu0 0.0
  %7035 = vmatpush2.xpose.msra.mxu0 0.0
  %7036 = vmatprep.subr.mxu0 0.0
  %7037 = vmatpush2.xpose.msra.mxu0 0.0
  %7038 = vmatprep.subr.mxu0 0.0
  %7039 = vmatpush2.xpose.msra.mxu0 0.0
  %7040 = vmatprep.subr.mxu0 0.0
  %7041 = vmatpush2.xpose.msra.mxu0 0.0
  %7042 = vmatprep.subr.mxu0 0.0
  %7043 = vmatpush2.xpose.msra.mxu0 0.0
  %7044 = vmatprep.subr.mxu0 0.0
  %7045 = vmatpush2.xpose.msra.mxu0 0.0
  %7046 = vmatprep.subr.mxu0 0.0
  %7047 = vmatpush2.xpose.msra.mxu0 0.0
  %7048 = vmatprep.subr.mxu0 0.0
  %7049 = vmatpush2.xpose.msra.mxu0 0.0
  %7050 = vmatprep.subr.mxu0 0.0
  %7051 = vmatpush2.xpose.msra.mxu0 0.0
  %7052 = vmatprep.subr.mxu0 0.0
  %7053 = vmatpush2.xpose.msra.mxu0 0.0
  %7054 = vmatprep.mubr.f32.mxu0 0.0
  %7055 = vmatmul.mubr.f32.gmra.mxu0 %v6979
  %v7056 = vpop.f32.mrf.mxu0
  %v7057 = vadd.f32 0.0, %v7056
  %v7058 = vpop.f32.mrf.mxu0
  %7059 = vmatprep.mubr.f32.mxu0 0.0
  %7060 = vmatmul.mubr.f32.gmra.mxu0 %v6982
  %v7061 = vpop.f32.mrf.mxu0
  %v7062 = vadd.f32 0.0, %v7061
  %v7063 = vpop.f32.mrf.mxu0
  %7064 = vdwg.mxu0
  %v7066 = vsel %vm380, %v5667, 0
  %v7069 = vsel %vm380, %v5803, 0
  %v7072 = vsel %vm380, %v6251, 0
  %v7075 = vsel %vm380, %v6387, 0
  %7077 = vmatprep.subr.mxu0 0.0
  %7078 = vmatpush1.xpose.msra.mxu0 0.0
  %7079 = vmatprep.subr.mxu0 0.0
  %7080 = vmatpush1.xpose.msra.mxu0 0.0
  %7081 = vmatprep.subr.mxu0 0.0
  %7082 = vmatpush1.xpose.msra.mxu0 0.0
  %7083 = vmatprep.subr.mxu0 0.0
  %7084 = vmatpush1.xpose.msra.mxu0 0.0
  %7085 = vmatprep.subr.mxu0 0.0
  %7086 = vmatpush1.xpose.msra.mxu0 0.0
  %7087 = vmatprep.subr.mxu0 0.0
  %7088 = vmatpush1.xpose.msra.mxu0 0.0
  %7089 = vmatprep.subr.mxu0 0.0
  %7090 = vmatpush1.xpose.msra.mxu0 0.0
  %7091 = vmatprep.subr.mxu0 0.0
  %7092 = vmatpush1.xpose.msra.mxu0 0.0
  %7093 = vmatprep.subr.mxu0 0.0
  %7094 = vmatpush1.xpose.msra.mxu0 0.0
  %7095 = vmatprep.subr.mxu0 0.0
  %7096 = vmatpush1.xpose.msra.mxu0 0.0
  %7097 = vmatprep.subr.mxu0 0.0
  %7098 = vmatpush1.xpose.msra.mxu0 0.0
  %7099 = vmatprep.subr.mxu0 0.0
  %7100 = vmatpush1.xpose.msra.mxu0 0.0
  %7101 = vmatprep.subr.mxu0 0.0
  %7102 = vmatpush1.xpose.msra.mxu0 0.0
  %7103 = vmatprep.subr.mxu0 0.0
  %7104 = vmatpush1.xpose.msra.mxu0 0.0
  %7105 = vmatprep.subr.mxu0 0.0
  %7106 = vmatpush1.xpose.msra.mxu0 %v7075
  %7107 = vmatprep.subr.mxu0 0.0
  %7108 = vmatpush1.xpose.msra.mxu0 %v7072
  %7109 = vmatprep.subr.mxu0 0.0
  %7110 = vmatpush2.xpose.msra.mxu0 0.0
  %7111 = vmatprep.subr.mxu0 0.0
  %7112 = vmatpush2.xpose.msra.mxu0 0.0
  %7113 = vmatprep.subr.mxu0 0.0
  %7114 = vmatpush2.xpose.msra.mxu0 0.0
  %7115 = vmatprep.subr.mxu0 0.0
  %7116 = vmatpush2.xpose.msra.mxu0 0.0
  %7117 = vmatprep.subr.mxu0 0.0
  %7118 = vmatpush2.xpose.msra.mxu0 0.0
  %7119 = vmatprep.subr.mxu0 0.0
  %7120 = vmatpush2.xpose.msra.mxu0 0.0
  %7121 = vmatprep.subr.mxu0 0.0
  %7122 = vmatpush2.xpose.msra.mxu0 0.0
  %7123 = vmatprep.subr.mxu0 0.0
  %7124 = vmatpush2.xpose.msra.mxu0 0.0
  %7125 = vmatprep.subr.mxu0 0.0
  %7126 = vmatpush2.xpose.msra.mxu0 0.0
  %7127 = vmatprep.subr.mxu0 0.0
  %7128 = vmatpush2.xpose.msra.mxu0 0.0
  %7129 = vmatprep.subr.mxu0 0.0
  %7130 = vmatpush2.xpose.msra.mxu0 0.0
  %7131 = vmatprep.subr.mxu0 0.0
  %7132 = vmatpush2.xpose.msra.mxu0 0.0
  %7133 = vmatprep.subr.mxu0 0.0
  %7134 = vmatpush2.xpose.msra.mxu0 0.0
  %7135 = vmatprep.subr.mxu0 0.0
  %7136 = vmatpush2.xpose.msra.mxu0 0.0
  %7137 = vmatprep.subr.mxu0 0.0
  %7138 = vmatpush2.xpose.msra.mxu0 0.0
  %7139 = vmatprep.subr.mxu0 0.0
  %7140 = vmatpush2.xpose.msra.mxu0 0.0
  %7141 = vmatprep.mubr.f32.mxu0 0.0
  %7142 = vmatmul.mubr.f32.gmra.mxu0 %v7066
  %v7143 = vpop.f32.mrf.mxu0
  %v7144 = vadd.f32 0.0, %v7143
  %v7145 = vpop.f32.mrf.mxu0
  %7146 = vmatprep.mubr.f32.mxu0 0.0
  %7147 = vmatmul.mubr.f32.gmra.mxu0 %v7069
  %v7148 = vpop.f32.mrf.mxu0
  %v7149 = vadd.f32 0.0, %v7148
  %v7150 = vpop.f32.mrf.mxu0
  %7151 = vdwg.mxu0
  %v7153 = vsel %vm380, %v5668, 0
  %v7156 = vsel %vm380, %v5804, 0
  %v7159 = vsel %vm380, %v6252, 0
  %v7162 = vsel %vm380, %v6388, 0
  %7164 = vmatprep.subr.mxu0 0.0
  %7165 = vmatpush1.xpose.msra.mxu0 0.0
  %7166 = vmatprep.subr.mxu0 0.0
  %7167 = vmatpush1.xpose.msra.mxu0 0.0
  %7168 = vmatprep.subr.mxu0 0.0
  %7169 = vmatpush1.xpose.msra.mxu0 0.0
  %7170 = vmatprep.subr.mxu0 0.0
  %7171 = vmatpush1.xpose.msra.mxu0 0.0
  %7172 = vmatprep.subr.mxu0 0.0
  %7173 = vmatpush1.xpose.msra.mxu0 0.0
  %7174 = vmatprep.subr.mxu0 0.0
  %7175 = vmatpush1.xpose.msra.mxu0 0.0
  %7176 = vmatprep.subr.mxu0 0.0
  %7177 = vmatpush1.xpose.msra.mxu0 0.0
  %7178 = vmatprep.subr.mxu0 0.0
  %7179 = vmatpush1.xpose.msra.mxu0 0.0
  %7180 = vmatprep.subr.mxu0 0.0
  %7181 = vmatpush1.xpose.msra.mxu0 0.0
  %7182 = vmatprep.subr.mxu0 0.0
  %7183 = vmatpush1.xpose.msra.mxu0 0.0
  %7184 = vmatprep.subr.mxu0 0.0
  %7185 = vmatpush1.xpose.msra.mxu0 0.0
  %7186 = vmatprep.subr.mxu0 0.0
  %7187 = vmatpush1.xpose.msra.mxu0 0.0
  %7188 = vmatprep.subr.mxu0 0.0
  %7189 = vmatpush1.xpose.msra.mxu0 0.0
  %7190 = vmatprep.subr.mxu0 0.0
  %7191 = vmatpush1.xpose.msra.mxu0 0.0
  %7192 = vmatprep.subr.mxu0 0.0
  %7193 = vmatpush1.xpose.msra.mxu0 %v7162
  %7194 = vmatprep.subr.mxu0 0.0
  %7195 = vmatpush1.xpose.msra.mxu0 %v7159
  %7196 = vmatprep.subr.mxu0 0.0
  %7197 = vmatpush2.xpose.msra.mxu0 0.0
  %7198 = vmatprep.subr.mxu0 0.0
  %7199 = vmatpush2.xpose.msra.mxu0 0.0
  %7200 = vmatprep.subr.mxu0 0.0
  %7201 = vmatpush2.xpose.msra.mxu0 0.0
  %7202 = vmatprep.subr.mxu0 0.0
  %7203 = vmatpush2.xpose.msra.mxu0 0.0
  %7204 = vmatprep.subr.mxu0 0.0
  %7205 = vmatpush2.xpose.msra.mxu0 0.0
  %7206 = vmatprep.subr.mxu0 0.0
  %7207 = vmatpush2.xpose.msra.mxu0 0.0
  %7208 = vmatprep.subr.mxu0 0.0
  %7209 = vmatpush2.xpose.msra.mxu0 0.0
  %7210 = vmatprep.subr.mxu0 0.0
  %7211 = vmatpush2.xpose.msra.mxu0 0.0
  %7212 = vmatprep.subr.mxu0 0.0
  %7213 = vmatpush2.xpose.msra.mxu0 0.0
  %7214 = vmatprep.subr.mxu0 0.0
  %7215 = vmatpush2.xpose.msra.mxu0 0.0
  %7216 = vmatprep.subr.mxu0 0.0
  %7217 = vmatpush2.xpose.msra.mxu0 0.0
  %7218 = vmatprep.subr.mxu0 0.0
  %7219 = vmatpush2.xpose.msra.mxu0 0.0
  %7220 = vmatprep.subr.mxu0 0.0
  %7221 = vmatpush2.xpose.msra.mxu0 0.0
  %7222 = vmatprep.subr.mxu0 0.0
  %7223 = vmatpush2.xpose.msra.mxu0 0.0
  %7224 = vmatprep.subr.mxu0 0.0
  %7225 = vmatpush2.xpose.msra.mxu0 0.0
  %7226 = vmatprep.subr.mxu0 0.0
  %7227 = vmatpush2.xpose.msra.mxu0 0.0
  %7228 = vmatprep.mubr.f32.mxu0 0.0
  %7229 = vmatmul.mubr.f32.gmra.mxu0 %v7153
  %v7230 = vpop.f32.mrf.mxu0
  %v7231 = vadd.f32 0.0, %v7230
  %v7232 = vpop.f32.mrf.mxu0
  %7233 = vmatprep.mubr.f32.mxu0 0.0
  %7234 = vmatmul.mubr.f32.gmra.mxu0 %v7156
  %v7235 = vpop.f32.mrf.mxu0
  %v7236 = vadd.f32 0.0, %v7235
  %v7237 = vpop.f32.mrf.mxu0
  %7238 = vdwg.mxu0
  %v7240 = vsel %vm380, %v5669, 0
  %v7243 = vsel %vm380, %v5805, 0
  %v7246 = vsel %vm380, %v6253, 0
  %v7249 = vsel %vm380, %v6389, 0
  %7251 = vmatprep.subr.mxu0 0.0
  %7252 = vmatpush1.xpose.msra.mxu0 0.0
  %7253 = vmatprep.subr.mxu0 0.0
  %7254 = vmatpush1.xpose.msra.mxu0 0.0
  %7255 = vmatprep.subr.mxu0 0.0
  %7256 = vmatpush1.xpose.msra.mxu0 0.0
  %7257 = vmatprep.subr.mxu0 0.0
  %7258 = vmatpush1.xpose.msra.mxu0 0.0
  %7259 = vmatprep.subr.mxu0 0.0
  %7260 = vmatpush1.xpose.msra.mxu0 0.0
  %7261 = vmatprep.subr.mxu0 0.0
  %7262 = vmatpush1.xpose.msra.mxu0 0.0
  %7263 = vmatprep.subr.mxu0 0.0
  %7264 = vmatpush1.xpose.msra.mxu0 0.0
  %7265 = vmatprep.subr.mxu0 0.0
  %7266 = vmatpush1.xpose.msra.mxu0 0.0
  %7267 = vmatprep.subr.mxu0 0.0
  %7268 = vmatpush1.xpose.msra.mxu0 0.0
  %7269 = vmatprep.subr.mxu0 0.0
  %7270 = vmatpush1.xpose.msra.mxu0 0.0
  %7271 = vmatprep.subr.mxu0 0.0
  %7272 = vmatpush1.xpose.msra.mxu0 0.0
  %7273 = vmatprep.subr.mxu0 0.0
  %7274 = vmatpush1.xpose.msra.mxu0 0.0
  %7275 = vmatprep.subr.mxu0 0.0
  %7276 = vmatpush1.xpose.msra.mxu0 0.0
  %7277 = vmatprep.subr.mxu0 0.0
  %7278 = vmatpush1.xpose.msra.mxu0 0.0
  %7279 = vmatprep.subr.mxu0 0.0
  %7280 = vmatpush1.xpose.msra.mxu0 %v7249
  %7281 = vmatprep.subr.mxu0 0.0
  %7282 = vmatpush1.xpose.msra.mxu0 %v7246
  %7283 = vmatprep.subr.mxu0 0.0
  %7284 = vmatpush2.xpose.msra.mxu0 0.0
  %7285 = vmatprep.subr.mxu0 0.0
  %7286 = vmatpush2.xpose.msra.mxu0 0.0
  %7287 = vmatprep.subr.mxu0 0.0
  %7288 = vmatpush2.xpose.msra.mxu0 0.0
  %7289 = vmatprep.subr.mxu0 0.0
  %7290 = vmatpush2.xpose.msra.mxu0 0.0
  %7291 = vmatprep.subr.mxu0 0.0
  %7292 = vmatpush2.xpose.msra.mxu0 0.0
  %7293 = vmatprep.subr.mxu0 0.0
  %7294 = vmatpush2.xpose.msra.mxu0 0.0
  %7295 = vmatprep.subr.mxu0 0.0
  %7296 = vmatpush2.xpose.msra.mxu0 0.0
  %7297 = vmatprep.subr.mxu0 0.0
  %7298 = vmatpush2.xpose.msra.mxu0 0.0
  %7299 = vmatprep.subr.mxu0 0.0
  %7300 = vmatpush2.xpose.msra.mxu0 0.0
  %7301 = vmatprep.subr.mxu0 0.0
  %7302 = vmatpush2.xpose.msra.mxu0 0.0
  %7303 = vmatprep.subr.mxu0 0.0
  %7304 = vmatpush2.xpose.msra.mxu0 0.0
  %7305 = vmatprep.subr.mxu0 0.0
  %7306 = vmatpush2.xpose.msra.mxu0 0.0
  %7307 = vmatprep.subr.mxu0 0.0
  %7308 = vmatpush2.xpose.msra.mxu0 0.0
  %7309 = vmatprep.subr.mxu0 0.0
  %7310 = vmatpush2.xpose.msra.mxu0 0.0
  %7311 = vmatprep.subr.mxu0 0.0
  %7312 = vmatpush2.xpose.msra.mxu0 0.0
  %7313 = vmatprep.subr.mxu0 0.0
  %7314 = vmatpush2.xpose.msra.mxu0 0.0
  %7315 = vmatprep.mubr.f32.mxu0 0.0
  %7316 = vmatmul.mubr.f32.gmra.mxu0 %v7240
  %v7317 = vpop.f32.mrf.mxu0
  %v7318 = vadd.f32 0.0, %v7317
  %v7319 = vpop.f32.mrf.mxu0
  %7320 = vmatprep.mubr.f32.mxu0 0.0
  %7321 = vmatmul.mubr.f32.gmra.mxu0 %v7243
  %v7322 = vpop.f32.mrf.mxu0
  %v7323 = vadd.f32 0.0, %v7322
  %v7324 = vpop.f32.mrf.mxu0
  %7325 = vdwg.mxu0
  %v7327 = vsel %vm380, %v5670, 0
  %v7330 = vsel %vm380, %v5806, 0
  %v7333 = vsel %vm380, %v6254, 0
  %v7336 = vsel %vm380, %v6390, 0
  %7338 = vmatprep.subr.mxu0 0.0
  %7339 = vmatpush1.xpose.msra.mxu0 0.0
  %7340 = vmatprep.subr.mxu0 0.0
  %7341 = vmatpush1.xpose.msra.mxu0 0.0
  %7342 = vmatprep.subr.mxu0 0.0
  %7343 = vmatpush1.xpose.msra.mxu0 0.0
  %7344 = vmatprep.subr.mxu0 0.0
  %7345 = vmatpush1.xpose.msra.mxu0 0.0
  %7346 = vmatprep.subr.mxu0 0.0
  %7347 = vmatpush1.xpose.msra.mxu0 0.0
  %7348 = vmatprep.subr.mxu0 0.0
  %7349 = vmatpush1.xpose.msra.mxu0 0.0
  %7350 = vmatprep.subr.mxu0 0.0
  %7351 = vmatpush1.xpose.msra.mxu0 0.0
  %7352 = vmatprep.subr.mxu0 0.0
  %7353 = vmatpush1.xpose.msra.mxu0 0.0
  %7354 = vmatprep.subr.mxu0 0.0
  %7355 = vmatpush1.xpose.msra.mxu0 0.0
  %7356 = vmatprep.subr.mxu0 0.0
  %7357 = vmatpush1.xpose.msra.mxu0 0.0
  %7358 = vmatprep.subr.mxu0 0.0
  %7359 = vmatpush1.xpose.msra.mxu0 0.0
  %7360 = vmatprep.subr.mxu0 0.0
  %7361 = vmatpush1.xpose.msra.mxu0 0.0
  %7362 = vmatprep.subr.mxu0 0.0
  %7363 = vmatpush1.xpose.msra.mxu0 0.0
  %7364 = vmatprep.subr.mxu0 0.0
  %7365 = vmatpush1.xpose.msra.mxu0 0.0
  %7366 = vmatprep.subr.mxu0 0.0
  %7367 = vmatpush1.xpose.msra.mxu0 %v7336
  %7368 = vmatprep.subr.mxu0 0.0
  %7369 = vmatpush1.xpose.msra.mxu0 %v7333
  %7370 = vmatprep.subr.mxu0 0.0
  %7371 = vmatpush2.xpose.msra.mxu0 0.0
  %7372 = vmatprep.subr.mxu0 0.0
  %7373 = vmatpush2.xpose.msra.mxu0 0.0
  %7374 = vmatprep.subr.mxu0 0.0
  %7375 = vmatpush2.xpose.msra.mxu0 0.0
  %7376 = vmatprep.subr.mxu0 0.0
  %7377 = vmatpush2.xpose.msra.mxu0 0.0
  %7378 = vmatprep.subr.mxu0 0.0
  %7379 = vmatpush2.xpose.msra.mxu0 0.0
  %7380 = vmatprep.subr.mxu0 0.0
  %7381 = vmatpush2.xpose.msra.mxu0 0.0
  %7382 = vmatprep.subr.mxu0 0.0
  %7383 = vmatpush2.xpose.msra.mxu0 0.0
  %7384 = vmatprep.subr.mxu0 0.0
  %7385 = vmatpush2.xpose.msra.mxu0 0.0
  %7386 = vmatprep.subr.mxu0 0.0
  %7387 = vmatpush2.xpose.msra.mxu0 0.0
  %7388 = vmatprep.subr.mxu0 0.0
  %7389 = vmatpush2.xpose.msra.mxu0 0.0
  %7390 = vmatprep.subr.mxu0 0.0
  %7391 = vmatpush2.xpose.msra.mxu0 0.0
  %7392 = vmatprep.subr.mxu0 0.0
  %7393 = vmatpush2.xpose.msra.mxu0 0.0
  %7394 = vmatprep.subr.mxu0 0.0
  %7395 = vmatpush2.xpose.msra.mxu0 0.0
  %7396 = vmatprep.subr.mxu0 0.0
  %7397 = vmatpush2.xpose.msra.mxu0 0.0
  %7398 = vmatprep.subr.mxu0 0.0
  %7399 = vmatpush2.xpose.msra.mxu0 0.0
  %7400 = vmatprep.subr.mxu0 0.0
  %7401 = vmatpush2.xpose.msra.mxu0 0.0
  %7402 = vmatprep.mubr.f32.mxu0 0.0
  %7403 = vmatmul.mubr.f32.gmra.mxu0 %v7327
  %v7404 = vpop.f32.mrf.mxu0
  %v7405 = vadd.f32 0.0, %v7404
  %v7406 = vpop.f32.mrf.mxu0
  %7407 = vmatprep.mubr.f32.mxu0 0.0
  %7408 = vmatmul.mubr.f32.gmra.mxu0 %v7330
  %v7409 = vpop.f32.mrf.mxu0
  %v7410 = vadd.f32 0.0, %v7409
  %v7411 = vpop.f32.mrf.mxu0
  %7412 = vdwg.mxu0
  %v7414 = vsel %vm380, %v5671, 0
  %v7417 = vsel %vm380, %v5807, 0
  %v7420 = vsel %vm380, %v6255, 0
  %v7423 = vsel %vm380, %v6391, 0
  %7425 = vmatprep.subr.mxu0 0.0
  %7426 = vmatpush1.xpose.msra.mxu0 0.0
  %7427 = vmatprep.subr.mxu0 0.0
  %7428 = vmatpush1.xpose.msra.mxu0 0.0
  %7429 = vmatprep.subr.mxu0 0.0
  %7430 = vmatpush1.xpose.msra.mxu0 0.0
  %7431 = vmatprep.subr.mxu0 0.0
  %7432 = vmatpush1.xpose.msra.mxu0 0.0
  %7433 = vmatprep.subr.mxu0 0.0
  %7434 = vmatpush1.xpose.msra.mxu0 0.0
  %7435 = vmatprep.subr.mxu0 0.0
  %7436 = vmatpush1.xpose.msra.mxu0 0.0
  %7437 = vmatprep.subr.mxu0 0.0
  %7438 = vmatpush1.xpose.msra.mxu0 0.0
  %7439 = vmatprep.subr.mxu0 0.0
  %7440 = vmatpush1.xpose.msra.mxu0 0.0
  %7441 = vmatprep.subr.mxu0 0.0
  %7442 = vmatpush1.xpose.msra.mxu0 0.0
  %7443 = vmatprep.subr.mxu0 0.0
  %7444 = vmatpush1.xpose.msra.mxu0 0.0
  %7445 = vmatprep.subr.mxu0 0.0
  %7446 = vmatpush1.xpose.msra.mxu0 0.0
  %7447 = vmatprep.subr.mxu0 0.0
  %7448 = vmatpush1.xpose.msra.mxu0 0.0
  %7449 = vmatprep.subr.mxu0 0.0
  %7450 = vmatpush1.xpose.msra.mxu0 0.0
  %7451 = vmatprep.subr.mxu0 0.0
  %7452 = vmatpush1.xpose.msra.mxu0 0.0
  %7453 = vmatprep.subr.mxu0 0.0
  %7454 = vmatpush1.xpose.msra.mxu0 %v7423
  %7455 = vmatprep.subr.mxu0 0.0
  %7456 = vmatpush1.xpose.msra.mxu0 %v7420
  %7457 = vmatprep.subr.mxu0 0.0
  %7458 = vmatpush2.xpose.msra.mxu0 0.0
  %7459 = vmatprep.subr.mxu0 0.0
  %7460 = vmatpush2.xpose.msra.mxu0 0.0
  %7461 = vmatprep.subr.mxu0 0.0
  %7462 = vmatpush2.xpose.msra.mxu0 0.0
  %7463 = vmatprep.subr.mxu0 0.0
  %7464 = vmatpush2.xpose.msra.mxu0 0.0
  %7465 = vmatprep.subr.mxu0 0.0
  %7466 = vmatpush2.xpose.msra.mxu0 0.0
  %7467 = vmatprep.subr.mxu0 0.0
  %7468 = vmatpush2.xpose.msra.mxu0 0.0
  %7469 = vmatprep.subr.mxu0 0.0
  %7470 = vmatpush2.xpose.msra.mxu0 0.0
  %7471 = vmatprep.subr.mxu0 0.0
  %7472 = vmatpush2.xpose.msra.mxu0 0.0
  %7473 = vmatprep.subr.mxu0 0.0
  %7474 = vmatpush2.xpose.msra.mxu0 0.0
  %7475 = vmatprep.subr.mxu0 0.0
  %7476 = vmatpush2.xpose.msra.mxu0 0.0
  %7477 = vmatprep.subr.mxu0 0.0
  %7478 = vmatpush2.xpose.msra.mxu0 0.0
  %7479 = vmatprep.subr.mxu0 0.0
  %7480 = vmatpush2.xpose.msra.mxu0 0.0
  %7481 = vmatprep.subr.mxu0 0.0
  %7482 = vmatpush2.xpose.msra.mxu0 0.0
  %7483 = vmatprep.subr.mxu0 0.0
  %7484 = vmatpush2.xpose.msra.mxu0 0.0
  %7485 = vmatprep.subr.mxu0 0.0
  %7486 = vmatpush2.xpose.msra.mxu0 0.0
  %7487 = vmatprep.subr.mxu0 0.0
  %7488 = vmatpush2.xpose.msra.mxu0 0.0
  %7489 = vmatprep.mubr.f32.mxu0 0.0
  %7490 = vmatmul.mubr.f32.gmra.mxu0 %v7414
  %v7491 = vpop.f32.mrf.mxu0
  %v7492 = vadd.f32 0.0, %v7491
  %v7493 = vpop.f32.mrf.mxu0
  %7494 = vmatprep.mubr.f32.mxu0 0.0
  %7495 = vmatmul.mubr.f32.gmra.mxu0 %v7417
  %v7496 = vpop.f32.mrf.mxu0
  %v7497 = vadd.f32 0.0, %v7496
  %v7498 = vpop.f32.mrf.mxu0
  %7499 = vdwg.mxu0
  %v7501 = vsel %vm380, %v5672, 0
  %v7504 = vsel %vm380, %v5808, 0
  %v7507 = vsel %vm380, %v6256, 0
  %v7510 = vsel %vm380, %v6392, 0
  %7512 = vmatprep.subr.mxu0 0.0
  %7513 = vmatpush1.xpose.msra.mxu0 0.0
  %7514 = vmatprep.subr.mxu0 0.0
  %7515 = vmatpush1.xpose.msra.mxu0 0.0
  %7516 = vmatprep.subr.mxu0 0.0
  %7517 = vmatpush1.xpose.msra.mxu0 0.0
  %7518 = vmatprep.subr.mxu0 0.0
  %7519 = vmatpush1.xpose.msra.mxu0 0.0
  %7520 = vmatprep.subr.mxu0 0.0
  %7521 = vmatpush1.xpose.msra.mxu0 0.0
  %7522 = vmatprep.subr.mxu0 0.0
  %7523 = vmatpush1.xpose.msra.mxu0 0.0
  %7524 = vmatprep.subr.mxu0 0.0
  %7525 = vmatpush1.xpose.msra.mxu0 0.0
  %7526 = vmatprep.subr.mxu0 0.0
  %7527 = vmatpush1.xpose.msra.mxu0 0.0
  %7528 = vmatprep.subr.mxu0 0.0
  %7529 = vmatpush1.xpose.msra.mxu0 0.0
  %7530 = vmatprep.subr.mxu0 0.0
  %7531 = vmatpush1.xpose.msra.mxu0 0.0
  %7532 = vmatprep.subr.mxu0 0.0
  %7533 = vmatpush1.xpose.msra.mxu0 0.0
  %7534 = vmatprep.subr.mxu0 0.0
  %7535 = vmatpush1.xpose.msra.mxu0 0.0
  %7536 = vmatprep.subr.mxu0 0.0
  %7537 = vmatpush1.xpose.msra.mxu0 0.0
  %7538 = vmatprep.subr.mxu0 0.0
  %7539 = vmatpush1.xpose.msra.mxu0 0.0
  %7540 = vmatprep.subr.mxu0 0.0
  %7541 = vmatpush1.xpose.msra.mxu0 %v7510
  %7542 = vmatprep.subr.mxu0 0.0
  %7543 = vmatpush1.xpose.msra.mxu0 %v7507
  %7544 = vmatprep.subr.mxu0 0.0
  %7545 = vmatpush2.xpose.msra.mxu0 0.0
  %7546 = vmatprep.subr.mxu0 0.0
  %7547 = vmatpush2.xpose.msra.mxu0 0.0
  %7548 = vmatprep.subr.mxu0 0.0
  %7549 = vmatpush2.xpose.msra.mxu0 0.0
  %7550 = vmatprep.subr.mxu0 0.0
  %7551 = vmatpush2.xpose.msra.mxu0 0.0
  %7552 = vmatprep.subr.mxu0 0.0
  %7553 = vmatpush2.xpose.msra.mxu0 0.0
  %7554 = vmatprep.subr.mxu0 0.0
  %7555 = vmatpush2.xpose.msra.mxu0 0.0
  %7556 = vmatprep.subr.mxu0 0.0
  %7557 = vmatpush2.xpose.msra.mxu0 0.0
  %7558 = vmatprep.subr.mxu0 0.0
  %7559 = vmatpush2.xpose.msra.mxu0 0.0
  %7560 = vmatprep.subr.mxu0 0.0
  %7561 = vmatpush2.xpose.msra.mxu0 0.0
  %7562 = vmatprep.subr.mxu0 0.0
  %7563 = vmatpush2.xpose.msra.mxu0 0.0
  %7564 = vmatprep.subr.mxu0 0.0
  %7565 = vmatpush2.xpose.msra.mxu0 0.0
  %7566 = vmatprep.subr.mxu0 0.0
  %7567 = vmatpush2.xpose.msra.mxu0 0.0
  %7568 = vmatprep.subr.mxu0 0.0
  %7569 = vmatpush2.xpose.msra.mxu0 0.0
  %7570 = vmatprep.subr.mxu0 0.0
  %7571 = vmatpush2.xpose.msra.mxu0 0.0
  %7572 = vmatprep.subr.mxu0 0.0
  %7573 = vmatpush2.xpose.msra.mxu0 0.0
  %7574 = vmatprep.subr.mxu0 0.0
  %7575 = vmatpush2.xpose.msra.mxu0 0.0
  %7576 = vmatprep.mubr.f32.mxu0 0.0
  %7577 = vmatmul.mubr.f32.gmra.mxu0 %v7501
  %v7578 = vpop.f32.mrf.mxu0
  %v7579 = vadd.f32 0.0, %v7578
  %v7580 = vpop.f32.mrf.mxu0
  %7581 = vmatprep.mubr.f32.mxu0 0.0
  %7582 = vmatmul.mubr.f32.gmra.mxu0 %v7504
  %v7583 = vpop.f32.mrf.mxu0
  %v7584 = vadd.f32 0.0, %v7583
  %v7585 = vpop.f32.mrf.mxu0
  %7586 = vdwg.mxu0
  %v7588 = vsel %vm380, %v5673, 0
  %v7591 = vsel %vm380, %v5809, 0
  %v7594 = vsel %vm380, %v6257, 0
  %v7597 = vsel %vm380, %v6393, 0
  %7599 = vmatprep.subr.mxu0 0.0
  %7600 = vmatpush1.xpose.msra.mxu0 0.0
  %7601 = vmatprep.subr.mxu0 0.0
  %7602 = vmatpush1.xpose.msra.mxu0 0.0
  %7603 = vmatprep.subr.mxu0 0.0
  %7604 = vmatpush1.xpose.msra.mxu0 0.0
  %7605 = vmatprep.subr.mxu0 0.0
  %7606 = vmatpush1.xpose.msra.mxu0 0.0
  %7607 = vmatprep.subr.mxu0 0.0
  %7608 = vmatpush1.xpose.msra.mxu0 0.0
  %7609 = vmatprep.subr.mxu0 0.0
  %7610 = vmatpush1.xpose.msra.mxu0 0.0
  %7611 = vmatprep.subr.mxu0 0.0
  %7612 = vmatpush1.xpose.msra.mxu0 0.0
  %7613 = vmatprep.subr.mxu0 0.0
  %7614 = vmatpush1.xpose.msra.mxu0 0.0
  %7615 = vmatprep.subr.mxu0 0.0
  %7616 = vmatpush1.xpose.msra.mxu0 0.0
  %7617 = vmatprep.subr.mxu0 0.0
  %7618 = vmatpush1.xpose.msra.mxu0 0.0
  %7619 = vmatprep.subr.mxu0 0.0
  %7620 = vmatpush1.xpose.msra.mxu0 0.0
  %7621 = vmatprep.subr.mxu0 0.0
  %7622 = vmatpush1.xpose.msra.mxu0 0.0
  %7623 = vmatprep.subr.mxu0 0.0
  %7624 = vmatpush1.xpose.msra.mxu0 0.0
  %7625 = vmatprep.subr.mxu0 0.0
  %7626 = vmatpush1.xpose.msra.mxu0 0.0
  %7627 = vmatprep.subr.mxu0 0.0
  %7628 = vmatpush1.xpose.msra.mxu0 %v7597
  %7629 = vmatprep.subr.mxu0 0.0
  %7630 = vmatpush1.xpose.msra.mxu0 %v7594
  %7631 = vmatprep.subr.mxu0 0.0
  %7632 = vmatpush2.xpose.msra.mxu0 0.0
  %7633 = vmatprep.subr.mxu0 0.0
  %7634 = vmatpush2.xpose.msra.mxu0 0.0
  %7635 = vmatprep.subr.mxu0 0.0
  %7636 = vmatpush2.xpose.msra.mxu0 0.0
  %7637 = vmatprep.subr.mxu0 0.0
  %7638 = vmatpush2.xpose.msra.mxu0 0.0
  %7639 = vmatprep.subr.mxu0 0.0
  %7640 = vmatpush2.xpose.msra.mxu0 0.0
  %7641 = vmatprep.subr.mxu0 0.0
  %7642 = vmatpush2.xpose.msra.mxu0 0.0
  %7643 = vmatprep.subr.mxu0 0.0
  %7644 = vmatpush2.xpose.msra.mxu0 0.0
  %7645 = vmatprep.subr.mxu0 0.0
  %7646 = vmatpush2.xpose.msra.mxu0 0.0
  %7647 = vmatprep.subr.mxu0 0.0
  %7648 = vmatpush2.xpose.msra.mxu0 0.0
  %7649 = vmatprep.subr.mxu0 0.0
  %7650 = vmatpush2.xpose.msra.mxu0 0.0
  %7651 = vmatprep.subr.mxu0 0.0
  %7652 = vmatpush2.xpose.msra.mxu0 0.0
  %7653 = vmatprep.subr.mxu0 0.0
  %7654 = vmatpush2.xpose.msra.mxu0 0.0
  %7655 = vmatprep.subr.mxu0 0.0
  %7656 = vmatpush2.xpose.msra.mxu0 0.0
  %7657 = vmatprep.subr.mxu0 0.0
  %7658 = vmatpush2.xpose.msra.mxu0 0.0
  %7659 = vmatprep.subr.mxu0 0.0
  %7660 = vmatpush2.xpose.msra.mxu0 0.0
  %7661 = vmatprep.subr.mxu0 0.0
  %7662 = vmatpush2.xpose.msra.mxu0 0.0
  %7663 = vmatprep.mubr.f32.mxu0 0.0
  %7664 = vmatmul.mubr.f32.gmra.mxu0 %v7588
  %v7665 = vpop.f32.mrf.mxu0
  %v7666 = vadd.f32 0.0, %v7665
  %v7667 = vpop.f32.mrf.mxu0
  %7668 = vmatprep.mubr.f32.mxu0 0.0
  %7669 = vmatmul.mubr.f32.gmra.mxu0 %v7591
  %v7670 = vpop.f32.mrf.mxu0
  %v7671 = vadd.f32 0.0, %v7670
  %v7672 = vpop.f32.mrf.mxu0
  %7673 = vdwg.mxu0
  %v7674 = vmul.f32 %v7057, 0.17677669
  %v7675 = vmul.f32 %v7062, 0.17677669
  %v7676 = vmul.f32 %v7144, 0.17677669
  %v7677 = vmul.f32 %v7149, 0.17677669
  %v7678 = vmul.f32 %v7231, 0.17677669
  %v7679 = vmul.f32 %v7236, 0.17677669
  %v7680 = vmul.f32 %v7318, 0.17677669
  %v7681 = vmul.f32 %v7323, 0.17677669
  %v7682 = vmul.f32 %v7405, 0.17677669
  %v7683 = vmul.f32 %v7410, 0.17677669
  %v7684 = vmul.f32 %v7492, 0.17677669
  %v7685 = vmul.f32 %v7497, 0.17677669
  %v7686 = vmul.f32 %v7579, 0.17677669
  %v7687 = vmul.f32 %v7584, 0.17677669
  %v7688 = vmul.f32 %v7666, 0.17677669
  %v7689 = vmul.f32 %v7671, 0.17677669
  %v7690 = vsel %vm3236, %v7674, -inf
  %7691 = vmax.xlane.f32.xlu0 %v7690
  %v7692 = vpop.xlane.xlu0 %7691
  %v7693 = vsel %vm3236, %v7675, -inf
  %7694 = vmax.xlane.f32.xlu0 %v7693
  %v7695 = vpop.xlane.xlu0 %7694
  %v7696 = vsel %vm3236, %v7676, -inf
  %7697 = vmax.xlane.f32.xlu0 %v7696
  %v7698 = vpop.xlane.xlu0 %7697
  %v7699 = vsel %vm3236, %v7677, -inf
  %7700 = vmax.xlane.f32.xlu0 %v7699
  %v7701 = vpop.xlane.xlu0 %7700
  %v7702 = vsel %vm3236, %v7678, -inf
  %7703 = vmax.xlane.f32.xlu0 %v7702
  %v7704 = vpop.xlane.xlu0 %7703
  %v7705 = vsel %vm3236, %v7679, -inf
  %7706 = vmax.xlane.f32.xlu0 %v7705
  %v7707 = vpop.xlane.xlu0 %7706
  %v7708 = vsel %vm3236, %v7680, -inf
  %7709 = vmax.xlane.f32.xlu0 %v7708
  %v7710 = vpop.xlane.xlu0 %7709
  %v7711 = vsel %vm3236, %v7681, -inf
  %7712 = vmax.xlane.f32.xlu0 %v7711
  %v7713 = vpop.xlane.xlu0 %7712
  %v7714 = vsel %vm3236, %v7682, -inf
  %7715 = vmax.xlane.f32.xlu0 %v7714
  %v7716 = vpop.xlane.xlu0 %7715
  %v7717 = vsel %vm3236, %v7683, -inf
  %7718 = vmax.xlane.f32.xlu0 %v7717
  %v7719 = vpop.xlane.xlu0 %7718
  %v7720 = vsel %vm3236, %v7684, -inf
  %7721 = vmax.xlane.f32.xlu0 %v7720
  %v7722 = vpop.xlane.xlu0 %7721
  %v7723 = vsel %vm3236, %v7685, -inf
  %7724 = vmax.xlane.f32.xlu0 %v7723
  %v7725 = vpop.xlane.xlu0 %7724
  %v7726 = vsel %vm3236, %v7686, -inf
  %7727 = vmax.xlane.f32.xlu0 %v7726
  %v7728 = vpop.xlane.xlu0 %7727
  %v7729 = vsel %vm3236, %v7687, -inf
  %7730 = vmax.xlane.f32.xlu0 %v7729
  %v7731 = vpop.xlane.xlu0 %7730
  %v7732 = vsel %vm3236, %v7688, -inf
  %7733 = vmax.xlane.f32.xlu0 %v7732
  %v7734 = vpop.xlane.xlu0 %7733
  %v7735 = vsel %vm3236, %v7689, -inf
  %7736 = vmax.xlane.f32.xlu0 %v7735
  %v7737 = vpop.xlane.xlu0 %7736
  %v7738 = vsub.f32 %v7674, %v7692
  %v7739 = vsub.f32 %v7675, %v7695
  %v7740 = vsub.f32 %v7676, %v7698
  %v7741 = vsub.f32 %v7677, %v7701
  %v7742 = vsub.f32 %v7678, %v7704
  %v7743 = vsub.f32 %v7679, %v7707
  %v7744 = vsub.f32 %v7680, %v7710
  %v7745 = vsub.f32 %v7681, %v7713
  %v7746 = vsub.f32 %v7682, %v7716
  %v7747 = vsub.f32 %v7683, %v7719
  %v7748 = vsub.f32 %v7684, %v7722
  %v7749 = vsub.f32 %v7685, %v7725
  %v7750 = vsub.f32 %v7686, %v7728
  %v7751 = vsub.f32 %v7687, %v7731
  %v7752 = vsub.f32 %v7688, %v7734
  %v7753 = vsub.f32 %v7689, %v7737
  %v7754 = vmul.f32 %v7738, 1.442695
  %v7755 = vpow.pop %v7754
  %v7756 = vmul.f32 %v7739, 1.442695
  %v7757 = vpow.pop %v7756
  %v7758 = vmul.f32 %v7740, 1.442695
  %v7759 = vpow.pop %v7758
  %v7760 = vmul.f32 %v7741, 1.442695
  %v7761 = vpow.pop %v7760
  %v7762 = vmul.f32 %v7742, 1.442695
  %v7763 = vpow.pop %v7762
  %v7764 = vmul.f32 %v7743, 1.442695
  %v7765 = vpow.pop %v7764
  %v7766 = vmul.f32 %v7744, 1.442695
  %v7767 = vpow.pop %v7766
  %v7768 = vmul.f32 %v7745, 1.442695
  %v7769 = vpow.pop %v7768
  %v7770 = vmul.f32 %v7746, 1.442695
  %v7771 = vpow.pop %v7770
  %v7772 = vmul.f32 %v7747, 1.442695
  %v7773 = vpow.pop %v7772
  %v7774 = vmul.f32 %v7748, 1.442695
  %v7775 = vpow.pop %v7774
  %v7776 = vmul.f32 %v7749, 1.442695
  %v7777 = vpow.pop %v7776
  %v7778 = vmul.f32 %v7750, 1.442695
  %v7779 = vpow.pop %v7778
  %v7780 = vmul.f32 %v7751, 1.442695
  %v7781 = vpow.pop %v7780
  %v7782 = vmul.f32 %v7752, 1.442695
  %v7783 = vpow.pop %v7782
  %v7784 = vmul.f32 %v7753, 1.442695
  %v7785 = vpow.pop %v7784
  %v7786 = vsel %vm3236, %v7755, 0.0
  %7787 = vadd.xlane.f32.xlu0 %v7786
  %v7788 = vpop.xlane.xlu0 %7787
  %v7789 = vsel %vm3236, %v7757, 0.0
  %7790 = vadd.xlane.f32.xlu0 %v7789
  %v7791 = vpop.xlane.xlu0 %7790
  %v7792 = vsel %vm3236, %v7759, 0.0
  %7793 = vadd.xlane.f32.xlu0 %v7792
  %v7794 = vpop.xlane.xlu0 %7793
  %v7795 = vsel %vm3236, %v7761, 0.0
  %7796 = vadd.xlane.f32.xlu0 %v7795
  %v7797 = vpop.xlane.xlu0 %7796
  %v7798 = vsel %vm3236, %v7763, 0.0
  %7799 = vadd.xlane.f32.xlu0 %v7798
  %v7800 = vpop.xlane.xlu0 %7799
  %v7801 = vsel %vm3236, %v7765, 0.0
  %7802 = vadd.xlane.f32.xlu0 %v7801
  %v7803 = vpop.xlane.xlu0 %7802
  %v7804 = vsel %vm3236, %v7767, 0.0
  %7805 = vadd.xlane.f32.xlu0 %v7804
  %v7806 = vpop.xlane.xlu0 %7805
  %v7807 = vsel %vm3236, %v7769, 0.0
  %7808 = vadd.xlane.f32.xlu0 %v7807
  %v7809 = vpop.xlane.xlu0 %7808
  %v7810 = vsel %vm3236, %v7771, 0.0
  %7811 = vadd.xlane.f32.xlu0 %v7810
  %v7812 = vpop.xlane.xlu0 %7811
  %v7813 = vsel %vm3236, %v7773, 0.0
  %7814 = vadd.xlane.f32.xlu0 %v7813
  %v7815 = vpop.xlane.xlu0 %7814
  %v7816 = vsel %vm3236, %v7775, 0.0
  %7817 = vadd.xlane.f32.xlu0 %v7816
  %v7818 = vpop.xlane.xlu0 %7817
  %v7819 = vsel %vm3236, %v7777, 0.0
  %7820 = vadd.xlane.f32.xlu0 %v7819
  %v7821 = vpop.xlane.xlu0 %7820
  %v7822 = vsel %vm3236, %v7779, 0.0
  %7823 = vadd.xlane.f32.xlu0 %v7822
  %v7824 = vpop.xlane.xlu0 %7823
  %v7825 = vsel %vm3236, %v7781, 0.0
  %7826 = vadd.xlane.f32.xlu0 %v7825
  %v7827 = vpop.xlane.xlu0 %7826
  %v7828 = vsel %vm3236, %v7783, 0.0
  %7829 = vadd.xlane.f32.xlu0 %v7828
  %v7830 = vpop.xlane.xlu0 %7829
  %v7831 = vsel %vm3236, %v7785, 0.0
  %7832 = vadd.xlane.f32.xlu0 %v7831
  %v7833 = vpop.xlane.xlu0 %7832
  %v7834 = vrcp.pop %v7788
  %v7835 = vmul.f32 %v7755, %v7834
  %v7836 = vrcp.pop %v7791
  %v7837 = vmul.f32 %v7757, %v7836
  %v7838 = vrcp.pop %v7794
  %v7839 = vmul.f32 %v7759, %v7838
  %v7840 = vrcp.pop %v7797
  %v7841 = vmul.f32 %v7761, %v7840
  %v7842 = vrcp.pop %v7800
  %v7843 = vmul.f32 %v7763, %v7842
  %v7844 = vrcp.pop %v7803
  %v7845 = vmul.f32 %v7765, %v7844
  %v7846 = vrcp.pop %v7806
  %v7847 = vmul.f32 %v7767, %v7846
  %v7848 = vrcp.pop %v7809
  %v7849 = vmul.f32 %v7769, %v7848
  %v7850 = vrcp.pop %v7812
  %v7851 = vmul.f32 %v7771, %v7850
  %v7852 = vrcp.pop %v7815
  %v7853 = vmul.f32 %v7773, %v7852
  %v7854 = vrcp.pop %v7818
  %v7855 = vmul.f32 %v7775, %v7854
  %v7856 = vrcp.pop %v7821
  %v7857 = vmul.f32 %v7777, %v7856
  %v7858 = vrcp.pop %v7824
  %v7859 = vmul.f32 %v7779, %v7858
  %v7860 = vrcp.pop %v7827
  %v7861 = vmul.f32 %v7781, %v7860
  %v7862 = vrcp.pop %v7830
  %v7863 = vmul.f32 %v7783, %v7862
  %v7864 = vrcp.pop %v7833
  %v7865 = vmul.f32 %v7785, %v7864
  %v7867 = vsel %vm3236, %v7835, 0
  %v7870 = vsel %vm3236, %v7837, 0
  %7872 = vmatprep.subr.mxu0 0.0
  %7873 = vmatpush1.msra.mxu0 0.0
  %7874 = vmatprep.subr.mxu0 0.0
  %7875 = vmatpush1.msra.mxu0 0.0
  %7876 = vmatprep.subr.mxu0 0.0
  %7877 = vmatpush1.msra.mxu0 0.0
  %7878 = vmatprep.subr.mxu0 0.0
  %7879 = vmatpush1.msra.mxu0 0.0
  %7880 = vmatprep.subr.mxu0 0.0
  %7881 = vmatpush1.msra.mxu0 0.0
  %7882 = vmatprep.subr.mxu0 0.0
  %7883 = vmatpush1.msra.mxu0 0.0
  %7884 = vmatprep.subr.mxu0 0.0
  %7885 = vmatpush1.msra.mxu0 0.0
  %7886 = vmatprep.subr.mxu0 0.0
  %7887 = vmatpush1.msra.mxu0 0.0
  %7888 = vmatprep.subr.mxu0 0.0
  %7889 = vmatpush1.msra.mxu0 0.0
  %7890 = vmatprep.subr.mxu0 0.0
  %7891 = vmatpush1.msra.mxu0 0.0
  %7892 = vmatprep.subr.mxu0 0.0
  %7893 = vmatpush1.msra.mxu0 0.0
  %7894 = vmatprep.subr.mxu0 0.0
  %7895 = vmatpush1.msra.mxu0 0.0
  %7896 = vmatprep.subr.mxu0 0.0
  %7897 = vmatpush1.msra.mxu0 0.0
  %7898 = vmatprep.subr.mxu0 0.0
  %7899 = vmatpush1.msra.mxu0 0.0
  %7900 = vmatprep.subr.mxu0 0.0
  %7901 = vmatpush1.msra.mxu0 %v6970
  %7902 = vmatprep.subr.mxu0 0.0
  %7903 = vmatpush1.msra.mxu0 %v6834
  %7904 = vmatprep.subr.mxu0 0.0
  %7905 = vmatpush2.msra.mxu0 0.0
  %7906 = vmatprep.subr.mxu0 0.0
  %7907 = vmatpush2.msra.mxu0 0.0
  %7908 = vmatprep.subr.mxu0 0.0
  %7909 = vmatpush2.msra.mxu0 0.0
  %7910 = vmatprep.subr.mxu0 0.0
  %7911 = vmatpush2.msra.mxu0 0.0
  %7912 = vmatprep.subr.mxu0 0.0
  %7913 = vmatpush2.msra.mxu0 0.0
  %7914 = vmatprep.subr.mxu0 0.0
  %7915 = vmatpush2.msra.mxu0 0.0
  %7916 = vmatprep.subr.mxu0 0.0
  %7917 = vmatpush2.msra.mxu0 0.0
  %7918 = vmatprep.subr.mxu0 0.0
  %7919 = vmatpush2.msra.mxu0 0.0
  %7920 = vmatprep.subr.mxu0 0.0
  %7921 = vmatpush2.msra.mxu0 0.0
  %7922 = vmatprep.subr.mxu0 0.0
  %7923 = vmatpush2.msra.mxu0 0.0
  %7924 = vmatprep.subr.mxu0 0.0
  %7925 = vmatpush2.msra.mxu0 0.0
  %7926 = vmatprep.subr.mxu0 0.0
  %7927 = vmatpush2.msra.mxu0 0.0
  %7928 = vmatprep.subr.mxu0 0.0
  %7929 = vmatpush2.msra.mxu0 0.0
  %7930 = vmatprep.subr.mxu0 0.0
  %7931 = vmatpush2.msra.mxu0 0.0
  %7932 = vmatprep.subr.mxu0 0.0
  %7933 = vmatpush2.msra.mxu0 0.0
  %7934 = vmatprep.subr.mxu0 0.0
  %7935 = vmatpush2.msra.mxu0 0.0
  %7936 = vmatprep.mubr.f32.mxu0 0.0
  %7937 = vmatmul.mubr.f32.gmra.mxu0 %v7867
  %v7938 = vpop.f32.mrf.mxu0
  %v7939 = vadd.f32 0.0, %v7938
  %v7940 = vpop.f32.mrf.mxu0
  %7941 = vmatprep.mubr.f32.mxu0 0.0
  %7942 = vmatmul.mubr.f32.gmra.mxu0 %v7870
  %v7943 = vpop.f32.mrf.mxu0
  %v7944 = vadd.f32 0.0, %v7943
  %v7945 = vpop.f32.mrf.mxu0
  %7946 = vdwg.mxu0
  %v7948 = vsel %vm3236, %v7839, 0
  %v7951 = vsel %vm3236, %v7841, 0
  %7953 = vmatprep.subr.mxu0 0.0
  %7954 = vmatpush1.msra.mxu0 0.0
  %7955 = vmatprep.subr.mxu0 0.0
  %7956 = vmatpush1.msra.mxu0 0.0
  %7957 = vmatprep.subr.mxu0 0.0
  %7958 = vmatpush1.msra.mxu0 0.0
  %7959 = vmatprep.subr.mxu0 0.0
  %7960 = vmatpush1.msra.mxu0 0.0
  %7961 = vmatprep.subr.mxu0 0.0
  %7962 = vmatpush1.msra.mxu0 0.0
  %7963 = vmatprep.subr.mxu0 0.0
  %7964 = vmatpush1.msra.mxu0 0.0
  %7965 = vmatprep.subr.mxu0 0.0
  %7966 = vmatpush1.msra.mxu0 0.0
  %7967 = vmatprep.subr.mxu0 0.0
  %7968 = vmatpush1.msra.mxu0 0.0
  %7969 = vmatprep.subr.mxu0 0.0
  %7970 = vmatpush1.msra.mxu0 0.0
  %7971 = vmatprep.subr.mxu0 0.0
  %7972 = vmatpush1.msra.mxu0 0.0
  %7973 = vmatprep.subr.mxu0 0.0
  %7974 = vmatpush1.msra.mxu0 0.0
  %7975 = vmatprep.subr.mxu0 0.0
  %7976 = vmatpush1.msra.mxu0 0.0
  %7977 = vmatprep.subr.mxu0 0.0
  %7978 = vmatpush1.msra.mxu0 0.0
  %7979 = vmatprep.subr.mxu0 0.0
  %7980 = vmatpush1.msra.mxu0 0.0
  %7981 = vmatprep.subr.mxu0 0.0
  %7982 = vmatpush1.msra.mxu0 %v6971
  %7983 = vmatprep.subr.mxu0 0.0
  %7984 = vmatpush1.msra.mxu0 %v6835
  %7985 = vmatprep.subr.mxu0 0.0
  %7986 = vmatpush2.msra.mxu0 0.0
  %7987 = vmatprep.subr.mxu0 0.0
  %7988 = vmatpush2.msra.mxu0 0.0
  %7989 = vmatprep.subr.mxu0 0.0
  %7990 = vmatpush2.msra.mxu0 0.0
  %7991 = vmatprep.subr.mxu0 0.0
  %7992 = vmatpush2.msra.mxu0 0.0
  %7993 = vmatprep.subr.mxu0 0.0
  %7994 = vmatpush2.msra.mxu0 0.0
  %7995 = vmatprep.subr.mxu0 0.0
  %7996 = vmatpush2.msra.mxu0 0.0
  %7997 = vmatprep.subr.mxu0 0.0
  %7998 = vmatpush2.msra.mxu0 0.0
  %7999 = vmatprep.subr.mxu0 0.0
  %8000 = vmatpush2.msra.mxu0 0.0
  %8001 = vmatprep.subr.mxu0 0.0
  %8002 = vmatpush2.msra.mxu0 0.0
  %8003 = vmatprep.subr.mxu0 0.0
  %8004 = vmatpush2.msra.mxu0 0.0
  %8005 = vmatprep.subr.mxu0 0.0
  %8006 = vmatpush2.msra.mxu0 0.0
  %8007 = vmatprep.subr.mxu0 0.0
  %8008 = vmatpush2.msra.mxu0 0.0
  %8009 = vmatprep.subr.mxu0 0.0
  %8010 = vmatpush2.msra.mxu0 0.0
  %8011 = vmatprep.subr.mxu0 0.0
  %8012 = vmatpush2.msra.mxu0 0.0
  %8013 = vmatprep.subr.mxu0 0.0
  %8014 = vmatpush2.msra.mxu0 0.0
  %8015 = vmatprep.subr.mxu0 0.0
  %8016 = vmatpush2.msra.mxu0 0.0
  %8017 = vmatprep.mubr.f32.mxu0 0.0
  %8018 = vmatmul.mubr.f32.gmra.mxu0 %v7948
  %v8019 = vpop.f32.mrf.mxu0
  %v8020 = vadd.f32 0.0, %v8019
  %v8021 = vpop.f32.mrf.mxu0
  %8022 = vmatprep.mubr.f32.mxu0 0.0
  %8023 = vmatmul.mubr.f32.gmra.mxu0 %v7951
  %v8024 = vpop.f32.mrf.mxu0
  %v8025 = vadd.f32 0.0, %v8024
  %v8026 = vpop.f32.mrf.mxu0
  %8027 = vdwg.mxu0
  %v8029 = vsel %vm3236, %v7843, 0
  %v8032 = vsel %vm3236, %v7845, 0
  %8034 = vmatprep.subr.mxu0 0.0
  %8035 = vmatpush1.msra.mxu0 0.0
  %8036 = vmatprep.subr.mxu0 0.0
  %8037 = vmatpush1.msra.mxu0 0.0
  %8038 = vmatprep.subr.mxu0 0.0
  %8039 = vmatpush1.msra.mxu0 0.0
  %8040 = vmatprep.subr.mxu0 0.0
  %8041 = vmatpush1.msra.mxu0 0.0
  %8042 = vmatprep.subr.mxu0 0.0
  %8043 = vmatpush1.msra.mxu0 0.0
  %8044 = vmatprep.subr.mxu0 0.0
  %8045 = vmatpush1.msra.mxu0 0.0
  %8046 = vmatprep.subr.mxu0 0.0
  %8047 = vmatpush1.msra.mxu0 0.0
  %8048 = vmatprep.subr.mxu0 0.0
  %8049 = vmatpush1.msra.mxu0 0.0
  %8050 = vmatprep.subr.mxu0 0.0
  %8051 = vmatpush1.msra.mxu0 0.0
  %8052 = vmatprep.subr.mxu0 0.0
  %8053 = vmatpush1.msra.mxu0 0.0
  %8054 = vmatprep.subr.mxu0 0.0
  %8055 = vmatpush1.msra.mxu0 0.0
  %8056 = vmatprep.subr.mxu0 0.0
  %8057 = vmatpush1.msra.mxu0 0.0
  %8058 = vmatprep.subr.mxu0 0.0
  %8059 = vmatpush1.msra.mxu0 0.0
  %8060 = vmatprep.subr.mxu0 0.0
  %8061 = vmatpush1.msra.mxu0 0.0
  %8062 = vmatprep.subr.mxu0 0.0
  %8063 = vmatpush1.msra.mxu0 %v6972
  %8064 = vmatprep.subr.mxu0 0.0
  %8065 = vmatpush1.msra.mxu0 %v6836
  %8066 = vmatprep.subr.mxu0 0.0
  %8067 = vmatpush2.msra.mxu0 0.0
  %8068 = vmatprep.subr.mxu0 0.0
  %8069 = vmatpush2.msra.mxu0 0.0
  %8070 = vmatprep.subr.mxu0 0.0
  %8071 = vmatpush2.msra.mxu0 0.0
  %8072 = vmatprep.subr.mxu0 0.0
  %8073 = vmatpush2.msra.mxu0 0.0
  %8074 = vmatprep.subr.mxu0 0.0
  %8075 = vmatpush2.msra.mxu0 0.0
  %8076 = vmatprep.subr.mxu0 0.0
  %8077 = vmatpush2.msra.mxu0 0.0
  %8078 = vmatprep.subr.mxu0 0.0
  %8079 = vmatpush2.msra.mxu0 0.0
  %8080 = vmatprep.subr.mxu0 0.0
  %8081 = vmatpush2.msra.mxu0 0.0
  %8082 = vmatprep.subr.mxu0 0.0
  %8083 = vmatpush2.msra.mxu0 0.0
  %8084 = vmatprep.subr.mxu0 0.0
  %8085 = vmatpush2.msra.mxu0 0.0
  %8086 = vmatprep.subr.mxu0 0.0
  %8087 = vmatpush2.msra.mxu0 0.0
  %8088 = vmatprep.subr.mxu0 0.0
  %8089 = vmatpush2.msra.mxu0 0.0
  %8090 = vmatprep.subr.mxu0 0.0
  %8091 = vmatpush2.msra.mxu0 0.0
  %8092 = vmatprep.subr.mxu0 0.0
  %8093 = vmatpush2.msra.mxu0 0.0
  %8094 = vmatprep.subr.mxu0 0.0
  %8095 = vmatpush2.msra.mxu0 0.0
  %8096 = vmatprep.subr.mxu0 0.0
  %8097 = vmatpush2.msra.mxu0 0.0
  %8098 = vmatprep.mubr.f32.mxu0 0.0
  %8099 = vmatmul.mubr.f32.gmra.mxu0 %v8029
  %v8100 = vpop.f32.mrf.mxu0
  %v8101 = vadd.f32 0.0, %v8100
  %v8102 = vpop.f32.mrf.mxu0
  %8103 = vmatprep.mubr.f32.mxu0 0.0
  %8104 = vmatmul.mubr.f32.gmra.mxu0 %v8032
  %v8105 = vpop.f32.mrf.mxu0
  %v8106 = vadd.f32 0.0, %v8105
  %v8107 = vpop.f32.mrf.mxu0
  %8108 = vdwg.mxu0
  %v8110 = vsel %vm3236, %v7847, 0
  %v8113 = vsel %vm3236, %v7849, 0
  %8115 = vmatprep.subr.mxu0 0.0
  %8116 = vmatpush1.msra.mxu0 0.0
  %8117 = vmatprep.subr.mxu0 0.0
  %8118 = vmatpush1.msra.mxu0 0.0
  %8119 = vmatprep.subr.mxu0 0.0
  %8120 = vmatpush1.msra.mxu0 0.0
  %8121 = vmatprep.subr.mxu0 0.0
  %8122 = vmatpush1.msra.mxu0 0.0
  %8123 = vmatprep.subr.mxu0 0.0
  %8124 = vmatpush1.msra.mxu0 0.0
  %8125 = vmatprep.subr.mxu0 0.0
  %8126 = vmatpush1.msra.mxu0 0.0
  %8127 = vmatprep.subr.mxu0 0.0
  %8128 = vmatpush1.msra.mxu0 0.0
  %8129 = vmatprep.subr.mxu0 0.0
  %8130 = vmatpush1.msra.mxu0 0.0
  %8131 = vmatprep.subr.mxu0 0.0
  %8132 = vmatpush1.msra.mxu0 0.0
  %8133 = vmatprep.subr.mxu0 0.0
  %8134 = vmatpush1.msra.mxu0 0.0
  %8135 = vmatprep.subr.mxu0 0.0
  %8136 = vmatpush1.msra.mxu0 0.0
  %8137 = vmatprep.subr.mxu0 0.0
  %8138 = vmatpush1.msra.mxu0 0.0
  %8139 = vmatprep.subr.mxu0 0.0
  %8140 = vmatpush1.msra.mxu0 0.0
  %8141 = vmatprep.subr.mxu0 0.0
  %8142 = vmatpush1.msra.mxu0 0.0
  %8143 = vmatprep.subr.mxu0 0.0
  %8144 = vmatpush1.msra.mxu0 %v6973
  %8145 = vmatprep.subr.mxu0 0.0
  %8146 = vmatpush1.msra.mxu0 %v6837
  %8147 = vmatprep.subr.mxu0 0.0
  %8148 = vmatpush2.msra.mxu0 0.0
  %8149 = vmatprep.subr.mxu0 0.0
  %8150 = vmatpush2.msra.mxu0 0.0
  %8151 = vmatprep.subr.mxu0 0.0
  %8152 = vmatpush2.msra.mxu0 0.0
  %8153 = vmatprep.subr.mxu0 0.0
  %8154 = vmatpush2.msra.mxu0 0.0
  %8155 = vmatprep.subr.mxu0 0.0
  %8156 = vmatpush2.msra.mxu0 0.0
  %8157 = vmatprep.subr.mxu0 0.0
  %8158 = vmatpush2.msra.mxu0 0.0
  %8159 = vmatprep.subr.mxu0 0.0
  %8160 = vmatpush2.msra.mxu0 0.0
  %8161 = vmatprep.subr.mxu0 0.0
  %8162 = vmatpush2.msra.mxu0 0.0
  %8163 = vmatprep.subr.mxu0 0.0
  %8164 = vmatpush2.msra.mxu0 0.0
  %8165 = vmatprep.subr.mxu0 0.0
  %8166 = vmatpush2.msra.mxu0 0.0
  %8167 = vmatprep.subr.mxu0 0.0
  %8168 = vmatpush2.msra.mxu0 0.0
  %8169 = vmatprep.subr.mxu0 0.0
  %8170 = vmatpush2.msra.mxu0 0.0
  %8171 = vmatprep.subr.mxu0 0.0
  %8172 = vmatpush2.msra.mxu0 0.0
  %8173 = vmatprep.subr.mxu0 0.0
  %8174 = vmatpush2.msra.mxu0 0.0
  %8175 = vmatprep.subr.mxu0 0.0
  %8176 = vmatpush2.msra.mxu0 0.0
  %8177 = vmatprep.subr.mxu0 0.0
  %8178 = vmatpush2.msra.mxu0 0.0
  %8179 = vmatprep.mubr.f32.mxu0 0.0
  %8180 = vmatmul.mubr.f32.gmra.mxu0 %v8110
  %v8181 = vpop.f32.mrf.mxu0
  %v8182 = vadd.f32 0.0, %v8181
  %v8183 = vpop.f32.mrf.mxu0
  %8184 = vmatprep.mubr.f32.mxu0 0.0
  %8185 = vmatmul.mubr.f32.gmra.mxu0 %v8113
  %v8186 = vpop.f32.mrf.mxu0
  %v8187 = vadd.f32 0.0, %v8186
  %v8188 = vpop.f32.mrf.mxu0
  %8189 = vdwg.mxu0
  %v8191 = vsel %vm3236, %v7851, 0
  %v8194 = vsel %vm3236, %v7853, 0
  %8196 = vmatprep.subr.mxu0 0.0
  %8197 = vmatpush1.msra.mxu0 0.0
  %8198 = vmatprep.subr.mxu0 0.0
  %8199 = vmatpush1.msra.mxu0 0.0
  %8200 = vmatprep.subr.mxu0 0.0
  %8201 = vmatpush1.msra.mxu0 0.0
  %8202 = vmatprep.subr.mxu0 0.0
  %8203 = vmatpush1.msra.mxu0 0.0
  %8204 = vmatprep.subr.mxu0 0.0
  %8205 = vmatpush1.msra.mxu0 0.0
  %8206 = vmatprep.subr.mxu0 0.0
  %8207 = vmatpush1.msra.mxu0 0.0
  %8208 = vmatprep.subr.mxu0 0.0
  %8209 = vmatpush1.msra.mxu0 0.0
  %8210 = vmatprep.subr.mxu0 0.0
  %8211 = vmatpush1.msra.mxu0 0.0
  %8212 = vmatprep.subr.mxu0 0.0
  %8213 = vmatpush1.msra.mxu0 0.0
  %8214 = vmatprep.subr.mxu0 0.0
  %8215 = vmatpush1.msra.mxu0 0.0
  %8216 = vmatprep.subr.mxu0 0.0
  %8217 = vmatpush1.msra.mxu0 0.0
  %8218 = vmatprep.subr.mxu0 0.0
  %8219 = vmatpush1.msra.mxu0 0.0
  %8220 = vmatprep.subr.mxu0 0.0
  %8221 = vmatpush1.msra.mxu0 0.0
  %8222 = vmatprep.subr.mxu0 0.0
  %8223 = vmatpush1.msra.mxu0 0.0
  %8224 = vmatprep.subr.mxu0 0.0
  %8225 = vmatpush1.msra.mxu0 %v6974
  %8226 = vmatprep.subr.mxu0 0.0
  %8227 = vmatpush1.msra.mxu0 %v6838
  %8228 = vmatprep.subr.mxu0 0.0
  %8229 = vmatpush2.msra.mxu0 0.0
  %8230 = vmatprep.subr.mxu0 0.0
  %8231 = vmatpush2.msra.mxu0 0.0
  %8232 = vmatprep.subr.mxu0 0.0
  %8233 = vmatpush2.msra.mxu0 0.0
  %8234 = vmatprep.subr.mxu0 0.0
  %8235 = vmatpush2.msra.mxu0 0.0
  %8236 = vmatprep.subr.mxu0 0.0
  %8237 = vmatpush2.msra.mxu0 0.0
  %8238 = vmatprep.subr.mxu0 0.0
  %8239 = vmatpush2.msra.mxu0 0.0
  %8240 = vmatprep.subr.mxu0 0.0
  %8241 = vmatpush2.msra.mxu0 0.0
  %8242 = vmatprep.subr.mxu0 0.0
  %8243 = vmatpush2.msra.mxu0 0.0
  %8244 = vmatprep.subr.mxu0 0.0
  %8245 = vmatpush2.msra.mxu0 0.0
  %8246 = vmatprep.subr.mxu0 0.0
  %8247 = vmatpush2.msra.mxu0 0.0
  %8248 = vmatprep.subr.mxu0 0.0
  %8249 = vmatpush2.msra.mxu0 0.0
  %8250 = vmatprep.subr.mxu0 0.0
  %8251 = vmatpush2.msra.mxu0 0.0
  %8252 = vmatprep.subr.mxu0 0.0
  %8253 = vmatpush2.msra.mxu0 0.0
  %8254 = vmatprep.subr.mxu0 0.0
  %8255 = vmatpush2.msra.mxu0 0.0
  %8256 = vmatprep.subr.mxu0 0.0
  %8257 = vmatpush2.msra.mxu0 0.0
  %8258 = vmatprep.subr.mxu0 0.0
  %8259 = vmatpush2.msra.mxu0 0.0
  %8260 = vmatprep.mubr.f32.mxu0 0.0
  %8261 = vmatmul.mubr.f32.gmra.mxu0 %v8191
  %v8262 = vpop.f32.mrf.mxu0
  %v8263 = vadd.f32 0.0, %v8262
  %v8264 = vpop.f32.mrf.mxu0
  %8265 = vmatprep.mubr.f32.mxu0 0.0
  %8266 = vmatmul.mubr.f32.gmra.mxu0 %v8194
  %v8267 = vpop.f32.mrf.mxu0
  %v8268 = vadd.f32 0.0, %v8267
  %v8269 = vpop.f32.mrf.mxu0
  %8270 = vdwg.mxu0
  %v8272 = vsel %vm3236, %v7855, 0
  %v8275 = vsel %vm3236, %v7857, 0
  %8277 = vmatprep.subr.mxu0 0.0
  %8278 = vmatpush1.msra.mxu0 0.0
  %8279 = vmatprep.subr.mxu0 0.0
  %8280 = vmatpush1.msra.mxu0 0.0
  %8281 = vmatprep.subr.mxu0 0.0
  %8282 = vmatpush1.msra.mxu0 0.0
  %8283 = vmatprep.subr.mxu0 0.0
  %8284 = vmatpush1.msra.mxu0 0.0
  %8285 = vmatprep.subr.mxu0 0.0
  %8286 = vmatpush1.msra.mxu0 0.0
  %8287 = vmatprep.subr.mxu0 0.0
  %8288 = vmatpush1.msra.mxu0 0.0
  %8289 = vmatprep.subr.mxu0 0.0
  %8290 = vmatpush1.msra.mxu0 0.0
  %8291 = vmatprep.subr.mxu0 0.0
  %8292 = vmatpush1.msra.mxu0 0.0
  %8293 = vmatprep.subr.mxu0 0.0
  %8294 = vmatpush1.msra.mxu0 0.0
  %8295 = vmatprep.subr.mxu0 0.0
  %8296 = vmatpush1.msra.mxu0 0.0
  %8297 = vmatprep.subr.mxu0 0.0
  %8298 = vmatpush1.msra.mxu0 0.0
  %8299 = vmatprep.subr.mxu0 0.0
  %8300 = vmatpush1.msra.mxu0 0.0
  %8301 = vmatprep.subr.mxu0 0.0
  %8302 = vmatpush1.msra.mxu0 0.0
  %8303 = vmatprep.subr.mxu0 0.0
  %8304 = vmatpush1.msra.mxu0 0.0
  %8305 = vmatprep.subr.mxu0 0.0
  %8306 = vmatpush1.msra.mxu0 %v6975
  %8307 = vmatprep.subr.mxu0 0.0
  %8308 = vmatpush1.msra.mxu0 %v6839
  %8309 = vmatprep.subr.mxu0 0.0
  %8310 = vmatpush2.msra.mxu0 0.0
  %8311 = vmatprep.subr.mxu0 0.0
  %8312 = vmatpush2.msra.mxu0 0.0
  %8313 = vmatprep.subr.mxu0 0.0
  %8314 = vmatpush2.msra.mxu0 0.0
  %8315 = vmatprep.subr.mxu0 0.0
  %8316 = vmatpush2.msra.mxu0 0.0
  %8317 = vmatprep.subr.mxu0 0.0
  %8318 = vmatpush2.msra.mxu0 0.0
  %8319 = vmatprep.subr.mxu0 0.0
  %8320 = vmatpush2.msra.mxu0 0.0
  %8321 = vmatprep.subr.mxu0 0.0
  %8322 = vmatpush2.msra.mxu0 0.0
  %8323 = vmatprep.subr.mxu0 0.0
  %8324 = vmatpush2.msra.mxu0 0.0
  %8325 = vmatprep.subr.mxu0 0.0
  %8326 = vmatpush2.msra.mxu0 0.0
  %8327 = vmatprep.subr.mxu0 0.0
  %8328 = vmatpush2.msra.mxu0 0.0
  %8329 = vmatprep.subr.mxu0 0.0
  %8330 = vmatpush2.msra.mxu0 0.0
  %8331 = vmatprep.subr.mxu0 0.0
  %8332 = vmatpush2.msra.mxu0 0.0
  %8333 = vmatprep.subr.mxu0 0.0
  %8334 = vmatpush2.msra.mxu0 0.0
  %8335 = vmatprep.subr.mxu0 0.0
  %8336 = vmatpush2.msra.mxu0 0.0
  %8337 = vmatprep.subr.mxu0 0.0
  %8338 = vmatpush2.msra.mxu0 0.0
  %8339 = vmatprep.subr.mxu0 0.0
  %8340 = vmatpush2.msra.mxu0 0.0
  %8341 = vmatprep.mubr.f32.mxu0 0.0
  %8342 = vmatmul.mubr.f32.gmra.mxu0 %v8272
  %v8343 = vpop.f32.mrf.mxu0
  %v8344 = vadd.f32 0.0, %v8343
  %v8345 = vpop.f32.mrf.mxu0
  %8346 = vmatprep.mubr.f32.mxu0 0.0
  %8347 = vmatmul.mubr.f32.gmra.mxu0 %v8275
  %v8348 = vpop.f32.mrf.mxu0
  %v8349 = vadd.f32 0.0, %v8348
  %v8350 = vpop.f32.mrf.mxu0
  %8351 = vdwg.mxu0
  %v8353 = vsel %vm3236, %v7859, 0
  %v8356 = vsel %vm3236, %v7861, 0
  %8358 = vmatprep.subr.mxu0 0.0
  %8359 = vmatpush1.msra.mxu0 0.0
  %8360 = vmatprep.subr.mxu0 0.0
  %8361 = vmatpush1.msra.mxu0 0.0
  %8362 = vmatprep.subr.mxu0 0.0
  %8363 = vmatpush1.msra.mxu0 0.0
  %8364 = vmatprep.subr.mxu0 0.0
  %8365 = vmatpush1.msra.mxu0 0.0
  %8366 = vmatprep.subr.mxu0 0.0
  %8367 = vmatpush1.msra.mxu0 0.0
  %8368 = vmatprep.subr.mxu0 0.0
  %8369 = vmatpush1.msra.mxu0 0.0
  %8370 = vmatprep.subr.mxu0 0.0
  %8371 = vmatpush1.msra.mxu0 0.0
  %8372 = vmatprep.subr.mxu0 0.0
  %8373 = vmatpush1.msra.mxu0 0.0
  %8374 = vmatprep.subr.mxu0 0.0
  %8375 = vmatpush1.msra.mxu0 0.0
  %8376 = vmatprep.subr.mxu0 0.0
  %8377 = vmatpush1.msra.mxu0 0.0
  %8378 = vmatprep.subr.mxu0 0.0
  %8379 = vmatpush1.msra.mxu0 0.0
  %8380 = vmatprep.subr.mxu0 0.0
  %8381 = vmatpush1.msra.mxu0 0.0
  %8382 = vmatprep.subr.mxu0 0.0
  %8383 = vmatpush1.msra.mxu0 0.0
  %8384 = vmatprep.subr.mxu0 0.0
  %8385 = vmatpush1.msra.mxu0 0.0
  %8386 = vmatprep.subr.mxu0 0.0
  %8387 = vmatpush1.msra.mxu0 %v6976
  %8388 = vmatprep.subr.mxu0 0.0
  %8389 = vmatpush1.msra.mxu0 %v6840
  %8390 = vmatprep.subr.mxu0 0.0
  %8391 = vmatpush2.msra.mxu0 0.0
  %8392 = vmatprep.subr.mxu0 0.0
  %8393 = vmatpush2.msra.mxu0 0.0
  %8394 = vmatprep.subr.mxu0 0.0
  %8395 = vmatpush2.msra.mxu0 0.0
  %8396 = vmatprep.subr.mxu0 0.0
  %8397 = vmatpush2.msra.mxu0 0.0
  %8398 = vmatprep.subr.mxu0 0.0
  %8399 = vmatpush2.msra.mxu0 0.0
  %8400 = vmatprep.subr.mxu0 0.0
  %8401 = vmatpush2.msra.mxu0 0.0
  %8402 = vmatprep.subr.mxu0 0.0
  %8403 = vmatpush2.msra.mxu0 0.0
  %8404 = vmatprep.subr.mxu0 0.0
  %8405 = vmatpush2.msra.mxu0 0.0
  %8406 = vmatprep.subr.mxu0 0.0
  %8407 = vmatpush2.msra.mxu0 0.0
  %8408 = vmatprep.subr.mxu0 0.0
  %8409 = vmatpush2.msra.mxu0 0.0
  %8410 = vmatprep.subr.mxu0 0.0
  %8411 = vmatpush2.msra.mxu0 0.0
  %8412 = vmatprep.subr.mxu0 0.0
  %8413 = vmatpush2.msra.mxu0 0.0
  %8414 = vmatprep.subr.mxu0 0.0
  %8415 = vmatpush2.msra.mxu0 0.0
  %8416 = vmatprep.subr.mxu0 0.0
  %8417 = vmatpush2.msra.mxu0 0.0
  %8418 = vmatprep.subr.mxu0 0.0
  %8419 = vmatpush2.msra.mxu0 0.0
  %8420 = vmatprep.subr.mxu0 0.0
  %8421 = vmatpush2.msra.mxu0 0.0
  %8422 = vmatprep.mubr.f32.mxu0 0.0
  %8423 = vmatmul.mubr.f32.gmra.mxu0 %v8353
  %v8424 = vpop.f32.mrf.mxu0
  %v8425 = vadd.f32 0.0, %v8424
  %v8426 = vpop.f32.mrf.mxu0
  %8427 = vmatprep.mubr.f32.mxu0 0.0
  %8428 = vmatmul.mubr.f32.gmra.mxu0 %v8356
  %v8429 = vpop.f32.mrf.mxu0
  %v8430 = vadd.f32 0.0, %v8429
  %v8431 = vpop.f32.mrf.mxu0
  %8432 = vdwg.mxu0
  %v8434 = vsel %vm3236, %v7863, 0
  %v8437 = vsel %vm3236, %v7865, 0
  %8439 = vmatprep.subr.mxu0 0.0
  %8440 = vmatpush1.msra.mxu0 0.0
  %8441 = vmatprep.subr.mxu0 0.0
  %8442 = vmatpush1.msra.mxu0 0.0
  %8443 = vmatprep.subr.mxu0 0.0
  %8444 = vmatpush1.msra.mxu0 0.0
  %8445 = vmatprep.subr.mxu0 0.0
  %8446 = vmatpush1.msra.mxu0 0.0
  %8447 = vmatprep.subr.mxu0 0.0
  %8448 = vmatpush1.msra.mxu0 0.0
  %8449 = vmatprep.subr.mxu0 0.0
  %8450 = vmatpush1.msra.mxu0 0.0
  %8451 = vmatprep.subr.mxu0 0.0
  %8452 = vmatpush1.msra.mxu0 0.0
  %8453 = vmatprep.subr.mxu0 0.0
  %8454 = vmatpush1.msra.mxu0 0.0
  %8455 = vmatprep.subr.mxu0 0.0
  %8456 = vmatpush1.msra.mxu0 0.0
  %8457 = vmatprep.subr.mxu0 0.0
  %8458 = vmatpush1.msra.mxu0 0.0
  %8459 = vmatprep.subr.mxu0 0.0
  %8460 = vmatpush1.msra.mxu0 0.0
  %8461 = vmatprep.subr.mxu0 0.0
  %8462 = vmatpush1.msra.mxu0 0.0
  %8463 = vmatprep.subr.mxu0 0.0
  %8464 = vmatpush1.msra.mxu0 0.0
  %8465 = vmatprep.subr.mxu0 0.0
  %8466 = vmatpush1.msra.mxu0 0.0
  %8467 = vmatprep.subr.mxu0 0.0
  %8468 = vmatpush1.msra.mxu0 %v6977
  %8469 = vmatprep.subr.mxu0 0.0
  %8470 = vmatpush1.msra.mxu0 %v6841
  %8471 = vmatprep.subr.mxu0 0.0
  %8472 = vmatpush2.msra.mxu0 0.0
  %8473 = vmatprep.subr.mxu0 0.0
  %8474 = vmatpush2.msra.mxu0 0.0
  %8475 = vmatprep.subr.mxu0 0.0
  %8476 = vmatpush2.msra.mxu0 0.0
  %8477 = vmatprep.subr.mxu0 0.0
  %8478 = vmatpush2.msra.mxu0 0.0
  %8479 = vmatprep.subr.mxu0 0.0
  %8480 = vmatpush2.msra.mxu0 0.0
  %8481 = vmatprep.subr.mxu0 0.0
  %8482 = vmatpush2.msra.mxu0 0.0
  %8483 = vmatprep.subr.mxu0 0.0
  %8484 = vmatpush2.msra.mxu0 0.0
  %8485 = vmatprep.subr.mxu0 0.0
  %8486 = vmatpush2.msra.mxu0 0.0
  %8487 = vmatprep.subr.mxu0 0.0
  %8488 = vmatpush2.msra.mxu0 0.0
  %8489 = vmatprep.subr.mxu0 0.0
  %8490 = vmatpush2.msra.mxu0 0.0
  %8491 = vmatprep.subr.mxu0 0.0
  %8492 = vmatpush2.msra.mxu0 0.0
  %8493 = vmatprep.subr.mxu0 0.0
  %8494 = vmatpush2.msra.mxu0 0.0
  %8495 = vmatprep.subr.mxu0 0.0
  %8496 = vmatpush2.msra.mxu0 0.0
  %8497 = vmatprep.subr.mxu0 0.0
  %8498 = vmatpush2.msra.mxu0 0.0
  %8499 = vmatprep.subr.mxu0 0.0
  %8500 = vmatpush2.msra.mxu0 0.0
  %8501 = vmatprep.subr.mxu0 0.0
  %8502 = vmatpush2.msra.mxu0 0.0
  %8503 = vmatprep.mubr.f32.mxu0 0.0
  %8504 = vmatmul.mubr.f32.gmra.mxu0 %v8434
  %v8505 = vpop.f32.mrf.mxu0
  %v8506 = vadd.f32 0.0, %v8505
  %v8507 = vpop.f32.mrf.mxu0
  %8508 = vmatprep.mubr.f32.mxu0 0.0
  %8509 = vmatmul.mubr.f32.gmra.mxu0 %v8437
  %v8510 = vpop.f32.mrf.mxu0
  %v8511 = vadd.f32 0.0, %v8510
  %v8512 = vpop.f32.mrf.mxu0
  %8513 = vdwg.mxu0
  %v8514 = vcombine.low %v7939, %v8101
  %v8515 = vcombine.high %v7939, %v8101
  %v8517 = vunpack.c.l.s4 1983009808
  %v8518 = vunpack.c.0.s8 %v8517
  %v8519 = vlaneseq
  %v8520 = vshrl.u32 %v8519, 7
  %v8521 = vsub.s32 %v8518, %v8520
  %v8522 = vrot.slane %v8514, %v8521
  %v8524 = vunpack.c.l.s4 1983009808
  %v8525 = vunpack.c.0.s8 %v8524
  %v8526 = vlaneseq
  %v8527 = vshrl.u32 %v8526, 7
  %v8528 = vsub.s32 %v8525, %v8527
  %v8529 = vrot.slane %v8515, %v8528
  %v8530 = vcombine.low %v8020, %v8182
  %v8531 = vcombine.high %v8020, %v8182
  %v8533 = vunpack.c.l.s4 1983009808
  %v8534 = vunpack.c.0.s8 %v8533
  %v8535 = vlaneseq
  %v8536 = vshrl.u32 %v8535, 7
  %v8537 = vsub.s32 %v8534, %v8536
  %v8538 = vrot.slane %v8530, %v8537
  %v8540 = vunpack.c.l.s4 1983009808
  %v8541 = vunpack.c.0.s8 %v8540
  %v8542 = vlaneseq
  %v8543 = vshrl.u32 %v8542, 7
  %v8544 = vsub.s32 %v8541, %v8543
  %v8545 = vrot.slane %v8531, %v8544
  %v8546 = vcombine.low %v8263, %v8425
  %v8547 = vcombine.high %v8263, %v8425
  %v8549 = vunpack.c.l.s4 1983009808
  %v8550 = vunpack.c.0.s8 %v8549
  %v8551 = vlaneseq
  %v8552 = vshrl.u32 %v8551, 7
  %v8553 = vsub.s32 %v8550, %v8552
  %v8554 = vrot.slane %v8546, %v8553
  %v8556 = vunpack.c.l.s4 1983009808
  %v8557 = vunpack.c.0.s8 %v8556
  %v8558 = vlaneseq
  %v8559 = vshrl.u32 %v8558, 7
  %v8560 = vsub.s32 %v8557, %v8559
  %v8561 = vrot.slane %v8547, %v8560
  %v8562 = vcombine.low %v8344, %v8506
  %v8563 = vcombine.high %v8344, %v8506
  %v8565 = vunpack.c.l.s4 1983009808
  %v8566 = vunpack.c.0.s8 %v8565
  %v8567 = vlaneseq
  %v8568 = vshrl.u32 %v8567, 7
  %v8569 = vsub.s32 %v8566, %v8568
  %v8570 = vrot.slane %v8562, %v8569
  %v8572 = vunpack.c.l.s4 1983009808
  %v8573 = vunpack.c.0.s8 %v8572
  %v8574 = vlaneseq
  %v8575 = vshrl.u32 %v8574, 7
  %v8576 = vsub.s32 %v8573, %v8575
  %v8577 = vrot.slane %v8563, %v8576
  %v8578 = vcombine.low %v8522, %v8538
  %v8579 = vcombine.high %v8522, %v8538
  %v8581 = vunpack.c.l.s4 1934713408
  %v8582 = vunpack.c.0.s8 %v8581
  %v8583 = vlaneseq
  %v8584 = vshrl.u32 %v8583, 7
  %v8585 = vsub.s32 %v8582, %v8584
  %v8586 = vrot.slane %v8578, %v8585
  %v8588 = vunpack.c.l.s4 1934713408
  %v8589 = vunpack.c.0.s8 %v8588
  %v8590 = vlaneseq
  %v8591 = vshrl.u32 %v8590, 7
  %v8592 = vsub.s32 %v8589, %v8591
  %v8593 = vrot.slane %v8579, %v8592
  %v8594 = vcombine.low %v8529, %v8545
  %v8595 = vcombine.high %v8529, %v8545
  %v8597 = vunpack.c.l.s4 1934713408
  %v8598 = vunpack.c.0.s8 %v8597
  %v8599 = vlaneseq
  %v8600 = vshrl.u32 %v8599, 7
  %v8601 = vsub.s32 %v8598, %v8600
  %v8602 = vrot.slane %v8594, %v8601
  %v8604 = vunpack.c.l.s4 1934713408
  %v8605 = vunpack.c.0.s8 %v8604
  %v8606 = vlaneseq
  %v8607 = vshrl.u32 %v8606, 7
  %v8608 = vsub.s32 %v8605, %v8607
  %v8609 = vrot.slane %v8595, %v8608
  %v8610 = vcombine.low %v8554, %v8570
  %v8611 = vcombine.high %v8554, %v8570
  %v8613 = vunpack.c.l.s4 1934713408
  %v8614 = vunpack.c.0.s8 %v8613
  %v8615 = vlaneseq
  %v8616 = vshrl.u32 %v8615, 7
  %v8617 = vsub.s32 %v8614, %v8616
  %v8618 = vrot.slane %v8610, %v8617
  %v8620 = vunpack.c.l.s4 1934713408
  %v8621 = vunpack.c.0.s8 %v8620
  %v8622 = vlaneseq
  %v8623 = vshrl.u32 %v8622, 7
  %v8624 = vsub.s32 %v8621, %v8623
  %v8625 = vrot.slane %v8611, %v8624
  %v8626 = vcombine.low %v8561, %v8577
  %v8627 = vcombine.high %v8561, %v8577
  %v8629 = vunpack.c.l.s4 1934713408
  %v8630 = vunpack.c.0.s8 %v8629
  %v8631 = vlaneseq
  %v8632 = vshrl.u32 %v8631, 7
  %v8633 = vsub.s32 %v8630, %v8632
  %v8634 = vrot.slane %v8626, %v8633
  %v8636 = vunpack.c.l.s4 1934713408
  %v8637 = vunpack.c.0.s8 %v8636
  %v8638 = vlaneseq
  %v8639 = vshrl.u32 %v8638, 7
  %v8640 = vsub.s32 %v8637, %v8639
  %v8641 = vrot.slane %v8627, %v8640
  %v8642 = vcombine.low %v8586, %v8618
  %v8643 = vcombine.high %v8586, %v8618
  %v8644 = vcombine.low %v8593, %v8625
  %v8645 = vcombine.high %v8593, %v8625
  %v8646 = vcombine.low %v8602, %v8634
  %v8647 = vcombine.high %v8602, %v8634
  %v8648 = vcombine.low %v8609, %v8641
  %v8649 = vcombine.high %v8609, %v8641
  %v8650 = vcombine.low %v7944, %v8106
  %v8651 = vcombine.high %v7944, %v8106
  %v8653 = vunpack.c.l.s4 1983009808
  %v8654 = vunpack.c.0.s8 %v8653
  %v8655 = vlaneseq
  %v8656 = vshrl.u32 %v8655, 7
  %v8657 = vsub.s32 %v8654, %v8656
  %v8658 = vrot.slane %v8650, %v8657
  %v8660 = vunpack.c.l.s4 1983009808
  %v8661 = vunpack.c.0.s8 %v8660
  %v8662 = vlaneseq
  %v8663 = vshrl.u32 %v8662, 7
  %v8664 = vsub.s32 %v8661, %v8663
  %v8665 = vrot.slane %v8651, %v8664
  %v8666 = vcombine.low %v8025, %v8187
  %v8667 = vcombine.high %v8025, %v8187
  %v8669 = vunpack.c.l.s4 1983009808
  %v8670 = vunpack.c.0.s8 %v8669
  %v8671 = vlaneseq
  %v8672 = vshrl.u32 %v8671, 7
  %v8673 = vsub.s32 %v8670, %v8672
  %v8674 = vrot.slane %v8666, %v8673
  %v8676 = vunpack.c.l.s4 1983009808
  %v8677 = vunpack.c.0.s8 %v8676
  %v8678 = vlaneseq
  %v8679 = vshrl.u32 %v8678, 7
  %v8680 = vsub.s32 %v8677, %v8679
  %v8681 = vrot.slane %v8667, %v8680
  %v8682 = vcombine.low %v8268, %v8430
  %v8683 = vcombine.high %v8268, %v8430
  %v8685 = vunpack.c.l.s4 1983009808
  %v8686 = vunpack.c.0.s8 %v8685
  %v8687 = vlaneseq
  %v8688 = vshrl.u32 %v8687, 7
  %v8689 = vsub.s32 %v8686, %v8688
  %v8690 = vrot.slane %v8682, %v8689
  %v8692 = vunpack.c.l.s4 1983009808
  %v8693 = vunpack.c.0.s8 %v8692
  %v8694 = vlaneseq
  %v8695 = vshrl.u32 %v8694, 7
  %v8696 = vsub.s32 %v8693, %v8695
  %v8697 = vrot.slane %v8683, %v8696
  %v8698 = vcombine.low %v8349, %v8511
  %v8699 = vcombine.high %v8349, %v8511
  %v8701 = vunpack.c.l.s4 1983009808
  %v8702 = vunpack.c.0.s8 %v8701
  %v8703 = vlaneseq
  %v8704 = vshrl.u32 %v8703, 7
  %v8705 = vsub.s32 %v8702, %v8704
  %v8706 = vrot.slane %v8698, %v8705
  %v8708 = vunpack.c.l.s4 1983009808
  %v8709 = vunpack.c.0.s8 %v8708
  %v8710 = vlaneseq
  %v8711 = vshrl.u32 %v8710, 7
  %v8712 = vsub.s32 %v8709, %v8711
  %v8713 = vrot.slane %v8699, %v8712
  %v8714 = vcombine.low %v8658, %v8674
  %v8715 = vcombine.high %v8658, %v8674
  %v8717 = vunpack.c.l.s4 1934713408
  %v8718 = vunpack.c.0.s8 %v8717
  %v8719 = vlaneseq
  %v8720 = vshrl.u32 %v8719, 7
  %v8721 = vsub.s32 %v8718, %v8720
  %v8722 = vrot.slane %v8714, %v8721
  %v8724 = vunpack.c.l.s4 1934713408
  %v8725 = vunpack.c.0.s8 %v8724
  %v8726 = vlaneseq
  %v8727 = vshrl.u32 %v8726, 7
  %v8728 = vsub.s32 %v8725, %v8727
  %v8729 = vrot.slane %v8715, %v8728
  %v8730 = vcombine.low %v8665, %v8681
  %v8731 = vcombine.high %v8665, %v8681
  %v8733 = vunpack.c.l.s4 1934713408
  %v8734 = vunpack.c.0.s8 %v8733
  %v8735 = vlaneseq
  %v8736 = vshrl.u32 %v8735, 7
  %v8737 = vsub.s32 %v8734, %v8736
  %v8738 = vrot.slane %v8730, %v8737
  %v8740 = vunpack.c.l.s4 1934713408
  %v8741 = vunpack.c.0.s8 %v8740
  %v8742 = vlaneseq
  %v8743 = vshrl.u32 %v8742, 7
  %v8744 = vsub.s32 %v8741, %v8743
  %v8745 = vrot.slane %v8731, %v8744
  %v8746 = vcombine.low %v8690, %v8706
  %v8747 = vcombine.high %v8690, %v8706
  %v8749 = vunpack.c.l.s4 1934713408
  %v8750 = vunpack.c.0.s8 %v8749
  %v8751 = vlaneseq
  %v8752 = vshrl.u32 %v8751, 7
  %v8753 = vsub.s32 %v8750, %v8752
  %v8754 = vrot.slane %v8746, %v8753
  %v8756 = vunpack.c.l.s4 1934713408
  %v8757 = vunpack.c.0.s8 %v8756
  %v8758 = vlaneseq
  %v8759 = vshrl.u32 %v8758, 7
  %v8760 = vsub.s32 %v8757, %v8759
  %v8761 = vrot.slane %v8747, %v8760
  %v8762 = vcombine.low %v8697, %v8713
  %v8763 = vcombine.high %v8697, %v8713
  %v8765 = vunpack.c.l.s4 1934713408
  %v8766 = vunpack.c.0.s8 %v8765
  %v8767 = vlaneseq
  %v8768 = vshrl.u32 %v8767, 7
  %v8769 = vsub.s32 %v8766, %v8768
  %v8770 = vrot.slane %v8762, %v8769
  %v8772 = vunpack.c.l.s4 1934713408
  %v8773 = vunpack.c.0.s8 %v8772
  %v8774 = vlaneseq
  %v8775 = vshrl.u32 %v8774, 7
  %v8776 = vsub.s32 %v8773, %v8775
  %v8777 = vrot.slane %v8763, %v8776
  %v8778 = vcombine.low %v8722, %v8754
  %v8779 = vcombine.high %v8722, %v8754
  %v8780 = vcombine.low %v8729, %v8761
  %v8781 = vcombine.high %v8729, %v8761
  %v8782 = vcombine.low %v8738, %v8770
  %v8783 = vcombine.high %v8738, %v8770
  %v8784 = vcombine.low %v8745, %v8777
  %v8785 = vcombine.high %v8745, %v8777
  %v8786 = vcombine.low %v8642, %v8644
  %v8787 = vcombine.high %v8642, %v8644
  %v8789 = vunpack.c.l.s4 1983009808
  %v8790 = vunpack.c.0.s8 %v8789
  %v8791 = vlaneseq
  %v8792 = vshrl.u32 %v8791, 7
  %v8793 = vsub.s32 %v8790, %v8792
  %v8794 = vrot.slane %v8786, %v8793
  %v8796 = vunpack.c.l.s4 1983009808
  %v8797 = vunpack.c.0.s8 %v8796
  %v8798 = vlaneseq
  %v8799 = vshrl.u32 %v8798, 7
  %v8800 = vsub.s32 %v8797, %v8799
  %v8801 = vrot.slane %v8787, %v8800
  %v8802 = vcombine.low %v8643, %v8645
  %v8803 = vcombine.high %v8643, %v8645
  %v8805 = vunpack.c.l.s4 1983009808
  %v8806 = vunpack.c.0.s8 %v8805
  %v8807 = vlaneseq
  %v8808 = vshrl.u32 %v8807, 7
  %v8809 = vsub.s32 %v8806, %v8808
  %v8810 = vrot.slane %v8802, %v8809
  %v8812 = vunpack.c.l.s4 1983009808
  %v8813 = vunpack.c.0.s8 %v8812
  %v8814 = vlaneseq
  %v8815 = vshrl.u32 %v8814, 7
  %v8816 = vsub.s32 %v8813, %v8815
  %v8817 = vrot.slane %v8803, %v8816
  %v8818 = vcombine.low %v8646, %v8648
  %v8819 = vcombine.high %v8646, %v8648
  %v8821 = vunpack.c.l.s4 1983009808
  %v8822 = vunpack.c.0.s8 %v8821
  %v8823 = vlaneseq
  %v8824 = vshrl.u32 %v8823, 7
  %v8825 = vsub.s32 %v8822, %v8824
  %v8826 = vrot.slane %v8818, %v8825
  %v8828 = vunpack.c.l.s4 1983009808
  %v8829 = vunpack.c.0.s8 %v8828
  %v8830 = vlaneseq
  %v8831 = vshrl.u32 %v8830, 7
  %v8832 = vsub.s32 %v8829, %v8831
  %v8833 = vrot.slane %v8819, %v8832
  %v8834 = vcombine.low %v8647, %v8649
  %v8835 = vcombine.high %v8647, %v8649
  %v8837 = vunpack.c.l.s4 1983009808
  %v8838 = vunpack.c.0.s8 %v8837
  %v8839 = vlaneseq
  %v8840 = vshrl.u32 %v8839, 7
  %v8841 = vsub.s32 %v8838, %v8840
  %v8842 = vrot.slane %v8834, %v8841
  %v8844 = vunpack.c.l.s4 1983009808
  %v8845 = vunpack.c.0.s8 %v8844
  %v8846 = vlaneseq
  %v8847 = vshrl.u32 %v8846, 7
  %v8848 = vsub.s32 %v8845, %v8847
  %v8849 = vrot.slane %v8835, %v8848
  %v8850 = vcombine.low %v8794, %v8810
  %v8851 = vcombine.high %v8794, %v8810
  %v8853 = vunpack.c.l.s4 1934713408
  %v8854 = vunpack.c.0.s8 %v8853
  %v8855 = vlaneseq
  %v8856 = vshrl.u32 %v8855, 7
  %v8857 = vsub.s32 %v8854, %v8856
  %v8858 = vrot.slane %v8850, %v8857
  %v8860 = vunpack.c.l.s4 1934713408
  %v8861 = vunpack.c.0.s8 %v8860
  %v8862 = vlaneseq
  %v8863 = vshrl.u32 %v8862, 7
  %v8864 = vsub.s32 %v8861, %v8863
  %v8865 = vrot.slane %v8851, %v8864
  %v8866 = vcombine.low %v8801, %v8817
  %v8867 = vcombine.high %v8801, %v8817
  %v8869 = vunpack.c.l.s4 1934713408
  %v8870 = vunpack.c.0.s8 %v8869
  %v8871 = vlaneseq
  %v8872 = vshrl.u32 %v8871, 7
  %v8873 = vsub.s32 %v8870, %v8872
  %v8874 = vrot.slane %v8866, %v8873
  %v8876 = vunpack.c.l.s4 1934713408
  %v8877 = vunpack.c.0.s8 %v8876
  %v8878 = vlaneseq
  %v8879 = vshrl.u32 %v8878, 7
  %v8880 = vsub.s32 %v8877, %v8879
  %v8881 = vrot.slane %v8867, %v8880
  %v8882 = vcombine.low %v8826, %v8842
  %v8883 = vcombine.high %v8826, %v8842
  %v8885 = vunpack.c.l.s4 1934713408
  %v8886 = vunpack.c.0.s8 %v8885
  %v8887 = vlaneseq
  %v8888 = vshrl.u32 %v8887, 7
  %v8889 = vsub.s32 %v8886, %v8888
  %v8890 = vrot.slane %v8882, %v8889
  %v8892 = vunpack.c.l.s4 1934713408
  %v8893 = vunpack.c.0.s8 %v8892
  %v8894 = vlaneseq
  %v8895 = vshrl.u32 %v8894, 7
  %v8896 = vsub.s32 %v8893, %v8895
  %v8897 = vrot.slane %v8883, %v8896
  %v8898 = vcombine.low %v8833, %v8849
  %v8899 = vcombine.high %v8833, %v8849
  %v8901 = vunpack.c.l.s4 1934713408
  %v8902 = vunpack.c.0.s8 %v8901
  %v8903 = vlaneseq
  %v8904 = vshrl.u32 %v8903, 7
  %v8905 = vsub.s32 %v8902, %v8904
  %v8906 = vrot.slane %v8898, %v8905
  %v8908 = vunpack.c.l.s4 1934713408
  %v8909 = vunpack.c.0.s8 %v8908
  %v8910 = vlaneseq
  %v8911 = vshrl.u32 %v8910, 7
  %v8912 = vsub.s32 %v8909, %v8911
  %v8913 = vrot.slane %v8899, %v8912
  %v8914 = vcombine.low %v8858, %v8890
  %v8915 = vcombine.high %v8858, %v8890
  %v8916 = vcombine.low %v8865, %v8897
  %v8917 = vcombine.high %v8865, %v8897
  %v8918 = vcombine.low %v8874, %v8906
  %v8919 = vcombine.high %v8874, %v8906
  %v8920 = vcombine.low %v8881, %v8913
  %v8921 = vcombine.high %v8881, %v8913
  %v8922 = vcombine.low %v8778, %v8780
  %v8923 = vcombine.high %v8778, %v8780
  %v8925 = vunpack.c.l.s4 1983009808
  %v8926 = vunpack.c.0.s8 %v8925
  %v8927 = vlaneseq
  %v8928 = vshrl.u32 %v8927, 7
  %v8929 = vsub.s32 %v8926, %v8928
  %v8930 = vrot.slane %v8922, %v8929
  %v8932 = vunpack.c.l.s4 1983009808
  %v8933 = vunpack.c.0.s8 %v8932
  %v8934 = vlaneseq
  %v8935 = vshrl.u32 %v8934, 7
  %v8936 = vsub.s32 %v8933, %v8935
  %v8937 = vrot.slane %v8923, %v8936
  %v8938 = vcombine.low %v8779, %v8781
  %v8939 = vcombine.high %v8779, %v8781
  %v8941 = vunpack.c.l.s4 1983009808
  %v8942 = vunpack.c.0.s8 %v8941
  %v8943 = vlaneseq
  %v8944 = vshrl.u32 %v8943, 7
  %v8945 = vsub.s32 %v8942, %v8944
  %v8946 = vrot.slane %v8938, %v8945
  %v8948 = vunpack.c.l.s4 1983009808
  %v8949 = vunpack.c.0.s8 %v8948
  %v8950 = vlaneseq
  %v8951 = vshrl.u32 %v8950, 7
  %v8952 = vsub.s32 %v8949, %v8951
  %v8953 = vrot.slane %v8939, %v8952
  %v8954 = vcombine.low %v8782, %v8784
  %v8955 = vcombine.high %v8782, %v8784
  %v8957 = vunpack.c.l.s4 1983009808
  %v8958 = vunpack.c.0.s8 %v8957
  %v8959 = vlaneseq
  %v8960 = vshrl.u32 %v8959, 7
  %v8961 = vsub.s32 %v8958, %v8960
  %v8962 = vrot.slane %v8954, %v8961
  %v8964 = vunpack.c.l.s4 1983009808
  %v8965 = vunpack.c.0.s8 %v8964
  %v8966 = vlaneseq
  %v8967 = vshrl.u32 %v8966, 7
  %v8968 = vsub.s32 %v8965, %v8967
  %v8969 = vrot.slane %v8955, %v8968
  %v8970 = vcombine.low %v8783, %v8785
  %v8971 = vcombine.high %v8783, %v8785
  %v8973 = vunpack.c.l.s4 1983009808
  %v8974 = vunpack.c.0.s8 %v8973
  %v8975 = vlaneseq
  %v8976 = vshrl.u32 %v8975, 7
  %v8977 = vsub.s32 %v8974, %v8976
  %v8978 = vrot.slane %v8970, %v8977
  %v8980 = vunpack.c.l.s4 1983009808
  %v8981 = vunpack.c.0.s8 %v8980
  %v8982 = vlaneseq
  %v8983 = vshrl.u32 %v8982, 7
  %v8984 = vsub.s32 %v8981, %v8983
  %v8985 = vrot.slane %v8971, %v8984
  %v8986 = vcombine.low %v8930, %v8946
  %v8987 = vcombine.high %v8930, %v8946
  %v8989 = vunpack.c.l.s4 1934713408
  %v8990 = vunpack.c.0.s8 %v8989
  %v8991 = vlaneseq
  %v8992 = vshrl.u32 %v8991, 7
  %v8993 = vsub.s32 %v8990, %v8992
  %v8994 = vrot.slane %v8986, %v8993
  %v8996 = vunpack.c.l.s4 1934713408
  %v8997 = vunpack.c.0.s8 %v8996
  %v8998 = vlaneseq
  %v8999 = vshrl.u32 %v8998, 7
  %v9000 = vsub.s32 %v8997, %v8999
  %v9001 = vrot.slane %v8987, %v9000
  %v9002 = vcombine.low %v8937, %v8953
  %v9003 = vcombine.high %v8937, %v8953
  %v9005 = vunpack.c.l.s4 1934713408
  %v9006 = vunpack.c.0.s8 %v9005
  %v9007 = vlaneseq
  %v9008 = vshrl.u32 %v9007, 7
  %v9009 = vsub.s32 %v9006, %v9008
  %v9010 = vrot.slane %v9002, %v9009
  %v9012 = vunpack.c.l.s4 1934713408
  %v9013 = vunpack.c.0.s8 %v9012
  %v9014 = vlaneseq
  %v9015 = vshrl.u32 %v9014, 7
  %v9016 = vsub.s32 %v9013, %v9015
  %v9017 = vrot.slane %v9003, %v9016
  %v9018 = vcombine.low %v8962, %v8978
  %v9019 = vcombine.high %v8962, %v8978
  %v9021 = vunpack.c.l.s4 1934713408
  %v9022 = vunpack.c.0.s8 %v9021
  %v9023 = vlaneseq
  %v9024 = vshrl.u32 %v9023, 7
  %v9025 = vsub.s32 %v9022, %v9024
  %v9026 = vrot.slane %v9018, %v9025
  %v9028 = vunpack.c.l.s4 1934713408
  %v9029 = vunpack.c.0.s8 %v9028
  %v9030 = vlaneseq
  %v9031 = vshrl.u32 %v9030, 7
  %v9032 = vsub.s32 %v9029, %v9031
  %v9033 = vrot.slane %v9019, %v9032
  %v9034 = vcombine.low %v8969, %v8985
  %v9035 = vcombine.high %v8969, %v8985
  %v9037 = vunpack.c.l.s4 1934713408
  %v9038 = vunpack.c.0.s8 %v9037
  %v9039 = vlaneseq
  %v9040 = vshrl.u32 %v9039, 7
  %v9041 = vsub.s32 %v9038, %v9040
  %v9042 = vrot.slane %v9034, %v9041
  %v9044 = vunpack.c.l.s4 1934713408
  %v9045 = vunpack.c.0.s8 %v9044
  %v9046 = vlaneseq
  %v9047 = vshrl.u32 %v9046, 7
  %v9048 = vsub.s32 %v9045, %v9047
  %v9049 = vrot.slane %v9035, %v9048
  %v9050 = vcombine.low %v8994, %v9026
  %v9051 = vcombine.high %v8994, %v9026
  %v9052 = vcombine.low %v9001, %v9033
  %v9053 = vcombine.high %v9001, %v9033
  %v9054 = vcombine.low %v9010, %v9042
  %v9055 = vcombine.high %v9010, %v9042
  %v9056 = vcombine.low %v9017, %v9049
  %v9057 = vcombine.high %v9017, %v9049
  %9060 = vrot.lane.b32.xlu0 %v8915, 32
  %v9061 = vpop.permute.xlu0 %9060
  %9062 = vrot.lane.b32.xlu0 %v9051, 32
  %v9063 = vpop.permute.xlu0 %9062
  %9068 = vrot.lane.b32.xlu0 %v8916, 64
  %v9069 = vpop.permute.xlu0 %9068
  %9070 = vrot.lane.b32.xlu0 %v9052, 64
  %v9071 = vpop.permute.xlu0 %9070
  %9076 = vrot.lane.b32.xlu0 %v8917, 96
  %v9077 = vpop.permute.xlu0 %9076
  %9078 = vrot.lane.b32.xlu0 %v9053, 96
  %v9079 = vpop.permute.xlu0 %9078
  %9084 = vrot.lane.b32.xlu0 %v8919, 32
  %v9085 = vpop.permute.xlu0 %9084
  %9086 = vrot.lane.b32.xlu0 %v9055, 32
  %v9087 = vpop.permute.xlu0 %9086
  %9092 = vrot.lane.b32.xlu0 %v8920, 64
  %v9093 = vpop.permute.xlu0 %9092
  %9094 = vrot.lane.b32.xlu0 %v9056, 64
  %v9095 = vpop.permute.xlu0 %9094
  %9100 = vrot.lane.b32.xlu0 %v8921, 96
  %v9101 = vpop.permute.xlu0 %9100
  %9102 = vrot.lane.b32.xlu0 %v9057, 96
  %v9103 = vpop.permute.xlu0 %9102
  %v9106 = vsel %vm380, %v8914, %v9061
  %v9107 = vsel %vm380, %v9050, %v9063
  %v9108 = vsel %vm4655, %v9106, %v9069
  %v9109 = vsel %vm4655, %v9107, %v9071
  %v9110 = vsel %vm4658, %v9108, %v9077
  %v9111 = vsel %vm4658, %v9109, %v9079
  %v9112 = vsel %vm380, %v8918, %v9085
  %v9113 = vsel %vm380, %v9054, %v9087
  %v9114 = vsel %vm4655, %v9112, %v9093
  %v9115 = vsel %vm4655, %v9113, %v9095
  %v9116 = vsel %vm4658, %v9114, %v9101
  %v9117 = vsel %vm4658, %v9115, %v9103
  %9118 = vmatprep.subr.mxu0 %v260
  %9119 = vmatpush1.msra.mxu0 %v259
  %9120 = vmatprep.subr.mxu0 %v258
  %9121 = vmatpush1.msra.mxu0 %v257
  %9122 = vmatprep.subr.mxu0 %v256
  %9123 = vmatpush1.msra.mxu0 %v255
  %9124 = vmatprep.subr.mxu0 %v254
  %9125 = vmatpush1.msra.mxu0 %v253
  %9126 = vmatprep.subr.mxu0 %v252
  %9127 = vmatpush1.msra.mxu0 %v251
  %9128 = vmatprep.subr.mxu0 %v250
  %9129 = vmatpush1.msra.mxu0 %v249
  %9130 = vmatprep.subr.mxu0 %v248
  %9131 = vmatpush1.msra.mxu0 %v247
  %9132 = vmatprep.subr.mxu0 %v246
  %9133 = vmatpush1.msra.mxu0 %v245
  %9134 = vmatprep.subr.mxu0 %v244
  %9135 = vmatpush1.msra.mxu0 %v243
  %9136 = vmatprep.subr.mxu0 %v242
  %9137 = vmatpush1.msra.mxu0 %v241
  %9138 = vmatprep.subr.mxu0 %v240
  %9139 = vmatpush1.msra.mxu0 %v239
  %9140 = vmatprep.subr.mxu0 %v238
  %9141 = vmatpush1.msra.mxu0 %v237
  %9142 = vmatprep.subr.mxu0 %v236
  %9143 = vmatpush1.msra.mxu0 %v235
  %9144 = vmatprep.subr.mxu0 %v234
  %9145 = vmatpush1.msra.mxu0 %v233
  %9146 = vmatprep.subr.mxu0 %v232
  %9147 = vmatpush1.msra.mxu0 %v231
  %9148 = vmatprep.subr.mxu0 %v230
  %9149 = vmatpush1.msra.mxu0 %v229
  %9150 = vmatprep.subr.mxu0 %v292
  %9151 = vmatpush2.msra.mxu0 %v291
  %9152 = vmatprep.subr.mxu0 %v290
  %9153 = vmatpush2.msra.mxu0 %v289
  %9154 = vmatprep.subr.mxu0 %v288
  %9155 = vmatpush2.msra.mxu0 %v287
  %9156 = vmatprep.subr.mxu0 %v286
  %9157 = vmatpush2.msra.mxu0 %v285
  %9158 = vmatprep.subr.mxu0 %v284
  %9159 = vmatpush2.msra.mxu0 %v283
  %9160 = vmatprep.subr.mxu0 %v282
  %9161 = vmatpush2.msra.mxu0 %v281
  %9162 = vmatprep.subr.mxu0 %v280
  %9163 = vmatpush2.msra.mxu0 %v279
  %9164 = vmatprep.subr.mxu0 %v278
  %9165 = vmatpush2.msra.mxu0 %v277
  %9166 = vmatprep.subr.mxu0 %v276
  %9167 = vmatpush2.msra.mxu0 %v275
  %9168 = vmatprep.subr.mxu0 %v274
  %9169 = vmatpush2.msra.mxu0 %v273
  %9170 = vmatprep.subr.mxu0 %v272
  %9171 = vmatpush2.msra.mxu0 %v271
  %9172 = vmatprep.subr.mxu0 %v270
  %9173 = vmatpush2.msra.mxu0 %v269
  %9174 = vmatprep.subr.mxu0 %v268
  %9175 = vmatpush2.msra.mxu0 %v267
  %9176 = vmatprep.subr.mxu0 %v266
  %9177 = vmatpush2.msra.mxu0 %v265
  %9178 = vmatprep.subr.mxu0 %v264
  %9179 = vmatpush2.msra.mxu0 %v263
  %9180 = vmatprep.subr.mxu0 %v262
  %9181 = vmatpush2.msra.mxu0 %v261
  %9182 = vmatprep.mubr.f32.mxu0 %v9116
  %9183 = vmatmul.mubr.f32.gmra.mxu0 %v9110
  %v9184 = vpop.f32.mrf.mxu0
  %v9185 = vadd.f32 %v4671, %v9184
  %v9186 = vpop.f32.mrf.mxu0
  %v9187 = vadd.f32 %v4675, %v9186
  %9188 = vmatprep.mubr.f32.mxu0 %v9117
  %9189 = vmatmul.mubr.f32.gmra.mxu0 %v9111
  %v9190 = vpop.f32.mrf.mxu0
  %v9191 = vadd.f32 %v4671, %v9190
  %v9192 = vpop.f32.mrf.mxu0
  %v9193 = vadd.f32 %v4675, %v9192
  %9194 = vdwg.mxu0
  %v9195 = vadd.f32 %v9185, %v4764
  %v9196 = vadd.f32 %v9187, %v4765
  %v9197 = vadd.f32 %v9191, %v4766
  %v9198 = vadd.f32 %v9193, %v4767
  %s9199 = scalar_lea.vmem %s8, 32
  %9200 = vst [vmem:[%s9199] sm:$0xff] %v9195
  %9201 = vst [vmem:[%s9199 + $0x8] sm:$0xff] %v9196
  %9202 = vst [vmem:[%s9199 + $0x10] sm:$0xff] %v9197
  %9203 = vst [vmem:[%s9199 + $0x18] sm:$0xff] %v9198
  // Predicated region
  $region34: #{cross_attention_forward.1} parent=0 // pred_check
    _
  $region35: #{cross_attention_forward.1} parent=0 // pred_check_branch
    %9205 = sbr.rel (0) target = $region37
  $region36: #{cross_attention_forward.1} parent=0 // pred_region
    _
  $region37: #{cross_attention_forward.1} parent=0 // pred_fallthru
    _
  // Predicated region
  $region38: #{cross_attention_forward.1} parent=0 // pred_check
    _
  $region39: #{cross_attention_forward.1} parent=0 // pred_check_branch
    %9207 = sbr.rel (0) target = $region41
  $region40: #{cross_attention_forward.1} parent=0 // pred_region
    _
  $region41: #{cross_attention_forward.1} parent=0 // pred_fallthru
    _

</llo_original>
